<compile_context>
chip_gen: v7x
topology: tpu7x:2x2x1
jax: 0.10.0
libtpu: 0.0.40
codegen_flags: <defaults>
</compile_context>

<pallas_src>
import numpy as np
import jax
import jax.numpy as jnp
from jax.experimental import pallas as pl
from jax.experimental.pallas import tpu as pltpu

# ---- config (mirrors cfg_AttentionModule) -----------------------------------
SIZE = 8                      # sample_params.size  -> downsample to SIZE x SIZE
V = SIZE * SIZE               # num_verts_in
S_OUT = 4                     # sqrt(num_verts_out)
NUM_VERTS_OUT = S_OUT * S_OUT
IN_CHANNELS = (4, 16, 32)
OUT_CHANNELS = (16, 32, 1)
MASK_SIZE = 1
USE_MASK = True

# packed-weight canvas layout: per layer, rows [0:cin] = W_l, [cin:2cin] = W_r,
# row [2cin] = bias; columns give each layer its own slab.
_LAYER_DEFS = (
    (IN_CHANNELS[0], OUT_CHANNELS[0], 0),                                     # conv_1
    (OUT_CHANNELS[0], 1, OUT_CHANNELS[0]),                                    # skip_1
    (IN_CHANNELS[1], OUT_CHANNELS[1], OUT_CHANNELS[0] + 1),                   # conv_2
    (OUT_CHANNELS[1], 1, OUT_CHANNELS[0] + 1 + OUT_CHANNELS[1]),              # skip_2
    (IN_CHANNELS[2], OUT_CHANNELS[2], OUT_CHANNELS[0] + 2 + OUT_CHANNELS[1]), # conv_3
)
_W_ROWS = 2 * max(IN_CHANNELS) + 1                     # 65
_W_COLS = OUT_CHANNELS[0] + OUT_CHANNELS[1] + 3        # 51


def _round_up(x, m):
    return ((x + m - 1) // m) * m


# ---- constant matrices (plain numpy glue) ------------------------------------
def _bilinear_matrix(src, dst):
    # 1-D bilinear resize matrix (align_corners=False), shape (dst, src).
    m = np.zeros((dst, src), np.float32)
    scale = src / dst
    for i in range(dst):
        s = max((i + 0.5) * scale - 0.5, 0.0)
        i0 = min(int(np.floor(s)), src - 1)
        i1 = min(i0 + 1, src - 1)
        f = s - i0
        m[i, i0] += 1.0 - f
        m[i, i1] += f
    return m


def _downsample_matrix(h, w):
    # F.interpolate(mode='bilinear', align_corners=False) to SIZE x SIZE, as a
    # (V, h*w) matrix on the row-major flattened spatial dims.
    return np.kron(_bilinear_matrix(h, SIZE), _bilinear_matrix(w, SIZE))


def _grid_mean_adjacency(s):
    # TODO(synk): original loads verts.pt / edges.pt produced by image2graph();
    # we synthesize verts = arange(V) and a 4-neighbour grid graph with mean
    # aggregation (SAGEConv default), batched independently per image.
    n = s * s
    adj = np.zeros((n, n), np.float32)
    for i in range(s):
        for j in range(s):
            vtx = i * s + j
            for di, dj in ((-1, 0), (1, 0), (0, -1), (0, 1)):
                ni, nj = i + di, j + dj
                if 0 <= ni < s and 0 <= nj < s:
                    adj[vtx, ni * s + nj] = 1.0
    deg = adj.sum(axis=1, keepdims=True)
    return adj / np.maximum(deg, 1.0)


def _pool_matrix(s_in, s_out):
    # AdaptiveAvgPool2d((s_out, s_out)) on an s_in x s_in map as a
    # (s_out^2, s_in^2) matmul over the flattened row-major map.
    assert s_in % s_out == 0
    k = s_in // s_out
    p = np.zeros((s_out * s_out, s_in * s_in), np.float32)
    for oi in range(s_out):
        for oj in range(s_out):
            row = oi * s_out + oj
            for di in range(k):
                for dj in range(k):
                    p[row, (oi * k + di) * s_in + (oj * k + dj)] = 1.0 / (k * k)
    return p


def _border_mask_flat(s, m):
    mask = np.zeros((s, s), np.float32)
    mask[m:-m, m:-m] = 1.0
    return mask.reshape(-1)


def _constants(h, w):
    """Packed constant canvases: (D | A) and (P*mask | P@(1-mask))."""
    d = _downsample_matrix(h, w)                       # (V, h*w)
    a = _grid_mean_adjacency(SIZE)                     # (V, V)
    p = _pool_matrix(SIZE, S_OUT)                      # (Q, V)
    mask = (_border_mask_flat(SIZE, MASK_SIZE) if USE_MASK
            else np.ones(V, np.float32))
    # mask + avgpool fold:  P @ (mask*h3 + fmin*(1-mask)) = Pm @ h3 + fmin * r
    pm = p * mask[None, :]                             # (Q, V)
    r = p @ (1.0 - mask)                               # (Q,)
    da = np.concatenate([d, a], axis=1)                # (V, h*w + V)
    pmr = np.concatenate([pm, r[:, None]], axis=1)     # (Q, V + 1)
    return jnp.asarray(da, jnp.float32), jnp.asarray(pmr, jnp.float32)


# ---- deterministic parameter init (SAGEConv: lin_l has bias, lin_r does not) -
def init_params(key):
    params = []
    for cin, cout, _ in _LAYER_DEFS:
        key, k1, k2, k3 = jax.random.split(key, 4)
        scale = 1.0 / np.sqrt(cin)
        wl = jax.random.uniform(k1, (cin, cout), jnp.float32, -scale, scale)
        wr = jax.random.uniform(k2, (cin, cout), jnp.float32, -scale, scale)
        b = jax.random.uniform(k3, (1, cout), jnp.float32, -scale, scale)
        params += [wl, wr, b]
    return params


def pack_params(params):
    """Pack the 15 small tensors into a single (65, 51) canvas."""
    w = np.zeros((_W_ROWS, _W_COLS), np.float32)
    idx = 0
    for cin, cout, col in _LAYER_DEFS:
        wl, wr, b = params[idx], params[idx + 1], params[idx + 2]
        idx += 3
        w[0:cin, col:col + cout] = np.asarray(wl)
        w[cin:2 * cin, col:col + cout] = np.asarray(wr)
        w[2 * cin, col:col + cout] = np.asarray(b).reshape(cout)
    return jnp.asarray(w)


# ---- Pallas kernel -----------------------------------------------------------
def _attention_kernel(img_ref, da_ref, pmr_ref, w_ref, out_ref):
    blk, _, hw = img_ref.shape                  # (B, C0, H*W)
    img = img_ref[...]                          # (B, C0, HW)  f32
    da = da_ref[...]
    d_mat = da[:, :hw]                          # (V, HW)   bilinear downsample
    a_mat = da[:, hw:hw + V]                    # (V, V)    mean adjacency
    pmr = pmr_ref[...]
    pm = pmr[:, :V]                             # (Q, V)    masked pool matrix
    r = pmr[:, V:V + 1]                         # (Q, 1)    fmin residual weights
    w = w_ref[...]                              # (65, 51)  packed SAGE weights

    d_b = jnp.broadcast_to(d_mat, (blk, V, hw))
    a_b = jnp.broadcast_to(a_mat, (blk, V, V))
    pm_b = jnp.broadcast_to(pm, (blk, NUM_VERTS_OUT, V))

    # fused downsample + NCHW->(V, C) layout: x0[b, v, c] = sum_p D[v,p] img[b,c,p]
    x0 = jnp.einsum('bvp,bcp->bvc', d_b, img,
                    preferred_element_type=jnp.float32)        # (B, V, 4)

    def sage(x, layer):
        # PyG SAGEConv: out = lin_l(mean_{j->i} x_j) + lin_r(x_i)  (bias in lin_l)
        cin, cout, col = layer
        wl = w[0:cin, col:col + cout]
        wr = w[cin:2 * cin, col:col + cout]
        bias = w[2 * cin:2 * cin + 1, col:col + cout]
        agg = jnp.einsum('bvw,bwc->bvc', a_b, x,
                         preferred_element_type=jnp.float32)   # (B, V, cin)
        # fold batch into rows for the shared-weight matmuls (single big MXU op)
        y = (jnp.dot(agg.reshape(blk * V, cin), wl,
                     preferred_element_type=jnp.float32)
             + jnp.dot(x.reshape(blk * V, cin), wr,
                       preferred_element_type=jnp.float32)
             + bias)
        return y.reshape(blk, V, cout)

    h1 = sage(x0, _LAYER_DEFS[0])                               # (B, V, 16)
    s1 = sage(h1, _LAYER_DEFS[1])                               # (B, V, 1)
    h2 = sage(h1, _LAYER_DEFS[2]) + s1                          # (B, V, 32)
    s2 = sage(h2, _LAYER_DEFS[3])                               # (B, V, 1)
    h3 = sage(h2, _LAYER_DEFS[4]) + s2                          # (B, V, 1)

    # border mask + adaptive average pool, folded into (Pm, r)
    fmin = jnp.min(h3, axis=1, keepdims=True)                   # (B, 1, 1)
    pooled = (jnp.einsum('bqv,bvc->bqc', pm_b, h3,
                         preferred_element_type=jnp.float32)
              + fmin * r[None, :, :])                           # (B, Q, 1)

    # Min-Max normalisation (NaN if the pooled map is flat, same as reference)
    pmin = jnp.min(pooled, axis=1, keepdims=True)
    pmax = jnp.max(pooled, axis=1, keepdims=True)
    out_ref[...] = (pooled - pmin) / (pmax - pmin)


# ---- wrapper -----------------------------------------------------------------
def attention_module_forward(img, params, *, batch_block=32):
    n, c, h, w = img.shape
    assert c == IN_CHANNELS[0]

    # flatten spatial dims only (contiguous -> essentially free); the bilinear
    # downsample and the channel-last graph layout happen inside the kernel.
    x = img.reshape(n, c, h * w)

    blk = min(batch_block, _round_up(n, 8))
    n_pad = _round_up(n, blk)
    if n_pad != n:
        x = jnp.pad(x, ((0, n_pad - n), (0, 0), (0, 0)))

    da, pmr = _constants(h, w)
    w_packed = pack_params(params)

    out = pl.pallas_call(
        _attention_kernel,
        out_shape=jax.ShapeDtypeStruct((n_pad, NUM_VERTS_OUT, 1), jnp.float32),
        grid_spec=pltpu.PrefetchScalarGridSpec(
            num_scalar_prefetch=0,
            grid=(n_pad // blk,),
            in_specs=[
                pl.BlockSpec((blk, c, h * w), lambda i: (i, 0, 0)),
                pl.BlockSpec(da.shape, lambda i: (0, 0)),
                pl.BlockSpec(pmr.shape, lambda i: (0, 0)),
                pl.BlockSpec(w_packed.shape, lambda i: (0, 0)),
            ],
            out_specs=pl.BlockSpec((blk, NUM_VERTS_OUT, 1),
                                   lambda i: (i, 0, 0)),
        ),
        compiler_params=pltpu.CompilerParams(
            dimension_semantics=("parallel",),
            vmem_limit_bytes=32 * 1024 * 1024,
        ),
    )(x, da, pmr, w_packed)

    return out[:n, :, 0]                                         # (N, num_verts_out)


# ---- pure-JAX reference for a correctness check ------------------------------
def _reference(img, params):
    n, c, h, w = img.shape
    d = jnp.asarray(_downsample_matrix(h, w))
    a = jnp.asarray(_grid_mean_adjacency(SIZE))
    p = jnp.asarray(_pool_matrix(SIZE, S_OUT))
    mask = jnp.asarray(_border_mask_flat(SIZE, MASK_SIZE))[:, None]   # (V, 1)

    x = img.reshape(n, c, h * w)
    x0 = jnp.einsum('vp,ncp->nvc', d, x)                              # (n, V, C0)

    (w1l, w1r, b1, ws1l, ws1r, bs1, w2l, w2r, b2,
     ws2l, ws2r, bs2, w3l, w3r, b3) = params

    def sage(z, wl, wr, b):
        agg = jnp.einsum('vw,nwc->nvc', a, z)
        return agg @ wl + z @ wr + b

    h1 = sage(x0, w1l, w1r, b1)
    s1 = sage(h1, ws1l, ws1r, bs1)
    h2 = sage(h1, w2l, w2r, b2) + s1
    s2 = sage(h2, ws2l, ws2r, bs2)
    h3 = sage(h2, w3l, w3r, b3) + s2                                  # (n, V, 1)

    if USE_MASK:
        fmin = jnp.min(h3, axis=(1, 2), keepdims=True)
        h3 = h3 * mask[None] + fmin * (1.0 - mask[None])

    pooled = jnp.einsum('qv,nvc->nqc', p, h3)[..., 0]                 # (n, Q)
    pmin = pooled.min(axis=1, keepdims=True)
    pmax = pooled.max(axis=1, keepdims=True)
    return (pooled - pmin) / (pmax - pmin)


if __name__ == "__main__":
    key = jax.random.PRNGKey(0)
    kp, ki = jax.random.split(key)
    params = init_params(kp)
    img = jax.random.normal(ki, (2, IN_CHANNELS[0], 16, 16), jnp.float32)

    out = attention_module_forward(img, params)
    out = jax.block_until_ready(out)

    ref = _reference(img, params)
    np.testing.assert_allclose(np.asarray(out), np.asarray(ref),
                               atol=2e-2, rtol=0)
    assert out.shape == (2, NUM_VERTS_OUT)
    print("KERNEL_OK")
</pallas_src>

<mosaic_0001>
module attributes {stable_mosaic.version = 11 : i64} {
  func.func @_attention_kernel(%arg0: i32, %arg1: memref<8x4x256xf32, #tpu.memory_space<vmem>>, %arg2: memref<64x320xf32, #tpu.memory_space<vmem>>, %arg3: memref<16x65xf32, #tpu.memory_space<vmem>>, %arg4: memref<65x51xf32, #tpu.memory_space<vmem>>, %arg5: memref<8x16x1xf32, #tpu.memory_space<vmem>>) attributes {dimension_semantics = [#tpu.dimension_semantics<parallel>], iteration_bounds = array<i64: 1>, scalar_prefetch = 0 : i64, scratch_operands = 0 : i64, tpu.core_type = #tpu.core_type<tc>, window_params = [{transform_indices = @transform_0, window_bounds = array<i64: 8, 4, 256>}, {pipeline_mode = #tpu.pipeline_mode<synchronous>, transform_indices = @transform_1, window_bounds = array<i64: 64, 320>}, {pipeline_mode = #tpu.pipeline_mode<synchronous>, transform_indices = @transform_2, window_bounds = array<i64: 16, 65>}, {pipeline_mode = #tpu.pipeline_mode<synchronous>, transform_indices = @transform_3, window_bounds = array<i64: 65, 51>}, {transform_indices = @transform_4, window_bounds = array<i64: 8, 16, 1>}]} {
    %c0 = arith.constant 0 : index
    %c0_0 = arith.constant 0 : index
    %c0_1 = arith.constant 0 : index
    %0 = vector.load %arg1[%c0, %c0_0, %c0_1] : memref<8x4x256xf32, #tpu.memory_space<vmem>>, vector<8x4x256xf32>
    %c0_2 = arith.constant 0 : index
    %c0_3 = arith.constant 0 : index
    %1 = vector.load %arg2[%c0_2, %c0_3] : memref<64x320xf32, #tpu.memory_space<vmem>>, vector<64x320xf32>
    %2 = vector.extract_strided_slice %1 {offsets = [0, 0], sizes = [64, 256], strides = [1, 1]} : vector<64x320xf32> to vector<64x256xf32>
    %3 = vector.extract_strided_slice %1 {offsets = [0, 256], sizes = [64, 64], strides = [1, 1]} : vector<64x320xf32> to vector<64x64xf32>
    %c0_4 = arith.constant 0 : index
    %c0_5 = arith.constant 0 : index
    %4 = vector.load %arg3[%c0_4, %c0_5] : memref<16x65xf32, #tpu.memory_space<vmem>>, vector<16x65xf32>
    %5 = vector.extract_strided_slice %4 {offsets = [0, 0], sizes = [16, 64], strides = [1, 1]} : vector<16x65xf32> to vector<16x64xf32>
    %6 = vector.extract_strided_slice %4 {offsets = [0, 64], sizes = [16, 1], strides = [1, 1]} : vector<16x65xf32> to vector<16x1xf32>
    %c0_6 = arith.constant 0 : index
    %c0_7 = arith.constant 0 : index
    %7 = vector.load %arg4[%c0_6, %c0_7] : memref<65x51xf32, #tpu.memory_space<vmem>>, vector<65x51xf32>
    %8 = vector.shape_cast %2 : vector<64x256xf32> to vector<1x64x256xf32>
    %9 = vector.broadcast %8 : vector<1x64x256xf32> to vector<8x64x256xf32>
    %10 = vector.shape_cast %3 : vector<64x64xf32> to vector<1x64x64xf32>
    %11 = vector.broadcast %10 : vector<1x64x64xf32> to vector<8x64x64xf32>
    %12 = vector.shape_cast %5 : vector<16x64xf32> to vector<1x16x64xf32>
    %13 = vector.broadcast %12 : vector<1x16x64xf32> to vector<8x16x64xf32>
    "tpu.trace_start"() <{level = 10 : i32, message = "bvp,bcp->bvc"}> : () -> ()
    %cst = arith.constant dense<0.000000e+00> : vector<8x64x4xf32>
    %14 = tpu.matmul %9, %0, %cst {dimension_numbers = #tpu.dot_dimension_numbers<[2], [2], [1], [1], [0, 0, 0, 1, 1, 1], [0], [0]>} : vector<8x64x256xf32>, vector<8x4x256xf32>, vector<8x64x4xf32> -> vector<8x64x4xf32>
    "tpu.trace_stop"() : () -> ()
    %15 = vector.extract_strided_slice %7 {offsets = [0, 0], sizes = [4, 16], strides = [1, 1]} : vector<65x51xf32> to vector<4x16xf32>
    %16 = vector.extract_strided_slice %7 {offsets = [4, 0], sizes = [4, 16], strides = [1, 1]} : vector<65x51xf32> to vector<4x16xf32>
    %17 = vector.extract_strided_slice %7 {offsets = [8, 0], sizes = [1, 16], strides = [1, 1]} : vector<65x51xf32> to vector<1x16xf32>
    "tpu.trace_start"() <{level = 10 : i32, message = "bvw,bwc->bvc"}> : () -> ()
    %cst_8 = arith.constant dense<0.000000e+00> : vector<8x64x4xf32>
    %18 = tpu.matmul %11, %14, %cst_8 {dimension_numbers = #tpu.dot_dimension_numbers<[2], [1], [1], [2], [0, 0, 0, 1, 1, 2], [0], [0]>} : vector<8x64x64xf32>, vector<8x64x4xf32>, vector<8x64x4xf32> -> vector<8x64x4xf32>
    "tpu.trace_stop"() : () -> ()
    %19 = vector.shape_cast %18 : vector<8x64x4xf32> to vector<512x4xf32>
    %cst_9 = arith.constant dense<0.000000e+00> : vector<512x16xf32>
    %20 = tpu.matmul %19, %15, %cst_9 {dimension_numbers = #tpu.dot_dimension_numbers<[1], [0], [0], [1], [0, 0, 1, 1], [], []>} : vector<512x4xf32>, vector<4x16xf32>, vector<512x16xf32> -> vector<512x16xf32>
    %21 = vector.shape_cast %14 : vector<8x64x4xf32> to vector<512x4xf32>
    %cst_10 = arith.constant dense<0.000000e+00> : vector<512x16xf32>
    %22 = tpu.matmul %21, %16, %cst_10 {dimension_numbers = #tpu.dot_dimension_numbers<[1], [0], [0], [1], [0, 0, 1, 1], [], []>} : vector<512x4xf32>, vector<4x16xf32>, vector<512x16xf32> -> vector<512x16xf32>
    %23 = arith.addf %20, %22 : vector<512x16xf32>
    %24 = vector.broadcast %17 : vector<1x16xf32> to vector<512x16xf32>
    %25 = arith.addf %23, %24 : vector<512x16xf32>
    %26 = vector.shape_cast %25 : vector<512x16xf32> to vector<8x64x16xf32>
    %27 = vector.extract_strided_slice %7 {offsets = [0, 16], sizes = [16, 1], strides = [1, 1]} : vector<65x51xf32> to vector<16x1xf32>
    %28 = vector.extract_strided_slice %7 {offsets = [16, 16], sizes = [16, 1], strides = [1, 1]} : vector<65x51xf32> to vector<16x1xf32>
    %29 = vector.extract_strided_slice %7 {offsets = [32, 16], sizes = [1, 1], strides = [1, 1]} : vector<65x51xf32> to vector<1x1xf32>
    "tpu.trace_start"() <{level = 10 : i32, message = "bvw,bwc->bvc"}> : () -> ()
    %cst_11 = arith.constant dense<0.000000e+00> : vector<8x64x16xf32>
    %30 = tpu.matmul %11, %26, %cst_11 {dimension_numbers = #tpu.dot_dimension_numbers<[2], [1], [1], [2], [0, 0, 0, 1, 1, 2], [0], [0]>} : vector<8x64x64xf32>, vector<8x64x16xf32>, vector<8x64x16xf32> -> vector<8x64x16xf32>
    "tpu.trace_stop"() : () -> ()
    %31 = vector.shape_cast %30 : vector<8x64x16xf32> to vector<512x16xf32>
    %cst_12 = arith.constant dense<0.000000e+00> : vector<512x1xf32>
    %32 = tpu.matmul %31, %27, %cst_12 {dimension_numbers = #tpu.dot_dimension_numbers<[1], [0], [0], [1], [0, 0, 1, 1], [], []>} : vector<512x16xf32>, vector<16x1xf32>, vector<512x1xf32> -> vector<512x1xf32>
    %33 = vector.shape_cast %26 : vector<8x64x16xf32> to vector<512x16xf32>
    %cst_13 = arith.constant dense<0.000000e+00> : vector<512x1xf32>
    %34 = tpu.matmul %33, %28, %cst_13 {dimension_numbers = #tpu.dot_dimension_numbers<[1], [0], [0], [1], [0, 0, 1, 1], [], []>} : vector<512x16xf32>, vector<16x1xf32>, vector<512x1xf32> -> vector<512x1xf32>
    %35 = arith.addf %32, %34 : vector<512x1xf32>
    %36 = vector.broadcast %29 : vector<1x1xf32> to vector<512x1xf32>
    %37 = arith.addf %35, %36 : vector<512x1xf32>
    %38 = vector.shape_cast %37 : vector<512x1xf32> to vector<8x64x1xf32>
    %39 = vector.extract_strided_slice %7 {offsets = [0, 17], sizes = [16, 32], strides = [1, 1]} : vector<65x51xf32> to vector<16x32xf32>
    %40 = vector.extract_strided_slice %7 {offsets = [16, 17], sizes = [16, 32], strides = [1, 1]} : vector<65x51xf32> to vector<16x32xf32>
    %41 = vector.extract_strided_slice %7 {offsets = [32, 17], sizes = [1, 32], strides = [1, 1]} : vector<65x51xf32> to vector<1x32xf32>
    "tpu.trace_start"() <{level = 10 : i32, message = "bvw,bwc->bvc"}> : () -> ()
    %cst_14 = arith.constant dense<0.000000e+00> : vector<8x64x16xf32>
    %42 = tpu.matmul %11, %26, %cst_14 {dimension_numbers = #tpu.dot_dimension_numbers<[2], [1], [1], [2], [0, 0, 0, 1, 1, 2], [0], [0]>} : vector<8x64x64xf32>, vector<8x64x16xf32>, vector<8x64x16xf32> -> vector<8x64x16xf32>
    "tpu.trace_stop"() : () -> ()
    %43 = vector.shape_cast %42 : vector<8x64x16xf32> to vector<512x16xf32>
    %cst_15 = arith.constant dense<0.000000e+00> : vector<512x32xf32>
    %44 = tpu.matmul %43, %39, %cst_15 {dimension_numbers = #tpu.dot_dimension_numbers<[1], [0], [0], [1], [0, 0, 1, 1], [], []>} : vector<512x16xf32>, vector<16x32xf32>, vector<512x32xf32> -> vector<512x32xf32>
    %45 = vector.shape_cast %26 : vector<8x64x16xf32> to vector<512x16xf32>
    %cst_16 = arith.constant dense<0.000000e+00> : vector<512x32xf32>
    %46 = tpu.matmul %45, %40, %cst_16 {dimension_numbers = #tpu.dot_dimension_numbers<[1], [0], [0], [1], [0, 0, 1, 1], [], []>} : vector<512x16xf32>, vector<16x32xf32>, vector<512x32xf32> -> vector<512x32xf32>
    %47 = arith.addf %44, %46 : vector<512x32xf32>
    %48 = vector.broadcast %41 : vector<1x32xf32> to vector<512x32xf32>
    %49 = arith.addf %47, %48 : vector<512x32xf32>
    %50 = vector.shape_cast %49 : vector<512x32xf32> to vector<8x64x32xf32>
    %51 = vector.broadcast %38 : vector<8x64x1xf32> to vector<8x64x32xf32>
    %52 = arith.addf %50, %51 : vector<8x64x32xf32>
    %53 = vector.extract_strided_slice %7 {offsets = [0, 49], sizes = [32, 1], strides = [1, 1]} : vector<65x51xf32> to vector<32x1xf32>
    %54 = vector.extract_strided_slice %7 {offsets = [32, 49], sizes = [32, 1], strides = [1, 1]} : vector<65x51xf32> to vector<32x1xf32>
    %55 = vector.extract_strided_slice %7 {offsets = [64, 49], sizes = [1, 1], strides = [1, 1]} : vector<65x51xf32> to vector<1x1xf32>
    "tpu.trace_start"() <{level = 10 : i32, message = "bvw,bwc->bvc"}> : () -> ()
    %cst_17 = arith.constant dense<0.000000e+00> : vector<8x64x32xf32>
    %56 = tpu.matmul %11, %52, %cst_17 {dimension_numbers = #tpu.dot_dimension_numbers<[2], [1], [1], [2], [0, 0, 0, 1, 1, 2], [0], [0]>} : vector<8x64x64xf32>, vector<8x64x32xf32>, vector<8x64x32xf32> -> vector<8x64x32xf32>
    "tpu.trace_stop"() : () -> ()
    %57 = vector.shape_cast %56 : vector<8x64x32xf32> to vector<512x32xf32>
    %cst_18 = arith.constant dense<0.000000e+00> : vector<512x1xf32>
    %58 = tpu.matmul %57, %53, %cst_18 {dimension_numbers = #tpu.dot_dimension_numbers<[1], [0], [0], [1], [0, 0, 1, 1], [], []>} : vector<512x32xf32>, vector<32x1xf32>, vector<512x1xf32> -> vector<512x1xf32>
    %59 = vector.shape_cast %52 : vector<8x64x32xf32> to vector<512x32xf32>
    %cst_19 = arith.constant dense<0.000000e+00> : vector<512x1xf32>
    %60 = tpu.matmul %59, %54, %cst_19 {dimension_numbers = #tpu.dot_dimension_numbers<[1], [0], [0], [1], [0, 0, 1, 1], [], []>} : vector<512x32xf32>, vector<32x1xf32>, vector<512x1xf32> -> vector<512x1xf32>
    %61 = arith.addf %58, %60 : vector<512x1xf32>
    %62 = vector.broadcast %55 : vector<1x1xf32> to vector<512x1xf32>
    %63 = arith.addf %61, %62 : vector<512x1xf32>
    %64 = vector.shape_cast %63 : vector<512x1xf32> to vector<8x64x1xf32>
    %65 = vector.extract_strided_slice %7 {offsets = [0, 50], sizes = [32, 1], strides = [1, 1]} : vector<65x51xf32> to vector<32x1xf32>
    %66 = vector.extract_strided_slice %7 {offsets = [32, 50], sizes = [32, 1], strides = [1, 1]} : vector<65x51xf32> to vector<32x1xf32>
    %67 = vector.extract_strided_slice %7 {offsets = [64, 50], sizes = [1, 1], strides = [1, 1]} : vector<65x51xf32> to vector<1x1xf32>
    "tpu.trace_start"() <{level = 10 : i32, message = "bvw,bwc->bvc"}> : () -> ()
    %cst_20 = arith.constant dense<0.000000e+00> : vector<8x64x32xf32>
    %68 = tpu.matmul %11, %52, %cst_20 {dimension_numbers = #tpu.dot_dimension_numbers<[2], [1], [1], [2], [0, 0, 0, 1, 1, 2], [0], [0]>} : vector<8x64x64xf32>, vector<8x64x32xf32>, vector<8x64x32xf32> -> vector<8x64x32xf32>
    "tpu.trace_stop"() : () -> ()
    %69 = vector.shape_cast %68 : vector<8x64x32xf32> to vector<512x32xf32>
    %cst_21 = arith.constant dense<0.000000e+00> : vector<512x1xf32>
    %70 = tpu.matmul %69, %65, %cst_21 {dimension_numbers = #tpu.dot_dimension_numbers<[1], [0], [0], [1], [0, 0, 1, 1], [], []>} : vector<512x32xf32>, vector<32x1xf32>, vector<512x1xf32> -> vector<512x1xf32>
    %71 = vector.shape_cast %52 : vector<8x64x32xf32> to vector<512x32xf32>
    %cst_22 = arith.constant dense<0.000000e+00> : vector<512x1xf32>
    %72 = tpu.matmul %71, %66, %cst_22 {dimension_numbers = #tpu.dot_dimension_numbers<[1], [0], [0], [1], [0, 0, 1, 1], [], []>} : vector<512x32xf32>, vector<32x1xf32>, vector<512x1xf32> -> vector<512x1xf32>
    %73 = arith.addf %70, %72 : vector<512x1xf32>
    %74 = vector.broadcast %67 : vector<1x1xf32> to vector<512x1xf32>
    %75 = arith.addf %73, %74 : vector<512x1xf32>
    %76 = vector.shape_cast %75 : vector<512x1xf32> to vector<8x64x1xf32>
    %77 = arith.addf %76, %64 : vector<8x64x1xf32>
    %cst_23 = arith.constant dense<0x7F800000> : vector<8x1xf32>
    %78 = vector.multi_reduction <minimumf>, %77, %cst_23 [1] : vector<8x64x1xf32> to vector<8x1xf32>
    %79 = vector.shape_cast %78 : vector<8x1xf32> to vector<8x1x1xf32>
    "tpu.trace_start"() <{level = 10 : i32, message = "bqv,bvc->bqc"}> : () -> ()
    %cst_24 = arith.constant dense<0.000000e+00> : vector<8x16x1xf32>
    %80 = tpu.matmul %13, %77, %cst_24 {dimension_numbers = #tpu.dot_dimension_numbers<[2], [1], [1], [2], [0, 0, 0, 1, 1, 2], [0], [0]>} : vector<8x16x64xf32>, vector<8x64x1xf32>, vector<8x16x1xf32> -> vector<8x16x1xf32>
    "tpu.trace_stop"() : () -> ()
    %81 = vector.shape_cast %6 : vector<16x1xf32> to vector<1x16x1xf32>
    %82 = vector.broadcast %79 : vector<8x1x1xf32> to vector<8x16x1xf32>
    %83 = vector.broadcast %81 : vector<1x16x1xf32> to vector<8x16x1xf32>
    %84 = arith.mulf %82, %83 : vector<8x16x1xf32>
    %85 = arith.addf %80, %84 : vector<8x16x1xf32>
    %cst_25 = arith.constant dense<0x7F800000> : vector<8x1xf32>
    %86 = vector.multi_reduction <minimumf>, %85, %cst_25 [1] : vector<8x16x1xf32> to vector<8x1xf32>
    %87 = vector.shape_cast %86 : vector<8x1xf32> to vector<8x1x1xf32>
    %cst_26 = arith.constant dense<0xFF800000> : vector<8x1xf32>
    %88 = vector.multi_reduction <maximumf>, %85, %cst_26 [1] : vector<8x16x1xf32> to vector<8x1xf32>
    %89 = vector.shape_cast %88 : vector<8x1xf32> to vector<8x1x1xf32>
    %90 = vector.broadcast %87 : vector<8x1x1xf32> to vector<8x16x1xf32>
    %91 = arith.subf %85, %90 : vector<8x16x1xf32>
    %92 = arith.subf %89, %87 : vector<8x1x1xf32>
    %93 = vector.broadcast %92 : vector<8x1x1xf32> to vector<8x16x1xf32>
    %94 = arith.divf %91, %93 : vector<8x16x1xf32>
    %c0_27 = arith.constant 0 : index
    %c0_28 = arith.constant 0 : index
    %c0_29 = arith.constant 0 : index
    %95 = vector.load %arg5[%c0_27, %c0_28, %c0_29] : memref<8x16x1xf32, #tpu.memory_space<vmem>>, vector<8x16x1xf32>
    tpu.vector_store %arg5[%c0_27, %c0_28, %c0_29], %94 {strides = array<i32>} : memref<8x16x1xf32, #tpu.memory_space<vmem>>, vector<8x16x1xf32>,
    return
  }
  func.func @transform_0(%arg0: i32) -> (i32, i32, i32) {
    %c0_i32 = arith.constant 0 : i32
    %c0_i32_0 = arith.constant 0 : i32
    %c0_i32_1 = arith.constant 0 : i32
    return %arg0, %c0_i32, %c0_i32_0 : i32, i32, i32
  }
  func.func @transform_1(%arg0: i32) -> (i32, i32) {
    %c0_i32 = arith.constant 0 : i32
    %c0_i32_0 = arith.constant 0 : i32
    %c0_i32_1 = arith.constant 0 : i32
    return %c0_i32, %c0_i32_0 : i32, i32
  }
  func.func @transform_2(%arg0: i32) -> (i32, i32) {
    %c0_i32 = arith.constant 0 : i32
    %c0_i32_0 = arith.constant 0 : i32
    %c0_i32_1 = arith.constant 0 : i32
    return %c0_i32, %c0_i32_0 : i32, i32
  }
  func.func @transform_3(%arg0: i32) -> (i32, i32) {
    %c0_i32 = arith.constant 0 : i32
    %c0_i32_0 = arith.constant 0 : i32
    %c0_i32_1 = arith.constant 0 : i32
    return %c0_i32, %c0_i32_0 : i32, i32
  }
  func.func @transform_4(%arg0: i32) -> (i32, i32, i32) {
    %c0_i32 = arith.constant 0 : i32
    %c0_i32_0 = arith.constant 0 : i32
    %c0_i32_1 = arith.constant 0 : i32
    return %arg0, %c0_i32, %c0_i32_0 : i32, i32, i32
  }
}

</mosaic_0001>

<llo_original>
// kernel: tpu_custom_call.1
$region0: #{tpu_custom_call.1}
  #allocation0 [shape = 'u32[]', space=smem, size = 0x4, offset = 0x4, fixed_abs, tag = 'smem constant byte address 0x4 - core index']
  #allocation1 [shape = 'u32[144,128]{1,0:T(1,128)}', space=vmem, size = 0x12000, scoped, tag = 'internal scratch']
  %s0 = inlined_call_operand.vmem [shape: f32[8,4,256], index: 0, kind: input, shape index: {}]
  %s1 = inlined_call_operand.hbm [shape: f32[64,320], index: 1, kind: input, shape index: {}]
  %s2 = inlined_call_operand.vmem [shape: f32[16,65], index: 2, kind: input, shape index: {}]
  %s3 = inlined_call_operand.vmem [shape: f32[65,51], index: 3, kind: input, shape index: {}]
  %s4 = inlined_call_operand.vmem [shape: f32[8,16,1], index: 4, kind: output, shape index: {}]
  %s5 = sld [smem:[#allocation0]]
  $region30: #{tpu_custom_call.1} parent=0
    _
  %s7 = ssub.s32 1, %s5
  %s8 = scalar_select 0, %s7, %s5
  $region1: #{tpu_custom_call.1} parent=0
    #allocation2 [shape = 'u8[98304]{0}', space=vmem, size = 0x18000, scoped, tag = 'input window, operand 1, single buffered']
    #allocation3 [shape = 's32[1]{0}', space=sflag, size = 0x4, scoped, tag = 'scoped memory for tpu_custom_call.1']
    %9 = vsyncpa [#allocation3], 0
    // Predicated region
    $region2: #{tpu_custom_call.1} parent=1 // pred_check
      _
    $region3: #{tpu_custom_call.1} parent=1 // pred_check_branch
      %11 = sbr.rel (0) target = $region5
    $region4: #{tpu_custom_call.1} parent=1 // pred_region
      _
    $region5: #{tpu_custom_call.1} parent=1 // pred_fallthru
      _
    // Predicated region
    $region6: #{tpu_custom_call.1} parent=1 // pred_check
      _
    $region7: #{tpu_custom_call.1} parent=1 // pred_check_branch
      %13 = sbr.rel (0) target = $region9
    $region8: #{tpu_custom_call.1} parent=1 // pred_region
      %s15 = ssub.s32 3072, 3072
      %16 = vsyncadd [#allocation3], %s15
      %s17 = sshll.u32 [#allocation2], 4
      %s18 = int_to_ptr.vmem [resolvable:$true] %s17
      %23 = dma.hbm_to_vmem [thread:$0]  %s1, 3072, %s18, [#allocation3], 384, 384, 24
    $region9: #{tpu_custom_call.1} parent=1 // pred_fallthru
      _
    // Predicated region
    $region10: #{tpu_custom_call.1} parent=1 // pred_check
      _
    $region11: #{tpu_custom_call.1} parent=1 // pred_check_branch
      %25 = sbr.rel (0) target = $region13
    $region12: #{tpu_custom_call.1} parent=1 // pred_region
      _
    $region13: #{tpu_custom_call.1} parent=1 // pred_fallthru
      _
    // Predicated region
    $region14: #{tpu_custom_call.1} parent=1 // pred_check
      _
    $region15: #{tpu_custom_call.1} parent=1 // pred_check_branch
      %27 = sbr.rel (0) target = $region17
    $region16: #{tpu_custom_call.1} parent=1 // pred_region
      _
    $region17: #{tpu_custom_call.1} parent=1 // pred_fallthru
      _
    // Predicated region
    $region18: #{tpu_custom_call.1} parent=1 // pred_check
      _
    $region19: #{tpu_custom_call.1} parent=1 // pred_check_branch
      %29 = sbr.rel (0) target = $region21
    $region20: #{tpu_custom_call.1} parent=1 // pred_region
      %30 = dma.done [#allocation3], 3072
    $region21: #{tpu_custom_call.1} parent=1 // pred_fallthru
      _
    %v31 = vld [vmem:[%s0] sm:$0xff]
    %v32 = vld [vmem:[%s0 + $0x8] sm:$0xff]
    %v33 = vld [vmem:[%s0 + $0x10] sm:$0xff]
    %v34 = vld [vmem:[%s0 + $0x18] sm:$0xff]
    %v35 = vld [vmem:[%s0 + $0x20] sm:$0xff]
    %v36 = vld [vmem:[%s0 + $0x28] sm:$0xff]
    %v37 = vld [vmem:[%s0 + $0x30] sm:$0xff]
    %v38 = vld [vmem:[%s0 + $0x38] sm:$0xff]
    %v39 = vld [vmem:[#allocation2] sm:$0xff]
    %v40 = vld [vmem:[#allocation2 + $0x8] sm:$0xff]
    %v41 = vld [vmem:[#allocation2 + $0x10] sm:$0xff]
    %v42 = vld [vmem:[#allocation2 + $0x18] sm:$0xff]
    %v43 = vld [vmem:[#allocation2 + $0x20] sm:$0xff]
    %v44 = vld [vmem:[#allocation2 + $0x28] sm:$0xff]
    %v45 = vld [vmem:[#allocation2 + $0x30] sm:$0xff]
    %v46 = vld [vmem:[#allocation2 + $0x38] sm:$0xff]
    %v47 = vld [vmem:[#allocation2 + $0x40] sm:$0xff]
    %v48 = vld [vmem:[#allocation2 + $0x48] sm:$0xff]
    %v49 = vld [vmem:[#allocation2 + $0x50] sm:$0xff]
    %v50 = vld [vmem:[#allocation2 + $0x58] sm:$0xff]
    %v51 = vld [vmem:[#allocation2 + $0x60] sm:$0xff]
    %v52 = vld [vmem:[#allocation2 + $0x68] sm:$0xff]
    %v53 = vld [vmem:[#allocation2 + $0x70] sm:$0xff]
    %v54 = vld [vmem:[#allocation2 + $0x78] sm:$0xff]
    %v55 = vld [vmem:[#allocation2 + $0x80] sm:$0xff]
    %v56 = vld [vmem:[#allocation2 + $0x88] sm:$0xff]
    %v57 = vld [vmem:[#allocation2 + $0x90] sm:$0xff]
    %v58 = vld [vmem:[#allocation2 + $0x98] sm:$0xff]
    %v59 = vld [vmem:[#allocation2 + $0xa0] sm:$0xff]
    %v60 = vld [vmem:[#allocation2 + $0xa8] sm:$0xff]
    %v61 = vld [vmem:[#allocation2 + $0xb0] sm:$0xff]
    %v62 = vld [vmem:[#allocation2 + $0xb8] sm:$0xff]
    %v63 = vld [vmem:[%s2] sm:$0xff]
    %v64 = vld [vmem:[%s2 + $0x8] sm:$0xff]
    %v65 = vld [vmem:[%s3] sm:$0xff]
    %v66 = vld [vmem:[%s3 + $0x8] sm:$0xff]
    %v67 = vld [vmem:[%s3 + $0x10] sm:$0xff]
    %v68 = vld [vmem:[%s3 + $0x18] sm:$0xff]
    %v69 = vld [vmem:[%s3 + $0x20] sm:$0xff]
    %v70 = vld [vmem:[%s3 + $0x28] sm:$0xff]
    %v71 = vld [vmem:[%s3 + $0x30] sm:$0xff]
    %v72 = vld [vmem:[%s3 + $0x38] sm:$0xff]
    %v73 = vld [vmem:[%s3 + $0x40] sm:$0x1]
    %v75 = vcombine.high %v31, %v31
    %77 = vmatprep.subr.mxu0 %v75
    %78 = vmatpush1.xpose.msra.mxu0 %v31
    %79 = vmatprep.subr.mxu0 0.0
    %80 = vmatpush1.xpose.msra.mxu0 0.0
    %81 = vmatprep.subr.mxu0 0.0
    %82 = vmatpush1.xpose.msra.mxu0 0.0
    %83 = vmatprep.subr.mxu0 0.0
    %84 = vmatpush1.xpose.msra.mxu0 0.0
    %85 = vmatprep.subr.mxu0 0.0
    %86 = vmatpush1.xpose.msra.mxu0 0.0
    %87 = vmatprep.subr.mxu0 0.0
    %88 = vmatpush1.xpose.msra.mxu0 0.0
    %89 = vmatprep.subr.mxu0 0.0
    %90 = vmatpush1.xpose.msra.mxu0 0.0
    %91 = vmatprep.subr.mxu0 0.0
    %92 = vmatpush1.xpose.msra.mxu0 0.0
    %93 = vmatprep.subr.mxu0 0.0
    %94 = vmatpush1.xpose.msra.mxu0 0.0
    %95 = vmatprep.subr.mxu0 0.0
    %96 = vmatpush1.xpose.msra.mxu0 0.0
    %97 = vmatprep.subr.mxu0 0.0
    %98 = vmatpush1.xpose.msra.mxu0 0.0
    %99 = vmatprep.subr.mxu0 0.0
    %100 = vmatpush1.xpose.msra.mxu0 0.0
    %101 = vmatprep.subr.mxu0 0.0
    %102 = vmatpush1.xpose.msra.mxu0 0.0
    %103 = vmatprep.subr.mxu0 0.0
    %104 = vmatpush1.xpose.msra.mxu0 0.0
    %105 = vmatprep.subr.mxu0 0.0
    %106 = vmatpush1.xpose.msra.mxu0 0.0
    %107 = vmatprep.subr.mxu0 0.0
    %108 = vmatpush1.xpose.msra.mxu0 0.0
    %109 = vmatprep.subr.mxu0 0.0
    %110 = vmatpush1.xpose.msra.mxu0 0.0
    %111 = vmatprep.subr.mxu0 0.0
    %112 = vmatpush1.xpose.msra.mxu0 0.0
    %113 = vmatprep.subr.mxu0 0.0
    %114 = vmatpush1.xpose.msra.mxu0 0.0
    %115 = vmatprep.subr.mxu0 0.0
    %116 = vmatpush1.xpose.msra.mxu0 0.0
    %117 = vmatprep.subr.mxu0 0.0
    %118 = vmatpush1.xpose.msra.mxu0 0.0
    %119 = vmatprep.subr.mxu0 0.0
    %120 = vmatpush1.xpose.msra.mxu0 0.0
    %121 = vmatprep.subr.mxu0 0.0
    %122 = vmatpush1.xpose.msra.mxu0 0.0
    %123 = vmatprep.subr.mxu0 0.0
    %124 = vmatpush1.xpose.msra.mxu0 0.0
    %125 = vmatprep.subr.mxu0 0.0
    %126 = vmatpush1.xpose.msra.mxu0 0.0
    %127 = vmatprep.subr.mxu0 0.0
    %128 = vmatpush1.xpose.msra.mxu0 0.0
    %129 = vmatprep.subr.mxu0 0.0
    %130 = vmatpush1.xpose.msra.mxu0 0.0
    %131 = vmatprep.subr.mxu0 0.0
    %132 = vmatpush1.xpose.msra.mxu0 0.0
    %133 = vmatprep.subr.mxu0 0.0
    %134 = vmatpush1.xpose.msra.mxu0 0.0
    %135 = vmatprep.subr.mxu0 0.0
    %136 = vmatpush1.xpose.msra.mxu0 0.0
    %137 = vmatprep.subr.mxu0 0.0
    %138 = vmatpush1.xpose.msra.mxu0 0.0
    %139 = vmatprep.subr.mxu0 0.0
    %140 = vmatpush1.xpose.msra.mxu0 0.0
    %141 = vmatprep.mubr.f32.mxu0 %v40
    %142 = vmatmul.mubr.f32.gmra.mrb[0].mxu0 %v39
    %v143 = vpop.f32.mrb[0].mxu0
    %v144 = vadd.f32 0.0, %v143
    %v145 = vpop.f32.mrb[0].mxu0
    %146 = vmatprep.mubr.f32.mxu0 %v43
    %147 = vmatmul.mubr.f32.gmra.mrb[0].mxu0 %v42
    %v148 = vpop.f32.mrb[0].mxu0
    %v149 = vadd.f32 0.0, %v148
    %v150 = vpop.f32.mrb[0].mxu0
    %151 = vmatprep.mubr.f32.mxu0 %v46
    %152 = vmatmul.mubr.f32.gmra.mrb[0].mxu0 %v45
    %v153 = vpop.f32.mrb[0].mxu0
    %v154 = vadd.f32 0.0, %v153
    %v155 = vpop.f32.mrb[0].mxu0
    %156 = vmatprep.mubr.f32.mxu0 %v49
    %157 = vmatmul.mubr.f32.gmra.mrb[0].mxu0 %v48
    %v158 = vpop.f32.mrb[0].mxu0
    %v159 = vadd.f32 0.0, %v158
    %v160 = vpop.f32.mrb[0].mxu0
    %161 = vmatprep.mubr.f32.mxu0 %v52
    %162 = vmatmul.mubr.f32.gmra.mrb[0].mxu0 %v51
    %v163 = vpop.f32.mrb[0].mxu0
    %v164 = vadd.f32 0.0, %v163
    %v165 = vpop.f32.mrb[0].mxu0
    %166 = vmatprep.mubr.f32.mxu0 %v55
    %167 = vmatmul.mubr.f32.gmra.mrb[0].mxu0 %v54
    %v168 = vpop.f32.mrb[0].mxu0
    %v169 = vadd.f32 0.0, %v168
    %v170 = vpop.f32.mrb[0].mxu0
    %171 = vmatprep.mubr.f32.mxu0 %v58
    %172 = vmatmul.mubr.f32.gmra.mrb[0].mxu0 %v57
    %v173 = vpop.f32.mrb[0].mxu0
    %v174 = vadd.f32 0.0, %v173
    %v175 = vpop.f32.mrb[0].mxu0
    %176 = vmatprep.mubr.f32.mxu0 %v61
    %177 = vmatmul.mubr.f32.gmra.mrb[0].mxu0 %v60
    %v178 = vpop.f32.mrb[0].mxu0
    %v179 = vadd.f32 0.0, %v178
    %v180 = vpop.f32.mrb[0].mxu0
    %181 = vdwg.mxu0
    %v183 = vcombine.high %v32, %v32
    %185 = vmatprep.subr.mxu0 %v183
    %186 = vmatpush1.xpose.msra.mxu0 %v32
    %187 = vmatprep.subr.mxu0 0.0
    %188 = vmatpush1.xpose.msra.mxu0 0.0
    %189 = vmatprep.subr.mxu0 0.0
    %190 = vmatpush1.xpose.msra.mxu0 0.0
    %191 = vmatprep.subr.mxu0 0.0
    %192 = vmatpush1.xpose.msra.mxu0 0.0
    %193 = vmatprep.subr.mxu0 0.0
    %194 = vmatpush1.xpose.msra.mxu0 0.0
    %195 = vmatprep.subr.mxu0 0.0
    %196 = vmatpush1.xpose.msra.mxu0 0.0
    %197 = vmatprep.subr.mxu0 0.0
    %198 = vmatpush1.xpose.msra.mxu0 0.0
    %199 = vmatprep.subr.mxu0 0.0
    %200 = vmatpush1.xpose.msra.mxu0 0.0
    %201 = vmatprep.subr.mxu0 0.0
    %202 = vmatpush1.xpose.msra.mxu0 0.0
    %203 = vmatprep.subr.mxu0 0.0
    %204 = vmatpush1.xpose.msra.mxu0 0.0
    %205 = vmatprep.subr.mxu0 0.0
    %206 = vmatpush1.xpose.msra.mxu0 0.0
    %207 = vmatprep.subr.mxu0 0.0
    %208 = vmatpush1.xpose.msra.mxu0 0.0
    %209 = vmatprep.subr.mxu0 0.0
    %210 = vmatpush1.xpose.msra.mxu0 0.0
    %211 = vmatprep.subr.mxu0 0.0
    %212 = vmatpush1.xpose.msra.mxu0 0.0
    %213 = vmatprep.subr.mxu0 0.0
    %214 = vmatpush1.xpose.msra.mxu0 0.0
    %215 = vmatprep.subr.mxu0 0.0
    %216 = vmatpush1.xpose.msra.mxu0 0.0
    %217 = vmatprep.subr.mxu0 0.0
    %218 = vmatpush1.xpose.msra.mxu0 0.0
    %219 = vmatprep.subr.mxu0 0.0
    %220 = vmatpush1.xpose.msra.mxu0 0.0
    %221 = vmatprep.subr.mxu0 0.0
    %222 = vmatpush1.xpose.msra.mxu0 0.0
    %223 = vmatprep.subr.mxu0 0.0
    %224 = vmatpush1.xpose.msra.mxu0 0.0
    %225 = vmatprep.subr.mxu0 0.0
    %226 = vmatpush1.xpose.msra.mxu0 0.0
    %227 = vmatprep.subr.mxu0 0.0
    %228 = vmatpush1.xpose.msra.mxu0 0.0
    %229 = vmatprep.subr.mxu0 0.0
    %230 = vmatpush1.xpose.msra.mxu0 0.0
    %231 = vmatprep.subr.mxu0 0.0
    %232 = vmatpush1.xpose.msra.mxu0 0.0
    %233 = vmatprep.subr.mxu0 0.0
    %234 = vmatpush1.xpose.msra.mxu0 0.0
    %235 = vmatprep.subr.mxu0 0.0
    %236 = vmatpush1.xpose.msra.mxu0 0.0
    %237 = vmatprep.subr.mxu0 0.0
    %238 = vmatpush1.xpose.msra.mxu0 0.0
    %239 = vmatprep.subr.mxu0 0.0
    %240 = vmatpush1.xpose.msra.mxu0 0.0
    %241 = vmatprep.subr.mxu0 0.0
    %242 = vmatpush1.xpose.msra.mxu0 0.0
    %243 = vmatprep.subr.mxu0 0.0
    %244 = vmatpush1.xpose.msra.mxu0 0.0
    %245 = vmatprep.subr.mxu0 0.0
    %246 = vmatpush1.xpose.msra.mxu0 0.0
    %247 = vmatprep.subr.mxu0 0.0
    %248 = vmatpush1.xpose.msra.mxu0 0.0
    %249 = vmatprep.mubr.f32.mxu0 %v40
    %250 = vmatmul.mubr.f32.gmra.mrb[0].mxu0 %v39
    %v251 = vpop.f32.mrb[0].mxu0
    %v252 = vadd.f32 0.0, %v251
    %v253 = vpop.f32.mrb[0].mxu0
    %254 = vmatprep.mubr.f32.mxu0 %v43
    %255 = vmatmul.mubr.f32.gmra.mrb[0].mxu0 %v42
    %v256 = vpop.f32.mrb[0].mxu0
    %v257 = vadd.f32 0.0, %v256
    %v258 = vpop.f32.mrb[0].mxu0
    %259 = vmatprep.mubr.f32.mxu0 %v46
    %260 = vmatmul.mubr.f32.gmra.mrb[0].mxu0 %v45
    %v261 = vpop.f32.mrb[0].mxu0
    %v262 = vadd.f32 0.0, %v261
    %v263 = vpop.f32.mrb[0].mxu0
    %264 = vmatprep.mubr.f32.mxu0 %v49
    %265 = vmatmul.mubr.f32.gmra.mrb[0].mxu0 %v48
    %v266 = vpop.f32.mrb[0].mxu0
    %v267 = vadd.f32 0.0, %v266
    %v268 = vpop.f32.mrb[0].mxu0
    %269 = vmatprep.mubr.f32.mxu0 %v52
    %270 = vmatmul.mubr.f32.gmra.mrb[0].mxu0 %v51
    %v271 = vpop.f32.mrb[0].mxu0
    %v272 = vadd.f32 0.0, %v271
    %v273 = vpop.f32.mrb[0].mxu0
    %274 = vmatprep.mubr.f32.mxu0 %v55
    %275 = vmatmul.mubr.f32.gmra.mrb[0].mxu0 %v54
    %v276 = vpop.f32.mrb[0].mxu0
    %v277 = vadd.f32 0.0, %v276
    %v278 = vpop.f32.mrb[0].mxu0
    %279 = vmatprep.mubr.f32.mxu0 %v58
    %280 = vmatmul.mubr.f32.gmra.mrb[0].mxu0 %v57
    %v281 = vpop.f32.mrb[0].mxu0
    %v282 = vadd.f32 0.0, %v281
    %v283 = vpop.f32.mrb[0].mxu0
    %284 = vmatprep.mubr.f32.mxu0 %v61
    %285 = vmatmul.mubr.f32.gmra.mrb[0].mxu0 %v60
    %v286 = vpop.f32.mrb[0].mxu0
    %v287 = vadd.f32 0.0, %v286
    %v288 = vpop.f32.mrb[0].mxu0
    %289 = vdwg.mxu0
    %v291 = vcombine.high %v33, %v33
    %293 = vmatprep.subr.mxu0 %v291
    %294 = vmatpush1.xpose.msra.mxu0 %v33
    %295 = vmatprep.subr.mxu0 0.0
    %296 = vmatpush1.xpose.msra.mxu0 0.0
    %297 = vmatprep.subr.mxu0 0.0
    %298 = vmatpush1.xpose.msra.mxu0 0.0
    %299 = vmatprep.subr.mxu0 0.0
    %300 = vmatpush1.xpose.msra.mxu0 0.0
    %301 = vmatprep.subr.mxu0 0.0
    %302 = vmatpush1.xpose.msra.mxu0 0.0
    %303 = vmatprep.subr.mxu0 0.0
    %304 = vmatpush1.xpose.msra.mxu0 0.0
    %305 = vmatprep.subr.mxu0 0.0
    %306 = vmatpush1.xpose.msra.mxu0 0.0
    %307 = vmatprep.subr.mxu0 0.0
    %308 = vmatpush1.xpose.msra.mxu0 0.0
    %309 = vmatprep.subr.mxu0 0.0
    %310 = vmatpush1.xpose.msra.mxu0 0.0
    %311 = vmatprep.subr.mxu0 0.0
    %312 = vmatpush1.xpose.msra.mxu0 0.0
    %313 = vmatprep.subr.mxu0 0.0
    %314 = vmatpush1.xpose.msra.mxu0 0.0
    %315 = vmatprep.subr.mxu0 0.0
    %316 = vmatpush1.xpose.msra.mxu0 0.0
    %317 = vmatprep.subr.mxu0 0.0
    %318 = vmatpush1.xpose.msra.mxu0 0.0
    %319 = vmatprep.subr.mxu0 0.0
    %320 = vmatpush1.xpose.msra.mxu0 0.0
    %321 = vmatprep.subr.mxu0 0.0
    %322 = vmatpush1.xpose.msra.mxu0 0.0
    %323 = vmatprep.subr.mxu0 0.0
    %324 = vmatpush1.xpose.msra.mxu0 0.0
    %325 = vmatprep.subr.mxu0 0.0
    %326 = vmatpush1.xpose.msra.mxu0 0.0
    %327 = vmatprep.subr.mxu0 0.0
    %328 = vmatpush1.xpose.msra.mxu0 0.0
    %329 = vmatprep.subr.mxu0 0.0
    %330 = vmatpush1.xpose.msra.mxu0 0.0
    %331 = vmatprep.subr.mxu0 0.0
    %332 = vmatpush1.xpose.msra.mxu0 0.0
    %333 = vmatprep.subr.mxu0 0.0
    %334 = vmatpush1.xpose.msra.mxu0 0.0
    %335 = vmatprep.subr.mxu0 0.0
    %336 = vmatpush1.xpose.msra.mxu0 0.0
    %337 = vmatprep.subr.mxu0 0.0
    %338 = vmatpush1.xpose.msra.mxu0 0.0
    %339 = vmatprep.subr.mxu0 0.0
    %340 = vmatpush1.xpose.msra.mxu0 0.0
    %341 = vmatprep.subr.mxu0 0.0
    %342 = vmatpush1.xpose.msra.mxu0 0.0
    %343 = vmatprep.subr.mxu0 0.0
    %344 = vmatpush1.xpose.msra.mxu0 0.0
    %345 = vmatprep.subr.mxu0 0.0
    %346 = vmatpush1.xpose.msra.mxu0 0.0
    %347 = vmatprep.subr.mxu0 0.0
    %348 = vmatpush1.xpose.msra.mxu0 0.0
    %349 = vmatprep.subr.mxu0 0.0
    %350 = vmatpush1.xpose.msra.mxu0 0.0
    %351 = vmatprep.subr.mxu0 0.0
    %352 = vmatpush1.xpose.msra.mxu0 0.0
    %353 = vmatprep.subr.mxu0 0.0
    %354 = vmatpush1.xpose.msra.mxu0 0.0
    %355 = vmatprep.subr.mxu0 0.0
    %356 = vmatpush1.xpose.msra.mxu0 0.0
    %357 = vmatprep.mubr.f32.mxu0 %v40
    %358 = vmatmul.mubr.f32.gmra.mrb[0].mxu0 %v39
    %v359 = vpop.f32.mrb[0].mxu0
    %v360 = vadd.f32 0.0, %v359
    %v361 = vpop.f32.mrb[0].mxu0
    %362 = vmatprep.mubr.f32.mxu0 %v43
    %363 = vmatmul.mubr.f32.gmra.mrb[0].mxu0 %v42
    %v364 = vpop.f32.mrb[0].mxu0
    %v365 = vadd.f32 0.0, %v364
    %v366 = vpop.f32.mrb[0].mxu0
    %367 = vmatprep.mubr.f32.mxu0 %v46
    %368 = vmatmul.mubr.f32.gmra.mrb[0].mxu0 %v45
    %v369 = vpop.f32.mrb[0].mxu0
    %v370 = vadd.f32 0.0, %v369
    %v371 = vpop.f32.mrb[0].mxu0
    %372 = vmatprep.mubr.f32.mxu0 %v49
    %373 = vmatmul.mubr.f32.gmra.mrb[0].mxu0 %v48
    %v374 = vpop.f32.mrb[0].mxu0
    %v375 = vadd.f32 0.0, %v374
    %v376 = vpop.f32.mrb[0].mxu0
    %377 = vmatprep.mubr.f32.mxu0 %v52
    %378 = vmatmul.mubr.f32.gmra.mrb[0].mxu0 %v51
    %v379 = vpop.f32.mrb[0].mxu0
    %v380 = vadd.f32 0.0, %v379
    %v381 = vpop.f32.mrb[0].mxu0
    %382 = vmatprep.mubr.f32.mxu0 %v55
    %383 = vmatmul.mubr.f32.gmra.mrb[0].mxu0 %v54
    %v384 = vpop.f32.mrb[0].mxu0
    %v385 = vadd.f32 0.0, %v384
    %v386 = vpop.f32.mrb[0].mxu0
    %387 = vmatprep.mubr.f32.mxu0 %v58
    %388 = vmatmul.mubr.f32.gmra.mrb[0].mxu0 %v57
    %v389 = vpop.f32.mrb[0].mxu0
    %v390 = vadd.f32 0.0, %v389
    %v391 = vpop.f32.mrb[0].mxu0
    %392 = vmatprep.mubr.f32.mxu0 %v61
    %393 = vmatmul.mubr.f32.gmra.mrb[0].mxu0 %v60
    %v394 = vpop.f32.mrb[0].mxu0
    %v395 = vadd.f32 0.0, %v394
    %v396 = vpop.f32.mrb[0].mxu0
    %397 = vdwg.mxu0
    %v399 = vcombine.high %v34, %v34
    %401 = vmatprep.subr.mxu0 %v399
    %402 = vmatpush1.xpose.msra.mxu0 %v34
    %403 = vmatprep.subr.mxu0 0.0
    %404 = vmatpush1.xpose.msra.mxu0 0.0
    %405 = vmatprep.subr.mxu0 0.0
    %406 = vmatpush1.xpose.msra.mxu0 0.0
    %407 = vmatprep.subr.mxu0 0.0
    %408 = vmatpush1.xpose.msra.mxu0 0.0
    %409 = vmatprep.subr.mxu0 0.0
    %410 = vmatpush1.xpose.msra.mxu0 0.0
    %411 = vmatprep.subr.mxu0 0.0
    %412 = vmatpush1.xpose.msra.mxu0 0.0
    %413 = vmatprep.subr.mxu0 0.0
    %414 = vmatpush1.xpose.msra.mxu0 0.0
    %415 = vmatprep.subr.mxu0 0.0
    %416 = vmatpush1.xpose.msra.mxu0 0.0
    %417 = vmatprep.subr.mxu0 0.0
    %418 = vmatpush1.xpose.msra.mxu0 0.0
    %419 = vmatprep.subr.mxu0 0.0
    %420 = vmatpush1.xpose.msra.mxu0 0.0
    %421 = vmatprep.subr.mxu0 0.0
    %422 = vmatpush1.xpose.msra.mxu0 0.0
    %423 = vmatprep.subr.mxu0 0.0
    %424 = vmatpush1.xpose.msra.mxu0 0.0
    %425 = vmatprep.subr.mxu0 0.0
    %426 = vmatpush1.xpose.msra.mxu0 0.0
    %427 = vmatprep.subr.mxu0 0.0
    %428 = vmatpush1.xpose.msra.mxu0 0.0
    %429 = vmatprep.subr.mxu0 0.0
    %430 = vmatpush1.xpose.msra.mxu0 0.0
    %431 = vmatprep.subr.mxu0 0.0
    %432 = vmatpush1.xpose.msra.mxu0 0.0
    %433 = vmatprep.subr.mxu0 0.0
    %434 = vmatpush1.xpose.msra.mxu0 0.0
    %435 = vmatprep.subr.mxu0 0.0
    %436 = vmatpush1.xpose.msra.mxu0 0.0
    %437 = vmatprep.subr.mxu0 0.0
    %438 = vmatpush1.xpose.msra.mxu0 0.0
    %439 = vmatprep.subr.mxu0 0.0
    %440 = vmatpush1.xpose.msra.mxu0 0.0
    %441 = vmatprep.subr.mxu0 0.0
    %442 = vmatpush1.xpose.msra.mxu0 0.0
    %443 = vmatprep.subr.mxu0 0.0
    %444 = vmatpush1.xpose.msra.mxu0 0.0
    %445 = vmatprep.subr.mxu0 0.0
    %446 = vmatpush1.xpose.msra.mxu0 0.0
    %447 = vmatprep.subr.mxu0 0.0
    %448 = vmatpush1.xpose.msra.mxu0 0.0
    %449 = vmatprep.subr.mxu0 0.0
    %450 = vmatpush1.xpose.msra.mxu0 0.0
    %451 = vmatprep.subr.mxu0 0.0
    %452 = vmatpush1.xpose.msra.mxu0 0.0
    %453 = vmatprep.subr.mxu0 0.0
    %454 = vmatpush1.xpose.msra.mxu0 0.0
    %455 = vmatprep.subr.mxu0 0.0
    %456 = vmatpush1.xpose.msra.mxu0 0.0
    %457 = vmatprep.subr.mxu0 0.0
    %458 = vmatpush1.xpose.msra.mxu0 0.0
    %459 = vmatprep.subr.mxu0 0.0
    %460 = vmatpush1.xpose.msra.mxu0 0.0
    %461 = vmatprep.subr.mxu0 0.0
    %462 = vmatpush1.xpose.msra.mxu0 0.0
    %463 = vmatprep.subr.mxu0 0.0
    %464 = vmatpush1.xpose.msra.mxu0 0.0
    %465 = vmatprep.mubr.f32.mxu0 %v40
    %466 = vmatmul.mubr.f32.gmra.mrb[0].mxu0 %v39
    %v467 = vpop.f32.mrb[0].mxu0
    %v468 = vadd.f32 0.0, %v467
    %v469 = vpop.f32.mrb[0].mxu0
    %470 = vmatprep.mubr.f32.mxu0 %v43
    %471 = vmatmul.mubr.f32.gmra.mrb[0].mxu0 %v42
    %v472 = vpop.f32.mrb[0].mxu0
    %v473 = vadd.f32 0.0, %v472
    %v474 = vpop.f32.mrb[0].mxu0
    %475 = vmatprep.mubr.f32.mxu0 %v46
    %476 = vmatmul.mubr.f32.gmra.mrb[0].mxu0 %v45
    %v477 = vpop.f32.mrb[0].mxu0
    %v478 = vadd.f32 0.0, %v477
    %v479 = vpop.f32.mrb[0].mxu0
    %480 = vmatprep.mubr.f32.mxu0 %v49
    %481 = vmatmul.mubr.f32.gmra.mrb[0].mxu0 %v48
    %v482 = vpop.f32.mrb[0].mxu0
    %v483 = vadd.f32 0.0, %v482
    %v484 = vpop.f32.mrb[0].mxu0
    %485 = vmatprep.mubr.f32.mxu0 %v52
    %486 = vmatmul.mubr.f32.gmra.mrb[0].mxu0 %v51
    %v487 = vpop.f32.mrb[0].mxu0
    %v488 = vadd.f32 0.0, %v487
    %v489 = vpop.f32.mrb[0].mxu0
    %490 = vmatprep.mubr.f32.mxu0 %v55
    %491 = vmatmul.mubr.f32.gmra.mrb[0].mxu0 %v54
    %v492 = vpop.f32.mrb[0].mxu0
    %v493 = vadd.f32 0.0, %v492
    %v494 = vpop.f32.mrb[0].mxu0
    %495 = vmatprep.mubr.f32.mxu0 %v58
    %496 = vmatmul.mubr.f32.gmra.mrb[0].mxu0 %v57
    %v497 = vpop.f32.mrb[0].mxu0
    %v498 = vadd.f32 0.0, %v497
    %v499 = vpop.f32.mrb[0].mxu0
    %500 = vmatprep.mubr.f32.mxu0 %v61
    %501 = vmatmul.mubr.f32.gmra.mrb[0].mxu0 %v60
    %v502 = vpop.f32.mrb[0].mxu0
    %v503 = vadd.f32 0.0, %v502
    %v504 = vpop.f32.mrb[0].mxu0
    %505 = vdwg.mxu0
    %v507 = vcombine.high %v35, %v35
    %509 = vmatprep.subr.mxu0 %v507
    %510 = vmatpush1.xpose.msra.mxu0 %v35
    %511 = vmatprep.subr.mxu0 0.0
    %512 = vmatpush1.xpose.msra.mxu0 0.0
    %513 = vmatprep.subr.mxu0 0.0
    %514 = vmatpush1.xpose.msra.mxu0 0.0
    %515 = vmatprep.subr.mxu0 0.0
    %516 = vmatpush1.xpose.msra.mxu0 0.0
    %517 = vmatprep.subr.mxu0 0.0
    %518 = vmatpush1.xpose.msra.mxu0 0.0
    %519 = vmatprep.subr.mxu0 0.0
    %520 = vmatpush1.xpose.msra.mxu0 0.0
    %521 = vmatprep.subr.mxu0 0.0
    %522 = vmatpush1.xpose.msra.mxu0 0.0
    %523 = vmatprep.subr.mxu0 0.0
    %524 = vmatpush1.xpose.msra.mxu0 0.0
    %525 = vmatprep.subr.mxu0 0.0
    %526 = vmatpush1.xpose.msra.mxu0 0.0
    %527 = vmatprep.subr.mxu0 0.0
    %528 = vmatpush1.xpose.msra.mxu0 0.0
    %529 = vmatprep.subr.mxu0 0.0
    %530 = vmatpush1.xpose.msra.mxu0 0.0
    %531 = vmatprep.subr.mxu0 0.0
    %532 = vmatpush1.xpose.msra.mxu0 0.0
    %533 = vmatprep.subr.mxu0 0.0
    %534 = vmatpush1.xpose.msra.mxu0 0.0
    %535 = vmatprep.subr.mxu0 0.0
    %536 = vmatpush1.xpose.msra.mxu0 0.0
    %537 = vmatprep.subr.mxu0 0.0
    %538 = vmatpush1.xpose.msra.mxu0 0.0
    %539 = vmatprep.subr.mxu0 0.0
    %540 = vmatpush1.xpose.msra.mxu0 0.0
    %541 = vmatprep.subr.mxu0 0.0
    %542 = vmatpush1.xpose.msra.mxu0 0.0
    %543 = vmatprep.subr.mxu0 0.0
    %544 = vmatpush1.xpose.msra.mxu0 0.0
    %545 = vmatprep.subr.mxu0 0.0
    %546 = vmatpush1.xpose.msra.mxu0 0.0
    %547 = vmatprep.subr.mxu0 0.0
    %548 = vmatpush1.xpose.msra.mxu0 0.0
    %549 = vmatprep.subr.mxu0 0.0
    %550 = vmatpush1.xpose.msra.mxu0 0.0
    %551 = vmatprep.subr.mxu0 0.0
    %552 = vmatpush1.xpose.msra.mxu0 0.0
    %553 = vmatprep.subr.mxu0 0.0
    %554 = vmatpush1.xpose.msra.mxu0 0.0
    %555 = vmatprep.subr.mxu0 0.0
    %556 = vmatpush1.xpose.msra.mxu0 0.0
    %557 = vmatprep.subr.mxu0 0.0
    %558 = vmatpush1.xpose.msra.mxu0 0.0
    %559 = vmatprep.subr.mxu0 0.0
    %560 = vmatpush1.xpose.msra.mxu0 0.0
    %561 = vmatprep.subr.mxu0 0.0
    %562 = vmatpush1.xpose.msra.mxu0 0.0
    %563 = vmatprep.subr.mxu0 0.0
    %564 = vmatpush1.xpose.msra.mxu0 0.0
    %565 = vmatprep.subr.mxu0 0.0
    %566 = vmatpush1.xpose.msra.mxu0 0.0
    %567 = vmatprep.subr.mxu0 0.0
    %568 = vmatpush1.xpose.msra.mxu0 0.0
    %569 = vmatprep.subr.mxu0 0.0
    %570 = vmatpush1.xpose.msra.mxu0 0.0
    %571 = vmatprep.subr.mxu0 0.0
    %572 = vmatpush1.xpose.msra.mxu0 0.0
    %573 = vmatprep.mubr.f32.mxu0 %v40
    %574 = vmatmul.mubr.f32.gmra.mrb[0].mxu0 %v39
    %v575 = vpop.f32.mrb[0].mxu0
    %v576 = vadd.f32 0.0, %v575
    %v577 = vpop.f32.mrb[0].mxu0
    %578 = vmatprep.mubr.f32.mxu0 %v43
    %579 = vmatmul.mubr.f32.gmra.mrb[0].mxu0 %v42
    %v580 = vpop.f32.mrb[0].mxu0
    %v581 = vadd.f32 0.0, %v580
    %v582 = vpop.f32.mrb[0].mxu0
    %583 = vmatprep.mubr.f32.mxu0 %v46
    %584 = vmatmul.mubr.f32.gmra.mrb[0].mxu0 %v45
    %v585 = vpop.f32.mrb[0].mxu0
    %v586 = vadd.f32 0.0, %v585
    %v587 = vpop.f32.mrb[0].mxu0
    %588 = vmatprep.mubr.f32.mxu0 %v49
    %589 = vmatmul.mubr.f32.gmra.mrb[0].mxu0 %v48
    %v590 = vpop.f32.mrb[0].mxu0
    %v591 = vadd.f32 0.0, %v590
    %v592 = vpop.f32.mrb[0].mxu0
    %593 = vmatprep.mubr.f32.mxu0 %v52
    %594 = vmatmul.mubr.f32.gmra.mrb[0].mxu0 %v51
    %v595 = vpop.f32.mrb[0].mxu0
    %v596 = vadd.f32 0.0, %v595
    %v597 = vpop.f32.mrb[0].mxu0
    %598 = vmatprep.mubr.f32.mxu0 %v55
    %599 = vmatmul.mubr.f32.gmra.mrb[0].mxu0 %v54
    %v600 = vpop.f32.mrb[0].mxu0
    %v601 = vadd.f32 0.0, %v600
    %v602 = vpop.f32.mrb[0].mxu0
    %603 = vmatprep.mubr.f32.mxu0 %v58
    %604 = vmatmul.mubr.f32.gmra.mrb[0].mxu0 %v57
    %v605 = vpop.f32.mrb[0].mxu0
    %v606 = vadd.f32 0.0, %v605
    %v607 = vpop.f32.mrb[0].mxu0
    %608 = vmatprep.mubr.f32.mxu0 %v61
    %609 = vmatmul.mubr.f32.gmra.mrb[0].mxu0 %v60
    %v610 = vpop.f32.mrb[0].mxu0
    %v611 = vadd.f32 0.0, %v610
    %v612 = vpop.f32.mrb[0].mxu0
    %613 = vdwg.mxu0
    %v615 = vcombine.high %v36, %v36
    %617 = vmatprep.subr.mxu0 %v615
    %618 = vmatpush1.xpose.msra.mxu0 %v36
    %619 = vmatprep.subr.mxu0 0.0
    %620 = vmatpush1.xpose.msra.mxu0 0.0
    %621 = vmatprep.subr.mxu0 0.0
    %622 = vmatpush1.xpose.msra.mxu0 0.0
    %623 = vmatprep.subr.mxu0 0.0
    %624 = vmatpush1.xpose.msra.mxu0 0.0
    %625 = vmatprep.subr.mxu0 0.0
    %626 = vmatpush1.xpose.msra.mxu0 0.0
    %627 = vmatprep.subr.mxu0 0.0
    %628 = vmatpush1.xpose.msra.mxu0 0.0
    %629 = vmatprep.subr.mxu0 0.0
    %630 = vmatpush1.xpose.msra.mxu0 0.0
    %631 = vmatprep.subr.mxu0 0.0
    %632 = vmatpush1.xpose.msra.mxu0 0.0
    %633 = vmatprep.subr.mxu0 0.0
    %634 = vmatpush1.xpose.msra.mxu0 0.0
    %635 = vmatprep.subr.mxu0 0.0
    %636 = vmatpush1.xpose.msra.mxu0 0.0
    %637 = vmatprep.subr.mxu0 0.0
    %638 = vmatpush1.xpose.msra.mxu0 0.0
    %639 = vmatprep.subr.mxu0 0.0
    %640 = vmatpush1.xpose.msra.mxu0 0.0
    %641 = vmatprep.subr.mxu0 0.0
    %642 = vmatpush1.xpose.msra.mxu0 0.0
    %643 = vmatprep.subr.mxu0 0.0
    %644 = vmatpush1.xpose.msra.mxu0 0.0
    %645 = vmatprep.subr.mxu0 0.0
    %646 = vmatpush1.xpose.msra.mxu0 0.0
    %647 = vmatprep.subr.mxu0 0.0
    %648 = vmatpush1.xpose.msra.mxu0 0.0
    %649 = vmatprep.subr.mxu0 0.0
    %650 = vmatpush1.xpose.msra.mxu0 0.0
    %651 = vmatprep.subr.mxu0 0.0
    %652 = vmatpush1.xpose.msra.mxu0 0.0
    %653 = vmatprep.subr.mxu0 0.0
    %654 = vmatpush1.xpose.msra.mxu0 0.0
    %655 = vmatprep.subr.mxu0 0.0
    %656 = vmatpush1.xpose.msra.mxu0 0.0
    %657 = vmatprep.subr.mxu0 0.0
    %658 = vmatpush1.xpose.msra.mxu0 0.0
    %659 = vmatprep.subr.mxu0 0.0
    %660 = vmatpush1.xpose.msra.mxu0 0.0
    %661 = vmatprep.subr.mxu0 0.0
    %662 = vmatpush1.xpose.msra.mxu0 0.0
    %663 = vmatprep.subr.mxu0 0.0
    %664 = vmatpush1.xpose.msra.mxu0 0.0
    %665 = vmatprep.subr.mxu0 0.0
    %666 = vmatpush1.xpose.msra.mxu0 0.0
    %667 = vmatprep.subr.mxu0 0.0
    %668 = vmatpush1.xpose.msra.mxu0 0.0
    %669 = vmatprep.subr.mxu0 0.0
    %670 = vmatpush1.xpose.msra.mxu0 0.0
    %671 = vmatprep.subr.mxu0 0.0
    %672 = vmatpush1.xpose.msra.mxu0 0.0
    %673 = vmatprep.subr.mxu0 0.0
    %674 = vmatpush1.xpose.msra.mxu0 0.0
    %675 = vmatprep.subr.mxu0 0.0
    %676 = vmatpush1.xpose.msra.mxu0 0.0
    %677 = vmatprep.subr.mxu0 0.0
    %678 = vmatpush1.xpose.msra.mxu0 0.0
    %679 = vmatprep.subr.mxu0 0.0
    %680 = vmatpush1.xpose.msra.mxu0 0.0
    %681 = vmatprep.mubr.f32.mxu0 %v40
    %682 = vmatmul.mubr.f32.gmra.mrb[0].mxu0 %v39
    %v683 = vpop.f32.mrb[0].mxu0
    %v684 = vadd.f32 0.0, %v683
    %v685 = vpop.f32.mrb[0].mxu0
    %686 = vmatprep.mubr.f32.mxu0 %v43
    %687 = vmatmul.mubr.f32.gmra.mrb[0].mxu0 %v42
    %v688 = vpop.f32.mrb[0].mxu0
    %v689 = vadd.f32 0.0, %v688
    %v690 = vpop.f32.mrb[0].mxu0
    %691 = vmatprep.mubr.f32.mxu0 %v46
    %692 = vmatmul.mubr.f32.gmra.mrb[0].mxu0 %v45
    %v693 = vpop.f32.mrb[0].mxu0
    %v694 = vadd.f32 0.0, %v693
    %v695 = vpop.f32.mrb[0].mxu0
    %696 = vmatprep.mubr.f32.mxu0 %v49
    %697 = vmatmul.mubr.f32.gmra.mrb[0].mxu0 %v48
    %v698 = vpop.f32.mrb[0].mxu0
    %v699 = vadd.f32 0.0, %v698
    %v700 = vpop.f32.mrb[0].mxu0
    %701 = vmatprep.mubr.f32.mxu0 %v52
    %702 = vmatmul.mubr.f32.gmra.mrb[0].mxu0 %v51
    %v703 = vpop.f32.mrb[0].mxu0
    %v704 = vadd.f32 0.0, %v703
    %v705 = vpop.f32.mrb[0].mxu0
    %706 = vmatprep.mubr.f32.mxu0 %v55
    %707 = vmatmul.mubr.f32.gmra.mrb[0].mxu0 %v54
    %v708 = vpop.f32.mrb[0].mxu0
    %v709 = vadd.f32 0.0, %v708
    %v710 = vpop.f32.mrb[0].mxu0
    %711 = vmatprep.mubr.f32.mxu0 %v58
    %712 = vmatmul.mubr.f32.gmra.mrb[0].mxu0 %v57
    %v713 = vpop.f32.mrb[0].mxu0
    %v714 = vadd.f32 0.0, %v713
    %v715 = vpop.f32.mrb[0].mxu0
    %716 = vmatprep.mubr.f32.mxu0 %v61
    %717 = vmatmul.mubr.f32.gmra.mrb[0].mxu0 %v60
    %v718 = vpop.f32.mrb[0].mxu0
    %v719 = vadd.f32 0.0, %v718
    %v720 = vpop.f32.mrb[0].mxu0
    %721 = vdwg.mxu0
    %v723 = vcombine.high %v37, %v37
    %725 = vmatprep.subr.mxu0 %v723
    %726 = vmatpush1.xpose.msra.mxu0 %v37
    %727 = vmatprep.subr.mxu0 0.0
    %728 = vmatpush1.xpose.msra.mxu0 0.0
    %729 = vmatprep.subr.mxu0 0.0
    %730 = vmatpush1.xpose.msra.mxu0 0.0
    %731 = vmatprep.subr.mxu0 0.0
    %732 = vmatpush1.xpose.msra.mxu0 0.0
    %733 = vmatprep.subr.mxu0 0.0
    %734 = vmatpush1.xpose.msra.mxu0 0.0
    %735 = vmatprep.subr.mxu0 0.0
    %736 = vmatpush1.xpose.msra.mxu0 0.0
    %737 = vmatprep.subr.mxu0 0.0
    %738 = vmatpush1.xpose.msra.mxu0 0.0
    %739 = vmatprep.subr.mxu0 0.0
    %740 = vmatpush1.xpose.msra.mxu0 0.0
    %741 = vmatprep.subr.mxu0 0.0
    %742 = vmatpush1.xpose.msra.mxu0 0.0
    %743 = vmatprep.subr.mxu0 0.0
    %744 = vmatpush1.xpose.msra.mxu0 0.0
    %745 = vmatprep.subr.mxu0 0.0
    %746 = vmatpush1.xpose.msra.mxu0 0.0
    %747 = vmatprep.subr.mxu0 0.0
    %748 = vmatpush1.xpose.msra.mxu0 0.0
    %749 = vmatprep.subr.mxu0 0.0
    %750 = vmatpush1.xpose.msra.mxu0 0.0
    %751 = vmatprep.subr.mxu0 0.0
    %752 = vmatpush1.xpose.msra.mxu0 0.0
    %753 = vmatprep.subr.mxu0 0.0
    %754 = vmatpush1.xpose.msra.mxu0 0.0
    %755 = vmatprep.subr.mxu0 0.0
    %756 = vmatpush1.xpose.msra.mxu0 0.0
    %757 = vmatprep.subr.mxu0 0.0
    %758 = vmatpush1.xpose.msra.mxu0 0.0
    %759 = vmatprep.subr.mxu0 0.0
    %760 = vmatpush1.xpose.msra.mxu0 0.0
    %761 = vmatprep.subr.mxu0 0.0
    %762 = vmatpush1.xpose.msra.mxu0 0.0
    %763 = vmatprep.subr.mxu0 0.0
    %764 = vmatpush1.xpose.msra.mxu0 0.0
    %765 = vmatprep.subr.mxu0 0.0
    %766 = vmatpush1.xpose.msra.mxu0 0.0
    %767 = vmatprep.subr.mxu0 0.0
    %768 = vmatpush1.xpose.msra.mxu0 0.0
    %769 = vmatprep.subr.mxu0 0.0
    %770 = vmatpush1.xpose.msra.mxu0 0.0
    %771 = vmatprep.subr.mxu0 0.0
    %772 = vmatpush1.xpose.msra.mxu0 0.0
    %773 = vmatprep.subr.mxu0 0.0
    %774 = vmatpush1.xpose.msra.mxu0 0.0
    %775 = vmatprep.subr.mxu0 0.0
    %776 = vmatpush1.xpose.msra.mxu0 0.0
    %777 = vmatprep.subr.mxu0 0.0
    %778 = vmatpush1.xpose.msra.mxu0 0.0
    %779 = vmatprep.subr.mxu0 0.0
    %780 = vmatpush1.xpose.msra.mxu0 0.0
    %781 = vmatprep.subr.mxu0 0.0
    %782 = vmatpush1.xpose.msra.mxu0 0.0
    %783 = vmatprep.subr.mxu0 0.0
    %784 = vmatpush1.xpose.msra.mxu0 0.0
    %785 = vmatprep.subr.mxu0 0.0
    %786 = vmatpush1.xpose.msra.mxu0 0.0
    %787 = vmatprep.subr.mxu0 0.0
    %788 = vmatpush1.xpose.msra.mxu0 0.0
    %789 = vmatprep.mubr.f32.mxu0 %v40
    %790 = vmatmul.mubr.f32.gmra.mrb[0].mxu0 %v39
    %v791 = vpop.f32.mrb[0].mxu0
    %v792 = vadd.f32 0.0, %v791
    %v793 = vpop.f32.mrb[0].mxu0
    %794 = vmatprep.mubr.f32.mxu0 %v43
    %795 = vmatmul.mubr.f32.gmra.mrb[0].mxu0 %v42
    %v796 = vpop.f32.mrb[0].mxu0
    %v797 = vadd.f32 0.0, %v796
    %v798 = vpop.f32.mrb[0].mxu0
    %799 = vmatprep.mubr.f32.mxu0 %v46
    %800 = vmatmul.mubr.f32.gmra.mrb[0].mxu0 %v45
    %v801 = vpop.f32.mrb[0].mxu0
    %v802 = vadd.f32 0.0, %v801
    %v803 = vpop.f32.mrb[0].mxu0
    %804 = vmatprep.mubr.f32.mxu0 %v49
    %805 = vmatmul.mubr.f32.gmra.mrb[0].mxu0 %v48
    %v806 = vpop.f32.mrb[0].mxu0
    %v807 = vadd.f32 0.0, %v806
    %v808 = vpop.f32.mrb[0].mxu0
    %809 = vmatprep.mubr.f32.mxu0 %v52
    %810 = vmatmul.mubr.f32.gmra.mrb[0].mxu0 %v51
    %v811 = vpop.f32.mrb[0].mxu0
    %v812 = vadd.f32 0.0, %v811
    %v813 = vpop.f32.mrb[0].mxu0
    %814 = vmatprep.mubr.f32.mxu0 %v55
    %815 = vmatmul.mubr.f32.gmra.mrb[0].mxu0 %v54
    %v816 = vpop.f32.mrb[0].mxu0
    %v817 = vadd.f32 0.0, %v816
    %v818 = vpop.f32.mrb[0].mxu0
    %819 = vmatprep.mubr.f32.mxu0 %v58
    %820 = vmatmul.mubr.f32.gmra.mrb[0].mxu0 %v57
    %v821 = vpop.f32.mrb[0].mxu0
    %v822 = vadd.f32 0.0, %v821
    %v823 = vpop.f32.mrb[0].mxu0
    %824 = vmatprep.mubr.f32.mxu0 %v61
    %825 = vmatmul.mubr.f32.gmra.mrb[0].mxu0 %v60
    %v826 = vpop.f32.mrb[0].mxu0
    %v827 = vadd.f32 0.0, %v826
    %v828 = vpop.f32.mrb[0].mxu0
    %829 = vdwg.mxu0
    %v831 = vcombine.high %v38, %v38
    %833 = vmatprep.subr.mxu0 %v831
    %834 = vmatpush1.xpose.msra.mxu0 %v38
    %835 = vmatprep.subr.mxu0 0.0
    %836 = vmatpush1.xpose.msra.mxu0 0.0
    %837 = vmatprep.subr.mxu0 0.0
    %838 = vmatpush1.xpose.msra.mxu0 0.0
    %839 = vmatprep.subr.mxu0 0.0
    %840 = vmatpush1.xpose.msra.mxu0 0.0
    %841 = vmatprep.subr.mxu0 0.0
    %842 = vmatpush1.xpose.msra.mxu0 0.0
    %843 = vmatprep.subr.mxu0 0.0
    %844 = vmatpush1.xpose.msra.mxu0 0.0
    %845 = vmatprep.subr.mxu0 0.0
    %846 = vmatpush1.xpose.msra.mxu0 0.0
    %847 = vmatprep.subr.mxu0 0.0
    %848 = vmatpush1.xpose.msra.mxu0 0.0
    %849 = vmatprep.subr.mxu0 0.0
    %850 = vmatpush1.xpose.msra.mxu0 0.0
    %851 = vmatprep.subr.mxu0 0.0
    %852 = vmatpush1.xpose.msra.mxu0 0.0
    %853 = vmatprep.subr.mxu0 0.0
    %854 = vmatpush1.xpose.msra.mxu0 0.0
    %855 = vmatprep.subr.mxu0 0.0
    %856 = vmatpush1.xpose.msra.mxu0 0.0
    %857 = vmatprep.subr.mxu0 0.0
    %858 = vmatpush1.xpose.msra.mxu0 0.0
    %859 = vmatprep.subr.mxu0 0.0
    %860 = vmatpush1.xpose.msra.mxu0 0.0
    %861 = vmatprep.subr.mxu0 0.0
    %862 = vmatpush1.xpose.msra.mxu0 0.0
    %863 = vmatprep.subr.mxu0 0.0
    %864 = vmatpush1.xpose.msra.mxu0 0.0
    %865 = vmatprep.subr.mxu0 0.0
    %866 = vmatpush1.xpose.msra.mxu0 0.0
    %867 = vmatprep.subr.mxu0 0.0
    %868 = vmatpush1.xpose.msra.mxu0 0.0
    %869 = vmatprep.subr.mxu0 0.0
    %870 = vmatpush1.xpose.msra.mxu0 0.0
    %871 = vmatprep.subr.mxu0 0.0
    %872 = vmatpush1.xpose.msra.mxu0 0.0
    %873 = vmatprep.subr.mxu0 0.0
    %874 = vmatpush1.xpose.msra.mxu0 0.0
    %875 = vmatprep.subr.mxu0 0.0
    %876 = vmatpush1.xpose.msra.mxu0 0.0
    %877 = vmatprep.subr.mxu0 0.0
    %878 = vmatpush1.xpose.msra.mxu0 0.0
    %879 = vmatprep.subr.mxu0 0.0
    %880 = vmatpush1.xpose.msra.mxu0 0.0
    %881 = vmatprep.subr.mxu0 0.0
    %882 = vmatpush1.xpose.msra.mxu0 0.0
    %883 = vmatprep.subr.mxu0 0.0
    %884 = vmatpush1.xpose.msra.mxu0 0.0
    %885 = vmatprep.subr.mxu0 0.0
    %886 = vmatpush1.xpose.msra.mxu0 0.0
    %887 = vmatprep.subr.mxu0 0.0
    %888 = vmatpush1.xpose.msra.mxu0 0.0
    %889 = vmatprep.subr.mxu0 0.0
    %890 = vmatpush1.xpose.msra.mxu0 0.0
    %891 = vmatprep.subr.mxu0 0.0
    %892 = vmatpush1.xpose.msra.mxu0 0.0
    %893 = vmatprep.subr.mxu0 0.0
    %894 = vmatpush1.xpose.msra.mxu0 0.0
    %895 = vmatprep.subr.mxu0 0.0
    %896 = vmatpush1.xpose.msra.mxu0 0.0
    %897 = vmatprep.mubr.f32.mxu0 %v40
    %898 = vmatmul.mubr.f32.gmra.mrb[0].mxu0 %v39
    %v899 = vpop.f32.mrb[0].mxu0
    %v900 = vadd.f32 0.0, %v899
    %v901 = vpop.f32.mrb[0].mxu0
    %902 = vmatprep.mubr.f32.mxu0 %v43
    %903 = vmatmul.mubr.f32.gmra.mrb[0].mxu0 %v42
    %v904 = vpop.f32.mrb[0].mxu0
    %v905 = vadd.f32 0.0, %v904
    %v906 = vpop.f32.mrb[0].mxu0
    %907 = vmatprep.mubr.f32.mxu0 %v46
    %908 = vmatmul.mubr.f32.gmra.mrb[0].mxu0 %v45
    %v909 = vpop.f32.mrb[0].mxu0
    %v910 = vadd.f32 0.0, %v909
    %v911 = vpop.f32.mrb[0].mxu0
    %912 = vmatprep.mubr.f32.mxu0 %v49
    %913 = vmatmul.mubr.f32.gmra.mrb[0].mxu0 %v48
    %v914 = vpop.f32.mrb[0].mxu0
    %v915 = vadd.f32 0.0, %v914
    %v916 = vpop.f32.mrb[0].mxu0
    %917 = vmatprep.mubr.f32.mxu0 %v52
    %918 = vmatmul.mubr.f32.gmra.mrb[0].mxu0 %v51
    %v919 = vpop.f32.mrb[0].mxu0
    %v920 = vadd.f32 0.0, %v919
    %v921 = vpop.f32.mrb[0].mxu0
    %922 = vmatprep.mubr.f32.mxu0 %v55
    %923 = vmatmul.mubr.f32.gmra.mrb[0].mxu0 %v54
    %v924 = vpop.f32.mrb[0].mxu0
    %v925 = vadd.f32 0.0, %v924
    %v926 = vpop.f32.mrb[0].mxu0
    %927 = vmatprep.mubr.f32.mxu0 %v58
    %928 = vmatmul.mubr.f32.gmra.mrb[0].mxu0 %v57
    %v929 = vpop.f32.mrb[0].mxu0
    %v930 = vadd.f32 0.0, %v929
    %v931 = vpop.f32.mrb[0].mxu0
    %932 = vmatprep.mubr.f32.mxu0 %v61
    %933 = vmatmul.mubr.f32.gmra.mrb[0].mxu0 %v60
    %v934 = vpop.f32.mrb[0].mxu0
    %v935 = vadd.f32 0.0, %v934
    %v936 = vpop.f32.mrb[0].mxu0
    %937 = vdwg.mxu0
    %vm938 = vcmask 523264
    %v940 = vsel %vm938, %v41, 0
    %v943 = vsel %vm938, %v44, 0
    %v946 = vsel %vm938, %v47, 0
    %v949 = vsel %vm938, %v50, 0
    %v952 = vsel %vm938, %v53, 0
    %v955 = vsel %vm938, %v56, 0
    %v958 = vsel %vm938, %v59, 0
    %v961 = vsel %vm938, %v62, 0
    %963 = vmatprep.subr.mxu0 0.0
    %964 = vmatpush1.msra.mxu0 %v144
    %965 = vmatprep.subr.mxu0 0.0
    %966 = vmatpush1.msra.mxu0 %v149
    %967 = vmatprep.subr.mxu0 0.0
    %968 = vmatpush1.msra.mxu0 %v154
    %969 = vmatprep.subr.mxu0 0.0
    %970 = vmatpush1.msra.mxu0 %v159
    %971 = vmatprep.subr.mxu0 0.0
    %972 = vmatpush1.msra.mxu0 %v164
    %973 = vmatprep.subr.mxu0 0.0
    %974 = vmatpush1.msra.mxu0 %v169
    %975 = vmatprep.subr.mxu0 0.0
    %976 = vmatpush1.msra.mxu0 %v174
    %977 = vmatprep.subr.mxu0 0.0
    %978 = vmatpush1.msra.mxu0 %v179
    %979 = vmatprep.subr.mxu0 0.0
    %980 = vmatpush1.msra.mxu0 0.0
    %981 = vmatprep.subr.mxu0 0.0
    %982 = vmatpush1.msra.mxu0 0.0
    %983 = vmatprep.subr.mxu0 0.0
    %984 = vmatpush1.msra.mxu0 0.0
    %985 = vmatprep.subr.mxu0 0.0
    %986 = vmatpush1.msra.mxu0 0.0
    %987 = vmatprep.subr.mxu0 0.0
    %988 = vmatpush1.msra.mxu0 0.0
    %989 = vmatprep.subr.mxu0 0.0
    %990 = vmatpush1.msra.mxu0 0.0
    %991 = vmatprep.subr.mxu0 0.0
    %992 = vmatpush1.msra.mxu0 0.0
    %993 = vmatprep.subr.mxu0 0.0
    %994 = vmatpush1.msra.mxu0 0.0
    %995 = vmatprep.subr.mxu0 0.0
    %996 = vmatpush1.msra.mxu0 0.0
    %997 = vmatprep.subr.mxu0 0.0
    %998 = vmatpush1.msra.mxu0 0.0
    %999 = vmatprep.subr.mxu0 0.0
    %1000 = vmatpush1.msra.mxu0 0.0
    %1001 = vmatprep.subr.mxu0 0.0
    %1002 = vmatpush1.msra.mxu0 0.0
    %1003 = vmatprep.subr.mxu0 0.0
    %1004 = vmatpush1.msra.mxu0 0.0
    %1005 = vmatprep.subr.mxu0 0.0
    %1006 = vmatpush1.msra.mxu0 0.0
    %1007 = vmatprep.subr.mxu0 0.0
    %1008 = vmatpush1.msra.mxu0 0.0
    %1009 = vmatprep.subr.mxu0 0.0
    %1010 = vmatpush1.msra.mxu0 0.0
    %1011 = vmatprep.subr.mxu0 0.0
    %1012 = vmatpush1.msra.mxu0 0.0
    %1013 = vmatprep.subr.mxu0 0.0
    %1014 = vmatpush1.msra.mxu0 0.0
    %1015 = vmatprep.subr.mxu0 0.0
    %1016 = vmatpush1.msra.mxu0 0.0
    %1017 = vmatprep.subr.mxu0 0.0
    %1018 = vmatpush1.msra.mxu0 0.0
    %1019 = vmatprep.subr.mxu0 0.0
    %1020 = vmatpush1.msra.mxu0 0.0
    %1021 = vmatprep.subr.mxu0 0.0
    %1022 = vmatpush1.msra.mxu0 0.0
    %1023 = vmatprep.subr.mxu0 0.0
    %1024 = vmatpush1.msra.mxu0 0.0
    %1025 = vmatprep.subr.mxu0 0.0
    %1026 = vmatpush1.msra.mxu0 0.0
    %1027 = vmatprep.mubr.f32.mxu0 0.0
    %1028 = vmatmul.mubr.f32.gmra.mrb[0].mxu0 %v940
    %v1029 = vpop.f32.mrb[0].mxu0
    %v1030 = vadd.f32 0.0, %v1029
    %v1031 = vpop.f32.mrb[0].mxu0
    %1032 = vmatprep.mubr.f32.mxu0 0.0
    %1033 = vmatmul.mubr.f32.gmra.mrb[0].mxu0 %v943
    %v1034 = vpop.f32.mrb[0].mxu0
    %v1035 = vadd.f32 0.0, %v1034
    %v1036 = vpop.f32.mrb[0].mxu0
    %1037 = vmatprep.mubr.f32.mxu0 0.0
    %1038 = vmatmul.mubr.f32.gmra.mrb[0].mxu0 %v946
    %v1039 = vpop.f32.mrb[0].mxu0
    %v1040 = vadd.f32 0.0, %v1039
    %v1041 = vpop.f32.mrb[0].mxu0
    %1042 = vmatprep.mubr.f32.mxu0 0.0
    %1043 = vmatmul.mubr.f32.gmra.mrb[0].mxu0 %v949
    %v1044 = vpop.f32.mrb[0].mxu0
    %v1045 = vadd.f32 0.0, %v1044
    %v1046 = vpop.f32.mrb[0].mxu0
    %1047 = vmatprep.mubr.f32.mxu0 0.0
    %1048 = vmatmul.mubr.f32.gmra.mrb[0].mxu0 %v952
    %v1049 = vpop.f32.mrb[0].mxu0
    %v1050 = vadd.f32 0.0, %v1049
    %v1051 = vpop.f32.mrb[0].mxu0
    %1052 = vmatprep.mubr.f32.mxu0 0.0
    %1053 = vmatmul.mubr.f32.gmra.mrb[0].mxu0 %v955
    %v1054 = vpop.f32.mrb[0].mxu0
    %v1055 = vadd.f32 0.0, %v1054
    %v1056 = vpop.f32.mrb[0].mxu0
    %1057 = vmatprep.mubr.f32.mxu0 0.0
    %1058 = vmatmul.mubr.f32.gmra.mrb[0].mxu0 %v958
    %v1059 = vpop.f32.mrb[0].mxu0
    %v1060 = vadd.f32 0.0, %v1059
    %v1061 = vpop.f32.mrb[0].mxu0
    %1062 = vmatprep.mubr.f32.mxu0 0.0
    %1063 = vmatmul.mubr.f32.gmra.mrb[0].mxu0 %v961
    %v1064 = vpop.f32.mrb[0].mxu0
    %v1065 = vadd.f32 0.0, %v1064
    %v1066 = vpop.f32.mrb[0].mxu0
    %1067 = vdwg.mxu0
    %1068 = vmatprep.subr.mxu0 0.0
    %1069 = vmatpush1.msra.mxu0 %v252
    %1070 = vmatprep.subr.mxu0 0.0
    %1071 = vmatpush1.msra.mxu0 %v257
    %1072 = vmatprep.subr.mxu0 0.0
    %1073 = vmatpush1.msra.mxu0 %v262
    %1074 = vmatprep.subr.mxu0 0.0
    %1075 = vmatpush1.msra.mxu0 %v267
    %1076 = vmatprep.subr.mxu0 0.0
    %1077 = vmatpush1.msra.mxu0 %v272
    %1078 = vmatprep.subr.mxu0 0.0
    %1079 = vmatpush1.msra.mxu0 %v277
    %1080 = vmatprep.subr.mxu0 0.0
    %1081 = vmatpush1.msra.mxu0 %v282
    %1082 = vmatprep.subr.mxu0 0.0
    %1083 = vmatpush1.msra.mxu0 %v287
    %1084 = vmatprep.subr.mxu0 0.0
    %1085 = vmatpush1.msra.mxu0 0.0
    %1086 = vmatprep.subr.mxu0 0.0
    %1087 = vmatpush1.msra.mxu0 0.0
    %1088 = vmatprep.subr.mxu0 0.0
    %1089 = vmatpush1.msra.mxu0 0.0
    %1090 = vmatprep.subr.mxu0 0.0
    %1091 = vmatpush1.msra.mxu0 0.0
    %1092 = vmatprep.subr.mxu0 0.0
    %1093 = vmatpush1.msra.mxu0 0.0
    %1094 = vmatprep.subr.mxu0 0.0
    %1095 = vmatpush1.msra.mxu0 0.0
    %1096 = vmatprep.subr.mxu0 0.0
    %1097 = vmatpush1.msra.mxu0 0.0
    %1098 = vmatprep.subr.mxu0 0.0
    %1099 = vmatpush1.msra.mxu0 0.0
    %1100 = vmatprep.subr.mxu0 0.0
    %1101 = vmatpush1.msra.mxu0 0.0
    %1102 = vmatprep.subr.mxu0 0.0
    %1103 = vmatpush1.msra.mxu0 0.0
    %1104 = vmatprep.subr.mxu0 0.0
    %1105 = vmatpush1.msra.mxu0 0.0
    %1106 = vmatprep.subr.mxu0 0.0
    %1107 = vmatpush1.msra.mxu0 0.0
    %1108 = vmatprep.subr.mxu0 0.0
    %1109 = vmatpush1.msra.mxu0 0.0
    %1110 = vmatprep.subr.mxu0 0.0
    %1111 = vmatpush1.msra.mxu0 0.0
    %1112 = vmatprep.subr.mxu0 0.0
    %1113 = vmatpush1.msra.mxu0 0.0
    %1114 = vmatprep.subr.mxu0 0.0
    %1115 = vmatpush1.msra.mxu0 0.0
    %1116 = vmatprep.subr.mxu0 0.0
    %1117 = vmatpush1.msra.mxu0 0.0
    %1118 = vmatprep.subr.mxu0 0.0
    %1119 = vmatpush1.msra.mxu0 0.0
    %1120 = vmatprep.subr.mxu0 0.0
    %1121 = vmatpush1.msra.mxu0 0.0
    %1122 = vmatprep.subr.mxu0 0.0
    %1123 = vmatpush1.msra.mxu0 0.0
    %1124 = vmatprep.subr.mxu0 0.0
    %1125 = vmatpush1.msra.mxu0 0.0
    %1126 = vmatprep.subr.mxu0 0.0
    %1127 = vmatpush1.msra.mxu0 0.0
    %1128 = vmatprep.subr.mxu0 0.0
    %1129 = vmatpush1.msra.mxu0 0.0
    %1130 = vmatprep.subr.mxu0 0.0
    %1131 = vmatpush1.msra.mxu0 0.0
    %1132 = vmatprep.mubr.f32.mxu0 0.0
    %1133 = vmatmul.mubr.f32.gmra.mrb[0].mxu0 %v940
    %v1134 = vpop.f32.mrb[0].mxu0
    %v1135 = vadd.f32 0.0, %v1134
    %v1136 = vpop.f32.mrb[0].mxu0
    %1137 = vmatprep.mubr.f32.mxu0 0.0
    %1138 = vmatmul.mubr.f32.gmra.mrb[0].mxu0 %v943
    %v1139 = vpop.f32.mrb[0].mxu0
    %v1140 = vadd.f32 0.0, %v1139
    %v1141 = vpop.f32.mrb[0].mxu0
    %1142 = vmatprep.mubr.f32.mxu0 0.0
    %1143 = vmatmul.mubr.f32.gmra.mrb[0].mxu0 %v946
    %v1144 = vpop.f32.mrb[0].mxu0
    %v1145 = vadd.f32 0.0, %v1144
    %v1146 = vpop.f32.mrb[0].mxu0
    %1147 = vmatprep.mubr.f32.mxu0 0.0
    %1148 = vmatmul.mubr.f32.gmra.mrb[0].mxu0 %v949
    %v1149 = vpop.f32.mrb[0].mxu0
    %v1150 = vadd.f32 0.0, %v1149
    %v1151 = vpop.f32.mrb[0].mxu0
    %1152 = vmatprep.mubr.f32.mxu0 0.0
    %1153 = vmatmul.mubr.f32.gmra.mrb[0].mxu0 %v952
    %v1154 = vpop.f32.mrb[0].mxu0
    %v1155 = vadd.f32 0.0, %v1154
    %v1156 = vpop.f32.mrb[0].mxu0
    %1157 = vmatprep.mubr.f32.mxu0 0.0
    %1158 = vmatmul.mubr.f32.gmra.mrb[0].mxu0 %v955
    %v1159 = vpop.f32.mrb[0].mxu0
    %v1160 = vadd.f32 0.0, %v1159
    %v1161 = vpop.f32.mrb[0].mxu0
    %1162 = vmatprep.mubr.f32.mxu0 0.0
    %1163 = vmatmul.mubr.f32.gmra.mrb[0].mxu0 %v958
    %v1164 = vpop.f32.mrb[0].mxu0
    %v1165 = vadd.f32 0.0, %v1164
    %v1166 = vpop.f32.mrb[0].mxu0
    %1167 = vmatprep.mubr.f32.mxu0 0.0
    %1168 = vmatmul.mubr.f32.gmra.mrb[0].mxu0 %v961
    %v1169 = vpop.f32.mrb[0].mxu0
    %v1170 = vadd.f32 0.0, %v1169
    %v1171 = vpop.f32.mrb[0].mxu0
    %1172 = vdwg.mxu0
    %1173 = vmatprep.subr.mxu0 0.0
    %1174 = vmatpush1.msra.mxu0 %v360
    %1175 = vmatprep.subr.mxu0 0.0
    %1176 = vmatpush1.msra.mxu0 %v365
    %1177 = vmatprep.subr.mxu0 0.0
    %1178 = vmatpush1.msra.mxu0 %v370
    %1179 = vmatprep.subr.mxu0 0.0
    %1180 = vmatpush1.msra.mxu0 %v375
    %1181 = vmatprep.subr.mxu0 0.0
    %1182 = vmatpush1.msra.mxu0 %v380
    %1183 = vmatprep.subr.mxu0 0.0
    %1184 = vmatpush1.msra.mxu0 %v385
    %1185 = vmatprep.subr.mxu0 0.0
    %1186 = vmatpush1.msra.mxu0 %v390
    %1187 = vmatprep.subr.mxu0 0.0
    %1188 = vmatpush1.msra.mxu0 %v395
    %1189 = vmatprep.subr.mxu0 0.0
    %1190 = vmatpush1.msra.mxu0 0.0
    %1191 = vmatprep.subr.mxu0 0.0
    %1192 = vmatpush1.msra.mxu0 0.0
    %1193 = vmatprep.subr.mxu0 0.0
    %1194 = vmatpush1.msra.mxu0 0.0
    %1195 = vmatprep.subr.mxu0 0.0
    %1196 = vmatpush1.msra.mxu0 0.0
    %1197 = vmatprep.subr.mxu0 0.0
    %1198 = vmatpush1.msra.mxu0 0.0
    %1199 = vmatprep.subr.mxu0 0.0
    %1200 = vmatpush1.msra.mxu0 0.0
    %1201 = vmatprep.subr.mxu0 0.0
    %1202 = vmatpush1.msra.mxu0 0.0
    %1203 = vmatprep.subr.mxu0 0.0
    %1204 = vmatpush1.msra.mxu0 0.0
    %1205 = vmatprep.subr.mxu0 0.0
    %1206 = vmatpush1.msra.mxu0 0.0
    %1207 = vmatprep.subr.mxu0 0.0
    %1208 = vmatpush1.msra.mxu0 0.0
    %1209 = vmatprep.subr.mxu0 0.0
    %1210 = vmatpush1.msra.mxu0 0.0
    %1211 = vmatprep.subr.mxu0 0.0
    %1212 = vmatpush1.msra.mxu0 0.0
    %1213 = vmatprep.subr.mxu0 0.0
    %1214 = vmatpush1.msra.mxu0 0.0
    %1215 = vmatprep.subr.mxu0 0.0
    %1216 = vmatpush1.msra.mxu0 0.0
    %1217 = vmatprep.subr.mxu0 0.0
    %1218 = vmatpush1.msra.mxu0 0.0
    %1219 = vmatprep.subr.mxu0 0.0
    %1220 = vmatpush1.msra.mxu0 0.0
    %1221 = vmatprep.subr.mxu0 0.0
    %1222 = vmatpush1.msra.mxu0 0.0
    %1223 = vmatprep.subr.mxu0 0.0
    %1224 = vmatpush1.msra.mxu0 0.0
    %1225 = vmatprep.subr.mxu0 0.0
    %1226 = vmatpush1.msra.mxu0 0.0
    %1227 = vmatprep.subr.mxu0 0.0
    %1228 = vmatpush1.msra.mxu0 0.0
    %1229 = vmatprep.subr.mxu0 0.0
    %1230 = vmatpush1.msra.mxu0 0.0
    %1231 = vmatprep.subr.mxu0 0.0
    %1232 = vmatpush1.msra.mxu0 0.0
    %1233 = vmatprep.subr.mxu0 0.0
    %1234 = vmatpush1.msra.mxu0 0.0
    %1235 = vmatprep.subr.mxu0 0.0
    %1236 = vmatpush1.msra.mxu0 0.0
    %1237 = vmatprep.mubr.f32.mxu0 0.0
    %1238 = vmatmul.mubr.f32.gmra.mrb[0].mxu0 %v940
    %v1239 = vpop.f32.mrb[0].mxu0
    %v1240 = vadd.f32 0.0, %v1239
    %v1241 = vpop.f32.mrb[0].mxu0
    %1242 = vmatprep.mubr.f32.mxu0 0.0
    %1243 = vmatmul.mubr.f32.gmra.mrb[0].mxu0 %v943
    %v1244 = vpop.f32.mrb[0].mxu0
    %v1245 = vadd.f32 0.0, %v1244
    %v1246 = vpop.f32.mrb[0].mxu0
    %1247 = vmatprep.mubr.f32.mxu0 0.0
    %1248 = vmatmul.mubr.f32.gmra.mrb[0].mxu0 %v946
    %v1249 = vpop.f32.mrb[0].mxu0
    %v1250 = vadd.f32 0.0, %v1249
    %v1251 = vpop.f32.mrb[0].mxu0
    %1252 = vmatprep.mubr.f32.mxu0 0.0
    %1253 = vmatmul.mubr.f32.gmra.mrb[0].mxu0 %v949
    %v1254 = vpop.f32.mrb[0].mxu0
    %v1255 = vadd.f32 0.0, %v1254
    %v1256 = vpop.f32.mrb[0].mxu0
    %1257 = vmatprep.mubr.f32.mxu0 0.0
    %1258 = vmatmul.mubr.f32.gmra.mrb[0].mxu0 %v952
    %v1259 = vpop.f32.mrb[0].mxu0
    %v1260 = vadd.f32 0.0, %v1259
    %v1261 = vpop.f32.mrb[0].mxu0
    %1262 = vmatprep.mubr.f32.mxu0 0.0
    %1263 = vmatmul.mubr.f32.gmra.mrb[0].mxu0 %v955
    %v1264 = vpop.f32.mrb[0].mxu0
    %v1265 = vadd.f32 0.0, %v1264
    %v1266 = vpop.f32.mrb[0].mxu0
    %1267 = vmatprep.mubr.f32.mxu0 0.0
    %1268 = vmatmul.mubr.f32.gmra.mrb[0].mxu0 %v958
    %v1269 = vpop.f32.mrb[0].mxu0
    %v1270 = vadd.f32 0.0, %v1269
    %v1271 = vpop.f32.mrb[0].mxu0
    %1272 = vmatprep.mubr.f32.mxu0 0.0
    %1273 = vmatmul.mubr.f32.gmra.mrb[0].mxu0 %v961
    %v1274 = vpop.f32.mrb[0].mxu0
    %v1275 = vadd.f32 0.0, %v1274
    %v1276 = vpop.f32.mrb[0].mxu0
    %1277 = vdwg.mxu0
    %1278 = vmatprep.subr.mxu0 0.0
    %1279 = vmatpush1.msra.mxu0 %v468
    %1280 = vmatprep.subr.mxu0 0.0
    %1281 = vmatpush1.msra.mxu0 %v473
    %1282 = vmatprep.subr.mxu0 0.0
    %1283 = vmatpush1.msra.mxu0 %v478
    %1284 = vmatprep.subr.mxu0 0.0
    %1285 = vmatpush1.msra.mxu0 %v483
    %1286 = vmatprep.subr.mxu0 0.0
    %1287 = vmatpush1.msra.mxu0 %v488
    %1288 = vmatprep.subr.mxu0 0.0
    %1289 = vmatpush1.msra.mxu0 %v493
    %1290 = vmatprep.subr.mxu0 0.0
    %1291 = vmatpush1.msra.mxu0 %v498
    %1292 = vmatprep.subr.mxu0 0.0
    %1293 = vmatpush1.msra.mxu0 %v503
    %1294 = vmatprep.subr.mxu0 0.0
    %1295 = vmatpush1.msra.mxu0 0.0
    %1296 = vmatprep.subr.mxu0 0.0
    %1297 = vmatpush1.msra.mxu0 0.0
    %1298 = vmatprep.subr.mxu0 0.0
    %1299 = vmatpush1.msra.mxu0 0.0
    %1300 = vmatprep.subr.mxu0 0.0
    %1301 = vmatpush1.msra.mxu0 0.0
    %1302 = vmatprep.subr.mxu0 0.0
    %1303 = vmatpush1.msra.mxu0 0.0
    %1304 = vmatprep.subr.mxu0 0.0
    %1305 = vmatpush1.msra.mxu0 0.0
    %1306 = vmatprep.subr.mxu0 0.0
    %1307 = vmatpush1.msra.mxu0 0.0
    %1308 = vmatprep.subr.mxu0 0.0
    %1309 = vmatpush1.msra.mxu0 0.0
    %1310 = vmatprep.subr.mxu0 0.0
    %1311 = vmatpush1.msra.mxu0 0.0
    %1312 = vmatprep.subr.mxu0 0.0
    %1313 = vmatpush1.msra.mxu0 0.0
    %1314 = vmatprep.subr.mxu0 0.0
    %1315 = vmatpush1.msra.mxu0 0.0
    %1316 = vmatprep.subr.mxu0 0.0
    %1317 = vmatpush1.msra.mxu0 0.0
    %1318 = vmatprep.subr.mxu0 0.0
    %1319 = vmatpush1.msra.mxu0 0.0
    %1320 = vmatprep.subr.mxu0 0.0
    %1321 = vmatpush1.msra.mxu0 0.0
    %1322 = vmatprep.subr.mxu0 0.0
    %1323 = vmatpush1.msra.mxu0 0.0
    %1324 = vmatprep.subr.mxu0 0.0
    %1325 = vmatpush1.msra.mxu0 0.0
    %1326 = vmatprep.subr.mxu0 0.0
    %1327 = vmatpush1.msra.mxu0 0.0
    %1328 = vmatprep.subr.mxu0 0.0
    %1329 = vmatpush1.msra.mxu0 0.0
    %1330 = vmatprep.subr.mxu0 0.0
    %1331 = vmatpush1.msra.mxu0 0.0
    %1332 = vmatprep.subr.mxu0 0.0
    %1333 = vmatpush1.msra.mxu0 0.0
    %1334 = vmatprep.subr.mxu0 0.0
    %1335 = vmatpush1.msra.mxu0 0.0
    %1336 = vmatprep.subr.mxu0 0.0
    %1337 = vmatpush1.msra.mxu0 0.0
    %1338 = vmatprep.subr.mxu0 0.0
    %1339 = vmatpush1.msra.mxu0 0.0
    %1340 = vmatprep.subr.mxu0 0.0
    %1341 = vmatpush1.msra.mxu0 0.0
    %1342 = vmatprep.mubr.f32.mxu0 0.0
    %1343 = vmatmul.mubr.f32.gmra.mrb[0].mxu0 %v940
    %v1344 = vpop.f32.mrb[0].mxu0
    %v1345 = vadd.f32 0.0, %v1344
    %v1346 = vpop.f32.mrb[0].mxu0
    %1347 = vmatprep.mubr.f32.mxu0 0.0
    %1348 = vmatmul.mubr.f32.gmra.mrb[0].mxu0 %v943
    %v1349 = vpop.f32.mrb[0].mxu0
    %v1350 = vadd.f32 0.0, %v1349
    %v1351 = vpop.f32.mrb[0].mxu0
    %1352 = vmatprep.mubr.f32.mxu0 0.0
    %1353 = vmatmul.mubr.f32.gmra.mrb[0].mxu0 %v946
    %v1354 = vpop.f32.mrb[0].mxu0
    %v1355 = vadd.f32 0.0, %v1354
    %v1356 = vpop.f32.mrb[0].mxu0
    %1357 = vmatprep.mubr.f32.mxu0 0.0
    %1358 = vmatmul.mubr.f32.gmra.mrb[0].mxu0 %v949
    %v1359 = vpop.f32.mrb[0].mxu0
    %v1360 = vadd.f32 0.0, %v1359
    %v1361 = vpop.f32.mrb[0].mxu0
    %1362 = vmatprep.mubr.f32.mxu0 0.0
    %1363 = vmatmul.mubr.f32.gmra.mrb[0].mxu0 %v952
    %v1364 = vpop.f32.mrb[0].mxu0
    %v1365 = vadd.f32 0.0, %v1364
    %v1366 = vpop.f32.mrb[0].mxu0
    %1367 = vmatprep.mubr.f32.mxu0 0.0
    %1368 = vmatmul.mubr.f32.gmra.mrb[0].mxu0 %v955
    %v1369 = vpop.f32.mrb[0].mxu0
    %v1370 = vadd.f32 0.0, %v1369
    %v1371 = vpop.f32.mrb[0].mxu0
    %1372 = vmatprep.mubr.f32.mxu0 0.0
    %1373 = vmatmul.mubr.f32.gmra.mrb[0].mxu0 %v958
    %v1374 = vpop.f32.mrb[0].mxu0
    %v1375 = vadd.f32 0.0, %v1374
    %v1376 = vpop.f32.mrb[0].mxu0
    %1377 = vmatprep.mubr.f32.mxu0 0.0
    %1378 = vmatmul.mubr.f32.gmra.mrb[0].mxu0 %v961
    %v1379 = vpop.f32.mrb[0].mxu0
    %v1380 = vadd.f32 0.0, %v1379
    %v1381 = vpop.f32.mrb[0].mxu0
    %1382 = vdwg.mxu0
    %1383 = vmatprep.subr.mxu0 0.0
    %1384 = vmatpush1.msra.mxu0 %v576
    %1385 = vmatprep.subr.mxu0 0.0
    %1386 = vmatpush1.msra.mxu0 %v581
    %1387 = vmatprep.subr.mxu0 0.0
    %1388 = vmatpush1.msra.mxu0 %v586
    %1389 = vmatprep.subr.mxu0 0.0
    %1390 = vmatpush1.msra.mxu0 %v591
    %1391 = vmatprep.subr.mxu0 0.0
    %1392 = vmatpush1.msra.mxu0 %v596
    %1393 = vmatprep.subr.mxu0 0.0
    %1394 = vmatpush1.msra.mxu0 %v601
    %1395 = vmatprep.subr.mxu0 0.0
    %1396 = vmatpush1.msra.mxu0 %v606
    %1397 = vmatprep.subr.mxu0 0.0
    %1398 = vmatpush1.msra.mxu0 %v611
    %1399 = vmatprep.subr.mxu0 0.0
    %1400 = vmatpush1.msra.mxu0 0.0
    %1401 = vmatprep.subr.mxu0 0.0
    %1402 = vmatpush1.msra.mxu0 0.0
    %1403 = vmatprep.subr.mxu0 0.0
    %1404 = vmatpush1.msra.mxu0 0.0
    %1405 = vmatprep.subr.mxu0 0.0
    %1406 = vmatpush1.msra.mxu0 0.0
    %1407 = vmatprep.subr.mxu0 0.0
    %1408 = vmatpush1.msra.mxu0 0.0
    %1409 = vmatprep.subr.mxu0 0.0
    %1410 = vmatpush1.msra.mxu0 0.0
    %1411 = vmatprep.subr.mxu0 0.0
    %1412 = vmatpush1.msra.mxu0 0.0
    %1413 = vmatprep.subr.mxu0 0.0
    %1414 = vmatpush1.msra.mxu0 0.0
    %1415 = vmatprep.subr.mxu0 0.0
    %1416 = vmatpush1.msra.mxu0 0.0
    %1417 = vmatprep.subr.mxu0 0.0
    %1418 = vmatpush1.msra.mxu0 0.0
    %1419 = vmatprep.subr.mxu0 0.0
    %1420 = vmatpush1.msra.mxu0 0.0
    %1421 = vmatprep.subr.mxu0 0.0
    %1422 = vmatpush1.msra.mxu0 0.0
    %1423 = vmatprep.subr.mxu0 0.0
    %1424 = vmatpush1.msra.mxu0 0.0
    %1425 = vmatprep.subr.mxu0 0.0
    %1426 = vmatpush1.msra.mxu0 0.0
    %1427 = vmatprep.subr.mxu0 0.0
    %1428 = vmatpush1.msra.mxu0 0.0
    %1429 = vmatprep.subr.mxu0 0.0
    %1430 = vmatpush1.msra.mxu0 0.0
    %1431 = vmatprep.subr.mxu0 0.0
    %1432 = vmatpush1.msra.mxu0 0.0
    %1433 = vmatprep.subr.mxu0 0.0
    %1434 = vmatpush1.msra.mxu0 0.0
    %1435 = vmatprep.subr.mxu0 0.0
    %1436 = vmatpush1.msra.mxu0 0.0
    %1437 = vmatprep.subr.mxu0 0.0
    %1438 = vmatpush1.msra.mxu0 0.0
    %1439 = vmatprep.subr.mxu0 0.0
    %1440 = vmatpush1.msra.mxu0 0.0
    %1441 = vmatprep.subr.mxu0 0.0
    %1442 = vmatpush1.msra.mxu0 0.0
    %1443 = vmatprep.subr.mxu0 0.0
    %1444 = vmatpush1.msra.mxu0 0.0
    %1445 = vmatprep.subr.mxu0 0.0
    %1446 = vmatpush1.msra.mxu0 0.0
    %1447 = vmatprep.mubr.f32.mxu0 0.0
    %1448 = vmatmul.mubr.f32.gmra.mrb[0].mxu0 %v940
    %v1449 = vpop.f32.mrb[0].mxu0
    %v1450 = vadd.f32 0.0, %v1449
    %v1451 = vpop.f32.mrb[0].mxu0
    %1452 = vmatprep.mubr.f32.mxu0 0.0
    %1453 = vmatmul.mubr.f32.gmra.mrb[0].mxu0 %v943
    %v1454 = vpop.f32.mrb[0].mxu0
    %v1455 = vadd.f32 0.0, %v1454
    %v1456 = vpop.f32.mrb[0].mxu0
    %1457 = vmatprep.mubr.f32.mxu0 0.0
    %1458 = vmatmul.mubr.f32.gmra.mrb[0].mxu0 %v946
    %v1459 = vpop.f32.mrb[0].mxu0
    %v1460 = vadd.f32 0.0, %v1459
    %v1461 = vpop.f32.mrb[0].mxu0
    %1462 = vmatprep.mubr.f32.mxu0 0.0
    %1463 = vmatmul.mubr.f32.gmra.mrb[0].mxu0 %v949
    %v1464 = vpop.f32.mrb[0].mxu0
    %v1465 = vadd.f32 0.0, %v1464
    %v1466 = vpop.f32.mrb[0].mxu0
    %1467 = vmatprep.mubr.f32.mxu0 0.0
    %1468 = vmatmul.mubr.f32.gmra.mrb[0].mxu0 %v952
    %v1469 = vpop.f32.mrb[0].mxu0
    %v1470 = vadd.f32 0.0, %v1469
    %v1471 = vpop.f32.mrb[0].mxu0
    %1472 = vmatprep.mubr.f32.mxu0 0.0
    %1473 = vmatmul.mubr.f32.gmra.mrb[0].mxu0 %v955
    %v1474 = vpop.f32.mrb[0].mxu0
    %v1475 = vadd.f32 0.0, %v1474
    %v1476 = vpop.f32.mrb[0].mxu0
    %1477 = vmatprep.mubr.f32.mxu0 0.0
    %1478 = vmatmul.mubr.f32.gmra.mrb[0].mxu0 %v958
    %v1479 = vpop.f32.mrb[0].mxu0
    %v1480 = vadd.f32 0.0, %v1479
    %v1481 = vpop.f32.mrb[0].mxu0
    %1482 = vmatprep.mubr.f32.mxu0 0.0
    %1483 = vmatmul.mubr.f32.gmra.mrb[0].mxu0 %v961
    %v1484 = vpop.f32.mrb[0].mxu0
    %v1485 = vadd.f32 0.0, %v1484
    %v1486 = vpop.f32.mrb[0].mxu0
    %1487 = vdwg.mxu0
    %1488 = vmatprep.subr.mxu0 0.0
    %1489 = vmatpush1.msra.mxu0 %v684
    %1490 = vmatprep.subr.mxu0 0.0
    %1491 = vmatpush1.msra.mxu0 %v689
    %1492 = vmatprep.subr.mxu0 0.0
    %1493 = vmatpush1.msra.mxu0 %v694
    %1494 = vmatprep.subr.mxu0 0.0
    %1495 = vmatpush1.msra.mxu0 %v699
    %1496 = vmatprep.subr.mxu0 0.0
    %1497 = vmatpush1.msra.mxu0 %v704
    %1498 = vmatprep.subr.mxu0 0.0
    %1499 = vmatpush1.msra.mxu0 %v709
    %1500 = vmatprep.subr.mxu0 0.0
    %1501 = vmatpush1.msra.mxu0 %v714
    %1502 = vmatprep.subr.mxu0 0.0
    %1503 = vmatpush1.msra.mxu0 %v719
    %1504 = vmatprep.subr.mxu0 0.0
    %1505 = vmatpush1.msra.mxu0 0.0
    %1506 = vmatprep.subr.mxu0 0.0
    %1507 = vmatpush1.msra.mxu0 0.0
    %1508 = vmatprep.subr.mxu0 0.0
    %1509 = vmatpush1.msra.mxu0 0.0
    %1510 = vmatprep.subr.mxu0 0.0
    %1511 = vmatpush1.msra.mxu0 0.0
    %1512 = vmatprep.subr.mxu0 0.0
    %1513 = vmatpush1.msra.mxu0 0.0
    %1514 = vmatprep.subr.mxu0 0.0
    %1515 = vmatpush1.msra.mxu0 0.0
    %1516 = vmatprep.subr.mxu0 0.0
    %1517 = vmatpush1.msra.mxu0 0.0
    %1518 = vmatprep.subr.mxu0 0.0
    %1519 = vmatpush1.msra.mxu0 0.0
    %1520 = vmatprep.subr.mxu0 0.0
    %1521 = vmatpush1.msra.mxu0 0.0
    %1522 = vmatprep.subr.mxu0 0.0
    %1523 = vmatpush1.msra.mxu0 0.0
    %1524 = vmatprep.subr.mxu0 0.0
    %1525 = vmatpush1.msra.mxu0 0.0
    %1526 = vmatprep.subr.mxu0 0.0
    %1527 = vmatpush1.msra.mxu0 0.0
    %1528 = vmatprep.subr.mxu0 0.0
    %1529 = vmatpush1.msra.mxu0 0.0
    %1530 = vmatprep.subr.mxu0 0.0
    %1531 = vmatpush1.msra.mxu0 0.0
    %1532 = vmatprep.subr.mxu0 0.0
    %1533 = vmatpush1.msra.mxu0 0.0
    %1534 = vmatprep.subr.mxu0 0.0
    %1535 = vmatpush1.msra.mxu0 0.0
    %1536 = vmatprep.subr.mxu0 0.0
    %1537 = vmatpush1.msra.mxu0 0.0
    %1538 = vmatprep.subr.mxu0 0.0
    %1539 = vmatpush1.msra.mxu0 0.0
    %1540 = vmatprep.subr.mxu0 0.0
    %1541 = vmatpush1.msra.mxu0 0.0
    %1542 = vmatprep.subr.mxu0 0.0
    %1543 = vmatpush1.msra.mxu0 0.0
    %1544 = vmatprep.subr.mxu0 0.0
    %1545 = vmatpush1.msra.mxu0 0.0
    %1546 = vmatprep.subr.mxu0 0.0
    %1547 = vmatpush1.msra.mxu0 0.0
    %1548 = vmatprep.subr.mxu0 0.0
    %1549 = vmatpush1.msra.mxu0 0.0
    %1550 = vmatprep.subr.mxu0 0.0
    %1551 = vmatpush1.msra.mxu0 0.0
    %1552 = vmatprep.mubr.f32.mxu0 0.0
    %1553 = vmatmul.mubr.f32.gmra.mrb[0].mxu0 %v940
    %v1554 = vpop.f32.mrb[0].mxu0
    %v1555 = vadd.f32 0.0, %v1554
    %v1556 = vpop.f32.mrb[0].mxu0
    %1557 = vmatprep.mubr.f32.mxu0 0.0
    %1558 = vmatmul.mubr.f32.gmra.mrb[0].mxu0 %v943
    %v1559 = vpop.f32.mrb[0].mxu0
    %v1560 = vadd.f32 0.0, %v1559
    %v1561 = vpop.f32.mrb[0].mxu0
    %1562 = vmatprep.mubr.f32.mxu0 0.0
    %1563 = vmatmul.mubr.f32.gmra.mrb[0].mxu0 %v946
    %v1564 = vpop.f32.mrb[0].mxu0
    %v1565 = vadd.f32 0.0, %v1564
    %v1566 = vpop.f32.mrb[0].mxu0
    %1567 = vmatprep.mubr.f32.mxu0 0.0
    %1568 = vmatmul.mubr.f32.gmra.mrb[0].mxu0 %v949
    %v1569 = vpop.f32.mrb[0].mxu0
    %v1570 = vadd.f32 0.0, %v1569
    %v1571 = vpop.f32.mrb[0].mxu0
    %1572 = vmatprep.mubr.f32.mxu0 0.0
    %1573 = vmatmul.mubr.f32.gmra.mrb[0].mxu0 %v952
    %v1574 = vpop.f32.mrb[0].mxu0
    %v1575 = vadd.f32 0.0, %v1574
    %v1576 = vpop.f32.mrb[0].mxu0
    %1577 = vmatprep.mubr.f32.mxu0 0.0
    %1578 = vmatmul.mubr.f32.gmra.mrb[0].mxu0 %v955
    %v1579 = vpop.f32.mrb[0].mxu0
    %v1580 = vadd.f32 0.0, %v1579
    %v1581 = vpop.f32.mrb[0].mxu0
    %1582 = vmatprep.mubr.f32.mxu0 0.0
    %1583 = vmatmul.mubr.f32.gmra.mrb[0].mxu0 %v958
    %v1584 = vpop.f32.mrb[0].mxu0
    %v1585 = vadd.f32 0.0, %v1584
    %v1586 = vpop.f32.mrb[0].mxu0
    %1587 = vmatprep.mubr.f32.mxu0 0.0
    %1588 = vmatmul.mubr.f32.gmra.mrb[0].mxu0 %v961
    %v1589 = vpop.f32.mrb[0].mxu0
    %v1590 = vadd.f32 0.0, %v1589
    %v1591 = vpop.f32.mrb[0].mxu0
    %1592 = vdwg.mxu0
    %1593 = vmatprep.subr.mxu0 0.0
    %1594 = vmatpush1.msra.mxu0 %v792
    %1595 = vmatprep.subr.mxu0 0.0
    %1596 = vmatpush1.msra.mxu0 %v797
    %1597 = vmatprep.subr.mxu0 0.0
    %1598 = vmatpush1.msra.mxu0 %v802
    %1599 = vmatprep.subr.mxu0 0.0
    %1600 = vmatpush1.msra.mxu0 %v807
    %1601 = vmatprep.subr.mxu0 0.0
    %1602 = vmatpush1.msra.mxu0 %v812
    %1603 = vmatprep.subr.mxu0 0.0
    %1604 = vmatpush1.msra.mxu0 %v817
    %1605 = vmatprep.subr.mxu0 0.0
    %1606 = vmatpush1.msra.mxu0 %v822
    %1607 = vmatprep.subr.mxu0 0.0
    %1608 = vmatpush1.msra.mxu0 %v827
    %1609 = vmatprep.subr.mxu0 0.0
    %1610 = vmatpush1.msra.mxu0 0.0
    %1611 = vmatprep.subr.mxu0 0.0
    %1612 = vmatpush1.msra.mxu0 0.0
    %1613 = vmatprep.subr.mxu0 0.0
    %1614 = vmatpush1.msra.mxu0 0.0
    %1615 = vmatprep.subr.mxu0 0.0
    %1616 = vmatpush1.msra.mxu0 0.0
    %1617 = vmatprep.subr.mxu0 0.0
    %1618 = vmatpush1.msra.mxu0 0.0
    %1619 = vmatprep.subr.mxu0 0.0
    %1620 = vmatpush1.msra.mxu0 0.0
    %1621 = vmatprep.subr.mxu0 0.0
    %1622 = vmatpush1.msra.mxu0 0.0
    %1623 = vmatprep.subr.mxu0 0.0
    %1624 = vmatpush1.msra.mxu0 0.0
    %1625 = vmatprep.subr.mxu0 0.0
    %1626 = vmatpush1.msra.mxu0 0.0
    %1627 = vmatprep.subr.mxu0 0.0
    %1628 = vmatpush1.msra.mxu0 0.0
    %1629 = vmatprep.subr.mxu0 0.0
    %1630 = vmatpush1.msra.mxu0 0.0
    %1631 = vmatprep.subr.mxu0 0.0
    %1632 = vmatpush1.msra.mxu0 0.0
    %1633 = vmatprep.subr.mxu0 0.0
    %1634 = vmatpush1.msra.mxu0 0.0
    %1635 = vmatprep.subr.mxu0 0.0
    %1636 = vmatpush1.msra.mxu0 0.0
    %1637 = vmatprep.subr.mxu0 0.0
    %1638 = vmatpush1.msra.mxu0 0.0
    %1639 = vmatprep.subr.mxu0 0.0
    %1640 = vmatpush1.msra.mxu0 0.0
    %1641 = vmatprep.subr.mxu0 0.0
    %1642 = vmatpush1.msra.mxu0 0.0
    %1643 = vmatprep.subr.mxu0 0.0
    %1644 = vmatpush1.msra.mxu0 0.0
    %1645 = vmatprep.subr.mxu0 0.0
    %1646 = vmatpush1.msra.mxu0 0.0
    %1647 = vmatprep.subr.mxu0 0.0
    %1648 = vmatpush1.msra.mxu0 0.0
    %1649 = vmatprep.subr.mxu0 0.0
    %1650 = vmatpush1.msra.mxu0 0.0
    %1651 = vmatprep.subr.mxu0 0.0
    %1652 = vmatpush1.msra.mxu0 0.0
    %1653 = vmatprep.subr.mxu0 0.0
    %1654 = vmatpush1.msra.mxu0 0.0
    %1655 = vmatprep.subr.mxu0 0.0
    %1656 = vmatpush1.msra.mxu0 0.0
    %1657 = vmatprep.mubr.f32.mxu0 0.0
    %1658 = vmatmul.mubr.f32.gmra.mrb[0].mxu0 %v940
    %v1659 = vpop.f32.mrb[0].mxu0
    %v1660 = vadd.f32 0.0, %v1659
    %v1661 = vpop.f32.mrb[0].mxu0
    %1662 = vmatprep.mubr.f32.mxu0 0.0
    %1663 = vmatmul.mubr.f32.gmra.mrb[0].mxu0 %v943
    %v1664 = vpop.f32.mrb[0].mxu0
    %v1665 = vadd.f32 0.0, %v1664
    %v1666 = vpop.f32.mrb[0].mxu0
    %1667 = vmatprep.mubr.f32.mxu0 0.0
    %1668 = vmatmul.mubr.f32.gmra.mrb[0].mxu0 %v946
    %v1669 = vpop.f32.mrb[0].mxu0
    %v1670 = vadd.f32 0.0, %v1669
    %v1671 = vpop.f32.mrb[0].mxu0
    %1672 = vmatprep.mubr.f32.mxu0 0.0
    %1673 = vmatmul.mubr.f32.gmra.mrb[0].mxu0 %v949
    %v1674 = vpop.f32.mrb[0].mxu0
    %v1675 = vadd.f32 0.0, %v1674
    %v1676 = vpop.f32.mrb[0].mxu0
    %1677 = vmatprep.mubr.f32.mxu0 0.0
    %1678 = vmatmul.mubr.f32.gmra.mrb[0].mxu0 %v952
    %v1679 = vpop.f32.mrb[0].mxu0
    %v1680 = vadd.f32 0.0, %v1679
    %v1681 = vpop.f32.mrb[0].mxu0
    %1682 = vmatprep.mubr.f32.mxu0 0.0
    %1683 = vmatmul.mubr.f32.gmra.mrb[0].mxu0 %v955
    %v1684 = vpop.f32.mrb[0].mxu0
    %v1685 = vadd.f32 0.0, %v1684
    %v1686 = vpop.f32.mrb[0].mxu0
    %1687 = vmatprep.mubr.f32.mxu0 0.0
    %1688 = vmatmul.mubr.f32.gmra.mrb[0].mxu0 %v958
    %v1689 = vpop.f32.mrb[0].mxu0
    %v1690 = vadd.f32 0.0, %v1689
    %v1691 = vpop.f32.mrb[0].mxu0
    %1692 = vmatprep.mubr.f32.mxu0 0.0
    %1693 = vmatmul.mubr.f32.gmra.mrb[0].mxu0 %v961
    %v1694 = vpop.f32.mrb[0].mxu0
    %v1695 = vadd.f32 0.0, %v1694
    %v1696 = vpop.f32.mrb[0].mxu0
    %1697 = vdwg.mxu0
    %1698 = vmatprep.subr.mxu0 0.0
    %1699 = vmatpush1.msra.mxu0 %v900
    %1700 = vmatprep.subr.mxu0 0.0
    %1701 = vmatpush1.msra.mxu0 %v905
    %1702 = vmatprep.subr.mxu0 0.0
    %1703 = vmatpush1.msra.mxu0 %v910
    %1704 = vmatprep.subr.mxu0 0.0
    %1705 = vmatpush1.msra.mxu0 %v915
    %1706 = vmatprep.subr.mxu0 0.0
    %1707 = vmatpush1.msra.mxu0 %v920
    %1708 = vmatprep.subr.mxu0 0.0
    %1709 = vmatpush1.msra.mxu0 %v925
    %1710 = vmatprep.subr.mxu0 0.0
    %1711 = vmatpush1.msra.mxu0 %v930
    %1712 = vmatprep.subr.mxu0 0.0
    %1713 = vmatpush1.msra.mxu0 %v935
    %1714 = vmatprep.subr.mxu0 0.0
    %1715 = vmatpush1.msra.mxu0 0.0
    %1716 = vmatprep.subr.mxu0 0.0
    %1717 = vmatpush1.msra.mxu0 0.0
    %1718 = vmatprep.subr.mxu0 0.0
    %1719 = vmatpush1.msra.mxu0 0.0
    %1720 = vmatprep.subr.mxu0 0.0
    %1721 = vmatpush1.msra.mxu0 0.0
    %1722 = vmatprep.subr.mxu0 0.0
    %1723 = vmatpush1.msra.mxu0 0.0
    %1724 = vmatprep.subr.mxu0 0.0
    %1725 = vmatpush1.msra.mxu0 0.0
    %1726 = vmatprep.subr.mxu0 0.0
    %1727 = vmatpush1.msra.mxu0 0.0
    %1728 = vmatprep.subr.mxu0 0.0
    %1729 = vmatpush1.msra.mxu0 0.0
    %1730 = vmatprep.subr.mxu0 0.0
    %1731 = vmatpush1.msra.mxu0 0.0
    %1732 = vmatprep.subr.mxu0 0.0
    %1733 = vmatpush1.msra.mxu0 0.0
    %1734 = vmatprep.subr.mxu0 0.0
    %1735 = vmatpush1.msra.mxu0 0.0
    %1736 = vmatprep.subr.mxu0 0.0
    %1737 = vmatpush1.msra.mxu0 0.0
    %1738 = vmatprep.subr.mxu0 0.0
    %1739 = vmatpush1.msra.mxu0 0.0
    %1740 = vmatprep.subr.mxu0 0.0
    %1741 = vmatpush1.msra.mxu0 0.0
    %1742 = vmatprep.subr.mxu0 0.0
    %1743 = vmatpush1.msra.mxu0 0.0
    %1744 = vmatprep.subr.mxu0 0.0
    %1745 = vmatpush1.msra.mxu0 0.0
    %1746 = vmatprep.subr.mxu0 0.0
    %1747 = vmatpush1.msra.mxu0 0.0
    %1748 = vmatprep.subr.mxu0 0.0
    %1749 = vmatpush1.msra.mxu0 0.0
    %1750 = vmatprep.subr.mxu0 0.0
    %1751 = vmatpush1.msra.mxu0 0.0
    %1752 = vmatprep.subr.mxu0 0.0
    %1753 = vmatpush1.msra.mxu0 0.0
    %1754 = vmatprep.subr.mxu0 0.0
    %1755 = vmatpush1.msra.mxu0 0.0
    %1756 = vmatprep.subr.mxu0 0.0
    %1757 = vmatpush1.msra.mxu0 0.0
    %1758 = vmatprep.subr.mxu0 0.0
    %1759 = vmatpush1.msra.mxu0 0.0
    %1760 = vmatprep.subr.mxu0 0.0
    %1761 = vmatpush1.msra.mxu0 0.0
    %1762 = vmatprep.mubr.f32.mxu0 0.0
    %1763 = vmatmul.mubr.f32.gmra.mrb[0].mxu0 %v940
    %v1764 = vpop.f32.mrb[0].mxu0
    %v1765 = vadd.f32 0.0, %v1764
    %v1766 = vpop.f32.mrb[0].mxu0
    %1767 = vmatprep.mubr.f32.mxu0 0.0
    %1768 = vmatmul.mubr.f32.gmra.mrb[0].mxu0 %v943
    %v1769 = vpop.f32.mrb[0].mxu0
    %v1770 = vadd.f32 0.0, %v1769
    %v1771 = vpop.f32.mrb[0].mxu0
    %1772 = vmatprep.mubr.f32.mxu0 0.0
    %1773 = vmatmul.mubr.f32.gmra.mrb[0].mxu0 %v946
    %v1774 = vpop.f32.mrb[0].mxu0
    %v1775 = vadd.f32 0.0, %v1774
    %v1776 = vpop.f32.mrb[0].mxu0
    %1777 = vmatprep.mubr.f32.mxu0 0.0
    %1778 = vmatmul.mubr.f32.gmra.mrb[0].mxu0 %v949
    %v1779 = vpop.f32.mrb[0].mxu0
    %v1780 = vadd.f32 0.0, %v1779
    %v1781 = vpop.f32.mrb[0].mxu0
    %1782 = vmatprep.mubr.f32.mxu0 0.0
    %1783 = vmatmul.mubr.f32.gmra.mrb[0].mxu0 %v952
    %v1784 = vpop.f32.mrb[0].mxu0
    %v1785 = vadd.f32 0.0, %v1784
    %v1786 = vpop.f32.mrb[0].mxu0
    %1787 = vmatprep.mubr.f32.mxu0 0.0
    %1788 = vmatmul.mubr.f32.gmra.mrb[0].mxu0 %v955
    %v1789 = vpop.f32.mrb[0].mxu0
    %v1790 = vadd.f32 0.0, %v1789
    %v1791 = vpop.f32.mrb[0].mxu0
    %1792 = vmatprep.mubr.f32.mxu0 0.0
    %1793 = vmatmul.mubr.f32.gmra.mrb[0].mxu0 %v958
    %v1794 = vpop.f32.mrb[0].mxu0
    %v1795 = vadd.f32 0.0, %v1794
    %v1796 = vpop.f32.mrb[0].mxu0
    %1797 = vmatprep.mubr.f32.mxu0 0.0
    %1798 = vmatmul.mubr.f32.gmra.mrb[0].mxu0 %v961
    %v1799 = vpop.f32.mrb[0].mxu0
    %v1800 = vadd.f32 0.0, %v1799
    %v1801 = vpop.f32.mrb[0].mxu0
    %1802 = vdwg.mxu0
    %v1804 = vrot.slane %v65, 4
    %vm1805 = vcmask 31744
    %v1807 = vsel %vm1805, %v144, 0
    %v1810 = vsel %vm1805, %v149, 0
    %v1813 = vsel %vm1805, %v154, 0
    %v1816 = vsel %vm1805, %v159, 0
    %v1819 = vsel %vm1805, %v164, 0
    %v1822 = vsel %vm1805, %v169, 0
    %v1825 = vsel %vm1805, %v174, 0
    %v1828 = vsel %vm1805, %v179, 0
    %v1831 = vsel %vm1805, %v252, 0
    %v1834 = vsel %vm1805, %v257, 0
    %v1837 = vsel %vm1805, %v262, 0
    %v1840 = vsel %vm1805, %v267, 0
    %v1843 = vsel %vm1805, %v272, 0
    %v1846 = vsel %vm1805, %v277, 0
    %v1849 = vsel %vm1805, %v282, 0
    %v1852 = vsel %vm1805, %v287, 0
    %v1855 = vsel %vm1805, %v360, 0
    %v1858 = vsel %vm1805, %v365, 0
    %v1861 = vsel %vm1805, %v370, 0
    %v1864 = vsel %vm1805, %v375, 0
    %v1867 = vsel %vm1805, %v380, 0
    %v1870 = vsel %vm1805, %v385, 0
    %v1873 = vsel %vm1805, %v390, 0
    %v1876 = vsel %vm1805, %v395, 0
    %v1879 = vsel %vm1805, %v468, 0
    %v1882 = vsel %vm1805, %v473, 0
    %v1885 = vsel %vm1805, %v478, 0
    %v1888 = vsel %vm1805, %v483, 0
    %v1891 = vsel %vm1805, %v488, 0
    %v1894 = vsel %vm1805, %v493, 0
    %v1897 = vsel %vm1805, %v498, 0
    %v1900 = vsel %vm1805, %v503, 0
    %v1903 = vsel %vm1805, %v576, 0
    %v1906 = vsel %vm1805, %v581, 0
    %v1909 = vsel %vm1805, %v586, 0
    %v1912 = vsel %vm1805, %v591, 0
    %v1915 = vsel %vm1805, %v596, 0
    %v1918 = vsel %vm1805, %v601, 0
    %v1921 = vsel %vm1805, %v606, 0
    %v1924 = vsel %vm1805, %v611, 0
    %v1927 = vsel %vm1805, %v684, 0
    %v1930 = vsel %vm1805, %v689, 0
    %v1933 = vsel %vm1805, %v694, 0
    %v1936 = vsel %vm1805, %v699, 0
    %v1939 = vsel %vm1805, %v704, 0
    %v1942 = vsel %vm1805, %v709, 0
    %v1945 = vsel %vm1805, %v714, 0
    %v1948 = vsel %vm1805, %v719, 0
    %v1951 = vsel %vm1805, %v792, 0
    %v1954 = vsel %vm1805, %v797, 0
    %v1957 = vsel %vm1805, %v802, 0
    %v1960 = vsel %vm1805, %v807, 0
    %v1963 = vsel %vm1805, %v812, 0
    %v1966 = vsel %vm1805, %v817, 0
    %v1969 = vsel %vm1805, %v822, 0
    %v1972 = vsel %vm1805, %v827, 0
    %v1975 = vsel %vm1805, %v900, 0
    %v1978 = vsel %vm1805, %v905, 0
    %v1981 = vsel %vm1805, %v910, 0
    %v1984 = vsel %vm1805, %v915, 0
    %v1987 = vsel %vm1805, %v920, 0
    %v1990 = vsel %vm1805, %v925, 0
    %v1993 = vsel %vm1805, %v930, 0
    %v1996 = vsel %vm1805, %v935, 0
    %vm1998 = vcmask 1043456
    %v1999 = vsel %vm1998, %v1804, 0
    %2001 = vmatprep.subr.mxu0 0.0
    %2002 = vmatpush1.msra.mxu0 %v1999
    %2003 = vmatprep.subr.mxu0 0.0
    %2004 = vmatpush1.msra.mxu0 0.0
    %2005 = vmatprep.subr.mxu0 0.0
    %2006 = vmatpush1.msra.mxu0 0.0
    %2007 = vmatprep.subr.mxu0 0.0
    %2008 = vmatpush1.msra.mxu0 0.0
    %2009 = vmatprep.subr.mxu0 0.0
    %2010 = vmatpush1.msra.mxu0 0.0
    %2011 = vmatprep.subr.mxu0 0.0
    %2012 = vmatpush1.msra.mxu0 0.0
    %2013 = vmatprep.subr.mxu0 0.0
    %2014 = vmatpush1.msra.mxu0 0.0
    %2015 = vmatprep.subr.mxu0 0.0
    %2016 = vmatpush1.msra.mxu0 0.0
    %2017 = vmatprep.subr.mxu0 0.0
    %2018 = vmatpush1.msra.mxu0 0.0
    %2019 = vmatprep.subr.mxu0 0.0
    %2020 = vmatpush1.msra.mxu0 0.0
    %2021 = vmatprep.subr.mxu0 0.0
    %2022 = vmatpush1.msra.mxu0 0.0
    %2023 = vmatprep.subr.mxu0 0.0
    %2024 = vmatpush1.msra.mxu0 0.0
    %2025 = vmatprep.subr.mxu0 0.0
    %2026 = vmatpush1.msra.mxu0 0.0
    %2027 = vmatprep.subr.mxu0 0.0
    %2028 = vmatpush1.msra.mxu0 0.0
    %2029 = vmatprep.subr.mxu0 0.0
    %2030 = vmatpush1.msra.mxu0 0.0
    %2031 = vmatprep.subr.mxu0 0.0
    %2032 = vmatpush1.msra.mxu0 0.0
    %2033 = vmatprep.subr.mxu0 0.0
    %2034 = vmatpush1.msra.mxu0 0.0
    %2035 = vmatprep.subr.mxu0 0.0
    %2036 = vmatpush1.msra.mxu0 0.0
    %2037 = vmatprep.subr.mxu0 0.0
    %2038 = vmatpush1.msra.mxu0 0.0
    %2039 = vmatprep.subr.mxu0 0.0
    %2040 = vmatpush1.msra.mxu0 0.0
    %2041 = vmatprep.subr.mxu0 0.0
    %2042 = vmatpush1.msra.mxu0 0.0
    %2043 = vmatprep.subr.mxu0 0.0
    %2044 = vmatpush1.msra.mxu0 0.0
    %2045 = vmatprep.subr.mxu0 0.0
    %2046 = vmatpush1.msra.mxu0 0.0
    %2047 = vmatprep.subr.mxu0 0.0
    %2048 = vmatpush1.msra.mxu0 0.0
    %2049 = vmatprep.subr.mxu0 0.0
    %2050 = vmatpush1.msra.mxu0 0.0
    %2051 = vmatprep.subr.mxu0 0.0
    %2052 = vmatpush1.msra.mxu0 0.0
    %2053 = vmatprep.subr.mxu0 0.0
    %2054 = vmatpush1.msra.mxu0 0.0
    %2055 = vmatprep.subr.mxu0 0.0
    %2056 = vmatpush1.msra.mxu0 0.0
    %2057 = vmatprep.subr.mxu0 0.0
    %2058 = vmatpush1.msra.mxu0 0.0
    %2059 = vmatprep.subr.mxu0 0.0
    %2060 = vmatpush1.msra.mxu0 0.0
    %2061 = vmatprep.subr.mxu0 0.0
    %2062 = vmatpush1.msra.mxu0 0.0
    %2063 = vmatprep.subr.mxu0 0.0
    %2064 = vmatpush1.msra.mxu0 0.0
    %2065 = vmatprep.mubr.f32.mxu0 0.0
    %2066 = vmatmul.mubr.f32.gmra.mrb[0].mxu0 %v1807
    %v2067 = vpop.f32.mrb[0].mxu0
    %v2068 = vadd.f32 0.0, %v2067
    %v2069 = vpop.f32.mrb[0].mxu0
    %2070 = vmatprep.mubr.f32.mxu0 0.0
    %2071 = vmatmul.mubr.f32.gmra.mrb[0].mxu0 %v1810
    %v2072 = vpop.f32.mrb[0].mxu0
    %v2073 = vadd.f32 0.0, %v2072
    %v2074 = vpop.f32.mrb[0].mxu0
    %2075 = vmatprep.mubr.f32.mxu0 0.0
    %2076 = vmatmul.mubr.f32.gmra.mrb[0].mxu0 %v1813
    %v2077 = vpop.f32.mrb[0].mxu0
    %v2078 = vadd.f32 0.0, %v2077
    %v2079 = vpop.f32.mrb[0].mxu0
    %2080 = vmatprep.mubr.f32.mxu0 0.0
    %2081 = vmatmul.mubr.f32.gmra.mrb[0].mxu0 %v1816
    %v2082 = vpop.f32.mrb[0].mxu0
    %v2083 = vadd.f32 0.0, %v2082
    %v2084 = vpop.f32.mrb[0].mxu0
    %2085 = vmatprep.mubr.f32.mxu0 0.0
    %2086 = vmatmul.mubr.f32.gmra.mrb[0].mxu0 %v1819
    %v2087 = vpop.f32.mrb[0].mxu0
    %v2088 = vadd.f32 0.0, %v2087
    %v2089 = vpop.f32.mrb[0].mxu0
    %2090 = vmatprep.mubr.f32.mxu0 0.0
    %2091 = vmatmul.mubr.f32.gmra.mrb[0].mxu0 %v1822
    %v2092 = vpop.f32.mrb[0].mxu0
    %v2093 = vadd.f32 0.0, %v2092
    %v2094 = vpop.f32.mrb[0].mxu0
    %2095 = vmatprep.mubr.f32.mxu0 0.0
    %2096 = vmatmul.mubr.f32.gmra.mrb[0].mxu0 %v1825
    %v2097 = vpop.f32.mrb[0].mxu0
    %v2098 = vadd.f32 0.0, %v2097
    %v2099 = vpop.f32.mrb[0].mxu0
    %2100 = vmatprep.mubr.f32.mxu0 0.0
    %2101 = vmatmul.mubr.f32.gmra.mrb[0].mxu0 %v1828
    %v2102 = vpop.f32.mrb[0].mxu0
    %v2103 = vadd.f32 0.0, %v2102
    %v2104 = vpop.f32.mrb[0].mxu0
    %2105 = vmatprep.mubr.f32.mxu0 0.0
    %2106 = vmatmul.mubr.f32.gmra.mrb[0].mxu0 %v1831
    %v2107 = vpop.f32.mrb[0].mxu0
    %v2108 = vadd.f32 0.0, %v2107
    %v2109 = vpop.f32.mrb[0].mxu0
    %2110 = vmatprep.mubr.f32.mxu0 0.0
    %2111 = vmatmul.mubr.f32.gmra.mrb[0].mxu0 %v1834
    %v2112 = vpop.f32.mrb[0].mxu0
    %v2113 = vadd.f32 0.0, %v2112
    %v2114 = vpop.f32.mrb[0].mxu0
    %2115 = vmatprep.mubr.f32.mxu0 0.0
    %2116 = vmatmul.mubr.f32.gmra.mrb[0].mxu0 %v1837
    %v2117 = vpop.f32.mrb[0].mxu0
    %v2118 = vadd.f32 0.0, %v2117
    %v2119 = vpop.f32.mrb[0].mxu0
    %2120 = vmatprep.mubr.f32.mxu0 0.0
    %2121 = vmatmul.mubr.f32.gmra.mrb[0].mxu0 %v1840
    %v2122 = vpop.f32.mrb[0].mxu0
    %v2123 = vadd.f32 0.0, %v2122
    %v2124 = vpop.f32.mrb[0].mxu0
    %2125 = vmatprep.mubr.f32.mxu0 0.0
    %2126 = vmatmul.mubr.f32.gmra.mrb[0].mxu0 %v1843
    %v2127 = vpop.f32.mrb[0].mxu0
    %v2128 = vadd.f32 0.0, %v2127
    %v2129 = vpop.f32.mrb[0].mxu0
    %2130 = vmatprep.mubr.f32.mxu0 0.0
    %2131 = vmatmul.mubr.f32.gmra.mrb[0].mxu0 %v1846
    %v2132 = vpop.f32.mrb[0].mxu0
    %v2133 = vadd.f32 0.0, %v2132
    %v2134 = vpop.f32.mrb[0].mxu0
    %2135 = vmatprep.mubr.f32.mxu0 0.0
    %2136 = vmatmul.mubr.f32.gmra.mrb[0].mxu0 %v1849
    %v2137 = vpop.f32.mrb[0].mxu0
    %v2138 = vadd.f32 0.0, %v2137
    %v2139 = vpop.f32.mrb[0].mxu0
    %2140 = vmatprep.mubr.f32.mxu0 0.0
    %2141 = vmatmul.mubr.f32.gmra.mrb[0].mxu0 %v1852
    %v2142 = vpop.f32.mrb[0].mxu0
    %v2143 = vadd.f32 0.0, %v2142
    %v2144 = vpop.f32.mrb[0].mxu0
    %2145 = vmatprep.mubr.f32.mxu0 0.0
    %2146 = vmatmul.mubr.f32.gmra.mrb[0].mxu0 %v1855
    %v2147 = vpop.f32.mrb[0].mxu0
    %v2148 = vadd.f32 0.0, %v2147
    %v2149 = vpop.f32.mrb[0].mxu0
    %2150 = vmatprep.mubr.f32.mxu0 0.0
    %2151 = vmatmul.mubr.f32.gmra.mrb[0].mxu0 %v1858
    %v2152 = vpop.f32.mrb[0].mxu0
    %v2153 = vadd.f32 0.0, %v2152
    %v2154 = vpop.f32.mrb[0].mxu0
    %2155 = vmatprep.mubr.f32.mxu0 0.0
    %2156 = vmatmul.mubr.f32.gmra.mrb[0].mxu0 %v1861
    %v2157 = vpop.f32.mrb[0].mxu0
    %v2158 = vadd.f32 0.0, %v2157
    %v2159 = vpop.f32.mrb[0].mxu0
    %2160 = vmatprep.mubr.f32.mxu0 0.0
    %2161 = vmatmul.mubr.f32.gmra.mrb[0].mxu0 %v1864
    %v2162 = vpop.f32.mrb[0].mxu0
    %v2163 = vadd.f32 0.0, %v2162
    %v2164 = vpop.f32.mrb[0].mxu0
    %2165 = vmatprep.mubr.f32.mxu0 0.0
    %2166 = vmatmul.mubr.f32.gmra.mrb[0].mxu0 %v1867
    %v2167 = vpop.f32.mrb[0].mxu0
    %v2168 = vadd.f32 0.0, %v2167
    %v2169 = vpop.f32.mrb[0].mxu0
    %2170 = vmatprep.mubr.f32.mxu0 0.0
    %2171 = vmatmul.mubr.f32.gmra.mrb[0].mxu0 %v1870
    %v2172 = vpop.f32.mrb[0].mxu0
    %v2173 = vadd.f32 0.0, %v2172
    %v2174 = vpop.f32.mrb[0].mxu0
    %2175 = vmatprep.mubr.f32.mxu0 0.0
    %2176 = vmatmul.mubr.f32.gmra.mrb[0].mxu0 %v1873
    %v2177 = vpop.f32.mrb[0].mxu0
    %v2178 = vadd.f32 0.0, %v2177
    %v2179 = vpop.f32.mrb[0].mxu0
    %2180 = vmatprep.mubr.f32.mxu0 0.0
    %2181 = vmatmul.mubr.f32.gmra.mrb[0].mxu0 %v1876
    %v2182 = vpop.f32.mrb[0].mxu0
    %v2183 = vadd.f32 0.0, %v2182
    %v2184 = vpop.f32.mrb[0].mxu0
    %2185 = vmatprep.mubr.f32.mxu0 0.0
    %2186 = vmatmul.mubr.f32.gmra.mrb[0].mxu0 %v1879
    %v2187 = vpop.f32.mrb[0].mxu0
    %v2188 = vadd.f32 0.0, %v2187
    %v2189 = vpop.f32.mrb[0].mxu0
    %2190 = vmatprep.mubr.f32.mxu0 0.0
    %2191 = vmatmul.mubr.f32.gmra.mrb[0].mxu0 %v1882
    %v2192 = vpop.f32.mrb[0].mxu0
    %v2193 = vadd.f32 0.0, %v2192
    %v2194 = vpop.f32.mrb[0].mxu0
    %2195 = vmatprep.mubr.f32.mxu0 0.0
    %2196 = vmatmul.mubr.f32.gmra.mrb[0].mxu0 %v1885
    %v2197 = vpop.f32.mrb[0].mxu0
    %v2198 = vadd.f32 0.0, %v2197
    %v2199 = vpop.f32.mrb[0].mxu0
    %2200 = vmatprep.mubr.f32.mxu0 0.0
    %2201 = vmatmul.mubr.f32.gmra.mrb[0].mxu0 %v1888
    %v2202 = vpop.f32.mrb[0].mxu0
    %v2203 = vadd.f32 0.0, %v2202
    %v2204 = vpop.f32.mrb[0].mxu0
    %2205 = vmatprep.mubr.f32.mxu0 0.0
    %2206 = vmatmul.mubr.f32.gmra.mrb[0].mxu0 %v1891
    %v2207 = vpop.f32.mrb[0].mxu0
    %v2208 = vadd.f32 0.0, %v2207
    %v2209 = vpop.f32.mrb[0].mxu0
    %2210 = vmatprep.mubr.f32.mxu0 0.0
    %2211 = vmatmul.mubr.f32.gmra.mrb[0].mxu0 %v1894
    %v2212 = vpop.f32.mrb[0].mxu0
    %v2213 = vadd.f32 0.0, %v2212
    %v2214 = vpop.f32.mrb[0].mxu0
    %2215 = vmatprep.mubr.f32.mxu0 0.0
    %2216 = vmatmul.mubr.f32.gmra.mrb[0].mxu0 %v1897
    %v2217 = vpop.f32.mrb[0].mxu0
    %v2218 = vadd.f32 0.0, %v2217
    %v2219 = vpop.f32.mrb[0].mxu0
    %2220 = vmatprep.mubr.f32.mxu0 0.0
    %2221 = vmatmul.mubr.f32.gmra.mrb[0].mxu0 %v1900
    %v2222 = vpop.f32.mrb[0].mxu0
    %v2223 = vadd.f32 0.0, %v2222
    %v2224 = vpop.f32.mrb[0].mxu0
    %2225 = vmatprep.mubr.f32.mxu0 0.0
    %2226 = vmatmul.mubr.f32.gmra.mrb[0].mxu0 %v1903
    %v2227 = vpop.f32.mrb[0].mxu0
    %v2228 = vadd.f32 0.0, %v2227
    %v2229 = vpop.f32.mrb[0].mxu0
    %2230 = vmatprep.mubr.f32.mxu0 0.0
    %2231 = vmatmul.mubr.f32.gmra.mrb[0].mxu0 %v1906
    %v2232 = vpop.f32.mrb[0].mxu0
    %v2233 = vadd.f32 0.0, %v2232
    %v2234 = vpop.f32.mrb[0].mxu0
    %2235 = vmatprep.mubr.f32.mxu0 0.0
    %2236 = vmatmul.mubr.f32.gmra.mrb[0].mxu0 %v1909
    %v2237 = vpop.f32.mrb[0].mxu0
    %v2238 = vadd.f32 0.0, %v2237
    %v2239 = vpop.f32.mrb[0].mxu0
    %2240 = vmatprep.mubr.f32.mxu0 0.0
    %2241 = vmatmul.mubr.f32.gmra.mrb[0].mxu0 %v1912
    %v2242 = vpop.f32.mrb[0].mxu0
    %v2243 = vadd.f32 0.0, %v2242
    %v2244 = vpop.f32.mrb[0].mxu0
    %2245 = vmatprep.mubr.f32.mxu0 0.0
    %2246 = vmatmul.mubr.f32.gmra.mrb[0].mxu0 %v1915
    %v2247 = vpop.f32.mrb[0].mxu0
    %v2248 = vadd.f32 0.0, %v2247
    %v2249 = vpop.f32.mrb[0].mxu0
    %2250 = vmatprep.mubr.f32.mxu0 0.0
    %2251 = vmatmul.mubr.f32.gmra.mrb[0].mxu0 %v1918
    %v2252 = vpop.f32.mrb[0].mxu0
    %v2253 = vadd.f32 0.0, %v2252
    %v2254 = vpop.f32.mrb[0].mxu0
    %2255 = vmatprep.mubr.f32.mxu0 0.0
    %2256 = vmatmul.mubr.f32.gmra.mrb[0].mxu0 %v1921
    %v2257 = vpop.f32.mrb[0].mxu0
    %v2258 = vadd.f32 0.0, %v2257
    %v2259 = vpop.f32.mrb[0].mxu0
    %2260 = vmatprep.mubr.f32.mxu0 0.0
    %2261 = vmatmul.mubr.f32.gmra.mrb[0].mxu0 %v1924
    %v2262 = vpop.f32.mrb[0].mxu0
    %v2263 = vadd.f32 0.0, %v2262
    %v2264 = vpop.f32.mrb[0].mxu0
    %2265 = vmatprep.mubr.f32.mxu0 0.0
    %2266 = vmatmul.mubr.f32.gmra.mrb[0].mxu0 %v1927
    %v2267 = vpop.f32.mrb[0].mxu0
    %v2268 = vadd.f32 0.0, %v2267
    %v2269 = vpop.f32.mrb[0].mxu0
    %2270 = vmatprep.mubr.f32.mxu0 0.0
    %2271 = vmatmul.mubr.f32.gmra.mrb[0].mxu0 %v1930
    %v2272 = vpop.f32.mrb[0].mxu0
    %v2273 = vadd.f32 0.0, %v2272
    %v2274 = vpop.f32.mrb[0].mxu0
    %2275 = vmatprep.mubr.f32.mxu0 0.0
    %2276 = vmatmul.mubr.f32.gmra.mrb[0].mxu0 %v1933
    %v2277 = vpop.f32.mrb[0].mxu0
    %v2278 = vadd.f32 0.0, %v2277
    %v2279 = vpop.f32.mrb[0].mxu0
    %2280 = vmatprep.mubr.f32.mxu0 0.0
    %2281 = vmatmul.mubr.f32.gmra.mrb[0].mxu0 %v1936
    %v2282 = vpop.f32.mrb[0].mxu0
    %v2283 = vadd.f32 0.0, %v2282
    %v2284 = vpop.f32.mrb[0].mxu0
    %2285 = vmatprep.mubr.f32.mxu0 0.0
    %2286 = vmatmul.mubr.f32.gmra.mrb[0].mxu0 %v1939
    %v2287 = vpop.f32.mrb[0].mxu0
    %v2288 = vadd.f32 0.0, %v2287
    %v2289 = vpop.f32.mrb[0].mxu0
    %2290 = vmatprep.mubr.f32.mxu0 0.0
    %2291 = vmatmul.mubr.f32.gmra.mrb[0].mxu0 %v1942
    %v2292 = vpop.f32.mrb[0].mxu0
    %v2293 = vadd.f32 0.0, %v2292
    %v2294 = vpop.f32.mrb[0].mxu0
    %2295 = vmatprep.mubr.f32.mxu0 0.0
    %2296 = vmatmul.mubr.f32.gmra.mrb[0].mxu0 %v1945
    %v2297 = vpop.f32.mrb[0].mxu0
    %v2298 = vadd.f32 0.0, %v2297
    %v2299 = vpop.f32.mrb[0].mxu0
    %2300 = vmatprep.mubr.f32.mxu0 0.0
    %2301 = vmatmul.mubr.f32.gmra.mrb[0].mxu0 %v1948
    %v2302 = vpop.f32.mrb[0].mxu0
    %v2303 = vadd.f32 0.0, %v2302
    %v2304 = vpop.f32.mrb[0].mxu0
    %2305 = vmatprep.mubr.f32.mxu0 0.0
    %2306 = vmatmul.mubr.f32.gmra.mrb[0].mxu0 %v1951
    %v2307 = vpop.f32.mrb[0].mxu0
    %v2308 = vadd.f32 0.0, %v2307
    %v2309 = vpop.f32.mrb[0].mxu0
    %2310 = vmatprep.mubr.f32.mxu0 0.0
    %2311 = vmatmul.mubr.f32.gmra.mrb[0].mxu0 %v1954
    %v2312 = vpop.f32.mrb[0].mxu0
    %v2313 = vadd.f32 0.0, %v2312
    %v2314 = vpop.f32.mrb[0].mxu0
    %2315 = vmatprep.mubr.f32.mxu0 0.0
    %2316 = vmatmul.mubr.f32.gmra.mrb[0].mxu0 %v1957
    %v2317 = vpop.f32.mrb[0].mxu0
    %v2318 = vadd.f32 0.0, %v2317
    %v2319 = vpop.f32.mrb[0].mxu0
    %2320 = vmatprep.mubr.f32.mxu0 0.0
    %2321 = vmatmul.mubr.f32.gmra.mrb[0].mxu0 %v1960
    %v2322 = vpop.f32.mrb[0].mxu0
    %v2323 = vadd.f32 0.0, %v2322
    %v2324 = vpop.f32.mrb[0].mxu0
    %2325 = vmatprep.mubr.f32.mxu0 0.0
    %2326 = vmatmul.mubr.f32.gmra.mrb[0].mxu0 %v1963
    %v2327 = vpop.f32.mrb[0].mxu0
    %v2328 = vadd.f32 0.0, %v2327
    %v2329 = vpop.f32.mrb[0].mxu0
    %2330 = vmatprep.mubr.f32.mxu0 0.0
    %2331 = vmatmul.mubr.f32.gmra.mrb[0].mxu0 %v1966
    %v2332 = vpop.f32.mrb[0].mxu0
    %v2333 = vadd.f32 0.0, %v2332
    %v2334 = vpop.f32.mrb[0].mxu0
    %2335 = vmatprep.mubr.f32.mxu0 0.0
    %2336 = vmatmul.mubr.f32.gmra.mrb[0].mxu0 %v1969
    %v2337 = vpop.f32.mrb[0].mxu0
    %v2338 = vadd.f32 0.0, %v2337
    %v2339 = vpop.f32.mrb[0].mxu0
    %2340 = vmatprep.mubr.f32.mxu0 0.0
    %2341 = vmatmul.mubr.f32.gmra.mrb[0].mxu0 %v1972
    %v2342 = vpop.f32.mrb[0].mxu0
    %v2343 = vadd.f32 0.0, %v2342
    %v2344 = vpop.f32.mrb[0].mxu0
    %2345 = vmatprep.mubr.f32.mxu0 0.0
    %2346 = vmatmul.mubr.f32.gmra.mrb[0].mxu0 %v1975
    %v2347 = vpop.f32.mrb[0].mxu0
    %v2348 = vadd.f32 0.0, %v2347
    %v2349 = vpop.f32.mrb[0].mxu0
    %2350 = vmatprep.mubr.f32.mxu0 0.0
    %2351 = vmatmul.mubr.f32.gmra.mrb[0].mxu0 %v1978
    %v2352 = vpop.f32.mrb[0].mxu0
    %v2353 = vadd.f32 0.0, %v2352
    %v2354 = vpop.f32.mrb[0].mxu0
    %2355 = vmatprep.mubr.f32.mxu0 0.0
    %2356 = vmatmul.mubr.f32.gmra.mrb[0].mxu0 %v1981
    %v2357 = vpop.f32.mrb[0].mxu0
    %v2358 = vadd.f32 0.0, %v2357
    %v2359 = vpop.f32.mrb[0].mxu0
    %2360 = vmatprep.mubr.f32.mxu0 0.0
    %2361 = vmatmul.mubr.f32.gmra.mrb[0].mxu0 %v1984
    %v2362 = vpop.f32.mrb[0].mxu0
    %v2363 = vadd.f32 0.0, %v2362
    %v2364 = vpop.f32.mrb[0].mxu0
    %2365 = vmatprep.mubr.f32.mxu0 0.0
    %2366 = vmatmul.mubr.f32.gmra.mrb[0].mxu0 %v1987
    %v2367 = vpop.f32.mrb[0].mxu0
    %v2368 = vadd.f32 0.0, %v2367
    %v2369 = vpop.f32.mrb[0].mxu0
    %2370 = vmatprep.mubr.f32.mxu0 0.0
    %2371 = vmatmul.mubr.f32.gmra.mrb[0].mxu0 %v1990
    %v2372 = vpop.f32.mrb[0].mxu0
    %v2373 = vadd.f32 0.0, %v2372
    %v2374 = vpop.f32.mrb[0].mxu0
    %2375 = vmatprep.mubr.f32.mxu0 0.0
    %2376 = vmatmul.mubr.f32.gmra.mrb[0].mxu0 %v1993
    %v2377 = vpop.f32.mrb[0].mxu0
    %v2378 = vadd.f32 0.0, %v2377
    %v2379 = vpop.f32.mrb[0].mxu0
    %2380 = vmatprep.mubr.f32.mxu0 0.0
    %2381 = vmatmul.mubr.f32.gmra.mrb[0].mxu0 %v1996
    %v2382 = vpop.f32.mrb[0].mxu0
    %v2383 = vadd.f32 0.0, %v2382
    %v2384 = vpop.f32.mrb[0].mxu0
    %2385 = vdwg.mxu0
    %v2387 = vsel %vm1805, %v1030, 0
    %v2390 = vsel %vm1805, %v1035, 0
    %v2393 = vsel %vm1805, %v1040, 0
    %v2396 = vsel %vm1805, %v1045, 0
    %v2399 = vsel %vm1805, %v1050, 0
    %v2402 = vsel %vm1805, %v1055, 0
    %v2405 = vsel %vm1805, %v1060, 0
    %v2408 = vsel %vm1805, %v1065, 0
    %v2411 = vsel %vm1805, %v1135, 0
    %v2414 = vsel %vm1805, %v1140, 0
    %v2417 = vsel %vm1805, %v1145, 0
    %v2420 = vsel %vm1805, %v1150, 0
    %v2423 = vsel %vm1805, %v1155, 0
    %v2426 = vsel %vm1805, %v1160, 0
    %v2429 = vsel %vm1805, %v1165, 0
    %v2432 = vsel %vm1805, %v1170, 0
    %v2435 = vsel %vm1805, %v1240, 0
    %v2438 = vsel %vm1805, %v1245, 0
    %v2441 = vsel %vm1805, %v1250, 0
    %v2444 = vsel %vm1805, %v1255, 0
    %v2447 = vsel %vm1805, %v1260, 0
    %v2450 = vsel %vm1805, %v1265, 0
    %v2453 = vsel %vm1805, %v1270, 0
    %v2456 = vsel %vm1805, %v1275, 0
    %v2459 = vsel %vm1805, %v1345, 0
    %v2462 = vsel %vm1805, %v1350, 0
    %v2465 = vsel %vm1805, %v1355, 0
    %v2468 = vsel %vm1805, %v1360, 0
    %v2471 = vsel %vm1805, %v1365, 0
    %v2474 = vsel %vm1805, %v1370, 0
    %v2477 = vsel %vm1805, %v1375, 0
    %v2480 = vsel %vm1805, %v1380, 0
    %v2483 = vsel %vm1805, %v1450, 0
    %v2486 = vsel %vm1805, %v1455, 0
    %v2489 = vsel %vm1805, %v1460, 0
    %v2492 = vsel %vm1805, %v1465, 0
    %v2495 = vsel %vm1805, %v1470, 0
    %v2498 = vsel %vm1805, %v1475, 0
    %v2501 = vsel %vm1805, %v1480, 0
    %v2504 = vsel %vm1805, %v1485, 0
    %v2507 = vsel %vm1805, %v1555, 0
    %v2510 = vsel %vm1805, %v1560, 0
    %v2513 = vsel %vm1805, %v1565, 0
    %v2516 = vsel %vm1805, %v1570, 0
    %v2519 = vsel %vm1805, %v1575, 0
    %v2522 = vsel %vm1805, %v1580, 0
    %v2525 = vsel %vm1805, %v1585, 0
    %v2528 = vsel %vm1805, %v1590, 0
    %v2531 = vsel %vm1805, %v1660, 0
    %v2534 = vsel %vm1805, %v1665, 0
    %v2537 = vsel %vm1805, %v1670, 0
    %v2540 = vsel %vm1805, %v1675, 0
    %v2543 = vsel %vm1805, %v1680, 0
    %v2546 = vsel %vm1805, %v1685, 0
    %v2549 = vsel %vm1805, %v1690, 0
    %v2552 = vsel %vm1805, %v1695, 0
    %v2555 = vsel %vm1805, %v1765, 0
    %v2558 = vsel %vm1805, %v1770, 0
    %v2561 = vsel %vm1805, %v1775, 0
    %v2564 = vsel %vm1805, %v1780, 0
    %v2567 = vsel %vm1805, %v1785, 0
    %v2570 = vsel %vm1805, %v1790, 0
    %v2573 = vsel %vm1805, %v1795, 0
    %v2576 = vsel %vm1805, %v1800, 0
    %v2578 = vsel %vm1998, %v65, 0
    %2580 = vmatprep.subr.mxu0 0.0
    %2581 = vmatpush1.msra.mxu0 %v2578
    %2582 = vmatprep.subr.mxu0 0.0
    %2583 = vmatpush1.msra.mxu0 0.0
    %2584 = vmatprep.subr.mxu0 0.0
    %2585 = vmatpush1.msra.mxu0 0.0
    %2586 = vmatprep.subr.mxu0 0.0
    %2587 = vmatpush1.msra.mxu0 0.0
    %2588 = vmatprep.subr.mxu0 0.0
    %2589 = vmatpush1.msra.mxu0 0.0
    %2590 = vmatprep.subr.mxu0 0.0
    %2591 = vmatpush1.msra.mxu0 0.0
    %2592 = vmatprep.subr.mxu0 0.0
    %2593 = vmatpush1.msra.mxu0 0.0
    %2594 = vmatprep.subr.mxu0 0.0
    %2595 = vmatpush1.msra.mxu0 0.0
    %2596 = vmatprep.subr.mxu0 0.0
    %2597 = vmatpush1.msra.mxu0 0.0
    %2598 = vmatprep.subr.mxu0 0.0
    %2599 = vmatpush1.msra.mxu0 0.0
    %2600 = vmatprep.subr.mxu0 0.0
    %2601 = vmatpush1.msra.mxu0 0.0
    %2602 = vmatprep.subr.mxu0 0.0
    %2603 = vmatpush1.msra.mxu0 0.0
    %2604 = vmatprep.subr.mxu0 0.0
    %2605 = vmatpush1.msra.mxu0 0.0
    %2606 = vmatprep.subr.mxu0 0.0
    %2607 = vmatpush1.msra.mxu0 0.0
    %2608 = vmatprep.subr.mxu0 0.0
    %2609 = vmatpush1.msra.mxu0 0.0
    %2610 = vmatprep.subr.mxu0 0.0
    %2611 = vmatpush1.msra.mxu0 0.0
    %2612 = vmatprep.subr.mxu0 0.0
    %2613 = vmatpush1.msra.mxu0 0.0
    %2614 = vmatprep.subr.mxu0 0.0
    %2615 = vmatpush1.msra.mxu0 0.0
    %2616 = vmatprep.subr.mxu0 0.0
    %2617 = vmatpush1.msra.mxu0 0.0
    %2618 = vmatprep.subr.mxu0 0.0
    %2619 = vmatpush1.msra.mxu0 0.0
    %2620 = vmatprep.subr.mxu0 0.0
    %2621 = vmatpush1.msra.mxu0 0.0
    %2622 = vmatprep.subr.mxu0 0.0
    %2623 = vmatpush1.msra.mxu0 0.0
    %2624 = vmatprep.subr.mxu0 0.0
    %2625 = vmatpush1.msra.mxu0 0.0
    %2626 = vmatprep.subr.mxu0 0.0
    %2627 = vmatpush1.msra.mxu0 0.0
    %2628 = vmatprep.subr.mxu0 0.0
    %2629 = vmatpush1.msra.mxu0 0.0
    %2630 = vmatprep.subr.mxu0 0.0
    %2631 = vmatpush1.msra.mxu0 0.0
    %2632 = vmatprep.subr.mxu0 0.0
    %2633 = vmatpush1.msra.mxu0 0.0
    %2634 = vmatprep.subr.mxu0 0.0
    %2635 = vmatpush1.msra.mxu0 0.0
    %2636 = vmatprep.subr.mxu0 0.0
    %2637 = vmatpush1.msra.mxu0 0.0
    %2638 = vmatprep.subr.mxu0 0.0
    %2639 = vmatpush1.msra.mxu0 0.0
    %2640 = vmatprep.subr.mxu0 0.0
    %2641 = vmatpush1.msra.mxu0 0.0
    %2642 = vmatprep.subr.mxu0 0.0
    %2643 = vmatpush1.msra.mxu0 0.0
    %2644 = vmatprep.mubr.f32.mxu0 0.0
    %2645 = vmatmul.mubr.f32.gmra.mrb[0].mxu0 %v2387
    %v2646 = vpop.f32.mrb[0].mxu0
    %v2647 = vadd.f32 %v2068, %v2646
    %v2648 = vpop.f32.mrb[0].mxu0
    %2649 = vmatprep.mubr.f32.mxu0 0.0
    %2650 = vmatmul.mubr.f32.gmra.mrb[0].mxu0 %v2390
    %v2651 = vpop.f32.mrb[0].mxu0
    %v2652 = vadd.f32 %v2073, %v2651
    %v2653 = vpop.f32.mrb[0].mxu0
    %2654 = vmatprep.mubr.f32.mxu0 0.0
    %2655 = vmatmul.mubr.f32.gmra.mrb[0].mxu0 %v2393
    %v2656 = vpop.f32.mrb[0].mxu0
    %v2657 = vadd.f32 %v2078, %v2656
    %v2658 = vpop.f32.mrb[0].mxu0
    %2659 = vmatprep.mubr.f32.mxu0 0.0
    %2660 = vmatmul.mubr.f32.gmra.mrb[0].mxu0 %v2396
    %v2661 = vpop.f32.mrb[0].mxu0
    %v2662 = vadd.f32 %v2083, %v2661
    %v2663 = vpop.f32.mrb[0].mxu0
    %2664 = vmatprep.mubr.f32.mxu0 0.0
    %2665 = vmatmul.mubr.f32.gmra.mrb[0].mxu0 %v2399
    %v2666 = vpop.f32.mrb[0].mxu0
    %v2667 = vadd.f32 %v2088, %v2666
    %v2668 = vpop.f32.mrb[0].mxu0
    %2669 = vmatprep.mubr.f32.mxu0 0.0
    %2670 = vmatmul.mubr.f32.gmra.mrb[0].mxu0 %v2402
    %v2671 = vpop.f32.mrb[0].mxu0
    %v2672 = vadd.f32 %v2093, %v2671
    %v2673 = vpop.f32.mrb[0].mxu0
    %2674 = vmatprep.mubr.f32.mxu0 0.0
    %2675 = vmatmul.mubr.f32.gmra.mrb[0].mxu0 %v2405
    %v2676 = vpop.f32.mrb[0].mxu0
    %v2677 = vadd.f32 %v2098, %v2676
    %v2678 = vpop.f32.mrb[0].mxu0
    %2679 = vmatprep.mubr.f32.mxu0 0.0
    %2680 = vmatmul.mubr.f32.gmra.mrb[0].mxu0 %v2408
    %v2681 = vpop.f32.mrb[0].mxu0
    %v2682 = vadd.f32 %v2103, %v2681
    %v2683 = vpop.f32.mrb[0].mxu0
    %2684 = vmatprep.mubr.f32.mxu0 0.0
    %2685 = vmatmul.mubr.f32.gmra.mrb[0].mxu0 %v2411
    %v2686 = vpop.f32.mrb[0].mxu0
    %v2687 = vadd.f32 %v2108, %v2686
    %v2688 = vpop.f32.mrb[0].mxu0
    %2689 = vmatprep.mubr.f32.mxu0 0.0
    %2690 = vmatmul.mubr.f32.gmra.mrb[0].mxu0 %v2414
    %v2691 = vpop.f32.mrb[0].mxu0
    %v2692 = vadd.f32 %v2113, %v2691
    %v2693 = vpop.f32.mrb[0].mxu0
    %2694 = vmatprep.mubr.f32.mxu0 0.0
    %2695 = vmatmul.mubr.f32.gmra.mrb[0].mxu0 %v2417
    %v2696 = vpop.f32.mrb[0].mxu0
    %v2697 = vadd.f32 %v2118, %v2696
    %v2698 = vpop.f32.mrb[0].mxu0
    %2699 = vmatprep.mubr.f32.mxu0 0.0
    %2700 = vmatmul.mubr.f32.gmra.mrb[0].mxu0 %v2420
    %v2701 = vpop.f32.mrb[0].mxu0
    %v2702 = vadd.f32 %v2123, %v2701
    %v2703 = vpop.f32.mrb[0].mxu0
    %2704 = vmatprep.mubr.f32.mxu0 0.0
    %2705 = vmatmul.mubr.f32.gmra.mrb[0].mxu0 %v2423
    %v2706 = vpop.f32.mrb[0].mxu0
    %v2707 = vadd.f32 %v2128, %v2706
    %v2708 = vpop.f32.mrb[0].mxu0
    %2709 = vmatprep.mubr.f32.mxu0 0.0
    %2710 = vmatmul.mubr.f32.gmra.mrb[0].mxu0 %v2426
    %v2711 = vpop.f32.mrb[0].mxu0
    %v2712 = vadd.f32 %v2133, %v2711
    %v2713 = vpop.f32.mrb[0].mxu0
    %2714 = vmatprep.mubr.f32.mxu0 0.0
    %2715 = vmatmul.mubr.f32.gmra.mrb[0].mxu0 %v2429
    %v2716 = vpop.f32.mrb[0].mxu0
    %v2717 = vadd.f32 %v2138, %v2716
    %v2718 = vpop.f32.mrb[0].mxu0
    %2719 = vmatprep.mubr.f32.mxu0 0.0
    %2720 = vmatmul.mubr.f32.gmra.mrb[0].mxu0 %v2432
    %v2721 = vpop.f32.mrb[0].mxu0
    %v2722 = vadd.f32 %v2143, %v2721
    %v2723 = vpop.f32.mrb[0].mxu0
    %2724 = vmatprep.mubr.f32.mxu0 0.0
    %2725 = vmatmul.mubr.f32.gmra.mrb[0].mxu0 %v2435
    %v2726 = vpop.f32.mrb[0].mxu0
    %v2727 = vadd.f32 %v2148, %v2726
    %v2728 = vpop.f32.mrb[0].mxu0
    %2729 = vmatprep.mubr.f32.mxu0 0.0
    %2730 = vmatmul.mubr.f32.gmra.mrb[0].mxu0 %v2438
    %v2731 = vpop.f32.mrb[0].mxu0
    %v2732 = vadd.f32 %v2153, %v2731
    %v2733 = vpop.f32.mrb[0].mxu0
    %2734 = vmatprep.mubr.f32.mxu0 0.0
    %2735 = vmatmul.mubr.f32.gmra.mrb[0].mxu0 %v2441
    %v2736 = vpop.f32.mrb[0].mxu0
    %v2737 = vadd.f32 %v2158, %v2736
    %v2738 = vpop.f32.mrb[0].mxu0
    %2739 = vmatprep.mubr.f32.mxu0 0.0
    %2740 = vmatmul.mubr.f32.gmra.mrb[0].mxu0 %v2444
    %v2741 = vpop.f32.mrb[0].mxu0
    %v2742 = vadd.f32 %v2163, %v2741
    %v2743 = vpop.f32.mrb[0].mxu0
    %2744 = vmatprep.mubr.f32.mxu0 0.0
    %2745 = vmatmul.mubr.f32.gmra.mrb[0].mxu0 %v2447
    %v2746 = vpop.f32.mrb[0].mxu0
    %v2747 = vadd.f32 %v2168, %v2746
    %v2748 = vpop.f32.mrb[0].mxu0
    %2749 = vmatprep.mubr.f32.mxu0 0.0
    %2750 = vmatmul.mubr.f32.gmra.mrb[0].mxu0 %v2450
    %v2751 = vpop.f32.mrb[0].mxu0
    %v2752 = vadd.f32 %v2173, %v2751
    %v2753 = vpop.f32.mrb[0].mxu0
    %2754 = vmatprep.mubr.f32.mxu0 0.0
    %2755 = vmatmul.mubr.f32.gmra.mrb[0].mxu0 %v2453
    %v2756 = vpop.f32.mrb[0].mxu0
    %v2757 = vadd.f32 %v2178, %v2756
    %v2758 = vpop.f32.mrb[0].mxu0
    %2759 = vmatprep.mubr.f32.mxu0 0.0
    %2760 = vmatmul.mubr.f32.gmra.mrb[0].mxu0 %v2456
    %v2761 = vpop.f32.mrb[0].mxu0
    %v2762 = vadd.f32 %v2183, %v2761
    %v2763 = vpop.f32.mrb[0].mxu0
    %2764 = vmatprep.mubr.f32.mxu0 0.0
    %2765 = vmatmul.mubr.f32.gmra.mrb[0].mxu0 %v2459
    %v2766 = vpop.f32.mrb[0].mxu0
    %v2767 = vadd.f32 %v2188, %v2766
    %v2768 = vpop.f32.mrb[0].mxu0
    %2769 = vmatprep.mubr.f32.mxu0 0.0
    %2770 = vmatmul.mubr.f32.gmra.mrb[0].mxu0 %v2462
    %v2771 = vpop.f32.mrb[0].mxu0
    %v2772 = vadd.f32 %v2193, %v2771
    %v2773 = vpop.f32.mrb[0].mxu0
    %2774 = vmatprep.mubr.f32.mxu0 0.0
    %2775 = vmatmul.mubr.f32.gmra.mrb[0].mxu0 %v2465
    %v2776 = vpop.f32.mrb[0].mxu0
    %v2777 = vadd.f32 %v2198, %v2776
    %v2778 = vpop.f32.mrb[0].mxu0
    %2779 = vmatprep.mubr.f32.mxu0 0.0
    %2780 = vmatmul.mubr.f32.gmra.mrb[0].mxu0 %v2468
    %v2781 = vpop.f32.mrb[0].mxu0
    %v2782 = vadd.f32 %v2203, %v2781
    %v2783 = vpop.f32.mrb[0].mxu0
    %2784 = vmatprep.mubr.f32.mxu0 0.0
    %2785 = vmatmul.mubr.f32.gmra.mrb[0].mxu0 %v2471
    %v2786 = vpop.f32.mrb[0].mxu0
    %v2787 = vadd.f32 %v2208, %v2786
    %v2788 = vpop.f32.mrb[0].mxu0
    %2789 = vmatprep.mubr.f32.mxu0 0.0
    %2790 = vmatmul.mubr.f32.gmra.mrb[0].mxu0 %v2474
    %v2791 = vpop.f32.mrb[0].mxu0
    %v2792 = vadd.f32 %v2213, %v2791
    %v2793 = vpop.f32.mrb[0].mxu0
    %2794 = vmatprep.mubr.f32.mxu0 0.0
    %2795 = vmatmul.mubr.f32.gmra.mrb[0].mxu0 %v2477
    %v2796 = vpop.f32.mrb[0].mxu0
    %v2797 = vadd.f32 %v2218, %v2796
    %v2798 = vpop.f32.mrb[0].mxu0
    %2799 = vmatprep.mubr.f32.mxu0 0.0
    %2800 = vmatmul.mubr.f32.gmra.mrb[0].mxu0 %v2480
    %v2801 = vpop.f32.mrb[0].mxu0
    %v2802 = vadd.f32 %v2223, %v2801
    %v2803 = vpop.f32.mrb[0].mxu0
    %2804 = vmatprep.mubr.f32.mxu0 0.0
    %2805 = vmatmul.mubr.f32.gmra.mrb[0].mxu0 %v2483
    %v2806 = vpop.f32.mrb[0].mxu0
    %v2807 = vadd.f32 %v2228, %v2806
    %v2808 = vpop.f32.mrb[0].mxu0
    %2809 = vmatprep.mubr.f32.mxu0 0.0
    %2810 = vmatmul.mubr.f32.gmra.mrb[0].mxu0 %v2486
    %v2811 = vpop.f32.mrb[0].mxu0
    %v2812 = vadd.f32 %v2233, %v2811
    %v2813 = vpop.f32.mrb[0].mxu0
    %2814 = vmatprep.mubr.f32.mxu0 0.0
    %2815 = vmatmul.mubr.f32.gmra.mrb[0].mxu0 %v2489
    %v2816 = vpop.f32.mrb[0].mxu0
    %v2817 = vadd.f32 %v2238, %v2816
    %v2818 = vpop.f32.mrb[0].mxu0
    %2819 = vmatprep.mubr.f32.mxu0 0.0
    %2820 = vmatmul.mubr.f32.gmra.mrb[0].mxu0 %v2492
    %v2821 = vpop.f32.mrb[0].mxu0
    %v2822 = vadd.f32 %v2243, %v2821
    %v2823 = vpop.f32.mrb[0].mxu0
    %2824 = vmatprep.mubr.f32.mxu0 0.0
    %2825 = vmatmul.mubr.f32.gmra.mrb[0].mxu0 %v2495
    %v2826 = vpop.f32.mrb[0].mxu0
    %v2827 = vadd.f32 %v2248, %v2826
    %v2828 = vpop.f32.mrb[0].mxu0
    %2829 = vmatprep.mubr.f32.mxu0 0.0
    %2830 = vmatmul.mubr.f32.gmra.mrb[0].mxu0 %v2498
    %v2831 = vpop.f32.mrb[0].mxu0
    %v2832 = vadd.f32 %v2253, %v2831
    %v2833 = vpop.f32.mrb[0].mxu0
    %2834 = vmatprep.mubr.f32.mxu0 0.0
    %2835 = vmatmul.mubr.f32.gmra.mrb[0].mxu0 %v2501
    %v2836 = vpop.f32.mrb[0].mxu0
    %v2837 = vadd.f32 %v2258, %v2836
    %v2838 = vpop.f32.mrb[0].mxu0
    %2839 = vmatprep.mubr.f32.mxu0 0.0
    %2840 = vmatmul.mubr.f32.gmra.mrb[0].mxu0 %v2504
    %v2841 = vpop.f32.mrb[0].mxu0
    %v2842 = vadd.f32 %v2263, %v2841
    %v2843 = vpop.f32.mrb[0].mxu0
    %2844 = vmatprep.mubr.f32.mxu0 0.0
    %2845 = vmatmul.mubr.f32.gmra.mrb[0].mxu0 %v2507
    %v2846 = vpop.f32.mrb[0].mxu0
    %v2847 = vadd.f32 %v2268, %v2846
    %v2848 = vpop.f32.mrb[0].mxu0
    %2849 = vmatprep.mubr.f32.mxu0 0.0
    %2850 = vmatmul.mubr.f32.gmra.mrb[0].mxu0 %v2510
    %v2851 = vpop.f32.mrb[0].mxu0
    %v2852 = vadd.f32 %v2273, %v2851
    %v2853 = vpop.f32.mrb[0].mxu0
    %2854 = vmatprep.mubr.f32.mxu0 0.0
    %2855 = vmatmul.mubr.f32.gmra.mrb[0].mxu0 %v2513
    %v2856 = vpop.f32.mrb[0].mxu0
    %v2857 = vadd.f32 %v2278, %v2856
    %v2858 = vpop.f32.mrb[0].mxu0
    %2859 = vmatprep.mubr.f32.mxu0 0.0
    %2860 = vmatmul.mubr.f32.gmra.mrb[0].mxu0 %v2516
    %v2861 = vpop.f32.mrb[0].mxu0
    %v2862 = vadd.f32 %v2283, %v2861
    %v2863 = vpop.f32.mrb[0].mxu0
    %2864 = vmatprep.mubr.f32.mxu0 0.0
    %2865 = vmatmul.mubr.f32.gmra.mrb[0].mxu0 %v2519
    %v2866 = vpop.f32.mrb[0].mxu0
    %v2867 = vadd.f32 %v2288, %v2866
    %v2868 = vpop.f32.mrb[0].mxu0
    %2869 = vmatprep.mubr.f32.mxu0 0.0
    %2870 = vmatmul.mubr.f32.gmra.mrb[0].mxu0 %v2522
    %v2871 = vpop.f32.mrb[0].mxu0
    %v2872 = vadd.f32 %v2293, %v2871
    %v2873 = vpop.f32.mrb[0].mxu0
    %2874 = vmatprep.mubr.f32.mxu0 0.0
    %2875 = vmatmul.mubr.f32.gmra.mrb[0].mxu0 %v2525
    %v2876 = vpop.f32.mrb[0].mxu0
    %v2877 = vadd.f32 %v2298, %v2876
    %v2878 = vpop.f32.mrb[0].mxu0
    %2879 = vmatprep.mubr.f32.mxu0 0.0
    %2880 = vmatmul.mubr.f32.gmra.mrb[0].mxu0 %v2528
    %v2881 = vpop.f32.mrb[0].mxu0
    %v2882 = vadd.f32 %v2303, %v2881
    %v2883 = vpop.f32.mrb[0].mxu0
    %2884 = vmatprep.mubr.f32.mxu0 0.0
    %2885 = vmatmul.mubr.f32.gmra.mrb[0].mxu0 %v2531
    %v2886 = vpop.f32.mrb[0].mxu0
    %v2887 = vadd.f32 %v2308, %v2886
    %v2888 = vpop.f32.mrb[0].mxu0
    %2889 = vmatprep.mubr.f32.mxu0 0.0
    %2890 = vmatmul.mubr.f32.gmra.mrb[0].mxu0 %v2534
    %v2891 = vpop.f32.mrb[0].mxu0
    %v2892 = vadd.f32 %v2313, %v2891
    %v2893 = vpop.f32.mrb[0].mxu0
    %2894 = vmatprep.mubr.f32.mxu0 0.0
    %2895 = vmatmul.mubr.f32.gmra.mrb[0].mxu0 %v2537
    %v2896 = vpop.f32.mrb[0].mxu0
    %v2897 = vadd.f32 %v2318, %v2896
    %v2898 = vpop.f32.mrb[0].mxu0
    %2899 = vmatprep.mubr.f32.mxu0 0.0
    %2900 = vmatmul.mubr.f32.gmra.mrb[0].mxu0 %v2540
    %v2901 = vpop.f32.mrb[0].mxu0
    %v2902 = vadd.f32 %v2323, %v2901
    %v2903 = vpop.f32.mrb[0].mxu0
    %2904 = vmatprep.mubr.f32.mxu0 0.0
    %2905 = vmatmul.mubr.f32.gmra.mrb[0].mxu0 %v2543
    %v2906 = vpop.f32.mrb[0].mxu0
    %v2907 = vadd.f32 %v2328, %v2906
    %v2908 = vpop.f32.mrb[0].mxu0
    %2909 = vmatprep.mubr.f32.mxu0 0.0
    %2910 = vmatmul.mubr.f32.gmra.mrb[0].mxu0 %v2546
    %v2911 = vpop.f32.mrb[0].mxu0
    %v2912 = vadd.f32 %v2333, %v2911
    %v2913 = vpop.f32.mrb[0].mxu0
    %2914 = vmatprep.mubr.f32.mxu0 0.0
    %2915 = vmatmul.mubr.f32.gmra.mrb[0].mxu0 %v2549
    %v2916 = vpop.f32.mrb[0].mxu0
    %v2917 = vadd.f32 %v2338, %v2916
    %v2918 = vpop.f32.mrb[0].mxu0
    %2919 = vmatprep.mubr.f32.mxu0 0.0
    %2920 = vmatmul.mubr.f32.gmra.mrb[0].mxu0 %v2552
    %v2921 = vpop.f32.mrb[0].mxu0
    %v2922 = vadd.f32 %v2343, %v2921
    %v2923 = vpop.f32.mrb[0].mxu0
    %2924 = vmatprep.mubr.f32.mxu0 0.0
    %2925 = vmatmul.mubr.f32.gmra.mrb[0].mxu0 %v2555
    %v2926 = vpop.f32.mrb[0].mxu0
    %v2927 = vadd.f32 %v2348, %v2926
    %v2928 = vpop.f32.mrb[0].mxu0
    %2929 = vmatprep.mubr.f32.mxu0 0.0
    %2930 = vmatmul.mubr.f32.gmra.mrb[0].mxu0 %v2558
    %v2931 = vpop.f32.mrb[0].mxu0
    %v2932 = vadd.f32 %v2353, %v2931
    %v2933 = vpop.f32.mrb[0].mxu0
    %2934 = vmatprep.mubr.f32.mxu0 0.0
    %2935 = vmatmul.mubr.f32.gmra.mrb[0].mxu0 %v2561
    %v2936 = vpop.f32.mrb[0].mxu0
    %v2937 = vadd.f32 %v2358, %v2936
    %v2938 = vpop.f32.mrb[0].mxu0
    %2939 = vmatprep.mubr.f32.mxu0 0.0
    %2940 = vmatmul.mubr.f32.gmra.mrb[0].mxu0 %v2564
    %v2941 = vpop.f32.mrb[0].mxu0
    %v2942 = vadd.f32 %v2363, %v2941
    %v2943 = vpop.f32.mrb[0].mxu0
    %2944 = vmatprep.mubr.f32.mxu0 0.0
    %2945 = vmatmul.mubr.f32.gmra.mrb[0].mxu0 %v2567
    %v2946 = vpop.f32.mrb[0].mxu0
    %v2947 = vadd.f32 %v2368, %v2946
    %v2948 = vpop.f32.mrb[0].mxu0
    %2949 = vmatprep.mubr.f32.mxu0 0.0
    %2950 = vmatmul.mubr.f32.gmra.mrb[0].mxu0 %v2570
    %v2951 = vpop.f32.mrb[0].mxu0
    %v2952 = vadd.f32 %v2373, %v2951
    %v2953 = vpop.f32.mrb[0].mxu0
    %2954 = vmatprep.mubr.f32.mxu0 0.0
    %2955 = vmatmul.mubr.f32.gmra.mrb[0].mxu0 %v2573
    %v2956 = vpop.f32.mrb[0].mxu0
    %v2957 = vadd.f32 %v2378, %v2956
    %v2958 = vpop.f32.mrb[0].mxu0
    %2959 = vmatprep.mubr.f32.mxu0 0.0
    %2960 = vmatmul.mubr.f32.gmra.mrb[0].mxu0 %v2576
    %v2961 = vpop.f32.mrb[0].mxu0
    %v2962 = vadd.f32 %v2383, %v2961
    %v2963 = vpop.f32.mrb[0].mxu0
    %2964 = vdwg.mxu0
    %v2965 = vlaneseq
    %v2966 = vshrl.u32 %v2965, 7
    %v2967 = vsub.s32 0, %v2966
    %v2968 = vrot.slane %v66, %v2967
    %v2969 = vadd.f32 %v2647, %v2968
    %v2970 = vadd.f32 %v2652, %v2968
    %v2971 = vadd.f32 %v2657, %v2968
    %v2972 = vadd.f32 %v2662, %v2968
    %v2973 = vadd.f32 %v2667, %v2968
    %v2974 = vadd.f32 %v2672, %v2968
    %v2975 = vadd.f32 %v2677, %v2968
    %v2976 = vadd.f32 %v2682, %v2968
    %v2977 = vadd.f32 %v2687, %v2968
    %v2978 = vadd.f32 %v2692, %v2968
    %v2979 = vadd.f32 %v2697, %v2968
    %v2980 = vadd.f32 %v2702, %v2968
    %v2981 = vadd.f32 %v2707, %v2968
    %v2982 = vadd.f32 %v2712, %v2968
    %v2983 = vadd.f32 %v2717, %v2968
    %v2984 = vadd.f32 %v2722, %v2968
    %v2985 = vadd.f32 %v2727, %v2968
    %v2986 = vadd.f32 %v2732, %v2968
    %v2987 = vadd.f32 %v2737, %v2968
    %v2988 = vadd.f32 %v2742, %v2968
    %v2989 = vadd.f32 %v2747, %v2968
    %v2990 = vadd.f32 %v2752, %v2968
    %v2991 = vadd.f32 %v2757, %v2968
    %v2992 = vadd.f32 %v2762, %v2968
    %v2993 = vadd.f32 %v2767, %v2968
    %v2994 = vadd.f32 %v2772, %v2968
    %v2995 = vadd.f32 %v2777, %v2968
    %v2996 = vadd.f32 %v2782, %v2968
    %v2997 = vadd.f32 %v2787, %v2968
    %v2998 = vadd.f32 %v2792, %v2968
    %v2999 = vadd.f32 %v2797, %v2968
    %v3000 = vadd.f32 %v2802, %v2968
    %v3001 = vadd.f32 %v2807, %v2968
    %v3002 = vadd.f32 %v2812, %v2968
    %v3003 = vadd.f32 %v2817, %v2968
    %v3004 = vadd.f32 %v2822, %v2968
    %v3005 = vadd.f32 %v2827, %v2968
    %v3006 = vadd.f32 %v2832, %v2968
    %v3007 = vadd.f32 %v2837, %v2968
    %v3008 = vadd.f32 %v2842, %v2968
    %v3009 = vadd.f32 %v2847, %v2968
    %v3010 = vadd.f32 %v2852, %v2968
    %v3011 = vadd.f32 %v2857, %v2968
    %v3012 = vadd.f32 %v2862, %v2968
    %v3013 = vadd.f32 %v2867, %v2968
    %v3014 = vadd.f32 %v2872, %v2968
    %v3015 = vadd.f32 %v2877, %v2968
    %v3016 = vadd.f32 %v2882, %v2968
    %v3017 = vadd.f32 %v2887, %v2968
    %v3018 = vadd.f32 %v2892, %v2968
    %v3019 = vadd.f32 %v2897, %v2968
    %v3020 = vadd.f32 %v2902, %v2968
    %v3021 = vadd.f32 %v2907, %v2968
    %v3022 = vadd.f32 %v2912, %v2968
    %v3023 = vadd.f32 %v2917, %v2968
    %v3024 = vadd.f32 %v2922, %v2968
    %v3025 = vadd.f32 %v2927, %v2968
    %v3026 = vadd.f32 %v2932, %v2968
    %v3027 = vadd.f32 %v2937, %v2968
    %v3028 = vadd.f32 %v2942, %v2968
    %v3029 = vadd.f32 %v2947, %v2968
    %v3030 = vadd.f32 %v2952, %v2968
    %v3031 = vadd.f32 %v2957, %v2968
    %v3032 = vadd.f32 %v2962, %v2968
    %3033 = vmatprep.subr.mxu0 0.0
    %3034 = vmatpush1.msra.mxu0 %v2969
    %3035 = vmatprep.subr.mxu0 0.0
    %3036 = vmatpush1.msra.mxu0 %v2970
    %3037 = vmatprep.subr.mxu0 0.0
    %3038 = vmatpush1.msra.mxu0 %v2971
    %3039 = vmatprep.subr.mxu0 0.0
    %3040 = vmatpush1.msra.mxu0 %v2972
    %3041 = vmatprep.subr.mxu0 0.0
    %3042 = vmatpush1.msra.mxu0 %v2973
    %3043 = vmatprep.subr.mxu0 0.0
    %3044 = vmatpush1.msra.mxu0 %v2974
    %3045 = vmatprep.subr.mxu0 0.0
    %3046 = vmatpush1.msra.mxu0 %v2975
    %3047 = vmatprep.subr.mxu0 0.0
    %3048 = vmatpush1.msra.mxu0 %v2976
    %3049 = vmatprep.subr.mxu0 0.0
    %3050 = vmatpush1.msra.mxu0 0.0
    %3051 = vmatprep.subr.mxu0 0.0
    %3052 = vmatpush1.msra.mxu0 0.0
    %3053 = vmatprep.subr.mxu0 0.0
    %3054 = vmatpush1.msra.mxu0 0.0
    %3055 = vmatprep.subr.mxu0 0.0
    %3056 = vmatpush1.msra.mxu0 0.0
    %3057 = vmatprep.subr.mxu0 0.0
    %3058 = vmatpush1.msra.mxu0 0.0
    %3059 = vmatprep.subr.mxu0 0.0
    %3060 = vmatpush1.msra.mxu0 0.0
    %3061 = vmatprep.subr.mxu0 0.0
    %3062 = vmatpush1.msra.mxu0 0.0
    %3063 = vmatprep.subr.mxu0 0.0
    %3064 = vmatpush1.msra.mxu0 0.0
    %3065 = vmatprep.subr.mxu0 0.0
    %3066 = vmatpush1.msra.mxu0 0.0
    %3067 = vmatprep.subr.mxu0 0.0
    %3068 = vmatpush1.msra.mxu0 0.0
    %3069 = vmatprep.subr.mxu0 0.0
    %3070 = vmatpush1.msra.mxu0 0.0
    %3071 = vmatprep.subr.mxu0 0.0
    %3072 = vmatpush1.msra.mxu0 0.0
    %3073 = vmatprep.subr.mxu0 0.0
    %3074 = vmatpush1.msra.mxu0 0.0
    %3075 = vmatprep.subr.mxu0 0.0
    %3076 = vmatpush1.msra.mxu0 0.0
    %3077 = vmatprep.subr.mxu0 0.0
    %3078 = vmatpush1.msra.mxu0 0.0
    %3079 = vmatprep.subr.mxu0 0.0
    %3080 = vmatpush1.msra.mxu0 0.0
    %3081 = vmatprep.subr.mxu0 0.0
    %3082 = vmatpush1.msra.mxu0 0.0
    %3083 = vmatprep.subr.mxu0 0.0
    %3084 = vmatpush1.msra.mxu0 0.0
    %3085 = vmatprep.subr.mxu0 0.0
    %3086 = vmatpush1.msra.mxu0 0.0
    %3087 = vmatprep.subr.mxu0 0.0
    %3088 = vmatpush1.msra.mxu0 0.0
    %3089 = vmatprep.subr.mxu0 0.0
    %3090 = vmatpush1.msra.mxu0 0.0
    %3091 = vmatprep.subr.mxu0 0.0
    %3092 = vmatpush1.msra.mxu0 0.0
    %3093 = vmatprep.subr.mxu0 0.0
    %3094 = vmatpush1.msra.mxu0 0.0
    %3095 = vmatprep.subr.mxu0 0.0
    %3096 = vmatpush1.msra.mxu0 0.0
    %3097 = vmatprep.mubr.f32.mxu0 0.0
    %3098 = vmatmul.mubr.f32.gmra.mrb[0].mxu0 %v940
    %v3099 = vpop.f32.mrb[0].mxu0
    %v3100 = vadd.f32 0.0, %v3099
    %v3101 = vpop.f32.mrb[0].mxu0
    %3102 = vmatprep.mubr.f32.mxu0 0.0
    %3103 = vmatmul.mubr.f32.gmra.mrb[0].mxu0 %v943
    %v3104 = vpop.f32.mrb[0].mxu0
    %v3105 = vadd.f32 0.0, %v3104
    %v3106 = vpop.f32.mrb[0].mxu0
    %3107 = vmatprep.mubr.f32.mxu0 0.0
    %3108 = vmatmul.mubr.f32.gmra.mrb[0].mxu0 %v946
    %v3109 = vpop.f32.mrb[0].mxu0
    %v3110 = vadd.f32 0.0, %v3109
    %v3111 = vpop.f32.mrb[0].mxu0
    %3112 = vmatprep.mubr.f32.mxu0 0.0
    %3113 = vmatmul.mubr.f32.gmra.mrb[0].mxu0 %v949
    %v3114 = vpop.f32.mrb[0].mxu0
    %v3115 = vadd.f32 0.0, %v3114
    %v3116 = vpop.f32.mrb[0].mxu0
    %3117 = vmatprep.mubr.f32.mxu0 0.0
    %3118 = vmatmul.mubr.f32.gmra.mrb[0].mxu0 %v952
    %v3119 = vpop.f32.mrb[0].mxu0
    %v3120 = vadd.f32 0.0, %v3119
    %v3121 = vpop.f32.mrb[0].mxu0
    %3122 = vmatprep.mubr.f32.mxu0 0.0
    %3123 = vmatmul.mubr.f32.gmra.mrb[0].mxu0 %v955
    %v3124 = vpop.f32.mrb[0].mxu0
    %v3125 = vadd.f32 0.0, %v3124
    %v3126 = vpop.f32.mrb[0].mxu0
    %3127 = vmatprep.mubr.f32.mxu0 0.0
    %3128 = vmatmul.mubr.f32.gmra.mrb[0].mxu0 %v958
    %v3129 = vpop.f32.mrb[0].mxu0
    %v3130 = vadd.f32 0.0, %v3129
    %v3131 = vpop.f32.mrb[0].mxu0
    %3132 = vmatprep.mubr.f32.mxu0 0.0
    %3133 = vmatmul.mubr.f32.gmra.mrb[0].mxu0 %v961
    %v3134 = vpop.f32.mrb[0].mxu0
    %v3135 = vadd.f32 0.0, %v3134
    %v3136 = vpop.f32.mrb[0].mxu0
    %3137 = vdwg.mxu0
    %3138 = vmatprep.subr.mxu0 0.0
    %3139 = vmatpush1.msra.mxu0 %v2977
    %3140 = vmatprep.subr.mxu0 0.0
    %3141 = vmatpush1.msra.mxu0 %v2978
    %3142 = vmatprep.subr.mxu0 0.0
    %3143 = vmatpush1.msra.mxu0 %v2979
    %3144 = vmatprep.subr.mxu0 0.0
    %3145 = vmatpush1.msra.mxu0 %v2980
    %3146 = vmatprep.subr.mxu0 0.0
    %3147 = vmatpush1.msra.mxu0 %v2981
    %3148 = vmatprep.subr.mxu0 0.0
    %3149 = vmatpush1.msra.mxu0 %v2982
    %3150 = vmatprep.subr.mxu0 0.0
    %3151 = vmatpush1.msra.mxu0 %v2983
    %3152 = vmatprep.subr.mxu0 0.0
    %3153 = vmatpush1.msra.mxu0 %v2984
    %3154 = vmatprep.subr.mxu0 0.0
    %3155 = vmatpush1.msra.mxu0 0.0
    %3156 = vmatprep.subr.mxu0 0.0
    %3157 = vmatpush1.msra.mxu0 0.0
    %3158 = vmatprep.subr.mxu0 0.0
    %3159 = vmatpush1.msra.mxu0 0.0
    %3160 = vmatprep.subr.mxu0 0.0
    %3161 = vmatpush1.msra.mxu0 0.0
    %3162 = vmatprep.subr.mxu0 0.0
    %3163 = vmatpush1.msra.mxu0 0.0
    %3164 = vmatprep.subr.mxu0 0.0
    %3165 = vmatpush1.msra.mxu0 0.0
    %3166 = vmatprep.subr.mxu0 0.0
    %3167 = vmatpush1.msra.mxu0 0.0
    %3168 = vmatprep.subr.mxu0 0.0
    %3169 = vmatpush1.msra.mxu0 0.0
    %3170 = vmatprep.subr.mxu0 0.0
    %3171 = vmatpush1.msra.mxu0 0.0
    %3172 = vmatprep.subr.mxu0 0.0
    %3173 = vmatpush1.msra.mxu0 0.0
    %3174 = vmatprep.subr.mxu0 0.0
    %3175 = vmatpush1.msra.mxu0 0.0
    %3176 = vmatprep.subr.mxu0 0.0
    %3177 = vmatpush1.msra.mxu0 0.0
    %3178 = vmatprep.subr.mxu0 0.0
    %3179 = vmatpush1.msra.mxu0 0.0
    %3180 = vmatprep.subr.mxu0 0.0
    %3181 = vmatpush1.msra.mxu0 0.0
    %3182 = vmatprep.subr.mxu0 0.0
    %3183 = vmatpush1.msra.mxu0 0.0
    %3184 = vmatprep.subr.mxu0 0.0
    %3185 = vmatpush1.msra.mxu0 0.0
    %3186 = vmatprep.subr.mxu0 0.0
    %3187 = vmatpush1.msra.mxu0 0.0
    %3188 = vmatprep.subr.mxu0 0.0
    %3189 = vmatpush1.msra.mxu0 0.0
    %3190 = vmatprep.subr.mxu0 0.0
    %3191 = vmatpush1.msra.mxu0 0.0
    %3192 = vmatprep.subr.mxu0 0.0
    %3193 = vmatpush1.msra.mxu0 0.0
    %3194 = vmatprep.subr.mxu0 0.0
    %3195 = vmatpush1.msra.mxu0 0.0
    %3196 = vmatprep.subr.mxu0 0.0
    %3197 = vmatpush1.msra.mxu0 0.0
    %3198 = vmatprep.subr.mxu0 0.0
    %3199 = vmatpush1.msra.mxu0 0.0
    %3200 = vmatprep.subr.mxu0 0.0
    %3201 = vmatpush1.msra.mxu0 0.0
    %3202 = vmatprep.mubr.f32.mxu0 0.0
    %3203 = vmatmul.mubr.f32.gmra.mrb[0].mxu0 %v940
    %v3204 = vpop.f32.mrb[0].mxu0
    %v3205 = vadd.f32 0.0, %v3204
    %v3206 = vpop.f32.mrb[0].mxu0
    %3207 = vmatprep.mubr.f32.mxu0 0.0
    %3208 = vmatmul.mubr.f32.gmra.mrb[0].mxu0 %v943
    %v3209 = vpop.f32.mrb[0].mxu0
    %v3210 = vadd.f32 0.0, %v3209
    %v3211 = vpop.f32.mrb[0].mxu0
    %3212 = vmatprep.mubr.f32.mxu0 0.0
    %3213 = vmatmul.mubr.f32.gmra.mrb[0].mxu0 %v946
    %v3214 = vpop.f32.mrb[0].mxu0
    %v3215 = vadd.f32 0.0, %v3214
    %v3216 = vpop.f32.mrb[0].mxu0
    %3217 = vmatprep.mubr.f32.mxu0 0.0
    %3218 = vmatmul.mubr.f32.gmra.mrb[0].mxu0 %v949
    %v3219 = vpop.f32.mrb[0].mxu0
    %v3220 = vadd.f32 0.0, %v3219
    %v3221 = vpop.f32.mrb[0].mxu0
    %3222 = vmatprep.mubr.f32.mxu0 0.0
    %3223 = vmatmul.mubr.f32.gmra.mrb[0].mxu0 %v952
    %v3224 = vpop.f32.mrb[0].mxu0
    %v3225 = vadd.f32 0.0, %v3224
    %v3226 = vpop.f32.mrb[0].mxu0
    %3227 = vmatprep.mubr.f32.mxu0 0.0
    %3228 = vmatmul.mubr.f32.gmra.mrb[0].mxu0 %v955
    %v3229 = vpop.f32.mrb[0].mxu0
    %v3230 = vadd.f32 0.0, %v3229
    %v3231 = vpop.f32.mrb[0].mxu0
    %3232 = vmatprep.mubr.f32.mxu0 0.0
    %3233 = vmatmul.mubr.f32.gmra.mrb[0].mxu0 %v958
    %v3234 = vpop.f32.mrb[0].mxu0
    %v3235 = vadd.f32 0.0, %v3234
    %v3236 = vpop.f32.mrb[0].mxu0
    %3237 = vmatprep.mubr.f32.mxu0 0.0
    %3238 = vmatmul.mubr.f32.gmra.mrb[0].mxu0 %v961
    %v3239 = vpop.f32.mrb[0].mxu0
    %v3240 = vadd.f32 0.0, %v3239
    %v3241 = vpop.f32.mrb[0].mxu0
    %3242 = vdwg.mxu0
    %3243 = vmatprep.subr.mxu0 0.0
    %3244 = vmatpush1.msra.mxu0 %v2985
    %3245 = vmatprep.subr.mxu0 0.0
    %3246 = vmatpush1.msra.mxu0 %v2986
    %3247 = vmatprep.subr.mxu0 0.0
    %3248 = vmatpush1.msra.mxu0 %v2987
    %3249 = vmatprep.subr.mxu0 0.0
    %3250 = vmatpush1.msra.mxu0 %v2988
    %3251 = vmatprep.subr.mxu0 0.0
    %3252 = vmatpush1.msra.mxu0 %v2989
    %3253 = vmatprep.subr.mxu0 0.0
    %3254 = vmatpush1.msra.mxu0 %v2990
    %3255 = vmatprep.subr.mxu0 0.0
    %3256 = vmatpush1.msra.mxu0 %v2991
    %3257 = vmatprep.subr.mxu0 0.0
    %3258 = vmatpush1.msra.mxu0 %v2992
    %3259 = vmatprep.subr.mxu0 0.0
    %3260 = vmatpush1.msra.mxu0 0.0
    %3261 = vmatprep.subr.mxu0 0.0
    %3262 = vmatpush1.msra.mxu0 0.0
    %3263 = vmatprep.subr.mxu0 0.0
    %3264 = vmatpush1.msra.mxu0 0.0
    %3265 = vmatprep.subr.mxu0 0.0
    %3266 = vmatpush1.msra.mxu0 0.0
    %3267 = vmatprep.subr.mxu0 0.0
    %3268 = vmatpush1.msra.mxu0 0.0
    %3269 = vmatprep.subr.mxu0 0.0
    %3270 = vmatpush1.msra.mxu0 0.0
    %3271 = vmatprep.subr.mxu0 0.0
    %3272 = vmatpush1.msra.mxu0 0.0
    %3273 = vmatprep.subr.mxu0 0.0
    %3274 = vmatpush1.msra.mxu0 0.0
    %3275 = vmatprep.subr.mxu0 0.0
    %3276 = vmatpush1.msra.mxu0 0.0
    %3277 = vmatprep.subr.mxu0 0.0
    %3278 = vmatpush1.msra.mxu0 0.0
    %3279 = vmatprep.subr.mxu0 0.0
    %3280 = vmatpush1.msra.mxu0 0.0
    %3281 = vmatprep.subr.mxu0 0.0
    %3282 = vmatpush1.msra.mxu0 0.0
    %3283 = vmatprep.subr.mxu0 0.0
    %3284 = vmatpush1.msra.mxu0 0.0
    %3285 = vmatprep.subr.mxu0 0.0
    %3286 = vmatpush1.msra.mxu0 0.0
    %3287 = vmatprep.subr.mxu0 0.0
    %3288 = vmatpush1.msra.mxu0 0.0
    %3289 = vmatprep.subr.mxu0 0.0
    %3290 = vmatpush1.msra.mxu0 0.0
    %3291 = vmatprep.subr.mxu0 0.0
    %3292 = vmatpush1.msra.mxu0 0.0
    %3293 = vmatprep.subr.mxu0 0.0
    %3294 = vmatpush1.msra.mxu0 0.0
    %3295 = vmatprep.subr.mxu0 0.0
    %3296 = vmatpush1.msra.mxu0 0.0
    %3297 = vmatprep.subr.mxu0 0.0
    %3298 = vmatpush1.msra.mxu0 0.0
    %3299 = vmatprep.subr.mxu0 0.0
    %3300 = vmatpush1.msra.mxu0 0.0
    %3301 = vmatprep.subr.mxu0 0.0
    %3302 = vmatpush1.msra.mxu0 0.0
    %3303 = vmatprep.subr.mxu0 0.0
    %3304 = vmatpush1.msra.mxu0 0.0
    %3305 = vmatprep.subr.mxu0 0.0
    %3306 = vmatpush1.msra.mxu0 0.0
    %3307 = vmatprep.mubr.f32.mxu0 0.0
    %3308 = vmatmul.mubr.f32.gmra.mrb[0].mxu0 %v940
    %v3309 = vpop.f32.mrb[0].mxu0
    %v3310 = vadd.f32 0.0, %v3309
    %v3311 = vpop.f32.mrb[0].mxu0
    %3312 = vmatprep.mubr.f32.mxu0 0.0
    %3313 = vmatmul.mubr.f32.gmra.mrb[0].mxu0 %v943
    %v3314 = vpop.f32.mrb[0].mxu0
    %v3315 = vadd.f32 0.0, %v3314
    %v3316 = vpop.f32.mrb[0].mxu0
    %3317 = vmatprep.mubr.f32.mxu0 0.0
    %3318 = vmatmul.mubr.f32.gmra.mrb[0].mxu0 %v946
    %v3319 = vpop.f32.mrb[0].mxu0
    %v3320 = vadd.f32 0.0, %v3319
    %v3321 = vpop.f32.mrb[0].mxu0
    %3322 = vmatprep.mubr.f32.mxu0 0.0
    %3323 = vmatmul.mubr.f32.gmra.mrb[0].mxu0 %v949
    %v3324 = vpop.f32.mrb[0].mxu0
    %v3325 = vadd.f32 0.0, %v3324
    %v3326 = vpop.f32.mrb[0].mxu0
    %3327 = vmatprep.mubr.f32.mxu0 0.0
    %3328 = vmatmul.mubr.f32.gmra.mrb[0].mxu0 %v952
    %v3329 = vpop.f32.mrb[0].mxu0
    %v3330 = vadd.f32 0.0, %v3329
    %v3331 = vpop.f32.mrb[0].mxu0
    %3332 = vmatprep.mubr.f32.mxu0 0.0
    %3333 = vmatmul.mubr.f32.gmra.mrb[0].mxu0 %v955
    %v3334 = vpop.f32.mrb[0].mxu0
    %v3335 = vadd.f32 0.0, %v3334
    %v3336 = vpop.f32.mrb[0].mxu0
    %3337 = vmatprep.mubr.f32.mxu0 0.0
    %3338 = vmatmul.mubr.f32.gmra.mrb[0].mxu0 %v958
    %v3339 = vpop.f32.mrb[0].mxu0
    %v3340 = vadd.f32 0.0, %v3339
    %v3341 = vpop.f32.mrb[0].mxu0
    %3342 = vmatprep.mubr.f32.mxu0 0.0
    %3343 = vmatmul.mubr.f32.gmra.mrb[0].mxu0 %v961
    %v3344 = vpop.f32.mrb[0].mxu0
    %v3345 = vadd.f32 0.0, %v3344
    %v3346 = vpop.f32.mrb[0].mxu0
    %3347 = vdwg.mxu0
    %3348 = vmatprep.subr.mxu0 0.0
    %3349 = vmatpush1.msra.mxu0 %v2993
    %3350 = vmatprep.subr.mxu0 0.0
    %3351 = vmatpush1.msra.mxu0 %v2994
    %3352 = vmatprep.subr.mxu0 0.0
    %3353 = vmatpush1.msra.mxu0 %v2995
    %3354 = vmatprep.subr.mxu0 0.0
    %3355 = vmatpush1.msra.mxu0 %v2996
    %3356 = vmatprep.subr.mxu0 0.0
    %3357 = vmatpush1.msra.mxu0 %v2997
    %3358 = vmatprep.subr.mxu0 0.0
    %3359 = vmatpush1.msra.mxu0 %v2998
    %3360 = vmatprep.subr.mxu0 0.0
    %3361 = vmatpush1.msra.mxu0 %v2999
    %3362 = vmatprep.subr.mxu0 0.0
    %3363 = vmatpush1.msra.mxu0 %v3000
    %3364 = vmatprep.subr.mxu0 0.0
    %3365 = vmatpush1.msra.mxu0 0.0
    %3366 = vmatprep.subr.mxu0 0.0
    %3367 = vmatpush1.msra.mxu0 0.0
    %3368 = vmatprep.subr.mxu0 0.0
    %3369 = vmatpush1.msra.mxu0 0.0
    %3370 = vmatprep.subr.mxu0 0.0
    %3371 = vmatpush1.msra.mxu0 0.0
    %3372 = vmatprep.subr.mxu0 0.0
    %3373 = vmatpush1.msra.mxu0 0.0
    %3374 = vmatprep.subr.mxu0 0.0
    %3375 = vmatpush1.msra.mxu0 0.0
    %3376 = vmatprep.subr.mxu0 0.0
    %3377 = vmatpush1.msra.mxu0 0.0
    %3378 = vmatprep.subr.mxu0 0.0
    %3379 = vmatpush1.msra.mxu0 0.0
    %3380 = vmatprep.subr.mxu0 0.0
    %3381 = vmatpush1.msra.mxu0 0.0
    %3382 = vmatprep.subr.mxu0 0.0
    %3383 = vmatpush1.msra.mxu0 0.0
    %3384 = vmatprep.subr.mxu0 0.0
    %3385 = vmatpush1.msra.mxu0 0.0
    %3386 = vmatprep.subr.mxu0 0.0
    %3387 = vmatpush1.msra.mxu0 0.0
    %3388 = vmatprep.subr.mxu0 0.0
    %3389 = vmatpush1.msra.mxu0 0.0
    %3390 = vmatprep.subr.mxu0 0.0
    %3391 = vmatpush1.msra.mxu0 0.0
    %3392 = vmatprep.subr.mxu0 0.0
    %3393 = vmatpush1.msra.mxu0 0.0
    %3394 = vmatprep.subr.mxu0 0.0
    %3395 = vmatpush1.msra.mxu0 0.0
    %3396 = vmatprep.subr.mxu0 0.0
    %3397 = vmatpush1.msra.mxu0 0.0
    %3398 = vmatprep.subr.mxu0 0.0
    %3399 = vmatpush1.msra.mxu0 0.0
    %3400 = vmatprep.subr.mxu0 0.0
    %3401 = vmatpush1.msra.mxu0 0.0
    %3402 = vmatprep.subr.mxu0 0.0
    %3403 = vmatpush1.msra.mxu0 0.0
    %3404 = vmatprep.subr.mxu0 0.0
    %3405 = vmatpush1.msra.mxu0 0.0
    %3406 = vmatprep.subr.mxu0 0.0
    %3407 = vmatpush1.msra.mxu0 0.0
    %3408 = vmatprep.subr.mxu0 0.0
    %3409 = vmatpush1.msra.mxu0 0.0
    %3410 = vmatprep.subr.mxu0 0.0
    %3411 = vmatpush1.msra.mxu0 0.0
    %3412 = vmatprep.mubr.f32.mxu0 0.0
    %3413 = vmatmul.mubr.f32.gmra.mrb[0].mxu0 %v940
    %v3414 = vpop.f32.mrb[0].mxu0
    %v3415 = vadd.f32 0.0, %v3414
    %v3416 = vpop.f32.mrb[0].mxu0
    %3417 = vmatprep.mubr.f32.mxu0 0.0
    %3418 = vmatmul.mubr.f32.gmra.mrb[0].mxu0 %v943
    %v3419 = vpop.f32.mrb[0].mxu0
    %v3420 = vadd.f32 0.0, %v3419
    %v3421 = vpop.f32.mrb[0].mxu0
    %3422 = vmatprep.mubr.f32.mxu0 0.0
    %3423 = vmatmul.mubr.f32.gmra.mrb[0].mxu0 %v946
    %v3424 = vpop.f32.mrb[0].mxu0
    %v3425 = vadd.f32 0.0, %v3424
    %v3426 = vpop.f32.mrb[0].mxu0
    %3427 = vmatprep.mubr.f32.mxu0 0.0
    %3428 = vmatmul.mubr.f32.gmra.mrb[0].mxu0 %v949
    %v3429 = vpop.f32.mrb[0].mxu0
    %v3430 = vadd.f32 0.0, %v3429
    %v3431 = vpop.f32.mrb[0].mxu0
    %3432 = vmatprep.mubr.f32.mxu0 0.0
    %3433 = vmatmul.mubr.f32.gmra.mrb[0].mxu0 %v952
    %v3434 = vpop.f32.mrb[0].mxu0
    %v3435 = vadd.f32 0.0, %v3434
    %v3436 = vpop.f32.mrb[0].mxu0
    %3437 = vmatprep.mubr.f32.mxu0 0.0
    %3438 = vmatmul.mubr.f32.gmra.mrb[0].mxu0 %v955
    %v3439 = vpop.f32.mrb[0].mxu0
    %v3440 = vadd.f32 0.0, %v3439
    %v3441 = vpop.f32.mrb[0].mxu0
    %3442 = vmatprep.mubr.f32.mxu0 0.0
    %3443 = vmatmul.mubr.f32.gmra.mrb[0].mxu0 %v958
    %v3444 = vpop.f32.mrb[0].mxu0
    %v3445 = vadd.f32 0.0, %v3444
    %v3446 = vpop.f32.mrb[0].mxu0
    %3447 = vmatprep.mubr.f32.mxu0 0.0
    %3448 = vmatmul.mubr.f32.gmra.mrb[0].mxu0 %v961
    %v3449 = vpop.f32.mrb[0].mxu0
    %v3450 = vadd.f32 0.0, %v3449
    %v3451 = vpop.f32.mrb[0].mxu0
    %3452 = vdwg.mxu0
    %3453 = vmatprep.subr.mxu0 0.0
    %3454 = vmatpush1.msra.mxu0 %v3001
    %3455 = vmatprep.subr.mxu0 0.0
    %3456 = vmatpush1.msra.mxu0 %v3002
    %3457 = vmatprep.subr.mxu0 0.0
    %3458 = vmatpush1.msra.mxu0 %v3003
    %3459 = vmatprep.subr.mxu0 0.0
    %3460 = vmatpush1.msra.mxu0 %v3004
    %3461 = vmatprep.subr.mxu0 0.0
    %3462 = vmatpush1.msra.mxu0 %v3005
    %3463 = vmatprep.subr.mxu0 0.0
    %3464 = vmatpush1.msra.mxu0 %v3006
    %3465 = vmatprep.subr.mxu0 0.0
    %3466 = vmatpush1.msra.mxu0 %v3007
    %3467 = vmatprep.subr.mxu0 0.0
    %3468 = vmatpush1.msra.mxu0 %v3008
    %3469 = vmatprep.subr.mxu0 0.0
    %3470 = vmatpush1.msra.mxu0 0.0
    %3471 = vmatprep.subr.mxu0 0.0
    %3472 = vmatpush1.msra.mxu0 0.0
    %3473 = vmatprep.subr.mxu0 0.0
    %3474 = vmatpush1.msra.mxu0 0.0
    %3475 = vmatprep.subr.mxu0 0.0
    %3476 = vmatpush1.msra.mxu0 0.0
    %3477 = vmatprep.subr.mxu0 0.0
    %3478 = vmatpush1.msra.mxu0 0.0
    %3479 = vmatprep.subr.mxu0 0.0
    %3480 = vmatpush1.msra.mxu0 0.0
    %3481 = vmatprep.subr.mxu0 0.0
    %3482 = vmatpush1.msra.mxu0 0.0
    %3483 = vmatprep.subr.mxu0 0.0
    %3484 = vmatpush1.msra.mxu0 0.0
    %3485 = vmatprep.subr.mxu0 0.0
    %3486 = vmatpush1.msra.mxu0 0.0
    %3487 = vmatprep.subr.mxu0 0.0
    %3488 = vmatpush1.msra.mxu0 0.0
    %3489 = vmatprep.subr.mxu0 0.0
    %3490 = vmatpush1.msra.mxu0 0.0
    %3491 = vmatprep.subr.mxu0 0.0
    %3492 = vmatpush1.msra.mxu0 0.0
    %3493 = vmatprep.subr.mxu0 0.0
    %3494 = vmatpush1.msra.mxu0 0.0
    %3495 = vmatprep.subr.mxu0 0.0
    %3496 = vmatpush1.msra.mxu0 0.0
    %3497 = vmatprep.subr.mxu0 0.0
    %3498 = vmatpush1.msra.mxu0 0.0
    %3499 = vmatprep.subr.mxu0 0.0
    %3500 = vmatpush1.msra.mxu0 0.0
    %3501 = vmatprep.subr.mxu0 0.0
    %3502 = vmatpush1.msra.mxu0 0.0
    %3503 = vmatprep.subr.mxu0 0.0
    %3504 = vmatpush1.msra.mxu0 0.0
    %3505 = vmatprep.subr.mxu0 0.0
    %3506 = vmatpush1.msra.mxu0 0.0
    %3507 = vmatprep.subr.mxu0 0.0
    %3508 = vmatpush1.msra.mxu0 0.0
    %3509 = vmatprep.subr.mxu0 0.0
    %3510 = vmatpush1.msra.mxu0 0.0
    %3511 = vmatprep.subr.mxu0 0.0
    %3512 = vmatpush1.msra.mxu0 0.0
    %3513 = vmatprep.subr.mxu0 0.0
    %3514 = vmatpush1.msra.mxu0 0.0
    %3515 = vmatprep.subr.mxu0 0.0
    %3516 = vmatpush1.msra.mxu0 0.0
    %3517 = vmatprep.mubr.f32.mxu0 0.0
    %3518 = vmatmul.mubr.f32.gmra.mrb[0].mxu0 %v940
    %v3519 = vpop.f32.mrb[0].mxu0
    %v3520 = vadd.f32 0.0, %v3519
    %v3521 = vpop.f32.mrb[0].mxu0
    %3522 = vmatprep.mubr.f32.mxu0 0.0
    %3523 = vmatmul.mubr.f32.gmra.mrb[0].mxu0 %v943
    %v3524 = vpop.f32.mrb[0].mxu0
    %v3525 = vadd.f32 0.0, %v3524
    %v3526 = vpop.f32.mrb[0].mxu0
    %3527 = vmatprep.mubr.f32.mxu0 0.0
    %3528 = vmatmul.mubr.f32.gmra.mrb[0].mxu0 %v946
    %v3529 = vpop.f32.mrb[0].mxu0
    %v3530 = vadd.f32 0.0, %v3529
    %v3531 = vpop.f32.mrb[0].mxu0
    %3532 = vmatprep.mubr.f32.mxu0 0.0
    %3533 = vmatmul.mubr.f32.gmra.mrb[0].mxu0 %v949
    %v3534 = vpop.f32.mrb[0].mxu0
    %v3535 = vadd.f32 0.0, %v3534
    %v3536 = vpop.f32.mrb[0].mxu0
    %3537 = vmatprep.mubr.f32.mxu0 0.0
    %3538 = vmatmul.mubr.f32.gmra.mrb[0].mxu0 %v952
    %v3539 = vpop.f32.mrb[0].mxu0
    %v3540 = vadd.f32 0.0, %v3539
    %v3541 = vpop.f32.mrb[0].mxu0
    %3542 = vmatprep.mubr.f32.mxu0 0.0
    %3543 = vmatmul.mubr.f32.gmra.mrb[0].mxu0 %v955
    %v3544 = vpop.f32.mrb[0].mxu0
    %v3545 = vadd.f32 0.0, %v3544
    %v3546 = vpop.f32.mrb[0].mxu0
    %3547 = vmatprep.mubr.f32.mxu0 0.0
    %3548 = vmatmul.mubr.f32.gmra.mrb[0].mxu0 %v958
    %v3549 = vpop.f32.mrb[0].mxu0
    %v3550 = vadd.f32 0.0, %v3549
    %v3551 = vpop.f32.mrb[0].mxu0
    %3552 = vmatprep.mubr.f32.mxu0 0.0
    %3553 = vmatmul.mubr.f32.gmra.mrb[0].mxu0 %v961
    %v3554 = vpop.f32.mrb[0].mxu0
    %v3555 = vadd.f32 0.0, %v3554
    %v3556 = vpop.f32.mrb[0].mxu0
    %3557 = vdwg.mxu0
    %3558 = vmatprep.subr.mxu0 0.0
    %3559 = vmatpush1.msra.mxu0 %v3009
    %3560 = vmatprep.subr.mxu0 0.0
    %3561 = vmatpush1.msra.mxu0 %v3010
    %3562 = vmatprep.subr.mxu0 0.0
    %3563 = vmatpush1.msra.mxu0 %v3011
    %3564 = vmatprep.subr.mxu0 0.0
    %3565 = vmatpush1.msra.mxu0 %v3012
    %3566 = vmatprep.subr.mxu0 0.0
    %3567 = vmatpush1.msra.mxu0 %v3013
    %3568 = vmatprep.subr.mxu0 0.0
    %3569 = vmatpush1.msra.mxu0 %v3014
    %3570 = vmatprep.subr.mxu0 0.0
    %3571 = vmatpush1.msra.mxu0 %v3015
    %3572 = vmatprep.subr.mxu0 0.0
    %3573 = vmatpush1.msra.mxu0 %v3016
    %3574 = vmatprep.subr.mxu0 0.0
    %3575 = vmatpush1.msra.mxu0 0.0
    %3576 = vmatprep.subr.mxu0 0.0
    %3577 = vmatpush1.msra.mxu0 0.0
    %3578 = vmatprep.subr.mxu0 0.0
    %3579 = vmatpush1.msra.mxu0 0.0
    %3580 = vmatprep.subr.mxu0 0.0
    %3581 = vmatpush1.msra.mxu0 0.0
    %3582 = vmatprep.subr.mxu0 0.0
    %3583 = vmatpush1.msra.mxu0 0.0
    %3584 = vmatprep.subr.mxu0 0.0
    %3585 = vmatpush1.msra.mxu0 0.0
    %3586 = vmatprep.subr.mxu0 0.0
    %3587 = vmatpush1.msra.mxu0 0.0
    %3588 = vmatprep.subr.mxu0 0.0
    %3589 = vmatpush1.msra.mxu0 0.0
    %3590 = vmatprep.subr.mxu0 0.0
    %3591 = vmatpush1.msra.mxu0 0.0
    %3592 = vmatprep.subr.mxu0 0.0
    %3593 = vmatpush1.msra.mxu0 0.0
    %3594 = vmatprep.subr.mxu0 0.0
    %3595 = vmatpush1.msra.mxu0 0.0
    %3596 = vmatprep.subr.mxu0 0.0
    %3597 = vmatpush1.msra.mxu0 0.0
    %3598 = vmatprep.subr.mxu0 0.0
    %3599 = vmatpush1.msra.mxu0 0.0
    %3600 = vmatprep.subr.mxu0 0.0
    %3601 = vmatpush1.msra.mxu0 0.0
    %3602 = vmatprep.subr.mxu0 0.0
    %3603 = vmatpush1.msra.mxu0 0.0
    %3604 = vmatprep.subr.mxu0 0.0
    %3605 = vmatpush1.msra.mxu0 0.0
    %3606 = vmatprep.subr.mxu0 0.0
    %3607 = vmatpush1.msra.mxu0 0.0
    %3608 = vmatprep.subr.mxu0 0.0
    %3609 = vmatpush1.msra.mxu0 0.0
    %3610 = vmatprep.subr.mxu0 0.0
    %3611 = vmatpush1.msra.mxu0 0.0
    %3612 = vmatprep.subr.mxu0 0.0
    %3613 = vmatpush1.msra.mxu0 0.0
    %3614 = vmatprep.subr.mxu0 0.0
    %3615 = vmatpush1.msra.mxu0 0.0
    %3616 = vmatprep.subr.mxu0 0.0
    %3617 = vmatpush1.msra.mxu0 0.0
    %3618 = vmatprep.subr.mxu0 0.0
    %3619 = vmatpush1.msra.mxu0 0.0
    %3620 = vmatprep.subr.mxu0 0.0
    %3621 = vmatpush1.msra.mxu0 0.0
    %3622 = vmatprep.mubr.f32.mxu0 0.0
    %3623 = vmatmul.mubr.f32.gmra.mrb[0].mxu0 %v940
    %v3624 = vpop.f32.mrb[0].mxu0
    %v3625 = vadd.f32 0.0, %v3624
    %v3626 = vpop.f32.mrb[0].mxu0
    %3627 = vmatprep.mubr.f32.mxu0 0.0
    %3628 = vmatmul.mubr.f32.gmra.mrb[0].mxu0 %v943
    %v3629 = vpop.f32.mrb[0].mxu0
    %v3630 = vadd.f32 0.0, %v3629
    %v3631 = vpop.f32.mrb[0].mxu0
    %3632 = vmatprep.mubr.f32.mxu0 0.0
    %3633 = vmatmul.mubr.f32.gmra.mrb[0].mxu0 %v946
    %v3634 = vpop.f32.mrb[0].mxu0
    %v3635 = vadd.f32 0.0, %v3634
    %v3636 = vpop.f32.mrb[0].mxu0
    %3637 = vmatprep.mubr.f32.mxu0 0.0
    %3638 = vmatmul.mubr.f32.gmra.mrb[0].mxu0 %v949
    %v3639 = vpop.f32.mrb[0].mxu0
    %v3640 = vadd.f32 0.0, %v3639
    %v3641 = vpop.f32.mrb[0].mxu0
    %3642 = vmatprep.mubr.f32.mxu0 0.0
    %3643 = vmatmul.mubr.f32.gmra.mrb[0].mxu0 %v952
    %v3644 = vpop.f32.mrb[0].mxu0
    %v3645 = vadd.f32 0.0, %v3644
    %v3646 = vpop.f32.mrb[0].mxu0
    %3647 = vmatprep.mubr.f32.mxu0 0.0
    %3648 = vmatmul.mubr.f32.gmra.mrb[0].mxu0 %v955
    %v3649 = vpop.f32.mrb[0].mxu0
    %v3650 = vadd.f32 0.0, %v3649
    %v3651 = vpop.f32.mrb[0].mxu0
    %3652 = vmatprep.mubr.f32.mxu0 0.0
    %3653 = vmatmul.mubr.f32.gmra.mrb[0].mxu0 %v958
    %v3654 = vpop.f32.mrb[0].mxu0
    %v3655 = vadd.f32 0.0, %v3654
    %v3656 = vpop.f32.mrb[0].mxu0
    %3657 = vmatprep.mubr.f32.mxu0 0.0
    %3658 = vmatmul.mubr.f32.gmra.mrb[0].mxu0 %v961
    %v3659 = vpop.f32.mrb[0].mxu0
    %v3660 = vadd.f32 0.0, %v3659
    %v3661 = vpop.f32.mrb[0].mxu0
    %3662 = vdwg.mxu0
    %3663 = vmatprep.subr.mxu0 0.0
    %3664 = vmatpush1.msra.mxu0 %v3017
    %3665 = vmatprep.subr.mxu0 0.0
    %3666 = vmatpush1.msra.mxu0 %v3018
    %3667 = vmatprep.subr.mxu0 0.0
    %3668 = vmatpush1.msra.mxu0 %v3019
    %3669 = vmatprep.subr.mxu0 0.0
    %3670 = vmatpush1.msra.mxu0 %v3020
    %3671 = vmatprep.subr.mxu0 0.0
    %3672 = vmatpush1.msra.mxu0 %v3021
    %3673 = vmatprep.subr.mxu0 0.0
    %3674 = vmatpush1.msra.mxu0 %v3022
    %3675 = vmatprep.subr.mxu0 0.0
    %3676 = vmatpush1.msra.mxu0 %v3023
    %3677 = vmatprep.subr.mxu0 0.0
    %3678 = vmatpush1.msra.mxu0 %v3024
    %3679 = vmatprep.subr.mxu0 0.0
    %3680 = vmatpush1.msra.mxu0 0.0
    %3681 = vmatprep.subr.mxu0 0.0
    %3682 = vmatpush1.msra.mxu0 0.0
    %3683 = vmatprep.subr.mxu0 0.0
    %3684 = vmatpush1.msra.mxu0 0.0
    %3685 = vmatprep.subr.mxu0 0.0
    %3686 = vmatpush1.msra.mxu0 0.0
    %3687 = vmatprep.subr.mxu0 0.0
    %3688 = vmatpush1.msra.mxu0 0.0
    %3689 = vmatprep.subr.mxu0 0.0
    %3690 = vmatpush1.msra.mxu0 0.0
    %3691 = vmatprep.subr.mxu0 0.0
    %3692 = vmatpush1.msra.mxu0 0.0
    %3693 = vmatprep.subr.mxu0 0.0
    %3694 = vmatpush1.msra.mxu0 0.0
    %3695 = vmatprep.subr.mxu0 0.0
    %3696 = vmatpush1.msra.mxu0 0.0
    %3697 = vmatprep.subr.mxu0 0.0
    %3698 = vmatpush1.msra.mxu0 0.0
    %3699 = vmatprep.subr.mxu0 0.0
    %3700 = vmatpush1.msra.mxu0 0.0
    %3701 = vmatprep.subr.mxu0 0.0
    %3702 = vmatpush1.msra.mxu0 0.0
    %3703 = vmatprep.subr.mxu0 0.0
    %3704 = vmatpush1.msra.mxu0 0.0
    %3705 = vmatprep.subr.mxu0 0.0
    %3706 = vmatpush1.msra.mxu0 0.0
    %3707 = vmatprep.subr.mxu0 0.0
    %3708 = vmatpush1.msra.mxu0 0.0
    %3709 = vmatprep.subr.mxu0 0.0
    %3710 = vmatpush1.msra.mxu0 0.0
    %3711 = vmatprep.subr.mxu0 0.0
    %3712 = vmatpush1.msra.mxu0 0.0
    %3713 = vmatprep.subr.mxu0 0.0
    %3714 = vmatpush1.msra.mxu0 0.0
    %3715 = vmatprep.subr.mxu0 0.0
    %3716 = vmatpush1.msra.mxu0 0.0
    %3717 = vmatprep.subr.mxu0 0.0
    %3718 = vmatpush1.msra.mxu0 0.0
    %3719 = vmatprep.subr.mxu0 0.0
    %3720 = vmatpush1.msra.mxu0 0.0
    %3721 = vmatprep.subr.mxu0 0.0
    %3722 = vmatpush1.msra.mxu0 0.0
    %3723 = vmatprep.subr.mxu0 0.0
    %3724 = vmatpush1.msra.mxu0 0.0
    %3725 = vmatprep.subr.mxu0 0.0
    %3726 = vmatpush1.msra.mxu0 0.0
    %3727 = vmatprep.mubr.f32.mxu0 0.0
    %3728 = vmatmul.mubr.f32.gmra.mrb[0].mxu0 %v940
    %v3729 = vpop.f32.mrb[0].mxu0
    %v3730 = vadd.f32 0.0, %v3729
    %v3731 = vpop.f32.mrb[0].mxu0
    %3732 = vmatprep.mubr.f32.mxu0 0.0
    %3733 = vmatmul.mubr.f32.gmra.mrb[0].mxu0 %v943
    %v3734 = vpop.f32.mrb[0].mxu0
    %v3735 = vadd.f32 0.0, %v3734
    %v3736 = vpop.f32.mrb[0].mxu0
    %3737 = vmatprep.mubr.f32.mxu0 0.0
    %3738 = vmatmul.mubr.f32.gmra.mrb[0].mxu0 %v946
    %v3739 = vpop.f32.mrb[0].mxu0
    %v3740 = vadd.f32 0.0, %v3739
    %v3741 = vpop.f32.mrb[0].mxu0
    %3742 = vmatprep.mubr.f32.mxu0 0.0
    %3743 = vmatmul.mubr.f32.gmra.mrb[0].mxu0 %v949
    %v3744 = vpop.f32.mrb[0].mxu0
    %v3745 = vadd.f32 0.0, %v3744
    %v3746 = vpop.f32.mrb[0].mxu0
    %3747 = vmatprep.mubr.f32.mxu0 0.0
    %3748 = vmatmul.mubr.f32.gmra.mrb[0].mxu0 %v952
    %v3749 = vpop.f32.mrb[0].mxu0
    %v3750 = vadd.f32 0.0, %v3749
    %v3751 = vpop.f32.mrb[0].mxu0
    %3752 = vmatprep.mubr.f32.mxu0 0.0
    %3753 = vmatmul.mubr.f32.gmra.mrb[0].mxu0 %v955
    %v3754 = vpop.f32.mrb[0].mxu0
    %v3755 = vadd.f32 0.0, %v3754
    %v3756 = vpop.f32.mrb[0].mxu0
    %3757 = vmatprep.mubr.f32.mxu0 0.0
    %3758 = vmatmul.mubr.f32.gmra.mrb[0].mxu0 %v958
    %v3759 = vpop.f32.mrb[0].mxu0
    %v3760 = vadd.f32 0.0, %v3759
    %v3761 = vpop.f32.mrb[0].mxu0
    %3762 = vmatprep.mubr.f32.mxu0 0.0
    %3763 = vmatmul.mubr.f32.gmra.mrb[0].mxu0 %v961
    %v3764 = vpop.f32.mrb[0].mxu0
    %v3765 = vadd.f32 0.0, %v3764
    %v3766 = vpop.f32.mrb[0].mxu0
    %3767 = vdwg.mxu0
    %3768 = vmatprep.subr.mxu0 0.0
    %3769 = vmatpush1.msra.mxu0 %v3025
    %3770 = vmatprep.subr.mxu0 0.0
    %3771 = vmatpush1.msra.mxu0 %v3026
    %3772 = vmatprep.subr.mxu0 0.0
    %3773 = vmatpush1.msra.mxu0 %v3027
    %3774 = vmatprep.subr.mxu0 0.0
    %3775 = vmatpush1.msra.mxu0 %v3028
    %3776 = vmatprep.subr.mxu0 0.0
    %3777 = vmatpush1.msra.mxu0 %v3029
    %3778 = vmatprep.subr.mxu0 0.0
    %3779 = vmatpush1.msra.mxu0 %v3030
    %3780 = vmatprep.subr.mxu0 0.0
    %3781 = vmatpush1.msra.mxu0 %v3031
    %3782 = vmatprep.subr.mxu0 0.0
    %3783 = vmatpush1.msra.mxu0 %v3032
    %3784 = vmatprep.subr.mxu0 0.0
    %3785 = vmatpush1.msra.mxu0 0.0
    %3786 = vmatprep.subr.mxu0 0.0
    %3787 = vmatpush1.msra.mxu0 0.0
    %3788 = vmatprep.subr.mxu0 0.0
    %3789 = vmatpush1.msra.mxu0 0.0
    %3790 = vmatprep.subr.mxu0 0.0
    %3791 = vmatpush1.msra.mxu0 0.0
    %3792 = vmatprep.subr.mxu0 0.0
    %3793 = vmatpush1.msra.mxu0 0.0
    %3794 = vmatprep.subr.mxu0 0.0
    %3795 = vmatpush1.msra.mxu0 0.0
    %3796 = vmatprep.subr.mxu0 0.0
    %3797 = vmatpush1.msra.mxu0 0.0
    %3798 = vmatprep.subr.mxu0 0.0
    %3799 = vmatpush1.msra.mxu0 0.0
    %3800 = vmatprep.subr.mxu0 0.0
    %3801 = vmatpush1.msra.mxu0 0.0
    %3802 = vmatprep.subr.mxu0 0.0
    %3803 = vmatpush1.msra.mxu0 0.0
    %3804 = vmatprep.subr.mxu0 0.0
    %3805 = vmatpush1.msra.mxu0 0.0
    %3806 = vmatprep.subr.mxu0 0.0
    %3807 = vmatpush1.msra.mxu0 0.0
    %3808 = vmatprep.subr.mxu0 0.0
    %3809 = vmatpush1.msra.mxu0 0.0
    %3810 = vmatprep.subr.mxu0 0.0
    %3811 = vmatpush1.msra.mxu0 0.0
    %3812 = vmatprep.subr.mxu0 0.0
    %3813 = vmatpush1.msra.mxu0 0.0
    %3814 = vmatprep.subr.mxu0 0.0
    %3815 = vmatpush1.msra.mxu0 0.0
    %3816 = vmatprep.subr.mxu0 0.0
    %3817 = vmatpush1.msra.mxu0 0.0
    %3818 = vmatprep.subr.mxu0 0.0
    %3819 = vmatpush1.msra.mxu0 0.0
    %3820 = vmatprep.subr.mxu0 0.0
    %3821 = vmatpush1.msra.mxu0 0.0
    %3822 = vmatprep.subr.mxu0 0.0
    %3823 = vmatpush1.msra.mxu0 0.0
    %3824 = vmatprep.subr.mxu0 0.0
    %3825 = vmatpush1.msra.mxu0 0.0
    %3826 = vmatprep.subr.mxu0 0.0
    %3827 = vmatpush1.msra.mxu0 0.0
    %3828 = vmatprep.subr.mxu0 0.0
    %3829 = vmatpush1.msra.mxu0 0.0
    %3830 = vmatprep.subr.mxu0 0.0
    %3831 = vmatpush1.msra.mxu0 0.0
    %3832 = vmatprep.mubr.f32.mxu0 0.0
    %3833 = vmatmul.mubr.f32.gmra.mrb[0].mxu0 %v940
    %v3834 = vpop.f32.mrb[0].mxu0
    %v3835 = vadd.f32 0.0, %v3834
    %v3836 = vpop.f32.mrb[0].mxu0
    %3837 = vmatprep.mubr.f32.mxu0 0.0
    %3838 = vmatmul.mubr.f32.gmra.mrb[0].mxu0 %v943
    %v3839 = vpop.f32.mrb[0].mxu0
    %v3840 = vadd.f32 0.0, %v3839
    %v3841 = vpop.f32.mrb[0].mxu0
    %3842 = vmatprep.mubr.f32.mxu0 0.0
    %3843 = vmatmul.mubr.f32.gmra.mrb[0].mxu0 %v946
    %v3844 = vpop.f32.mrb[0].mxu0
    %v3845 = vadd.f32 0.0, %v3844
    %v3846 = vpop.f32.mrb[0].mxu0
    %3847 = vmatprep.mubr.f32.mxu0 0.0
    %3848 = vmatmul.mubr.f32.gmra.mrb[0].mxu0 %v949
    %v3849 = vpop.f32.mrb[0].mxu0
    %v3850 = vadd.f32 0.0, %v3849
    %v3851 = vpop.f32.mrb[0].mxu0
    %3852 = vmatprep.mubr.f32.mxu0 0.0
    %3853 = vmatmul.mubr.f32.gmra.mrb[0].mxu0 %v952
    %v3854 = vpop.f32.mrb[0].mxu0
    %v3855 = vadd.f32 0.0, %v3854
    %v3856 = vpop.f32.mrb[0].mxu0
    %3857 = vmatprep.mubr.f32.mxu0 0.0
    %3858 = vmatmul.mubr.f32.gmra.mrb[0].mxu0 %v955
    %v3859 = vpop.f32.mrb[0].mxu0
    %v3860 = vadd.f32 0.0, %v3859
    %v3861 = vpop.f32.mrb[0].mxu0
    %3862 = vmatprep.mubr.f32.mxu0 0.0
    %3863 = vmatmul.mubr.f32.gmra.mrb[0].mxu0 %v958
    %v3864 = vpop.f32.mrb[0].mxu0
    %v3865 = vadd.f32 0.0, %v3864
    %v3866 = vpop.f32.mrb[0].mxu0
    %3867 = vmatprep.mubr.f32.mxu0 0.0
    %3868 = vmatmul.mubr.f32.gmra.mrb[0].mxu0 %v961
    %v3869 = vpop.f32.mrb[0].mxu0
    %v3870 = vadd.f32 0.0, %v3869
    %v3871 = vpop.f32.mrb[0].mxu0
    %3872 = vdwg.mxu0
    %3875 = vrot.lane.b32.xlu0 %v67, 112
    %v3876 = vpop.permute.xlu0 %3875
    %3877 = vrot.lane.b32.xlu0 %v68, 112
    %v3878 = vpop.permute.xlu0 %3877
    %vm3881 = vcmask 130048
    %v3883 = vsel %vm3881, %v2969, 0
    %v3886 = vsel %vm3881, %v2970, 0
    %v3889 = vsel %vm3881, %v2971, 0
    %v3892 = vsel %vm3881, %v2972, 0
    %v3895 = vsel %vm3881, %v2973, 0
    %v3898 = vsel %vm3881, %v2974, 0
    %v3901 = vsel %vm3881, %v2975, 0
    %v3904 = vsel %vm3881, %v2976, 0
    %v3907 = vsel %vm3881, %v2977, 0
    %v3910 = vsel %vm3881, %v2978, 0
    %v3913 = vsel %vm3881, %v2979, 0
    %v3916 = vsel %vm3881, %v2980, 0
    %v3919 = vsel %vm3881, %v2981, 0
    %v3922 = vsel %vm3881, %v2982, 0
    %v3925 = vsel %vm3881, %v2983, 0
    %v3928 = vsel %vm3881, %v2984, 0
    %v3931 = vsel %vm3881, %v2985, 0
    %v3934 = vsel %vm3881, %v2986, 0
    %v3937 = vsel %vm3881, %v2987, 0
    %v3940 = vsel %vm3881, %v2988, 0
    %v3943 = vsel %vm3881, %v2989, 0
    %v3946 = vsel %vm3881, %v2990, 0
    %v3949 = vsel %vm3881, %v2991, 0
    %v3952 = vsel %vm3881, %v2992, 0
    %v3955 = vsel %vm3881, %v2993, 0
    %v3958 = vsel %vm3881, %v2994, 0
    %v3961 = vsel %vm3881, %v2995, 0
    %v3964 = vsel %vm3881, %v2996, 0
    %v3967 = vsel %vm3881, %v2997, 0
    %v3970 = vsel %vm3881, %v2998, 0
    %v3973 = vsel %vm3881, %v2999, 0
    %v3976 = vsel %vm3881, %v3000, 0
    %v3979 = vsel %vm3881, %v3001, 0
    %v3982 = vsel %vm3881, %v3002, 0
    %v3985 = vsel %vm3881, %v3003, 0
    %v3988 = vsel %vm3881, %v3004, 0
    %v3991 = vsel %vm3881, %v3005, 0
    %v3994 = vsel %vm3881, %v3006, 0
    %v3997 = vsel %vm3881, %v3007, 0
    %v4000 = vsel %vm3881, %v3008, 0
    %v4003 = vsel %vm3881, %v3009, 0
    %v4006 = vsel %vm3881, %v3010, 0
    %v4009 = vsel %vm3881, %v3011, 0
    %v4012 = vsel %vm3881, %v3012, 0
    %v4015 = vsel %vm3881, %v3013, 0
    %v4018 = vsel %vm3881, %v3014, 0
    %v4021 = vsel %vm3881, %v3015, 0
    %v4024 = vsel %vm3881, %v3016, 0
    %v4027 = vsel %vm3881, %v3017, 0
    %v4030 = vsel %vm3881, %v3018, 0
    %v4033 = vsel %vm3881, %v3019, 0
    %v4036 = vsel %vm3881, %v3020, 0
    %v4039 = vsel %vm3881, %v3021, 0
    %v4042 = vsel %vm3881, %v3022, 0
    %v4045 = vsel %vm3881, %v3023, 0
    %v4048 = vsel %vm3881, %v3024, 0
    %v4051 = vsel %vm3881, %v3025, 0
    %v4054 = vsel %vm3881, %v3026, 0
    %v4057 = vsel %vm3881, %v3027, 0
    %v4060 = vsel %vm3881, %v3028, 0
    %v4063 = vsel %vm3881, %v3029, 0
    %v4066 = vsel %vm3881, %v3030, 0
    %v4069 = vsel %vm3881, %v3031, 0
    %v4072 = vsel %vm3881, %v3032, 0
    %4074 = vmatprep.subr.mxu0 0.0
    %4075 = vmatpush1.msra.mxu0 %v3876
    %4076 = vmatprep.subr.mxu0 0.0
    %4077 = vmatpush1.msra.mxu0 %v3878
    %4078 = vmatprep.subr.mxu0 0.0
    %4079 = vmatpush1.msra.mxu0 0.0
    %4080 = vmatprep.subr.mxu0 0.0
    %4081 = vmatpush1.msra.mxu0 0.0
    %4082 = vmatprep.subr.mxu0 0.0
    %4083 = vmatpush1.msra.mxu0 0.0
    %4084 = vmatprep.subr.mxu0 0.0
    %4085 = vmatpush1.msra.mxu0 0.0
    %4086 = vmatprep.subr.mxu0 0.0
    %4087 = vmatpush1.msra.mxu0 0.0
    %4088 = vmatprep.subr.mxu0 0.0
    %4089 = vmatpush1.msra.mxu0 0.0
    %4090 = vmatprep.subr.mxu0 0.0
    %4091 = vmatpush1.msra.mxu0 0.0
    %4092 = vmatprep.subr.mxu0 0.0
    %4093 = vmatpush1.msra.mxu0 0.0
    %4094 = vmatprep.subr.mxu0 0.0
    %4095 = vmatpush1.msra.mxu0 0.0
    %4096 = vmatprep.subr.mxu0 0.0
    %4097 = vmatpush1.msra.mxu0 0.0
    %4098 = vmatprep.subr.mxu0 0.0
    %4099 = vmatpush1.msra.mxu0 0.0
    %4100 = vmatprep.subr.mxu0 0.0
    %4101 = vmatpush1.msra.mxu0 0.0
    %4102 = vmatprep.subr.mxu0 0.0
    %4103 = vmatpush1.msra.mxu0 0.0
    %4104 = vmatprep.subr.mxu0 0.0
    %4105 = vmatpush1.msra.mxu0 0.0
    %4106 = vmatprep.subr.mxu0 0.0
    %4107 = vmatpush1.msra.mxu0 0.0
    %4108 = vmatprep.subr.mxu0 0.0
    %4109 = vmatpush1.msra.mxu0 0.0
    %4110 = vmatprep.subr.mxu0 0.0
    %4111 = vmatpush1.msra.mxu0 0.0
    %4112 = vmatprep.subr.mxu0 0.0
    %4113 = vmatpush1.msra.mxu0 0.0
    %4114 = vmatprep.subr.mxu0 0.0
    %4115 = vmatpush1.msra.mxu0 0.0
    %4116 = vmatprep.subr.mxu0 0.0
    %4117 = vmatpush1.msra.mxu0 0.0
    %4118 = vmatprep.subr.mxu0 0.0
    %4119 = vmatpush1.msra.mxu0 0.0
    %4120 = vmatprep.subr.mxu0 0.0
    %4121 = vmatpush1.msra.mxu0 0.0
    %4122 = vmatprep.subr.mxu0 0.0
    %4123 = vmatpush1.msra.mxu0 0.0
    %4124 = vmatprep.subr.mxu0 0.0
    %4125 = vmatpush1.msra.mxu0 0.0
    %4126 = vmatprep.subr.mxu0 0.0
    %4127 = vmatpush1.msra.mxu0 0.0
    %4128 = vmatprep.subr.mxu0 0.0
    %4129 = vmatpush1.msra.mxu0 0.0
    %4130 = vmatprep.subr.mxu0 0.0
    %4131 = vmatpush1.msra.mxu0 0.0
    %4132 = vmatprep.subr.mxu0 0.0
    %4133 = vmatpush1.msra.mxu0 0.0
    %4134 = vmatprep.subr.mxu0 0.0
    %4135 = vmatpush1.msra.mxu0 0.0
    %4136 = vmatprep.subr.mxu0 0.0
    %4137 = vmatpush1.msra.mxu0 0.0
    %4138 = vmatprep.mubr.f32.mxu0 0.0
    %4139 = vmatmul.mubr.f32.gmra.mrb[0].mxu0 %v3883
    %v4140 = vpop.f32.mrb[0].mxu0
    %v4141 = vadd.f32 0.0, %v4140
    %v4142 = vpop.f32.mrb[0].mxu0
    %4143 = vmatprep.mubr.f32.mxu0 0.0
    %4144 = vmatmul.mubr.f32.gmra.mrb[0].mxu0 %v3886
    %v4145 = vpop.f32.mrb[0].mxu0
    %v4146 = vadd.f32 0.0, %v4145
    %v4147 = vpop.f32.mrb[0].mxu0
    %4148 = vmatprep.mubr.f32.mxu0 0.0
    %4149 = vmatmul.mubr.f32.gmra.mrb[0].mxu0 %v3889
    %v4150 = vpop.f32.mrb[0].mxu0
    %v4151 = vadd.f32 0.0, %v4150
    %v4152 = vpop.f32.mrb[0].mxu0
    %4153 = vmatprep.mubr.f32.mxu0 0.0
    %4154 = vmatmul.mubr.f32.gmra.mrb[0].mxu0 %v3892
    %v4155 = vpop.f32.mrb[0].mxu0
    %v4156 = vadd.f32 0.0, %v4155
    %v4157 = vpop.f32.mrb[0].mxu0
    %4158 = vmatprep.mubr.f32.mxu0 0.0
    %4159 = vmatmul.mubr.f32.gmra.mrb[0].mxu0 %v3895
    %v4160 = vpop.f32.mrb[0].mxu0
    %v4161 = vadd.f32 0.0, %v4160
    %v4162 = vpop.f32.mrb[0].mxu0
    %4163 = vmatprep.mubr.f32.mxu0 0.0
    %4164 = vmatmul.mubr.f32.gmra.mrb[0].mxu0 %v3898
    %v4165 = vpop.f32.mrb[0].mxu0
    %v4166 = vadd.f32 0.0, %v4165
    %v4167 = vpop.f32.mrb[0].mxu0
    %4168 = vmatprep.mubr.f32.mxu0 0.0
    %4169 = vmatmul.mubr.f32.gmra.mrb[0].mxu0 %v3901
    %v4170 = vpop.f32.mrb[0].mxu0
    %v4171 = vadd.f32 0.0, %v4170
    %v4172 = vpop.f32.mrb[0].mxu0
    %4173 = vmatprep.mubr.f32.mxu0 0.0
    %4174 = vmatmul.mubr.f32.gmra.mrb[0].mxu0 %v3904
    %v4175 = vpop.f32.mrb[0].mxu0
    %v4176 = vadd.f32 0.0, %v4175
    %v4177 = vpop.f32.mrb[0].mxu0
    %4178 = vmatprep.mubr.f32.mxu0 0.0
    %4179 = vmatmul.mubr.f32.gmra.mrb[0].mxu0 %v3907
    %v4180 = vpop.f32.mrb[0].mxu0
    %v4181 = vadd.f32 0.0, %v4180
    %v4182 = vpop.f32.mrb[0].mxu0
    %4183 = vmatprep.mubr.f32.mxu0 0.0
    %4184 = vmatmul.mubr.f32.gmra.mrb[0].mxu0 %v3910
    %v4185 = vpop.f32.mrb[0].mxu0
    %v4186 = vadd.f32 0.0, %v4185
    %v4187 = vpop.f32.mrb[0].mxu0
    %4188 = vmatprep.mubr.f32.mxu0 0.0
    %4189 = vmatmul.mubr.f32.gmra.mrb[0].mxu0 %v3913
    %v4190 = vpop.f32.mrb[0].mxu0
    %v4191 = vadd.f32 0.0, %v4190
    %v4192 = vpop.f32.mrb[0].mxu0
    %4193 = vmatprep.mubr.f32.mxu0 0.0
    %4194 = vmatmul.mubr.f32.gmra.mrb[0].mxu0 %v3916
    %v4195 = vpop.f32.mrb[0].mxu0
    %v4196 = vadd.f32 0.0, %v4195
    %v4197 = vpop.f32.mrb[0].mxu0
    %4198 = vmatprep.mubr.f32.mxu0 0.0
    %4199 = vmatmul.mubr.f32.gmra.mrb[0].mxu0 %v3919
    %v4200 = vpop.f32.mrb[0].mxu0
    %v4201 = vadd.f32 0.0, %v4200
    %v4202 = vpop.f32.mrb[0].mxu0
    %4203 = vmatprep.mubr.f32.mxu0 0.0
    %4204 = vmatmul.mubr.f32.gmra.mrb[0].mxu0 %v3922
    %v4205 = vpop.f32.mrb[0].mxu0
    %v4206 = vadd.f32 0.0, %v4205
    %v4207 = vpop.f32.mrb[0].mxu0
    %4208 = vmatprep.mubr.f32.mxu0 0.0
    %4209 = vmatmul.mubr.f32.gmra.mrb[0].mxu0 %v3925
    %v4210 = vpop.f32.mrb[0].mxu0
    %v4211 = vadd.f32 0.0, %v4210
    %v4212 = vpop.f32.mrb[0].mxu0
    %4213 = vmatprep.mubr.f32.mxu0 0.0
    %4214 = vmatmul.mubr.f32.gmra.mrb[0].mxu0 %v3928
    %v4215 = vpop.f32.mrb[0].mxu0
    %v4216 = vadd.f32 0.0, %v4215
    %v4217 = vpop.f32.mrb[0].mxu0
    %4218 = vmatprep.mubr.f32.mxu0 0.0
    %4219 = vmatmul.mubr.f32.gmra.mrb[0].mxu0 %v3931
    %v4220 = vpop.f32.mrb[0].mxu0
    %v4221 = vadd.f32 0.0, %v4220
    %v4222 = vpop.f32.mrb[0].mxu0
    %4223 = vmatprep.mubr.f32.mxu0 0.0
    %4224 = vmatmul.mubr.f32.gmra.mrb[0].mxu0 %v3934
    %v4225 = vpop.f32.mrb[0].mxu0
    %v4226 = vadd.f32 0.0, %v4225
    %v4227 = vpop.f32.mrb[0].mxu0
    %4228 = vmatprep.mubr.f32.mxu0 0.0
    %4229 = vmatmul.mubr.f32.gmra.mrb[0].mxu0 %v3937
    %v4230 = vpop.f32.mrb[0].mxu0
    %v4231 = vadd.f32 0.0, %v4230
    %v4232 = vpop.f32.mrb[0].mxu0
    %4233 = vmatprep.mubr.f32.mxu0 0.0
    %4234 = vmatmul.mubr.f32.gmra.mrb[0].mxu0 %v3940
    %v4235 = vpop.f32.mrb[0].mxu0
    %v4236 = vadd.f32 0.0, %v4235
    %v4237 = vpop.f32.mrb[0].mxu0
    %4238 = vmatprep.mubr.f32.mxu0 0.0
    %4239 = vmatmul.mubr.f32.gmra.mrb[0].mxu0 %v3943
    %v4240 = vpop.f32.mrb[0].mxu0
    %v4241 = vadd.f32 0.0, %v4240
    %v4242 = vpop.f32.mrb[0].mxu0
    %4243 = vmatprep.mubr.f32.mxu0 0.0
    %4244 = vmatmul.mubr.f32.gmra.mrb[0].mxu0 %v3946
    %v4245 = vpop.f32.mrb[0].mxu0
    %v4246 = vadd.f32 0.0, %v4245
    %v4247 = vpop.f32.mrb[0].mxu0
    %4248 = vmatprep.mubr.f32.mxu0 0.0
    %4249 = vmatmul.mubr.f32.gmra.mrb[0].mxu0 %v3949
    %v4250 = vpop.f32.mrb[0].mxu0
    %v4251 = vadd.f32 0.0, %v4250
    %v4252 = vpop.f32.mrb[0].mxu0
    %4253 = vmatprep.mubr.f32.mxu0 0.0
    %4254 = vmatmul.mubr.f32.gmra.mrb[0].mxu0 %v3952
    %v4255 = vpop.f32.mrb[0].mxu0
    %v4256 = vadd.f32 0.0, %v4255
    %v4257 = vpop.f32.mrb[0].mxu0
    %4258 = vmatprep.mubr.f32.mxu0 0.0
    %4259 = vmatmul.mubr.f32.gmra.mrb[0].mxu0 %v3955
    %v4260 = vpop.f32.mrb[0].mxu0
    %v4261 = vadd.f32 0.0, %v4260
    %v4262 = vpop.f32.mrb[0].mxu0
    %4263 = vmatprep.mubr.f32.mxu0 0.0
    %4264 = vmatmul.mubr.f32.gmra.mrb[0].mxu0 %v3958
    %v4265 = vpop.f32.mrb[0].mxu0
    %v4266 = vadd.f32 0.0, %v4265
    %v4267 = vpop.f32.mrb[0].mxu0
    %4268 = vmatprep.mubr.f32.mxu0 0.0
    %4269 = vmatmul.mubr.f32.gmra.mrb[0].mxu0 %v3961
    %v4270 = vpop.f32.mrb[0].mxu0
    %v4271 = vadd.f32 0.0, %v4270
    %v4272 = vpop.f32.mrb[0].mxu0
    %4273 = vmatprep.mubr.f32.mxu0 0.0
    %4274 = vmatmul.mubr.f32.gmra.mrb[0].mxu0 %v3964
    %v4275 = vpop.f32.mrb[0].mxu0
    %v4276 = vadd.f32 0.0, %v4275
    %v4277 = vpop.f32.mrb[0].mxu0
    %4278 = vmatprep.mubr.f32.mxu0 0.0
    %4279 = vmatmul.mubr.f32.gmra.mrb[0].mxu0 %v3967
    %v4280 = vpop.f32.mrb[0].mxu0
    %v4281 = vadd.f32 0.0, %v4280
    %v4282 = vpop.f32.mrb[0].mxu0
    %4283 = vmatprep.mubr.f32.mxu0 0.0
    %4284 = vmatmul.mubr.f32.gmra.mrb[0].mxu0 %v3970
    %v4285 = vpop.f32.mrb[0].mxu0
    %v4286 = vadd.f32 0.0, %v4285
    %v4287 = vpop.f32.mrb[0].mxu0
    %4288 = vmatprep.mubr.f32.mxu0 0.0
    %4289 = vmatmul.mubr.f32.gmra.mrb[0].mxu0 %v3973
    %v4290 = vpop.f32.mrb[0].mxu0
    %v4291 = vadd.f32 0.0, %v4290
    %v4292 = vpop.f32.mrb[0].mxu0
    %4293 = vmatprep.mubr.f32.mxu0 0.0
    %4294 = vmatmul.mubr.f32.gmra.mrb[0].mxu0 %v3976
    %v4295 = vpop.f32.mrb[0].mxu0
    %v4296 = vadd.f32 0.0, %v4295
    %v4297 = vpop.f32.mrb[0].mxu0
    %4298 = vmatprep.mubr.f32.mxu0 0.0
    %4299 = vmatmul.mubr.f32.gmra.mrb[0].mxu0 %v3979
    %v4300 = vpop.f32.mrb[0].mxu0
    %v4301 = vadd.f32 0.0, %v4300
    %v4302 = vpop.f32.mrb[0].mxu0
    %4303 = vmatprep.mubr.f32.mxu0 0.0
    %4304 = vmatmul.mubr.f32.gmra.mrb[0].mxu0 %v3982
    %v4305 = vpop.f32.mrb[0].mxu0
    %v4306 = vadd.f32 0.0, %v4305
    %v4307 = vpop.f32.mrb[0].mxu0
    %4308 = vmatprep.mubr.f32.mxu0 0.0
    %4309 = vmatmul.mubr.f32.gmra.mrb[0].mxu0 %v3985
    %v4310 = vpop.f32.mrb[0].mxu0
    %v4311 = vadd.f32 0.0, %v4310
    %v4312 = vpop.f32.mrb[0].mxu0
    %4313 = vmatprep.mubr.f32.mxu0 0.0
    %4314 = vmatmul.mubr.f32.gmra.mrb[0].mxu0 %v3988
    %v4315 = vpop.f32.mrb[0].mxu0
    %v4316 = vadd.f32 0.0, %v4315
    %v4317 = vpop.f32.mrb[0].mxu0
    %4318 = vmatprep.mubr.f32.mxu0 0.0
    %4319 = vmatmul.mubr.f32.gmra.mrb[0].mxu0 %v3991
    %v4320 = vpop.f32.mrb[0].mxu0
    %v4321 = vadd.f32 0.0, %v4320
    %v4322 = vpop.f32.mrb[0].mxu0
    %4323 = vmatprep.mubr.f32.mxu0 0.0
    %4324 = vmatmul.mubr.f32.gmra.mrb[0].mxu0 %v3994
    %v4325 = vpop.f32.mrb[0].mxu0
    %v4326 = vadd.f32 0.0, %v4325
    %v4327 = vpop.f32.mrb[0].mxu0
    %4328 = vmatprep.mubr.f32.mxu0 0.0
    %4329 = vmatmul.mubr.f32.gmra.mrb[0].mxu0 %v3997
    %v4330 = vpop.f32.mrb[0].mxu0
    %v4331 = vadd.f32 0.0, %v4330
    %v4332 = vpop.f32.mrb[0].mxu0
    %4333 = vmatprep.mubr.f32.mxu0 0.0
    %4334 = vmatmul.mubr.f32.gmra.mrb[0].mxu0 %v4000
    %v4335 = vpop.f32.mrb[0].mxu0
    %v4336 = vadd.f32 0.0, %v4335
    %v4337 = vpop.f32.mrb[0].mxu0
    %4338 = vmatprep.mubr.f32.mxu0 0.0
    %4339 = vmatmul.mubr.f32.gmra.mrb[0].mxu0 %v4003
    %v4340 = vpop.f32.mrb[0].mxu0
    %v4341 = vadd.f32 0.0, %v4340
    %v4342 = vpop.f32.mrb[0].mxu0
    %4343 = vmatprep.mubr.f32.mxu0 0.0
    %4344 = vmatmul.mubr.f32.gmra.mrb[0].mxu0 %v4006
    %v4345 = vpop.f32.mrb[0].mxu0
    %v4346 = vadd.f32 0.0, %v4345
    %v4347 = vpop.f32.mrb[0].mxu0
    %4348 = vmatprep.mubr.f32.mxu0 0.0
    %4349 = vmatmul.mubr.f32.gmra.mrb[0].mxu0 %v4009
    %v4350 = vpop.f32.mrb[0].mxu0
    %v4351 = vadd.f32 0.0, %v4350
    %v4352 = vpop.f32.mrb[0].mxu0
    %4353 = vmatprep.mubr.f32.mxu0 0.0
    %4354 = vmatmul.mubr.f32.gmra.mrb[0].mxu0 %v4012
    %v4355 = vpop.f32.mrb[0].mxu0
    %v4356 = vadd.f32 0.0, %v4355
    %v4357 = vpop.f32.mrb[0].mxu0
    %4358 = vmatprep.mubr.f32.mxu0 0.0
    %4359 = vmatmul.mubr.f32.gmra.mrb[0].mxu0 %v4015
    %v4360 = vpop.f32.mrb[0].mxu0
    %v4361 = vadd.f32 0.0, %v4360
    %v4362 = vpop.f32.mrb[0].mxu0
    %4363 = vmatprep.mubr.f32.mxu0 0.0
    %4364 = vmatmul.mubr.f32.gmra.mrb[0].mxu0 %v4018
    %v4365 = vpop.f32.mrb[0].mxu0
    %v4366 = vadd.f32 0.0, %v4365
    %v4367 = vpop.f32.mrb[0].mxu0
    %4368 = vmatprep.mubr.f32.mxu0 0.0
    %4369 = vmatmul.mubr.f32.gmra.mrb[0].mxu0 %v4021
    %v4370 = vpop.f32.mrb[0].mxu0
    %v4371 = vadd.f32 0.0, %v4370
    %v4372 = vpop.f32.mrb[0].mxu0
    %4373 = vmatprep.mubr.f32.mxu0 0.0
    %4374 = vmatmul.mubr.f32.gmra.mrb[0].mxu0 %v4024
    %v4375 = vpop.f32.mrb[0].mxu0
    %v4376 = vadd.f32 0.0, %v4375
    %v4377 = vpop.f32.mrb[0].mxu0
    %4378 = vmatprep.mubr.f32.mxu0 0.0
    %4379 = vmatmul.mubr.f32.gmra.mrb[0].mxu0 %v4027
    %v4380 = vpop.f32.mrb[0].mxu0
    %v4381 = vadd.f32 0.0, %v4380
    %v4382 = vpop.f32.mrb[0].mxu0
    %4383 = vmatprep.mubr.f32.mxu0 0.0
    %4384 = vmatmul.mubr.f32.gmra.mrb[0].mxu0 %v4030
    %v4385 = vpop.f32.mrb[0].mxu0
    %v4386 = vadd.f32 0.0, %v4385
    %v4387 = vpop.f32.mrb[0].mxu0
    %4388 = vmatprep.mubr.f32.mxu0 0.0
    %4389 = vmatmul.mubr.f32.gmra.mrb[0].mxu0 %v4033
    %v4390 = vpop.f32.mrb[0].mxu0
    %v4391 = vadd.f32 0.0, %v4390
    %v4392 = vpop.f32.mrb[0].mxu0
    %4393 = vmatprep.mubr.f32.mxu0 0.0
    %4394 = vmatmul.mubr.f32.gmra.mrb[0].mxu0 %v4036
    %v4395 = vpop.f32.mrb[0].mxu0
    %v4396 = vadd.f32 0.0, %v4395
    %v4397 = vpop.f32.mrb[0].mxu0
    %4398 = vmatprep.mubr.f32.mxu0 0.0
    %4399 = vmatmul.mubr.f32.gmra.mrb[0].mxu0 %v4039
    %v4400 = vpop.f32.mrb[0].mxu0
    %v4401 = vadd.f32 0.0, %v4400
    %v4402 = vpop.f32.mrb[0].mxu0
    %4403 = vmatprep.mubr.f32.mxu0 0.0
    %4404 = vmatmul.mubr.f32.gmra.mrb[0].mxu0 %v4042
    %v4405 = vpop.f32.mrb[0].mxu0
    %v4406 = vadd.f32 0.0, %v4405
    %v4407 = vpop.f32.mrb[0].mxu0
    %4408 = vmatprep.mubr.f32.mxu0 0.0
    %4409 = vmatmul.mubr.f32.gmra.mrb[0].mxu0 %v4045
    %v4410 = vpop.f32.mrb[0].mxu0
    %v4411 = vadd.f32 0.0, %v4410
    %v4412 = vpop.f32.mrb[0].mxu0
    %4413 = vmatprep.mubr.f32.mxu0 0.0
    %4414 = vmatmul.mubr.f32.gmra.mrb[0].mxu0 %v4048
    %v4415 = vpop.f32.mrb[0].mxu0
    %v4416 = vadd.f32 0.0, %v4415
    %v4417 = vpop.f32.mrb[0].mxu0
    %4418 = vmatprep.mubr.f32.mxu0 0.0
    %4419 = vmatmul.mubr.f32.gmra.mrb[0].mxu0 %v4051
    %v4420 = vpop.f32.mrb[0].mxu0
    %v4421 = vadd.f32 0.0, %v4420
    %v4422 = vpop.f32.mrb[0].mxu0
    %4423 = vmatprep.mubr.f32.mxu0 0.0
    %4424 = vmatmul.mubr.f32.gmra.mrb[0].mxu0 %v4054
    %v4425 = vpop.f32.mrb[0].mxu0
    %v4426 = vadd.f32 0.0, %v4425
    %v4427 = vpop.f32.mrb[0].mxu0
    %4428 = vmatprep.mubr.f32.mxu0 0.0
    %4429 = vmatmul.mubr.f32.gmra.mrb[0].mxu0 %v4057
    %v4430 = vpop.f32.mrb[0].mxu0
    %v4431 = vadd.f32 0.0, %v4430
    %v4432 = vpop.f32.mrb[0].mxu0
    %4433 = vmatprep.mubr.f32.mxu0 0.0
    %4434 = vmatmul.mubr.f32.gmra.mrb[0].mxu0 %v4060
    %v4435 = vpop.f32.mrb[0].mxu0
    %v4436 = vadd.f32 0.0, %v4435
    %v4437 = vpop.f32.mrb[0].mxu0
    %4438 = vmatprep.mubr.f32.mxu0 0.0
    %4439 = vmatmul.mubr.f32.gmra.mrb[0].mxu0 %v4063
    %v4440 = vpop.f32.mrb[0].mxu0
    %v4441 = vadd.f32 0.0, %v4440
    %v4442 = vpop.f32.mrb[0].mxu0
    %4443 = vmatprep.mubr.f32.mxu0 0.0
    %4444 = vmatmul.mubr.f32.gmra.mrb[0].mxu0 %v4066
    %v4445 = vpop.f32.mrb[0].mxu0
    %v4446 = vadd.f32 0.0, %v4445
    %v4447 = vpop.f32.mrb[0].mxu0
    %4448 = vmatprep.mubr.f32.mxu0 0.0
    %4449 = vmatmul.mubr.f32.gmra.mrb[0].mxu0 %v4069
    %v4450 = vpop.f32.mrb[0].mxu0
    %v4451 = vadd.f32 0.0, %v4450
    %v4452 = vpop.f32.mrb[0].mxu0
    %4453 = vmatprep.mubr.f32.mxu0 0.0
    %4454 = vmatmul.mubr.f32.gmra.mrb[0].mxu0 %v4072
    %v4455 = vpop.f32.mrb[0].mxu0
    %v4456 = vadd.f32 0.0, %v4455
    %v4457 = vpop.f32.mrb[0].mxu0
    %4458 = vdwg.mxu0
    %4460 = vrot.lane.b32.xlu0 %v65, 112
    %v4461 = vpop.permute.xlu0 %4460
    %4462 = vrot.lane.b32.xlu0 %v66, 112
    %v4463 = vpop.permute.xlu0 %4462
    %v4467 = vsel %vm3881, %v3100, 0
    %v4470 = vsel %vm3881, %v3105, 0
    %v4473 = vsel %vm3881, %v3110, 0
    %v4476 = vsel %vm3881, %v3115, 0
    %v4479 = vsel %vm3881, %v3120, 0
    %v4482 = vsel %vm3881, %v3125, 0
    %v4485 = vsel %vm3881, %v3130, 0
    %v4488 = vsel %vm3881, %v3135, 0
    %v4491 = vsel %vm3881, %v3205, 0
    %v4494 = vsel %vm3881, %v3210, 0
    %v4497 = vsel %vm3881, %v3215, 0
    %v4500 = vsel %vm3881, %v3220, 0
    %v4503 = vsel %vm3881, %v3225, 0
    %v4506 = vsel %vm3881, %v3230, 0
    %v4509 = vsel %vm3881, %v3235, 0
    %v4512 = vsel %vm3881, %v3240, 0
    %v4515 = vsel %vm3881, %v3310, 0
    %v4518 = vsel %vm3881, %v3315, 0
    %v4521 = vsel %vm3881, %v3320, 0
    %v4524 = vsel %vm3881, %v3325, 0
    %v4527 = vsel %vm3881, %v3330, 0
    %v4530 = vsel %vm3881, %v3335, 0
    %v4533 = vsel %vm3881, %v3340, 0
    %v4536 = vsel %vm3881, %v3345, 0
    %v4539 = vsel %vm3881, %v3415, 0
    %v4542 = vsel %vm3881, %v3420, 0
    %v4545 = vsel %vm3881, %v3425, 0
    %v4548 = vsel %vm3881, %v3430, 0
    %v4551 = vsel %vm3881, %v3435, 0
    %v4554 = vsel %vm3881, %v3440, 0
    %v4557 = vsel %vm3881, %v3445, 0
    %v4560 = vsel %vm3881, %v3450, 0
    %v4563 = vsel %vm3881, %v3520, 0
    %v4566 = vsel %vm3881, %v3525, 0
    %v4569 = vsel %vm3881, %v3530, 0
    %v4572 = vsel %vm3881, %v3535, 0
    %v4575 = vsel %vm3881, %v3540, 0
    %v4578 = vsel %vm3881, %v3545, 0
    %v4581 = vsel %vm3881, %v3550, 0
    %v4584 = vsel %vm3881, %v3555, 0
    %v4587 = vsel %vm3881, %v3625, 0
    %v4590 = vsel %vm3881, %v3630, 0
    %v4593 = vsel %vm3881, %v3635, 0
    %v4596 = vsel %vm3881, %v3640, 0
    %v4599 = vsel %vm3881, %v3645, 0
    %v4602 = vsel %vm3881, %v3650, 0
    %v4605 = vsel %vm3881, %v3655, 0
    %v4608 = vsel %vm3881, %v3660, 0
    %v4611 = vsel %vm3881, %v3730, 0
    %v4614 = vsel %vm3881, %v3735, 0
    %v4617 = vsel %vm3881, %v3740, 0
    %v4620 = vsel %vm3881, %v3745, 0
    %v4623 = vsel %vm3881, %v3750, 0
    %v4626 = vsel %vm3881, %v3755, 0
    %v4629 = vsel %vm3881, %v3760, 0
    %v4632 = vsel %vm3881, %v3765, 0
    %v4635 = vsel %vm3881, %v3835, 0
    %v4638 = vsel %vm3881, %v3840, 0
    %v4641 = vsel %vm3881, %v3845, 0
    %v4644 = vsel %vm3881, %v3850, 0
    %v4647 = vsel %vm3881, %v3855, 0
    %v4650 = vsel %vm3881, %v3860, 0
    %v4653 = vsel %vm3881, %v3865, 0
    %v4656 = vsel %vm3881, %v3870, 0
    %4658 = vmatprep.subr.mxu0 0.0
    %4659 = vmatpush1.msra.mxu0 %v4461
    %4660 = vmatprep.subr.mxu0 0.0
    %4661 = vmatpush1.msra.mxu0 %v4463
    %4662 = vmatprep.subr.mxu0 0.0
    %4663 = vmatpush1.msra.mxu0 0.0
    %4664 = vmatprep.subr.mxu0 0.0
    %4665 = vmatpush1.msra.mxu0 0.0
    %4666 = vmatprep.subr.mxu0 0.0
    %4667 = vmatpush1.msra.mxu0 0.0
    %4668 = vmatprep.subr.mxu0 0.0
    %4669 = vmatpush1.msra.mxu0 0.0
    %4670 = vmatprep.subr.mxu0 0.0
    %4671 = vmatpush1.msra.mxu0 0.0
    %4672 = vmatprep.subr.mxu0 0.0
    %4673 = vmatpush1.msra.mxu0 0.0
    %4674 = vmatprep.subr.mxu0 0.0
    %4675 = vmatpush1.msra.mxu0 0.0
    %4676 = vmatprep.subr.mxu0 0.0
    %4677 = vmatpush1.msra.mxu0 0.0
    %4678 = vmatprep.subr.mxu0 0.0
    %4679 = vmatpush1.msra.mxu0 0.0
    %4680 = vmatprep.subr.mxu0 0.0
    %4681 = vmatpush1.msra.mxu0 0.0
    %4682 = vmatprep.subr.mxu0 0.0
    %4683 = vmatpush1.msra.mxu0 0.0
    %4684 = vmatprep.subr.mxu0 0.0
    %4685 = vmatpush1.msra.mxu0 0.0
    %4686 = vmatprep.subr.mxu0 0.0
    %4687 = vmatpush1.msra.mxu0 0.0
    %4688 = vmatprep.subr.mxu0 0.0
    %4689 = vmatpush1.msra.mxu0 0.0
    %4690 = vmatprep.subr.mxu0 0.0
    %4691 = vmatpush1.msra.mxu0 0.0
    %4692 = vmatprep.subr.mxu0 0.0
    %4693 = vmatpush1.msra.mxu0 0.0
    %4694 = vmatprep.subr.mxu0 0.0
    %4695 = vmatpush1.msra.mxu0 0.0
    %4696 = vmatprep.subr.mxu0 0.0
    %4697 = vmatpush1.msra.mxu0 0.0
    %4698 = vmatprep.subr.mxu0 0.0
    %4699 = vmatpush1.msra.mxu0 0.0
    %4700 = vmatprep.subr.mxu0 0.0
    %4701 = vmatpush1.msra.mxu0 0.0
    %4702 = vmatprep.subr.mxu0 0.0
    %4703 = vmatpush1.msra.mxu0 0.0
    %4704 = vmatprep.subr.mxu0 0.0
    %4705 = vmatpush1.msra.mxu0 0.0
    %4706 = vmatprep.subr.mxu0 0.0
    %4707 = vmatpush1.msra.mxu0 0.0
    %4708 = vmatprep.subr.mxu0 0.0
    %4709 = vmatpush1.msra.mxu0 0.0
    %4710 = vmatprep.subr.mxu0 0.0
    %4711 = vmatpush1.msra.mxu0 0.0
    %4712 = vmatprep.subr.mxu0 0.0
    %4713 = vmatpush1.msra.mxu0 0.0
    %4714 = vmatprep.subr.mxu0 0.0
    %4715 = vmatpush1.msra.mxu0 0.0
    %4716 = vmatprep.subr.mxu0 0.0
    %4717 = vmatpush1.msra.mxu0 0.0
    %4718 = vmatprep.subr.mxu0 0.0
    %4719 = vmatpush1.msra.mxu0 0.0
    %4720 = vmatprep.subr.mxu0 0.0
    %4721 = vmatpush1.msra.mxu0 0.0
    %4722 = vmatprep.mubr.f32.mxu0 0.0
    %4723 = vmatmul.mubr.f32.gmra.mrb[0].mxu0 %v4467
    %v4724 = vpop.f32.mrb[0].mxu0
    %v4725 = vadd.f32 %v4141, %v4724
    %v4726 = vpop.f32.mrb[0].mxu0
    %4727 = vmatprep.mubr.f32.mxu0 0.0
    %4728 = vmatmul.mubr.f32.gmra.mrb[0].mxu0 %v4470
    %v4729 = vpop.f32.mrb[0].mxu0
    %v4730 = vadd.f32 %v4146, %v4729
    %v4731 = vpop.f32.mrb[0].mxu0
    %4732 = vmatprep.mubr.f32.mxu0 0.0
    %4733 = vmatmul.mubr.f32.gmra.mrb[0].mxu0 %v4473
    %v4734 = vpop.f32.mrb[0].mxu0
    %v4735 = vadd.f32 %v4151, %v4734
    %v4736 = vpop.f32.mrb[0].mxu0
    %4737 = vmatprep.mubr.f32.mxu0 0.0
    %4738 = vmatmul.mubr.f32.gmra.mrb[0].mxu0 %v4476
    %v4739 = vpop.f32.mrb[0].mxu0
    %v4740 = vadd.f32 %v4156, %v4739
    %v4741 = vpop.f32.mrb[0].mxu0
    %4742 = vmatprep.mubr.f32.mxu0 0.0
    %4743 = vmatmul.mubr.f32.gmra.mrb[0].mxu0 %v4479
    %v4744 = vpop.f32.mrb[0].mxu0
    %v4745 = vadd.f32 %v4161, %v4744
    %v4746 = vpop.f32.mrb[0].mxu0
    %4747 = vmatprep.mubr.f32.mxu0 0.0
    %4748 = vmatmul.mubr.f32.gmra.mrb[0].mxu0 %v4482
    %v4749 = vpop.f32.mrb[0].mxu0
    %v4750 = vadd.f32 %v4166, %v4749
    %v4751 = vpop.f32.mrb[0].mxu0
    %4752 = vmatprep.mubr.f32.mxu0 0.0
    %4753 = vmatmul.mubr.f32.gmra.mrb[0].mxu0 %v4485
    %v4754 = vpop.f32.mrb[0].mxu0
    %v4755 = vadd.f32 %v4171, %v4754
    %v4756 = vpop.f32.mrb[0].mxu0
    %4757 = vmatprep.mubr.f32.mxu0 0.0
    %4758 = vmatmul.mubr.f32.gmra.mrb[0].mxu0 %v4488
    %v4759 = vpop.f32.mrb[0].mxu0
    %v4760 = vadd.f32 %v4176, %v4759
    %v4761 = vpop.f32.mrb[0].mxu0
    %4762 = vmatprep.mubr.f32.mxu0 0.0
    %4763 = vmatmul.mubr.f32.gmra.mrb[0].mxu0 %v4491
    %v4764 = vpop.f32.mrb[0].mxu0
    %v4765 = vadd.f32 %v4181, %v4764
    %v4766 = vpop.f32.mrb[0].mxu0
    %4767 = vmatprep.mubr.f32.mxu0 0.0
    %4768 = vmatmul.mubr.f32.gmra.mrb[0].mxu0 %v4494
    %v4769 = vpop.f32.mrb[0].mxu0
    %v4770 = vadd.f32 %v4186, %v4769
    %v4771 = vpop.f32.mrb[0].mxu0
    %4772 = vmatprep.mubr.f32.mxu0 0.0
    %4773 = vmatmul.mubr.f32.gmra.mrb[0].mxu0 %v4497
    %v4774 = vpop.f32.mrb[0].mxu0
    %v4775 = vadd.f32 %v4191, %v4774
    %v4776 = vpop.f32.mrb[0].mxu0
    %4777 = vmatprep.mubr.f32.mxu0 0.0
    %4778 = vmatmul.mubr.f32.gmra.mrb[0].mxu0 %v4500
    %v4779 = vpop.f32.mrb[0].mxu0
    %v4780 = vadd.f32 %v4196, %v4779
    %v4781 = vpop.f32.mrb[0].mxu0
    %4782 = vmatprep.mubr.f32.mxu0 0.0
    %4783 = vmatmul.mubr.f32.gmra.mrb[0].mxu0 %v4503
    %v4784 = vpop.f32.mrb[0].mxu0
    %v4785 = vadd.f32 %v4201, %v4784
    %v4786 = vpop.f32.mrb[0].mxu0
    %4787 = vmatprep.mubr.f32.mxu0 0.0
    %4788 = vmatmul.mubr.f32.gmra.mrb[0].mxu0 %v4506
    %v4789 = vpop.f32.mrb[0].mxu0
    %v4790 = vadd.f32 %v4206, %v4789
    %v4791 = vpop.f32.mrb[0].mxu0
    %4792 = vmatprep.mubr.f32.mxu0 0.0
    %4793 = vmatmul.mubr.f32.gmra.mrb[0].mxu0 %v4509
    %v4794 = vpop.f32.mrb[0].mxu0
    %v4795 = vadd.f32 %v4211, %v4794
    %v4796 = vpop.f32.mrb[0].mxu0
    %4797 = vmatprep.mubr.f32.mxu0 0.0
    %4798 = vmatmul.mubr.f32.gmra.mrb[0].mxu0 %v4512
    %v4799 = vpop.f32.mrb[0].mxu0
    %v4800 = vadd.f32 %v4216, %v4799
    %v4801 = vpop.f32.mrb[0].mxu0
    %4802 = vmatprep.mubr.f32.mxu0 0.0
    %4803 = vmatmul.mubr.f32.gmra.mrb[0].mxu0 %v4515
    %v4804 = vpop.f32.mrb[0].mxu0
    %v4805 = vadd.f32 %v4221, %v4804
    %v4806 = vpop.f32.mrb[0].mxu0
    %4807 = vmatprep.mubr.f32.mxu0 0.0
    %4808 = vmatmul.mubr.f32.gmra.mrb[0].mxu0 %v4518
    %v4809 = vpop.f32.mrb[0].mxu0
    %v4810 = vadd.f32 %v4226, %v4809
    %v4811 = vpop.f32.mrb[0].mxu0
    %4812 = vmatprep.mubr.f32.mxu0 0.0
    %4813 = vmatmul.mubr.f32.gmra.mrb[0].mxu0 %v4521
    %v4814 = vpop.f32.mrb[0].mxu0
    %v4815 = vadd.f32 %v4231, %v4814
    %v4816 = vpop.f32.mrb[0].mxu0
    %4817 = vmatprep.mubr.f32.mxu0 0.0
    %4818 = vmatmul.mubr.f32.gmra.mrb[0].mxu0 %v4524
    %v4819 = vpop.f32.mrb[0].mxu0
    %v4820 = vadd.f32 %v4236, %v4819
    %v4821 = vpop.f32.mrb[0].mxu0
    %4822 = vmatprep.mubr.f32.mxu0 0.0
    %4823 = vmatmul.mubr.f32.gmra.mrb[0].mxu0 %v4527
    %v4824 = vpop.f32.mrb[0].mxu0
    %v4825 = vadd.f32 %v4241, %v4824
    %v4826 = vpop.f32.mrb[0].mxu0
    %4827 = vmatprep.mubr.f32.mxu0 0.0
    %4828 = vmatmul.mubr.f32.gmra.mrb[0].mxu0 %v4530
    %v4829 = vpop.f32.mrb[0].mxu0
    %v4830 = vadd.f32 %v4246, %v4829
    %v4831 = vpop.f32.mrb[0].mxu0
    %4832 = vmatprep.mubr.f32.mxu0 0.0
    %4833 = vmatmul.mubr.f32.gmra.mrb[0].mxu0 %v4533
    %v4834 = vpop.f32.mrb[0].mxu0
    %v4835 = vadd.f32 %v4251, %v4834
    %v4836 = vpop.f32.mrb[0].mxu0
    %4837 = vmatprep.mubr.f32.mxu0 0.0
    %4838 = vmatmul.mubr.f32.gmra.mrb[0].mxu0 %v4536
    %v4839 = vpop.f32.mrb[0].mxu0
    %v4840 = vadd.f32 %v4256, %v4839
    %v4841 = vpop.f32.mrb[0].mxu0
    %4842 = vmatprep.mubr.f32.mxu0 0.0
    %4843 = vmatmul.mubr.f32.gmra.mrb[0].mxu0 %v4539
    %v4844 = vpop.f32.mrb[0].mxu0
    %v4845 = vadd.f32 %v4261, %v4844
    %v4846 = vpop.f32.mrb[0].mxu0
    %4847 = vmatprep.mubr.f32.mxu0 0.0
    %4848 = vmatmul.mubr.f32.gmra.mrb[0].mxu0 %v4542
    %v4849 = vpop.f32.mrb[0].mxu0
    %v4850 = vadd.f32 %v4266, %v4849
    %v4851 = vpop.f32.mrb[0].mxu0
    %4852 = vmatprep.mubr.f32.mxu0 0.0
    %4853 = vmatmul.mubr.f32.gmra.mrb[0].mxu0 %v4545
    %v4854 = vpop.f32.mrb[0].mxu0
    %v4855 = vadd.f32 %v4271, %v4854
    %v4856 = vpop.f32.mrb[0].mxu0
    %4857 = vmatprep.mubr.f32.mxu0 0.0
    %4858 = vmatmul.mubr.f32.gmra.mrb[0].mxu0 %v4548
    %v4859 = vpop.f32.mrb[0].mxu0
    %v4860 = vadd.f32 %v4276, %v4859
    %v4861 = vpop.f32.mrb[0].mxu0
    %4862 = vmatprep.mubr.f32.mxu0 0.0
    %4863 = vmatmul.mubr.f32.gmra.mrb[0].mxu0 %v4551
    %v4864 = vpop.f32.mrb[0].mxu0
    %v4865 = vadd.f32 %v4281, %v4864
    %v4866 = vpop.f32.mrb[0].mxu0
    %4867 = vmatprep.mubr.f32.mxu0 0.0
    %4868 = vmatmul.mubr.f32.gmra.mrb[0].mxu0 %v4554
    %v4869 = vpop.f32.mrb[0].mxu0
    %v4870 = vadd.f32 %v4286, %v4869
    %v4871 = vpop.f32.mrb[0].mxu0
    %4872 = vmatprep.mubr.f32.mxu0 0.0
    %4873 = vmatmul.mubr.f32.gmra.mrb[0].mxu0 %v4557
    %v4874 = vpop.f32.mrb[0].mxu0
    %v4875 = vadd.f32 %v4291, %v4874
    %v4876 = vpop.f32.mrb[0].mxu0
    %4877 = vmatprep.mubr.f32.mxu0 0.0
    %4878 = vmatmul.mubr.f32.gmra.mrb[0].mxu0 %v4560
    %v4879 = vpop.f32.mrb[0].mxu0
    %v4880 = vadd.f32 %v4296, %v4879
    %v4881 = vpop.f32.mrb[0].mxu0
    %4882 = vmatprep.mubr.f32.mxu0 0.0
    %4883 = vmatmul.mubr.f32.gmra.mrb[0].mxu0 %v4563
    %v4884 = vpop.f32.mrb[0].mxu0
    %v4885 = vadd.f32 %v4301, %v4884
    %v4886 = vpop.f32.mrb[0].mxu0
    %4887 = vmatprep.mubr.f32.mxu0 0.0
    %4888 = vmatmul.mubr.f32.gmra.mrb[0].mxu0 %v4566
    %v4889 = vpop.f32.mrb[0].mxu0
    %v4890 = vadd.f32 %v4306, %v4889
    %v4891 = vpop.f32.mrb[0].mxu0
    %4892 = vmatprep.mubr.f32.mxu0 0.0
    %4893 = vmatmul.mubr.f32.gmra.mrb[0].mxu0 %v4569
    %v4894 = vpop.f32.mrb[0].mxu0
    %v4895 = vadd.f32 %v4311, %v4894
    %v4896 = vpop.f32.mrb[0].mxu0
    %4897 = vmatprep.mubr.f32.mxu0 0.0
    %4898 = vmatmul.mubr.f32.gmra.mrb[0].mxu0 %v4572
    %v4899 = vpop.f32.mrb[0].mxu0
    %v4900 = vadd.f32 %v4316, %v4899
    %v4901 = vpop.f32.mrb[0].mxu0
    %4902 = vmatprep.mubr.f32.mxu0 0.0
    %4903 = vmatmul.mubr.f32.gmra.mrb[0].mxu0 %v4575
    %v4904 = vpop.f32.mrb[0].mxu0
    %v4905 = vadd.f32 %v4321, %v4904
    %v4906 = vpop.f32.mrb[0].mxu0
    %4907 = vmatprep.mubr.f32.mxu0 0.0
    %4908 = vmatmul.mubr.f32.gmra.mrb[0].mxu0 %v4578
    %v4909 = vpop.f32.mrb[0].mxu0
    %v4910 = vadd.f32 %v4326, %v4909
    %v4911 = vpop.f32.mrb[0].mxu0
    %4912 = vmatprep.mubr.f32.mxu0 0.0
    %4913 = vmatmul.mubr.f32.gmra.mrb[0].mxu0 %v4581
    %v4914 = vpop.f32.mrb[0].mxu0
    %v4915 = vadd.f32 %v4331, %v4914
    %v4916 = vpop.f32.mrb[0].mxu0
    %4917 = vmatprep.mubr.f32.mxu0 0.0
    %4918 = vmatmul.mubr.f32.gmra.mrb[0].mxu0 %v4584
    %v4919 = vpop.f32.mrb[0].mxu0
    %v4920 = vadd.f32 %v4336, %v4919
    %v4921 = vpop.f32.mrb[0].mxu0
    %4922 = vmatprep.mubr.f32.mxu0 0.0
    %4923 = vmatmul.mubr.f32.gmra.mrb[0].mxu0 %v4587
    %v4924 = vpop.f32.mrb[0].mxu0
    %v4925 = vadd.f32 %v4341, %v4924
    %v4926 = vpop.f32.mrb[0].mxu0
    %4927 = vmatprep.mubr.f32.mxu0 0.0
    %4928 = vmatmul.mubr.f32.gmra.mrb[0].mxu0 %v4590
    %v4929 = vpop.f32.mrb[0].mxu0
    %v4930 = vadd.f32 %v4346, %v4929
    %v4931 = vpop.f32.mrb[0].mxu0
    %4932 = vmatprep.mubr.f32.mxu0 0.0
    %4933 = vmatmul.mubr.f32.gmra.mrb[0].mxu0 %v4593
    %v4934 = vpop.f32.mrb[0].mxu0
    %v4935 = vadd.f32 %v4351, %v4934
    %v4936 = vpop.f32.mrb[0].mxu0
    %4937 = vmatprep.mubr.f32.mxu0 0.0
    %4938 = vmatmul.mubr.f32.gmra.mrb[0].mxu0 %v4596
    %v4939 = vpop.f32.mrb[0].mxu0
    %v4940 = vadd.f32 %v4356, %v4939
    %v4941 = vpop.f32.mrb[0].mxu0
    %4942 = vmatprep.mubr.f32.mxu0 0.0
    %4943 = vmatmul.mubr.f32.gmra.mrb[0].mxu0 %v4599
    %v4944 = vpop.f32.mrb[0].mxu0
    %v4945 = vadd.f32 %v4361, %v4944
    %v4946 = vpop.f32.mrb[0].mxu0
    %4947 = vmatprep.mubr.f32.mxu0 0.0
    %4948 = vmatmul.mubr.f32.gmra.mrb[0].mxu0 %v4602
    %v4949 = vpop.f32.mrb[0].mxu0
    %v4950 = vadd.f32 %v4366, %v4949
    %v4951 = vpop.f32.mrb[0].mxu0
    %4952 = vmatprep.mubr.f32.mxu0 0.0
    %4953 = vmatmul.mubr.f32.gmra.mrb[0].mxu0 %v4605
    %v4954 = vpop.f32.mrb[0].mxu0
    %v4955 = vadd.f32 %v4371, %v4954
    %v4956 = vpop.f32.mrb[0].mxu0
    %4957 = vmatprep.mubr.f32.mxu0 0.0
    %4958 = vmatmul.mubr.f32.gmra.mrb[0].mxu0 %v4608
    %v4959 = vpop.f32.mrb[0].mxu0
    %v4960 = vadd.f32 %v4376, %v4959
    %v4961 = vpop.f32.mrb[0].mxu0
    %4962 = vmatprep.mubr.f32.mxu0 0.0
    %4963 = vmatmul.mubr.f32.gmra.mrb[0].mxu0 %v4611
    %v4964 = vpop.f32.mrb[0].mxu0
    %v4965 = vadd.f32 %v4381, %v4964
    %v4966 = vpop.f32.mrb[0].mxu0
    %4967 = vmatprep.mubr.f32.mxu0 0.0
    %4968 = vmatmul.mubr.f32.gmra.mrb[0].mxu0 %v4614
    %v4969 = vpop.f32.mrb[0].mxu0
    %v4970 = vadd.f32 %v4386, %v4969
    %v4971 = vpop.f32.mrb[0].mxu0
    %4972 = vmatprep.mubr.f32.mxu0 0.0
    %4973 = vmatmul.mubr.f32.gmra.mrb[0].mxu0 %v4617
    %v4974 = vpop.f32.mrb[0].mxu0
    %v4975 = vadd.f32 %v4391, %v4974
    %v4976 = vpop.f32.mrb[0].mxu0
    %4977 = vmatprep.mubr.f32.mxu0 0.0
    %4978 = vmatmul.mubr.f32.gmra.mrb[0].mxu0 %v4620
    %v4979 = vpop.f32.mrb[0].mxu0
    %v4980 = vadd.f32 %v4396, %v4979
    %v4981 = vpop.f32.mrb[0].mxu0
    %4982 = vmatprep.mubr.f32.mxu0 0.0
    %4983 = vmatmul.mubr.f32.gmra.mrb[0].mxu0 %v4623
    %v4984 = vpop.f32.mrb[0].mxu0
    %v4985 = vadd.f32 %v4401, %v4984
    %v4986 = vpop.f32.mrb[0].mxu0
    %4987 = vmatprep.mubr.f32.mxu0 0.0
    %4988 = vmatmul.mubr.f32.gmra.mrb[0].mxu0 %v4626
    %v4989 = vpop.f32.mrb[0].mxu0
    %v4990 = vadd.f32 %v4406, %v4989
    %v4991 = vpop.f32.mrb[0].mxu0
    %4992 = vmatprep.mubr.f32.mxu0 0.0
    %4993 = vmatmul.mubr.f32.gmra.mrb[0].mxu0 %v4629
    %v4994 = vpop.f32.mrb[0].mxu0
    %v4995 = vadd.f32 %v4411, %v4994
    %v4996 = vpop.f32.mrb[0].mxu0
    %4997 = vmatprep.mubr.f32.mxu0 0.0
    %4998 = vmatmul.mubr.f32.gmra.mrb[0].mxu0 %v4632
    %v4999 = vpop.f32.mrb[0].mxu0
    %v5000 = vadd.f32 %v4416, %v4999
    %v5001 = vpop.f32.mrb[0].mxu0
    %5002 = vmatprep.mubr.f32.mxu0 0.0
    %5003 = vmatmul.mubr.f32.gmra.mrb[0].mxu0 %v4635
    %v5004 = vpop.f32.mrb[0].mxu0
    %v5005 = vadd.f32 %v4421, %v5004
    %v5006 = vpop.f32.mrb[0].mxu0
    %5007 = vmatprep.mubr.f32.mxu0 0.0
    %5008 = vmatmul.mubr.f32.gmra.mrb[0].mxu0 %v4638
    %v5009 = vpop.f32.mrb[0].mxu0
    %v5010 = vadd.f32 %v4426, %v5009
    %v5011 = vpop.f32.mrb[0].mxu0
    %5012 = vmatprep.mubr.f32.mxu0 0.0
    %5013 = vmatmul.mubr.f32.gmra.mrb[0].mxu0 %v4641
    %v5014 = vpop.f32.mrb[0].mxu0
    %v5015 = vadd.f32 %v4431, %v5014
    %v5016 = vpop.f32.mrb[0].mxu0
    %5017 = vmatprep.mubr.f32.mxu0 0.0
    %5018 = vmatmul.mubr.f32.gmra.mrb[0].mxu0 %v4644
    %v5019 = vpop.f32.mrb[0].mxu0
    %v5020 = vadd.f32 %v4436, %v5019
    %v5021 = vpop.f32.mrb[0].mxu0
    %5022 = vmatprep.mubr.f32.mxu0 0.0
    %5023 = vmatmul.mubr.f32.gmra.mrb[0].mxu0 %v4647
    %v5024 = vpop.f32.mrb[0].mxu0
    %v5025 = vadd.f32 %v4441, %v5024
    %v5026 = vpop.f32.mrb[0].mxu0
    %5027 = vmatprep.mubr.f32.mxu0 0.0
    %5028 = vmatmul.mubr.f32.gmra.mrb[0].mxu0 %v4650
    %v5029 = vpop.f32.mrb[0].mxu0
    %v5030 = vadd.f32 %v4446, %v5029
    %v5031 = vpop.f32.mrb[0].mxu0
    %5032 = vmatprep.mubr.f32.mxu0 0.0
    %5033 = vmatmul.mubr.f32.gmra.mrb[0].mxu0 %v4653
    %v5034 = vpop.f32.mrb[0].mxu0
    %v5035 = vadd.f32 %v4451, %v5034
    %v5036 = vpop.f32.mrb[0].mxu0
    %5037 = vmatprep.mubr.f32.mxu0 0.0
    %5038 = vmatmul.mubr.f32.gmra.mrb[0].mxu0 %v4656
    %v5039 = vpop.f32.mrb[0].mxu0
    %v5040 = vadd.f32 %v4456, %v5039
    %v5041 = vpop.f32.mrb[0].mxu0
    %5042 = vdwg.mxu0
    %v5043 = vlaneseq
    %v5044 = vshrl.u32 %v5043, 7
    %v5045 = vsub.s32 0, %v5044
    %v5046 = vrot.slane %v69, %v5045
    %5048 = vrot.lane.b32.xlu0 %v5046, 112
    %v5049 = vpop.permute.xlu0 %5048
    %v5051 = vadd.f32 %v4725, %v5049
    %v5052 = vadd.f32 %v4730, %v5049
    %v5053 = vadd.f32 %v4735, %v5049
    %v5054 = vadd.f32 %v4740, %v5049
    %v5055 = vadd.f32 %v4745, %v5049
    %v5056 = vadd.f32 %v4750, %v5049
    %v5057 = vadd.f32 %v4755, %v5049
    %v5058 = vadd.f32 %v4760, %v5049
    %v5059 = vadd.f32 %v4765, %v5049
    %v5060 = vadd.f32 %v4770, %v5049
    %v5061 = vadd.f32 %v4775, %v5049
    %v5062 = vadd.f32 %v4780, %v5049
    %v5063 = vadd.f32 %v4785, %v5049
    %v5064 = vadd.f32 %v4790, %v5049
    %v5065 = vadd.f32 %v4795, %v5049
    %v5066 = vadd.f32 %v4800, %v5049
    %v5067 = vadd.f32 %v4805, %v5049
    %v5068 = vadd.f32 %v4810, %v5049
    %v5069 = vadd.f32 %v4815, %v5049
    %v5070 = vadd.f32 %v4820, %v5049
    %v5071 = vadd.f32 %v4825, %v5049
    %v5072 = vadd.f32 %v4830, %v5049
    %v5073 = vadd.f32 %v4835, %v5049
    %v5074 = vadd.f32 %v4840, %v5049
    %v5075 = vadd.f32 %v4845, %v5049
    %v5076 = vadd.f32 %v4850, %v5049
    %v5077 = vadd.f32 %v4855, %v5049
    %v5078 = vadd.f32 %v4860, %v5049
    %v5079 = vadd.f32 %v4865, %v5049
    %v5080 = vadd.f32 %v4870, %v5049
    %v5081 = vadd.f32 %v4875, %v5049
    %v5082 = vadd.f32 %v4880, %v5049
    %v5083 = vadd.f32 %v4885, %v5049
    %v5084 = vadd.f32 %v4890, %v5049
    %v5085 = vadd.f32 %v4895, %v5049
    %v5086 = vadd.f32 %v4900, %v5049
    %v5087 = vadd.f32 %v4905, %v5049
    %v5088 = vadd.f32 %v4910, %v5049
    %v5089 = vadd.f32 %v4915, %v5049
    %v5090 = vadd.f32 %v4920, %v5049
    %v5091 = vadd.f32 %v4925, %v5049
    %v5092 = vadd.f32 %v4930, %v5049
    %v5093 = vadd.f32 %v4935, %v5049
    %v5094 = vadd.f32 %v4940, %v5049
    %v5095 = vadd.f32 %v4945, %v5049
    %v5096 = vadd.f32 %v4950, %v5049
    %v5097 = vadd.f32 %v4955, %v5049
    %v5098 = vadd.f32 %v4960, %v5049
    %v5099 = vadd.f32 %v4965, %v5049
    %v5100 = vadd.f32 %v4970, %v5049
    %v5101 = vadd.f32 %v4975, %v5049
    %v5102 = vadd.f32 %v4980, %v5049
    %v5103 = vadd.f32 %v4985, %v5049
    %v5104 = vadd.f32 %v4990, %v5049
    %v5105 = vadd.f32 %v4995, %v5049
    %v5106 = vadd.f32 %v5000, %v5049
    %v5107 = vadd.f32 %v5005, %v5049
    %v5108 = vadd.f32 %v5010, %v5049
    %v5109 = vadd.f32 %v5015, %v5049
    %v5110 = vadd.f32 %v5020, %v5049
    %v5111 = vadd.f32 %v5025, %v5049
    %v5112 = vadd.f32 %v5030, %v5049
    %v5113 = vadd.f32 %v5035, %v5049
    %v5114 = vadd.f32 %v5040, %v5049
    %5115 = vrot.lane.b32.xlu0 %v67, 111
    %v5116 = vpop.permute.xlu0 %5115
    %5117 = vrot.lane.b32.xlu0 %v68, 111
    %v5118 = vpop.permute.xlu0 %5117
    %5121 = vmatprep.subr.mxu0 0.0
    %5122 = vmatpush1.msra.mxu0 %v5116
    %5123 = vmatprep.subr.mxu0 0.0
    %5124 = vmatpush1.msra.mxu0 %v5118
    %5125 = vmatprep.subr.mxu0 0.0
    %5126 = vmatpush1.msra.mxu0 0.0
    %5127 = vmatprep.subr.mxu0 0.0
    %5128 = vmatpush1.msra.mxu0 0.0
    %5129 = vmatprep.subr.mxu0 0.0
    %5130 = vmatpush1.msra.mxu0 0.0
    %5131 = vmatprep.subr.mxu0 0.0
    %5132 = vmatpush1.msra.mxu0 0.0
    %5133 = vmatprep.subr.mxu0 0.0
    %5134 = vmatpush1.msra.mxu0 0.0
    %5135 = vmatprep.subr.mxu0 0.0
    %5136 = vmatpush1.msra.mxu0 0.0
    %5137 = vmatprep.subr.mxu0 0.0
    %5138 = vmatpush1.msra.mxu0 0.0
    %5139 = vmatprep.subr.mxu0 0.0
    %5140 = vmatpush1.msra.mxu0 0.0
    %5141 = vmatprep.subr.mxu0 0.0
    %5142 = vmatpush1.msra.mxu0 0.0
    %5143 = vmatprep.subr.mxu0 0.0
    %5144 = vmatpush1.msra.mxu0 0.0
    %5145 = vmatprep.subr.mxu0 0.0
    %5146 = vmatpush1.msra.mxu0 0.0
    %5147 = vmatprep.subr.mxu0 0.0
    %5148 = vmatpush1.msra.mxu0 0.0
    %5149 = vmatprep.subr.mxu0 0.0
    %5150 = vmatpush1.msra.mxu0 0.0
    %5151 = vmatprep.subr.mxu0 0.0
    %5152 = vmatpush1.msra.mxu0 0.0
    %5153 = vmatprep.subr.mxu0 0.0
    %5154 = vmatpush1.msra.mxu0 0.0
    %5155 = vmatprep.subr.mxu0 0.0
    %5156 = vmatpush1.msra.mxu0 0.0
    %5157 = vmatprep.subr.mxu0 0.0
    %5158 = vmatpush1.msra.mxu0 0.0
    %5159 = vmatprep.subr.mxu0 0.0
    %5160 = vmatpush1.msra.mxu0 0.0
    %5161 = vmatprep.subr.mxu0 0.0
    %5162 = vmatpush1.msra.mxu0 0.0
    %5163 = vmatprep.subr.mxu0 0.0
    %5164 = vmatpush1.msra.mxu0 0.0
    %5165 = vmatprep.subr.mxu0 0.0
    %5166 = vmatpush1.msra.mxu0 0.0
    %5167 = vmatprep.subr.mxu0 0.0
    %5168 = vmatpush1.msra.mxu0 0.0
    %5169 = vmatprep.subr.mxu0 0.0
    %5170 = vmatpush1.msra.mxu0 0.0
    %5171 = vmatprep.subr.mxu0 0.0
    %5172 = vmatpush1.msra.mxu0 0.0
    %5173 = vmatprep.subr.mxu0 0.0
    %5174 = vmatpush1.msra.mxu0 0.0
    %5175 = vmatprep.subr.mxu0 0.0
    %5176 = vmatpush1.msra.mxu0 0.0
    %5177 = vmatprep.subr.mxu0 0.0
    %5178 = vmatpush1.msra.mxu0 0.0
    %5179 = vmatprep.subr.mxu0 0.0
    %5180 = vmatpush1.msra.mxu0 0.0
    %5181 = vmatprep.subr.mxu0 0.0
    %5182 = vmatpush1.msra.mxu0 0.0
    %5183 = vmatprep.subr.mxu0 0.0
    %5184 = vmatpush1.msra.mxu0 0.0
    %5185 = vmatprep.mubr.f32.mxu0 0.0
    %5186 = vmatmul.mubr.f32.gmra.mrb[0].mxu0 %v3883
    %v5187 = vpop.f32.mrb[0].mxu0
    %v5188 = vadd.f32 0.0, %v5187
    %v5189 = vpop.f32.mrb[0].mxu0
    %5190 = vmatprep.mubr.f32.mxu0 0.0
    %5191 = vmatmul.mubr.f32.gmra.mrb[0].mxu0 %v3886
    %v5192 = vpop.f32.mrb[0].mxu0
    %v5193 = vadd.f32 0.0, %v5192
    %v5194 = vpop.f32.mrb[0].mxu0
    %5195 = vmatprep.mubr.f32.mxu0 0.0
    %5196 = vmatmul.mubr.f32.gmra.mrb[0].mxu0 %v3889
    %v5197 = vpop.f32.mrb[0].mxu0
    %v5198 = vadd.f32 0.0, %v5197
    %v5199 = vpop.f32.mrb[0].mxu0
    %5200 = vmatprep.mubr.f32.mxu0 0.0
    %5201 = vmatmul.mubr.f32.gmra.mrb[0].mxu0 %v3892
    %v5202 = vpop.f32.mrb[0].mxu0
    %v5203 = vadd.f32 0.0, %v5202
    %v5204 = vpop.f32.mrb[0].mxu0
    %5205 = vmatprep.mubr.f32.mxu0 0.0
    %5206 = vmatmul.mubr.f32.gmra.mrb[0].mxu0 %v3895
    %v5207 = vpop.f32.mrb[0].mxu0
    %v5208 = vadd.f32 0.0, %v5207
    %v5209 = vpop.f32.mrb[0].mxu0
    %5210 = vmatprep.mubr.f32.mxu0 0.0
    %5211 = vmatmul.mubr.f32.gmra.mrb[0].mxu0 %v3898
    %v5212 = vpop.f32.mrb[0].mxu0
    %v5213 = vadd.f32 0.0, %v5212
    %v5214 = vpop.f32.mrb[0].mxu0
    %5215 = vmatprep.mubr.f32.mxu0 0.0
    %5216 = vmatmul.mubr.f32.gmra.mrb[0].mxu0 %v3901
    %v5217 = vpop.f32.mrb[0].mxu0
    %v5218 = vadd.f32 0.0, %v5217
    %v5219 = vpop.f32.mrb[0].mxu0
    %5220 = vmatprep.mubr.f32.mxu0 0.0
    %5221 = vmatmul.mubr.f32.gmra.mrb[0].mxu0 %v3904
    %v5222 = vpop.f32.mrb[0].mxu0
    %v5223 = vadd.f32 0.0, %v5222
    %v5224 = vpop.f32.mrb[0].mxu0
    %5225 = vmatprep.mubr.f32.mxu0 0.0
    %5226 = vmatmul.mubr.f32.gmra.mrb[0].mxu0 %v3907
    %v5227 = vpop.f32.mrb[0].mxu0
    %v5228 = vadd.f32 0.0, %v5227
    %v5229 = vpop.f32.mrb[0].mxu0
    %5230 = vmatprep.mubr.f32.mxu0 0.0
    %5231 = vmatmul.mubr.f32.gmra.mrb[0].mxu0 %v3910
    %v5232 = vpop.f32.mrb[0].mxu0
    %v5233 = vadd.f32 0.0, %v5232
    %v5234 = vpop.f32.mrb[0].mxu0
    %5235 = vmatprep.mubr.f32.mxu0 0.0
    %5236 = vmatmul.mubr.f32.gmra.mrb[0].mxu0 %v3913
    %v5237 = vpop.f32.mrb[0].mxu0
    %v5238 = vadd.f32 0.0, %v5237
    %v5239 = vpop.f32.mrb[0].mxu0
    %5240 = vmatprep.mubr.f32.mxu0 0.0
    %5241 = vmatmul.mubr.f32.gmra.mrb[0].mxu0 %v3916
    %v5242 = vpop.f32.mrb[0].mxu0
    %v5243 = vadd.f32 0.0, %v5242
    %v5244 = vpop.f32.mrb[0].mxu0
    %5245 = vmatprep.mubr.f32.mxu0 0.0
    %5246 = vmatmul.mubr.f32.gmra.mrb[0].mxu0 %v3919
    %v5247 = vpop.f32.mrb[0].mxu0
    %v5248 = vadd.f32 0.0, %v5247
    %v5249 = vpop.f32.mrb[0].mxu0
    %5250 = vmatprep.mubr.f32.mxu0 0.0
    %5251 = vmatmul.mubr.f32.gmra.mrb[0].mxu0 %v3922
    %v5252 = vpop.f32.mrb[0].mxu0
    %v5253 = vadd.f32 0.0, %v5252
    %v5254 = vpop.f32.mrb[0].mxu0
    %5255 = vmatprep.mubr.f32.mxu0 0.0
    %5256 = vmatmul.mubr.f32.gmra.mrb[0].mxu0 %v3925
    %v5257 = vpop.f32.mrb[0].mxu0
    %v5258 = vadd.f32 0.0, %v5257
    %v5259 = vpop.f32.mrb[0].mxu0
    %5260 = vmatprep.mubr.f32.mxu0 0.0
    %5261 = vmatmul.mubr.f32.gmra.mrb[0].mxu0 %v3928
    %v5262 = vpop.f32.mrb[0].mxu0
    %v5263 = vadd.f32 0.0, %v5262
    %v5264 = vpop.f32.mrb[0].mxu0
    %5265 = vmatprep.mubr.f32.mxu0 0.0
    %5266 = vmatmul.mubr.f32.gmra.mrb[0].mxu0 %v3931
    %v5267 = vpop.f32.mrb[0].mxu0
    %v5268 = vadd.f32 0.0, %v5267
    %v5269 = vpop.f32.mrb[0].mxu0
    %5270 = vmatprep.mubr.f32.mxu0 0.0
    %5271 = vmatmul.mubr.f32.gmra.mrb[0].mxu0 %v3934
    %v5272 = vpop.f32.mrb[0].mxu0
    %v5273 = vadd.f32 0.0, %v5272
    %v5274 = vpop.f32.mrb[0].mxu0
    %5275 = vmatprep.mubr.f32.mxu0 0.0
    %5276 = vmatmul.mubr.f32.gmra.mrb[0].mxu0 %v3937
    %v5277 = vpop.f32.mrb[0].mxu0
    %v5278 = vadd.f32 0.0, %v5277
    %v5279 = vpop.f32.mrb[0].mxu0
    %5280 = vmatprep.mubr.f32.mxu0 0.0
    %5281 = vmatmul.mubr.f32.gmra.mrb[0].mxu0 %v3940
    %v5282 = vpop.f32.mrb[0].mxu0
    %v5283 = vadd.f32 0.0, %v5282
    %v5284 = vpop.f32.mrb[0].mxu0
    %5285 = vmatprep.mubr.f32.mxu0 0.0
    %5286 = vmatmul.mubr.f32.gmra.mrb[0].mxu0 %v3943
    %v5287 = vpop.f32.mrb[0].mxu0
    %v5288 = vadd.f32 0.0, %v5287
    %v5289 = vpop.f32.mrb[0].mxu0
    %5290 = vmatprep.mubr.f32.mxu0 0.0
    %5291 = vmatmul.mubr.f32.gmra.mrb[0].mxu0 %v3946
    %v5292 = vpop.f32.mrb[0].mxu0
    %v5293 = vadd.f32 0.0, %v5292
    %v5294 = vpop.f32.mrb[0].mxu0
    %5295 = vmatprep.mubr.f32.mxu0 0.0
    %5296 = vmatmul.mubr.f32.gmra.mrb[0].mxu0 %v3949
    %v5297 = vpop.f32.mrb[0].mxu0
    %v5298 = vadd.f32 0.0, %v5297
    %v5299 = vpop.f32.mrb[0].mxu0
    %5300 = vmatprep.mubr.f32.mxu0 0.0
    %5301 = vmatmul.mubr.f32.gmra.mrb[0].mxu0 %v3952
    %v5302 = vpop.f32.mrb[0].mxu0
    %v5303 = vadd.f32 0.0, %v5302
    %v5304 = vpop.f32.mrb[0].mxu0
    %5305 = vmatprep.mubr.f32.mxu0 0.0
    %5306 = vmatmul.mubr.f32.gmra.mrb[0].mxu0 %v3955
    %v5307 = vpop.f32.mrb[0].mxu0
    %v5308 = vadd.f32 0.0, %v5307
    %v5309 = vpop.f32.mrb[0].mxu0
    %5310 = vmatprep.mubr.f32.mxu0 0.0
    %5311 = vmatmul.mubr.f32.gmra.mrb[0].mxu0 %v3958
    %v5312 = vpop.f32.mrb[0].mxu0
    %v5313 = vadd.f32 0.0, %v5312
    %v5314 = vpop.f32.mrb[0].mxu0
    %5315 = vmatprep.mubr.f32.mxu0 0.0
    %5316 = vmatmul.mubr.f32.gmra.mrb[0].mxu0 %v3961
    %v5317 = vpop.f32.mrb[0].mxu0
    %v5318 = vadd.f32 0.0, %v5317
    %v5319 = vpop.f32.mrb[0].mxu0
    %5320 = vmatprep.mubr.f32.mxu0 0.0
    %5321 = vmatmul.mubr.f32.gmra.mrb[0].mxu0 %v3964
    %v5322 = vpop.f32.mrb[0].mxu0
    %v5323 = vadd.f32 0.0, %v5322
    %v5324 = vpop.f32.mrb[0].mxu0
    %5325 = vmatprep.mubr.f32.mxu0 0.0
    %5326 = vmatmul.mubr.f32.gmra.mrb[0].mxu0 %v3967
    %v5327 = vpop.f32.mrb[0].mxu0
    %v5328 = vadd.f32 0.0, %v5327
    %v5329 = vpop.f32.mrb[0].mxu0
    %5330 = vmatprep.mubr.f32.mxu0 0.0
    %5331 = vmatmul.mubr.f32.gmra.mrb[0].mxu0 %v3970
    %v5332 = vpop.f32.mrb[0].mxu0
    %v5333 = vadd.f32 0.0, %v5332
    %v5334 = vpop.f32.mrb[0].mxu0
    %5335 = vmatprep.mubr.f32.mxu0 0.0
    %5336 = vmatmul.mubr.f32.gmra.mrb[0].mxu0 %v3973
    %v5337 = vpop.f32.mrb[0].mxu0
    %v5338 = vadd.f32 0.0, %v5337
    %v5339 = vpop.f32.mrb[0].mxu0
    %5340 = vmatprep.mubr.f32.mxu0 0.0
    %5341 = vmatmul.mubr.f32.gmra.mrb[0].mxu0 %v3976
    %v5342 = vpop.f32.mrb[0].mxu0
    %v5343 = vadd.f32 0.0, %v5342
    %v5344 = vpop.f32.mrb[0].mxu0
    %5345 = vmatprep.mubr.f32.mxu0 0.0
    %5346 = vmatmul.mubr.f32.gmra.mrb[0].mxu0 %v3979
    %v5347 = vpop.f32.mrb[0].mxu0
    %v5348 = vadd.f32 0.0, %v5347
    %v5349 = vpop.f32.mrb[0].mxu0
    %5350 = vmatprep.mubr.f32.mxu0 0.0
    %5351 = vmatmul.mubr.f32.gmra.mrb[0].mxu0 %v3982
    %v5352 = vpop.f32.mrb[0].mxu0
    %v5353 = vadd.f32 0.0, %v5352
    %v5354 = vpop.f32.mrb[0].mxu0
    %5355 = vmatprep.mubr.f32.mxu0 0.0
    %5356 = vmatmul.mubr.f32.gmra.mrb[0].mxu0 %v3985
    %v5357 = vpop.f32.mrb[0].mxu0
    %v5358 = vadd.f32 0.0, %v5357
    %v5359 = vpop.f32.mrb[0].mxu0
    %5360 = vmatprep.mubr.f32.mxu0 0.0
    %5361 = vmatmul.mubr.f32.gmra.mrb[0].mxu0 %v3988
    %v5362 = vpop.f32.mrb[0].mxu0
    %v5363 = vadd.f32 0.0, %v5362
    %v5364 = vpop.f32.mrb[0].mxu0
    %5365 = vmatprep.mubr.f32.mxu0 0.0
    %5366 = vmatmul.mubr.f32.gmra.mrb[0].mxu0 %v3991
    %v5367 = vpop.f32.mrb[0].mxu0
    %v5368 = vadd.f32 0.0, %v5367
    %v5369 = vpop.f32.mrb[0].mxu0
    %5370 = vmatprep.mubr.f32.mxu0 0.0
    %5371 = vmatmul.mubr.f32.gmra.mrb[0].mxu0 %v3994
    %v5372 = vpop.f32.mrb[0].mxu0
    %v5373 = vadd.f32 0.0, %v5372
    %v5374 = vpop.f32.mrb[0].mxu0
    %5375 = vmatprep.mubr.f32.mxu0 0.0
    %5376 = vmatmul.mubr.f32.gmra.mrb[0].mxu0 %v3997
    %v5377 = vpop.f32.mrb[0].mxu0
    %v5378 = vadd.f32 0.0, %v5377
    %v5379 = vpop.f32.mrb[0].mxu0
    %5380 = vmatprep.mubr.f32.mxu0 0.0
    %5381 = vmatmul.mubr.f32.gmra.mrb[0].mxu0 %v4000
    %v5382 = vpop.f32.mrb[0].mxu0
    %v5383 = vadd.f32 0.0, %v5382
    %v5384 = vpop.f32.mrb[0].mxu0
    %5385 = vmatprep.mubr.f32.mxu0 0.0
    %5386 = vmatmul.mubr.f32.gmra.mrb[0].mxu0 %v4003
    %v5387 = vpop.f32.mrb[0].mxu0
    %v5388 = vadd.f32 0.0, %v5387
    %v5389 = vpop.f32.mrb[0].mxu0
    %5390 = vmatprep.mubr.f32.mxu0 0.0
    %5391 = vmatmul.mubr.f32.gmra.mrb[0].mxu0 %v4006
    %v5392 = vpop.f32.mrb[0].mxu0
    %v5393 = vadd.f32 0.0, %v5392
    %v5394 = vpop.f32.mrb[0].mxu0
    %5395 = vmatprep.mubr.f32.mxu0 0.0
    %5396 = vmatmul.mubr.f32.gmra.mrb[0].mxu0 %v4009
    %v5397 = vpop.f32.mrb[0].mxu0
    %v5398 = vadd.f32 0.0, %v5397
    %v5399 = vpop.f32.mrb[0].mxu0
    %5400 = vmatprep.mubr.f32.mxu0 0.0
    %5401 = vmatmul.mubr.f32.gmra.mrb[0].mxu0 %v4012
    %v5402 = vpop.f32.mrb[0].mxu0
    %v5403 = vadd.f32 0.0, %v5402
    %v5404 = vpop.f32.mrb[0].mxu0
    %5405 = vmatprep.mubr.f32.mxu0 0.0
    %5406 = vmatmul.mubr.f32.gmra.mrb[0].mxu0 %v4015
    %v5407 = vpop.f32.mrb[0].mxu0
    %v5408 = vadd.f32 0.0, %v5407
    %v5409 = vpop.f32.mrb[0].mxu0
    %5410 = vmatprep.mubr.f32.mxu0 0.0
    %5411 = vmatmul.mubr.f32.gmra.mrb[0].mxu0 %v4018
    %v5412 = vpop.f32.mrb[0].mxu0
    %v5413 = vadd.f32 0.0, %v5412
    %v5414 = vpop.f32.mrb[0].mxu0
    %5415 = vmatprep.mubr.f32.mxu0 0.0
    %5416 = vmatmul.mubr.f32.gmra.mrb[0].mxu0 %v4021
    %v5417 = vpop.f32.mrb[0].mxu0
    %v5418 = vadd.f32 0.0, %v5417
    %v5419 = vpop.f32.mrb[0].mxu0
    %5420 = vmatprep.mubr.f32.mxu0 0.0
    %5421 = vmatmul.mubr.f32.gmra.mrb[0].mxu0 %v4024
    %v5422 = vpop.f32.mrb[0].mxu0
    %v5423 = vadd.f32 0.0, %v5422
    %v5424 = vpop.f32.mrb[0].mxu0
    %5425 = vmatprep.mubr.f32.mxu0 0.0
    %5426 = vmatmul.mubr.f32.gmra.mrb[0].mxu0 %v4027
    %v5427 = vpop.f32.mrb[0].mxu0
    %v5428 = vadd.f32 0.0, %v5427
    %v5429 = vpop.f32.mrb[0].mxu0
    %5430 = vmatprep.mubr.f32.mxu0 0.0
    %5431 = vmatmul.mubr.f32.gmra.mrb[0].mxu0 %v4030
    %v5432 = vpop.f32.mrb[0].mxu0
    %v5433 = vadd.f32 0.0, %v5432
    %v5434 = vpop.f32.mrb[0].mxu0
    %5435 = vmatprep.mubr.f32.mxu0 0.0
    %5436 = vmatmul.mubr.f32.gmra.mrb[0].mxu0 %v4033
    %v5437 = vpop.f32.mrb[0].mxu0
    %v5438 = vadd.f32 0.0, %v5437
    %v5439 = vpop.f32.mrb[0].mxu0
    %5440 = vmatprep.mubr.f32.mxu0 0.0
    %5441 = vmatmul.mubr.f32.gmra.mrb[0].mxu0 %v4036
    %v5442 = vpop.f32.mrb[0].mxu0
    %v5443 = vadd.f32 0.0, %v5442
    %v5444 = vpop.f32.mrb[0].mxu0
    %5445 = vmatprep.mubr.f32.mxu0 0.0
    %5446 = vmatmul.mubr.f32.gmra.mrb[0].mxu0 %v4039
    %v5447 = vpop.f32.mrb[0].mxu0
    %v5448 = vadd.f32 0.0, %v5447
    %v5449 = vpop.f32.mrb[0].mxu0
    %5450 = vmatprep.mubr.f32.mxu0 0.0
    %5451 = vmatmul.mubr.f32.gmra.mrb[0].mxu0 %v4042
    %v5452 = vpop.f32.mrb[0].mxu0
    %v5453 = vadd.f32 0.0, %v5452
    %v5454 = vpop.f32.mrb[0].mxu0
    %5455 = vmatprep.mubr.f32.mxu0 0.0
    %5456 = vmatmul.mubr.f32.gmra.mrb[0].mxu0 %v4045
    %v5457 = vpop.f32.mrb[0].mxu0
    %v5458 = vadd.f32 0.0, %v5457
    %v5459 = vpop.f32.mrb[0].mxu0
    %5460 = vmatprep.mubr.f32.mxu0 0.0
    %5461 = vmatmul.mubr.f32.gmra.mrb[0].mxu0 %v4048
    %v5462 = vpop.f32.mrb[0].mxu0
    %v5463 = vadd.f32 0.0, %v5462
    %v5464 = vpop.f32.mrb[0].mxu0
    %5465 = vmatprep.mubr.f32.mxu0 0.0
    %5466 = vmatmul.mubr.f32.gmra.mrb[0].mxu0 %v4051
    %v5467 = vpop.f32.mrb[0].mxu0
    %v5468 = vadd.f32 0.0, %v5467
    %v5469 = vpop.f32.mrb[0].mxu0
    %5470 = vmatprep.mubr.f32.mxu0 0.0
    %5471 = vmatmul.mubr.f32.gmra.mrb[0].mxu0 %v4054
    %v5472 = vpop.f32.mrb[0].mxu0
    %v5473 = vadd.f32 0.0, %v5472
    %v5474 = vpop.f32.mrb[0].mxu0
    %5475 = vmatprep.mubr.f32.mxu0 0.0
    %5476 = vmatmul.mubr.f32.gmra.mrb[0].mxu0 %v4057
    %v5477 = vpop.f32.mrb[0].mxu0
    %v5478 = vadd.f32 0.0, %v5477
    %v5479 = vpop.f32.mrb[0].mxu0
    %5480 = vmatprep.mubr.f32.mxu0 0.0
    %5481 = vmatmul.mubr.f32.gmra.mrb[0].mxu0 %v4060
    %v5482 = vpop.f32.mrb[0].mxu0
    %v5483 = vadd.f32 0.0, %v5482
    %v5484 = vpop.f32.mrb[0].mxu0
    %5485 = vmatprep.mubr.f32.mxu0 0.0
    %5486 = vmatmul.mubr.f32.gmra.mrb[0].mxu0 %v4063
    %v5487 = vpop.f32.mrb[0].mxu0
    %v5488 = vadd.f32 0.0, %v5487
    %v5489 = vpop.f32.mrb[0].mxu0
    %5490 = vmatprep.mubr.f32.mxu0 0.0
    %5491 = vmatmul.mubr.f32.gmra.mrb[0].mxu0 %v4066
    %v5492 = vpop.f32.mrb[0].mxu0
    %v5493 = vadd.f32 0.0, %v5492
    %v5494 = vpop.f32.mrb[0].mxu0
    %5495 = vmatprep.mubr.f32.mxu0 0.0
    %5496 = vmatmul.mubr.f32.gmra.mrb[0].mxu0 %v4069
    %v5497 = vpop.f32.mrb[0].mxu0
    %v5498 = vadd.f32 0.0, %v5497
    %v5499 = vpop.f32.mrb[0].mxu0
    %5500 = vmatprep.mubr.f32.mxu0 0.0
    %5501 = vmatmul.mubr.f32.gmra.mrb[0].mxu0 %v4072
    %v5502 = vpop.f32.mrb[0].mxu0
    %v5503 = vadd.f32 0.0, %v5502
    %v5504 = vpop.f32.mrb[0].mxu0
    %5505 = vdwg.mxu0
    %5506 = vrot.lane.b32.xlu0 %v65, 111
    %v5507 = vpop.permute.xlu0 %5506
    %5508 = vrot.lane.b32.xlu0 %v66, 111
    %v5509 = vpop.permute.xlu0 %5508
    %5512 = vmatprep.subr.mxu0 0.0
    %5513 = vmatpush1.msra.mxu0 %v5507
    %5514 = vmatprep.subr.mxu0 0.0
    %5515 = vmatpush1.msra.mxu0 %v5509
    %5516 = vmatprep.subr.mxu0 0.0
    %5517 = vmatpush1.msra.mxu0 0.0
    %5518 = vmatprep.subr.mxu0 0.0
    %5519 = vmatpush1.msra.mxu0 0.0
    %5520 = vmatprep.subr.mxu0 0.0
    %5521 = vmatpush1.msra.mxu0 0.0
    %5522 = vmatprep.subr.mxu0 0.0
    %5523 = vmatpush1.msra.mxu0 0.0
    %5524 = vmatprep.subr.mxu0 0.0
    %5525 = vmatpush1.msra.mxu0 0.0
    %5526 = vmatprep.subr.mxu0 0.0
    %5527 = vmatpush1.msra.mxu0 0.0
    %5528 = vmatprep.subr.mxu0 0.0
    %5529 = vmatpush1.msra.mxu0 0.0
    %5530 = vmatprep.subr.mxu0 0.0
    %5531 = vmatpush1.msra.mxu0 0.0
    %5532 = vmatprep.subr.mxu0 0.0
    %5533 = vmatpush1.msra.mxu0 0.0
    %5534 = vmatprep.subr.mxu0 0.0
    %5535 = vmatpush1.msra.mxu0 0.0
    %5536 = vmatprep.subr.mxu0 0.0
    %5537 = vmatpush1.msra.mxu0 0.0
    %5538 = vmatprep.subr.mxu0 0.0
    %5539 = vmatpush1.msra.mxu0 0.0
    %5540 = vmatprep.subr.mxu0 0.0
    %5541 = vmatpush1.msra.mxu0 0.0
    %5542 = vmatprep.subr.mxu0 0.0
    %5543 = vmatpush1.msra.mxu0 0.0
    %5544 = vmatprep.subr.mxu0 0.0
    %5545 = vmatpush1.msra.mxu0 0.0
    %5546 = vmatprep.subr.mxu0 0.0
    %5547 = vmatpush1.msra.mxu0 0.0
    %5548 = vmatprep.subr.mxu0 0.0
    %5549 = vmatpush1.msra.mxu0 0.0
    %5550 = vmatprep.subr.mxu0 0.0
    %5551 = vmatpush1.msra.mxu0 0.0
    %5552 = vmatprep.subr.mxu0 0.0
    %5553 = vmatpush1.msra.mxu0 0.0
    %5554 = vmatprep.subr.mxu0 0.0
    %5555 = vmatpush1.msra.mxu0 0.0
    %5556 = vmatprep.subr.mxu0 0.0
    %5557 = vmatpush1.msra.mxu0 0.0
    %5558 = vmatprep.subr.mxu0 0.0
    %5559 = vmatpush1.msra.mxu0 0.0
    %5560 = vmatprep.subr.mxu0 0.0
    %5561 = vmatpush1.msra.mxu0 0.0
    %5562 = vmatprep.subr.mxu0 0.0
    %5563 = vmatpush1.msra.mxu0 0.0
    %5564 = vmatprep.subr.mxu0 0.0
    %5565 = vmatpush1.msra.mxu0 0.0
    %5566 = vmatprep.subr.mxu0 0.0
    %5567 = vmatpush1.msra.mxu0 0.0
    %5568 = vmatprep.subr.mxu0 0.0
    %5569 = vmatpush1.msra.mxu0 0.0
    %5570 = vmatprep.subr.mxu0 0.0
    %5571 = vmatpush1.msra.mxu0 0.0
    %5572 = vmatprep.subr.mxu0 0.0
    %5573 = vmatpush1.msra.mxu0 0.0
    %5574 = vmatprep.subr.mxu0 0.0
    %5575 = vmatpush1.msra.mxu0 0.0
    %5576 = vmatprep.mubr.f32.mxu0 0.0
    %5577 = vmatmul.mubr.f32.gmra.mrb[0].mxu0 %v4467
    %v5578 = vpop.f32.mrb[0].mxu0
    %v5579 = vadd.f32 %v5188, %v5578
    %v5580 = vpop.f32.mrb[0].mxu0
    %5581 = vmatprep.mubr.f32.mxu0 0.0
    %5582 = vmatmul.mubr.f32.gmra.mrb[0].mxu0 %v4470
    %v5583 = vpop.f32.mrb[0].mxu0
    %v5584 = vadd.f32 %v5193, %v5583
    %v5585 = vpop.f32.mrb[0].mxu0
    %5586 = vmatprep.mubr.f32.mxu0 0.0
    %5587 = vmatmul.mubr.f32.gmra.mrb[0].mxu0 %v4473
    %v5588 = vpop.f32.mrb[0].mxu0
    %v5589 = vadd.f32 %v5198, %v5588
    %v5590 = vpop.f32.mrb[0].mxu0
    %5591 = vmatprep.mubr.f32.mxu0 0.0
    %5592 = vmatmul.mubr.f32.gmra.mrb[0].mxu0 %v4476
    %v5593 = vpop.f32.mrb[0].mxu0
    %v5594 = vadd.f32 %v5203, %v5593
    %v5595 = vpop.f32.mrb[0].mxu0
    %5596 = vmatprep.mubr.f32.mxu0 0.0
    %5597 = vmatmul.mubr.f32.gmra.mrb[0].mxu0 %v4479
    %v5598 = vpop.f32.mrb[0].mxu0
    %v5599 = vadd.f32 %v5208, %v5598
    %v5600 = vpop.f32.mrb[0].mxu0
    %5601 = vmatprep.mubr.f32.mxu0 0.0
    %5602 = vmatmul.mubr.f32.gmra.mrb[0].mxu0 %v4482
    %v5603 = vpop.f32.mrb[0].mxu0
    %v5604 = vadd.f32 %v5213, %v5603
    %v5605 = vpop.f32.mrb[0].mxu0
    %5606 = vmatprep.mubr.f32.mxu0 0.0
    %5607 = vmatmul.mubr.f32.gmra.mrb[0].mxu0 %v4485
    %v5608 = vpop.f32.mrb[0].mxu0
    %v5609 = vadd.f32 %v5218, %v5608
    %v5610 = vpop.f32.mrb[0].mxu0
    %5611 = vmatprep.mubr.f32.mxu0 0.0
    %5612 = vmatmul.mubr.f32.gmra.mrb[0].mxu0 %v4488
    %v5613 = vpop.f32.mrb[0].mxu0
    %v5614 = vadd.f32 %v5223, %v5613
    %v5615 = vpop.f32.mrb[0].mxu0
    %5616 = vmatprep.mubr.f32.mxu0 0.0
    %5617 = vmatmul.mubr.f32.gmra.mrb[0].mxu0 %v4491
    %v5618 = vpop.f32.mrb[0].mxu0
    %v5619 = vadd.f32 %v5228, %v5618
    %v5620 = vpop.f32.mrb[0].mxu0
    %5621 = vmatprep.mubr.f32.mxu0 0.0
    %5622 = vmatmul.mubr.f32.gmra.mrb[0].mxu0 %v4494
    %v5623 = vpop.f32.mrb[0].mxu0
    %v5624 = vadd.f32 %v5233, %v5623
    %v5625 = vpop.f32.mrb[0].mxu0
    %5626 = vmatprep.mubr.f32.mxu0 0.0
    %5627 = vmatmul.mubr.f32.gmra.mrb[0].mxu0 %v4497
    %v5628 = vpop.f32.mrb[0].mxu0
    %v5629 = vadd.f32 %v5238, %v5628
    %v5630 = vpop.f32.mrb[0].mxu0
    %5631 = vmatprep.mubr.f32.mxu0 0.0
    %5632 = vmatmul.mubr.f32.gmra.mrb[0].mxu0 %v4500
    %v5633 = vpop.f32.mrb[0].mxu0
    %v5634 = vadd.f32 %v5243, %v5633
    %v5635 = vpop.f32.mrb[0].mxu0
    %5636 = vmatprep.mubr.f32.mxu0 0.0
    %5637 = vmatmul.mubr.f32.gmra.mrb[0].mxu0 %v4503
    %v5638 = vpop.f32.mrb[0].mxu0
    %v5639 = vadd.f32 %v5248, %v5638
    %v5640 = vpop.f32.mrb[0].mxu0
    %5641 = vmatprep.mubr.f32.mxu0 0.0
    %5642 = vmatmul.mubr.f32.gmra.mrb[0].mxu0 %v4506
    %v5643 = vpop.f32.mrb[0].mxu0
    %v5644 = vadd.f32 %v5253, %v5643
    %v5645 = vpop.f32.mrb[0].mxu0
    %5646 = vmatprep.mubr.f32.mxu0 0.0
    %5647 = vmatmul.mubr.f32.gmra.mrb[0].mxu0 %v4509
    %v5648 = vpop.f32.mrb[0].mxu0
    %v5649 = vadd.f32 %v5258, %v5648
    %v5650 = vpop.f32.mrb[0].mxu0
    %5651 = vmatprep.mubr.f32.mxu0 0.0
    %5652 = vmatmul.mubr.f32.gmra.mrb[0].mxu0 %v4512
    %v5653 = vpop.f32.mrb[0].mxu0
    %v5654 = vadd.f32 %v5263, %v5653
    %v5655 = vpop.f32.mrb[0].mxu0
    %5656 = vmatprep.mubr.f32.mxu0 0.0
    %5657 = vmatmul.mubr.f32.gmra.mrb[0].mxu0 %v4515
    %v5658 = vpop.f32.mrb[0].mxu0
    %v5659 = vadd.f32 %v5268, %v5658
    %v5660 = vpop.f32.mrb[0].mxu0
    %5661 = vmatprep.mubr.f32.mxu0 0.0
    %5662 = vmatmul.mubr.f32.gmra.mrb[0].mxu0 %v4518
    %v5663 = vpop.f32.mrb[0].mxu0
    %v5664 = vadd.f32 %v5273, %v5663
    %v5665 = vpop.f32.mrb[0].mxu0
    %5666 = vmatprep.mubr.f32.mxu0 0.0
    %5667 = vmatmul.mubr.f32.gmra.mrb[0].mxu0 %v4521
    %v5668 = vpop.f32.mrb[0].mxu0
    %v5669 = vadd.f32 %v5278, %v5668
    %v5670 = vpop.f32.mrb[0].mxu0
    %5671 = vmatprep.mubr.f32.mxu0 0.0
    %5672 = vmatmul.mubr.f32.gmra.mrb[0].mxu0 %v4524
    %v5673 = vpop.f32.mrb[0].mxu0
    %v5674 = vadd.f32 %v5283, %v5673
    %v5675 = vpop.f32.mrb[0].mxu0
    %5676 = vmatprep.mubr.f32.mxu0 0.0
    %5677 = vmatmul.mubr.f32.gmra.mrb[0].mxu0 %v4527
    %v5678 = vpop.f32.mrb[0].mxu0
    %v5679 = vadd.f32 %v5288, %v5678
    %v5680 = vpop.f32.mrb[0].mxu0
    %5681 = vmatprep.mubr.f32.mxu0 0.0
    %5682 = vmatmul.mubr.f32.gmra.mrb[0].mxu0 %v4530
    %v5683 = vpop.f32.mrb[0].mxu0
    %v5684 = vadd.f32 %v5293, %v5683
    %v5685 = vpop.f32.mrb[0].mxu0
    %5686 = vmatprep.mubr.f32.mxu0 0.0
    %5687 = vmatmul.mubr.f32.gmra.mrb[0].mxu0 %v4533
    %v5688 = vpop.f32.mrb[0].mxu0
    %v5689 = vadd.f32 %v5298, %v5688
    %v5690 = vpop.f32.mrb[0].mxu0
    %5691 = vmatprep.mubr.f32.mxu0 0.0
    %5692 = vmatmul.mubr.f32.gmra.mrb[0].mxu0 %v4536
    %v5693 = vpop.f32.mrb[0].mxu0
    %v5694 = vadd.f32 %v5303, %v5693
    %v5695 = vpop.f32.mrb[0].mxu0
    %5696 = vmatprep.mubr.f32.mxu0 0.0
    %5697 = vmatmul.mubr.f32.gmra.mrb[0].mxu0 %v4539
    %v5698 = vpop.f32.mrb[0].mxu0
    %v5699 = vadd.f32 %v5308, %v5698
    %v5700 = vpop.f32.mrb[0].mxu0
    %5701 = vmatprep.mubr.f32.mxu0 0.0
    %5702 = vmatmul.mubr.f32.gmra.mrb[0].mxu0 %v4542
    %v5703 = vpop.f32.mrb[0].mxu0
    %v5704 = vadd.f32 %v5313, %v5703
    %v5705 = vpop.f32.mrb[0].mxu0
    %5706 = vmatprep.mubr.f32.mxu0 0.0
    %5707 = vmatmul.mubr.f32.gmra.mrb[0].mxu0 %v4545
    %v5708 = vpop.f32.mrb[0].mxu0
    %v5709 = vadd.f32 %v5318, %v5708
    %v5710 = vpop.f32.mrb[0].mxu0
    %5711 = vmatprep.mubr.f32.mxu0 0.0
    %5712 = vmatmul.mubr.f32.gmra.mrb[0].mxu0 %v4548
    %v5713 = vpop.f32.mrb[0].mxu0
    %v5714 = vadd.f32 %v5323, %v5713
    %v5715 = vpop.f32.mrb[0].mxu0
    %5716 = vmatprep.mubr.f32.mxu0 0.0
    %5717 = vmatmul.mubr.f32.gmra.mrb[0].mxu0 %v4551
    %v5718 = vpop.f32.mrb[0].mxu0
    %v5719 = vadd.f32 %v5328, %v5718
    %v5720 = vpop.f32.mrb[0].mxu0
    %5721 = vmatprep.mubr.f32.mxu0 0.0
    %5722 = vmatmul.mubr.f32.gmra.mrb[0].mxu0 %v4554
    %v5723 = vpop.f32.mrb[0].mxu0
    %v5724 = vadd.f32 %v5333, %v5723
    %v5725 = vpop.f32.mrb[0].mxu0
    %5726 = vmatprep.mubr.f32.mxu0 0.0
    %5727 = vmatmul.mubr.f32.gmra.mrb[0].mxu0 %v4557
    %v5728 = vpop.f32.mrb[0].mxu0
    %v5729 = vadd.f32 %v5338, %v5728
    %v5730 = vpop.f32.mrb[0].mxu0
    %5731 = vmatprep.mubr.f32.mxu0 0.0
    %5732 = vmatmul.mubr.f32.gmra.mrb[0].mxu0 %v4560
    %v5733 = vpop.f32.mrb[0].mxu0
    %v5734 = vadd.f32 %v5343, %v5733
    %v5735 = vpop.f32.mrb[0].mxu0
    %5736 = vmatprep.mubr.f32.mxu0 0.0
    %5737 = vmatmul.mubr.f32.gmra.mrb[0].mxu0 %v4563
    %v5738 = vpop.f32.mrb[0].mxu0
    %v5739 = vadd.f32 %v5348, %v5738
    %v5740 = vpop.f32.mrb[0].mxu0
    %5741 = vmatprep.mubr.f32.mxu0 0.0
    %5742 = vmatmul.mubr.f32.gmra.mrb[0].mxu0 %v4566
    %v5743 = vpop.f32.mrb[0].mxu0
    %v5744 = vadd.f32 %v5353, %v5743
    %v5745 = vpop.f32.mrb[0].mxu0
    %5746 = vmatprep.mubr.f32.mxu0 0.0
    %5747 = vmatmul.mubr.f32.gmra.mrb[0].mxu0 %v4569
    %v5748 = vpop.f32.mrb[0].mxu0
    %v5749 = vadd.f32 %v5358, %v5748
    %v5750 = vpop.f32.mrb[0].mxu0
    %5751 = vmatprep.mubr.f32.mxu0 0.0
    %5752 = vmatmul.mubr.f32.gmra.mrb[0].mxu0 %v4572
    %v5753 = vpop.f32.mrb[0].mxu0
    %v5754 = vadd.f32 %v5363, %v5753
    %v5755 = vpop.f32.mrb[0].mxu0
    %5756 = vmatprep.mubr.f32.mxu0 0.0
    %5757 = vmatmul.mubr.f32.gmra.mrb[0].mxu0 %v4575
    %v5758 = vpop.f32.mrb[0].mxu0
    %v5759 = vadd.f32 %v5368, %v5758
    %v5760 = vpop.f32.mrb[0].mxu0
    %5761 = vmatprep.mubr.f32.mxu0 0.0
    %5762 = vmatmul.mubr.f32.gmra.mrb[0].mxu0 %v4578
    %v5763 = vpop.f32.mrb[0].mxu0
    %v5764 = vadd.f32 %v5373, %v5763
    %v5765 = vpop.f32.mrb[0].mxu0
    %5766 = vmatprep.mubr.f32.mxu0 0.0
    %5767 = vmatmul.mubr.f32.gmra.mrb[0].mxu0 %v4581
    %v5768 = vpop.f32.mrb[0].mxu0
    %v5769 = vadd.f32 %v5378, %v5768
    %v5770 = vpop.f32.mrb[0].mxu0
    %5771 = vmatprep.mubr.f32.mxu0 0.0
    %5772 = vmatmul.mubr.f32.gmra.mrb[0].mxu0 %v4584
    %v5773 = vpop.f32.mrb[0].mxu0
    %v5774 = vadd.f32 %v5383, %v5773
    %v5775 = vpop.f32.mrb[0].mxu0
    %5776 = vmatprep.mubr.f32.mxu0 0.0
    %5777 = vmatmul.mubr.f32.gmra.mrb[0].mxu0 %v4587
    %v5778 = vpop.f32.mrb[0].mxu0
    %v5779 = vadd.f32 %v5388, %v5778
    %v5780 = vpop.f32.mrb[0].mxu0
    %5781 = vmatprep.mubr.f32.mxu0 0.0
    %5782 = vmatmul.mubr.f32.gmra.mrb[0].mxu0 %v4590
    %v5783 = vpop.f32.mrb[0].mxu0
    %v5784 = vadd.f32 %v5393, %v5783
    %v5785 = vpop.f32.mrb[0].mxu0
    %5786 = vmatprep.mubr.f32.mxu0 0.0
    %5787 = vmatmul.mubr.f32.gmra.mrb[0].mxu0 %v4593
    %v5788 = vpop.f32.mrb[0].mxu0
    %v5789 = vadd.f32 %v5398, %v5788
    %v5790 = vpop.f32.mrb[0].mxu0
    %5791 = vmatprep.mubr.f32.mxu0 0.0
    %5792 = vmatmul.mubr.f32.gmra.mrb[0].mxu0 %v4596
    %v5793 = vpop.f32.mrb[0].mxu0
    %v5794 = vadd.f32 %v5403, %v5793
    %v5795 = vpop.f32.mrb[0].mxu0
    %5796 = vmatprep.mubr.f32.mxu0 0.0
    %5797 = vmatmul.mubr.f32.gmra.mrb[0].mxu0 %v4599
    %v5798 = vpop.f32.mrb[0].mxu0
    %v5799 = vadd.f32 %v5408, %v5798
    %v5800 = vpop.f32.mrb[0].mxu0
    %5801 = vmatprep.mubr.f32.mxu0 0.0
    %5802 = vmatmul.mubr.f32.gmra.mrb[0].mxu0 %v4602
    %v5803 = vpop.f32.mrb[0].mxu0
    %v5804 = vadd.f32 %v5413, %v5803
    %v5805 = vpop.f32.mrb[0].mxu0
    %5806 = vmatprep.mubr.f32.mxu0 0.0
    %5807 = vmatmul.mubr.f32.gmra.mrb[0].mxu0 %v4605
    %v5808 = vpop.f32.mrb[0].mxu0
    %v5809 = vadd.f32 %v5418, %v5808
    %v5810 = vpop.f32.mrb[0].mxu0
    %5811 = vmatprep.mubr.f32.mxu0 0.0
    %5812 = vmatmul.mubr.f32.gmra.mrb[0].mxu0 %v4608
    %v5813 = vpop.f32.mrb[0].mxu0
    %v5814 = vadd.f32 %v5423, %v5813
    %v5815 = vpop.f32.mrb[0].mxu0
    %5816 = vmatprep.mubr.f32.mxu0 0.0
    %5817 = vmatmul.mubr.f32.gmra.mrb[0].mxu0 %v4611
    %v5818 = vpop.f32.mrb[0].mxu0
    %v5819 = vadd.f32 %v5428, %v5818
    %v5820 = vpop.f32.mrb[0].mxu0
    %5821 = vmatprep.mubr.f32.mxu0 0.0
    %5822 = vmatmul.mubr.f32.gmra.mrb[0].mxu0 %v4614
    %v5823 = vpop.f32.mrb[0].mxu0
    %v5824 = vadd.f32 %v5433, %v5823
    %v5825 = vpop.f32.mrb[0].mxu0
    %5826 = vmatprep.mubr.f32.mxu0 0.0
    %5827 = vmatmul.mubr.f32.gmra.mrb[0].mxu0 %v4617
    %v5828 = vpop.f32.mrb[0].mxu0
    %v5829 = vadd.f32 %v5438, %v5828
    %v5830 = vpop.f32.mrb[0].mxu0
    %5831 = vmatprep.mubr.f32.mxu0 0.0
    %5832 = vmatmul.mubr.f32.gmra.mrb[0].mxu0 %v4620
    %v5833 = vpop.f32.mrb[0].mxu0
    %v5834 = vadd.f32 %v5443, %v5833
    %v5835 = vpop.f32.mrb[0].mxu0
    %5836 = vmatprep.mubr.f32.mxu0 0.0
    %5837 = vmatmul.mubr.f32.gmra.mrb[0].mxu0 %v4623
    %v5838 = vpop.f32.mrb[0].mxu0
    %v5839 = vadd.f32 %v5448, %v5838
    %v5840 = vpop.f32.mrb[0].mxu0
    %5841 = vmatprep.mubr.f32.mxu0 0.0
    %5842 = vmatmul.mubr.f32.gmra.mrb[0].mxu0 %v4626
    %v5843 = vpop.f32.mrb[0].mxu0
    %v5844 = vadd.f32 %v5453, %v5843
    %v5845 = vpop.f32.mrb[0].mxu0
    %5846 = vmatprep.mubr.f32.mxu0 0.0
    %5847 = vmatmul.mubr.f32.gmra.mrb[0].mxu0 %v4629
    %v5848 = vpop.f32.mrb[0].mxu0
    %v5849 = vadd.f32 %v5458, %v5848
    %v5850 = vpop.f32.mrb[0].mxu0
    %5851 = vmatprep.mubr.f32.mxu0 0.0
    %5852 = vmatmul.mubr.f32.gmra.mrb[0].mxu0 %v4632
    %v5853 = vpop.f32.mrb[0].mxu0
    %v5854 = vadd.f32 %v5463, %v5853
    %v5855 = vpop.f32.mrb[0].mxu0
    %5856 = vmatprep.mubr.f32.mxu0 0.0
    %5857 = vmatmul.mubr.f32.gmra.mrb[0].mxu0 %v4635
    %v5858 = vpop.f32.mrb[0].mxu0
    %v5859 = vadd.f32 %v5468, %v5858
    %v5860 = vpop.f32.mrb[0].mxu0
    %5861 = vmatprep.mubr.f32.mxu0 0.0
    %5862 = vmatmul.mubr.f32.gmra.mrb[0].mxu0 %v4638
    %v5863 = vpop.f32.mrb[0].mxu0
    %v5864 = vadd.f32 %v5473, %v5863
    %v5865 = vpop.f32.mrb[0].mxu0
    %5866 = vmatprep.mubr.f32.mxu0 0.0
    %5867 = vmatmul.mubr.f32.gmra.mrb[0].mxu0 %v4641
    %v5868 = vpop.f32.mrb[0].mxu0
    %v5869 = vadd.f32 %v5478, %v5868
    %v5870 = vpop.f32.mrb[0].mxu0
    %5871 = vmatprep.mubr.f32.mxu0 0.0
    %5872 = vmatmul.mubr.f32.gmra.mrb[0].mxu0 %v4644
    %v5873 = vpop.f32.mrb[0].mxu0
    %v5874 = vadd.f32 %v5483, %v5873
    %v5875 = vpop.f32.mrb[0].mxu0
    %5876 = vmatprep.mubr.f32.mxu0 0.0
    %5877 = vmatmul.mubr.f32.gmra.mrb[0].mxu0 %v4647
    %v5878 = vpop.f32.mrb[0].mxu0
    %v5879 = vadd.f32 %v5488, %v5878
    %v5880 = vpop.f32.mrb[0].mxu0
    %5881 = vmatprep.mubr.f32.mxu0 0.0
    %5882 = vmatmul.mubr.f32.gmra.mrb[0].mxu0 %v4650
    %v5883 = vpop.f32.mrb[0].mxu0
    %v5884 = vadd.f32 %v5493, %v5883
    %v5885 = vpop.f32.mrb[0].mxu0
    %5886 = vmatprep.mubr.f32.mxu0 0.0
    %5887 = vmatmul.mubr.f32.gmra.mrb[0].mxu0 %v4653
    %v5888 = vpop.f32.mrb[0].mxu0
    %v5889 = vadd.f32 %v5498, %v5888
    %v5890 = vpop.f32.mrb[0].mxu0
    %5891 = vmatprep.mubr.f32.mxu0 0.0
    %5892 = vmatmul.mubr.f32.gmra.mrb[0].mxu0 %v4656
    %v5893 = vpop.f32.mrb[0].mxu0
    %v5894 = vadd.f32 %v5503, %v5893
    %v5895 = vpop.f32.mrb[0].mxu0
    %5896 = vdwg.mxu0
    %5897 = vrot.lane.b32.xlu0 %v5046, 111
    %v5898 = vpop.permute.xlu0 %5897
    %v5900 = vadd.f32 %v5579, %v5898
    %v5901 = vadd.f32 %v5584, %v5898
    %v5902 = vadd.f32 %v5589, %v5898
    %v5903 = vadd.f32 %v5594, %v5898
    %v5904 = vadd.f32 %v5599, %v5898
    %v5905 = vadd.f32 %v5604, %v5898
    %v5906 = vadd.f32 %v5609, %v5898
    %v5907 = vadd.f32 %v5614, %v5898
    %v5908 = vadd.f32 %v5619, %v5898
    %v5909 = vadd.f32 %v5624, %v5898
    %v5910 = vadd.f32 %v5629, %v5898
    %v5911 = vadd.f32 %v5634, %v5898
    %v5912 = vadd.f32 %v5639, %v5898
    %v5913 = vadd.f32 %v5644, %v5898
    %v5914 = vadd.f32 %v5649, %v5898
    %v5915 = vadd.f32 %v5654, %v5898
    %v5916 = vadd.f32 %v5659, %v5898
    %v5917 = vadd.f32 %v5664, %v5898
    %v5918 = vadd.f32 %v5669, %v5898
    %v5919 = vadd.f32 %v5674, %v5898
    %v5920 = vadd.f32 %v5679, %v5898
    %v5921 = vadd.f32 %v5684, %v5898
    %v5922 = vadd.f32 %v5689, %v5898
    %v5923 = vadd.f32 %v5694, %v5898
    %v5924 = vadd.f32 %v5699, %v5898
    %v5925 = vadd.f32 %v5704, %v5898
    %v5926 = vadd.f32 %v5709, %v5898
    %v5927 = vadd.f32 %v5714, %v5898
    %v5928 = vadd.f32 %v5719, %v5898
    %v5929 = vadd.f32 %v5724, %v5898
    %v5930 = vadd.f32 %v5729, %v5898
    %v5931 = vadd.f32 %v5734, %v5898
    %v5932 = vadd.f32 %v5739, %v5898
    %v5933 = vadd.f32 %v5744, %v5898
    %v5934 = vadd.f32 %v5749, %v5898
    %v5935 = vadd.f32 %v5754, %v5898
    %v5936 = vadd.f32 %v5759, %v5898
    %v5937 = vadd.f32 %v5764, %v5898
    %v5938 = vadd.f32 %v5769, %v5898
    %v5939 = vadd.f32 %v5774, %v5898
    %v5940 = vadd.f32 %v5779, %v5898
    %v5941 = vadd.f32 %v5784, %v5898
    %v5942 = vadd.f32 %v5789, %v5898
    %v5943 = vadd.f32 %v5794, %v5898
    %v5944 = vadd.f32 %v5799, %v5898
    %v5945 = vadd.f32 %v5804, %v5898
    %v5946 = vadd.f32 %v5809, %v5898
    %v5947 = vadd.f32 %v5814, %v5898
    %v5948 = vadd.f32 %v5819, %v5898
    %v5949 = vadd.f32 %v5824, %v5898
    %v5950 = vadd.f32 %v5829, %v5898
    %v5951 = vadd.f32 %v5834, %v5898
    %v5952 = vadd.f32 %v5839, %v5898
    %v5953 = vadd.f32 %v5844, %v5898
    %v5954 = vadd.f32 %v5849, %v5898
    %v5955 = vadd.f32 %v5854, %v5898
    %v5956 = vadd.f32 %v5859, %v5898
    %v5957 = vadd.f32 %v5864, %v5898
    %v5958 = vadd.f32 %v5869, %v5898
    %v5959 = vadd.f32 %v5874, %v5898
    %v5960 = vadd.f32 %v5879, %v5898
    %v5961 = vadd.f32 %v5884, %v5898
    %v5962 = vadd.f32 %v5889, %v5898
    %v5963 = vadd.f32 %v5894, %v5898
    %5965 = vset.pattern.permute.xlu0 0
    %5966 = vperm.xlu0 %5965, %v5051
    %v5967 = vpop.permute.xlu0 %5966
    %5970 = vset.pattern.permute.xlu0 0
    %5971 = vperm.xlu0 %5970, %v5052
    %v5972 = vpop.permute.xlu0 %5971
    %5975 = vset.pattern.permute.xlu0 0
    %5976 = vperm.xlu0 %5975, %v5053
    %v5977 = vpop.permute.xlu0 %5976
    %5980 = vset.pattern.permute.xlu0 0
    %5981 = vperm.xlu0 %5980, %v5054
    %v5982 = vpop.permute.xlu0 %5981
    %5985 = vset.pattern.permute.xlu0 0
    %5986 = vperm.xlu0 %5985, %v5055
    %v5987 = vpop.permute.xlu0 %5986
    %5990 = vset.pattern.permute.xlu0 0
    %5991 = vperm.xlu0 %5990, %v5056
    %v5992 = vpop.permute.xlu0 %5991
    %5995 = vset.pattern.permute.xlu0 0
    %5996 = vperm.xlu0 %5995, %v5057
    %v5997 = vpop.permute.xlu0 %5996
    %6000 = vset.pattern.permute.xlu0 0
    %6001 = vperm.xlu0 %6000, %v5058
    %v6002 = vpop.permute.xlu0 %6001
    %6005 = vset.pattern.permute.xlu0 0
    %6006 = vperm.xlu0 %6005, %v5059
    %v6007 = vpop.permute.xlu0 %6006
    %6010 = vset.pattern.permute.xlu0 0
    %6011 = vperm.xlu0 %6010, %v5060
    %v6012 = vpop.permute.xlu0 %6011
    %6015 = vset.pattern.permute.xlu0 0
    %6016 = vperm.xlu0 %6015, %v5061
    %v6017 = vpop.permute.xlu0 %6016
    %6020 = vset.pattern.permute.xlu0 0
    %6021 = vperm.xlu0 %6020, %v5062
    %v6022 = vpop.permute.xlu0 %6021
    %6025 = vset.pattern.permute.xlu0 0
    %6026 = vperm.xlu0 %6025, %v5063
    %v6027 = vpop.permute.xlu0 %6026
    %6030 = vset.pattern.permute.xlu0 0
    %6031 = vperm.xlu0 %6030, %v5064
    %v6032 = vpop.permute.xlu0 %6031
    %6035 = vset.pattern.permute.xlu0 0
    %6036 = vperm.xlu0 %6035, %v5065
    %v6037 = vpop.permute.xlu0 %6036
    %6040 = vset.pattern.permute.xlu0 0
    %6041 = vperm.xlu0 %6040, %v5066
    %v6042 = vpop.permute.xlu0 %6041
    %6045 = vset.pattern.permute.xlu0 0
    %6046 = vperm.xlu0 %6045, %v5067
    %v6047 = vpop.permute.xlu0 %6046
    %6050 = vset.pattern.permute.xlu0 0
    %6051 = vperm.xlu0 %6050, %v5068
    %v6052 = vpop.permute.xlu0 %6051
    %6055 = vset.pattern.permute.xlu0 0
    %6056 = vperm.xlu0 %6055, %v5069
    %v6057 = vpop.permute.xlu0 %6056
    %6060 = vset.pattern.permute.xlu0 0
    %6061 = vperm.xlu0 %6060, %v5070
    %v6062 = vpop.permute.xlu0 %6061
    %6065 = vset.pattern.permute.xlu0 0
    %6066 = vperm.xlu0 %6065, %v5071
    %v6067 = vpop.permute.xlu0 %6066
    %6070 = vset.pattern.permute.xlu0 0
    %6071 = vperm.xlu0 %6070, %v5072
    %v6072 = vpop.permute.xlu0 %6071
    %6075 = vset.pattern.permute.xlu0 0
    %6076 = vperm.xlu0 %6075, %v5073
    %v6077 = vpop.permute.xlu0 %6076
    %6080 = vset.pattern.permute.xlu0 0
    %6081 = vperm.xlu0 %6080, %v5074
    %v6082 = vpop.permute.xlu0 %6081
    %6085 = vset.pattern.permute.xlu0 0
    %6086 = vperm.xlu0 %6085, %v5075
    %v6087 = vpop.permute.xlu0 %6086
    %6090 = vset.pattern.permute.xlu0 0
    %6091 = vperm.xlu0 %6090, %v5076
    %v6092 = vpop.permute.xlu0 %6091
    %6095 = vset.pattern.permute.xlu0 0
    %6096 = vperm.xlu0 %6095, %v5077
    %v6097 = vpop.permute.xlu0 %6096
    %6100 = vset.pattern.permute.xlu0 0
    %6101 = vperm.xlu0 %6100, %v5078
    %v6102 = vpop.permute.xlu0 %6101
    %6105 = vset.pattern.permute.xlu0 0
    %6106 = vperm.xlu0 %6105, %v5079
    %v6107 = vpop.permute.xlu0 %6106
    %6110 = vset.pattern.permute.xlu0 0
    %6111 = vperm.xlu0 %6110, %v5080
    %v6112 = vpop.permute.xlu0 %6111
    %6115 = vset.pattern.permute.xlu0 0
    %6116 = vperm.xlu0 %6115, %v5081
    %v6117 = vpop.permute.xlu0 %6116
    %6120 = vset.pattern.permute.xlu0 0
    %6121 = vperm.xlu0 %6120, %v5082
    %v6122 = vpop.permute.xlu0 %6121
    %6125 = vset.pattern.permute.xlu0 0
    %6126 = vperm.xlu0 %6125, %v5083
    %v6127 = vpop.permute.xlu0 %6126
    %6130 = vset.pattern.permute.xlu0 0
    %6131 = vperm.xlu0 %6130, %v5084
    %v6132 = vpop.permute.xlu0 %6131
    %6135 = vset.pattern.permute.xlu0 0
    %6136 = vperm.xlu0 %6135, %v5085
    %v6137 = vpop.permute.xlu0 %6136
    %6140 = vset.pattern.permute.xlu0 0
    %6141 = vperm.xlu0 %6140, %v5086
    %v6142 = vpop.permute.xlu0 %6141
    %6145 = vset.pattern.permute.xlu0 0
    %6146 = vperm.xlu0 %6145, %v5087
    %v6147 = vpop.permute.xlu0 %6146
    %6150 = vset.pattern.permute.xlu0 0
    %6151 = vperm.xlu0 %6150, %v5088
    %v6152 = vpop.permute.xlu0 %6151
    %6155 = vset.pattern.permute.xlu0 0
    %6156 = vperm.xlu0 %6155, %v5089
    %v6157 = vpop.permute.xlu0 %6156
    %6160 = vset.pattern.permute.xlu0 0
    %6161 = vperm.xlu0 %6160, %v5090
    %v6162 = vpop.permute.xlu0 %6161
    %6165 = vset.pattern.permute.xlu0 0
    %6166 = vperm.xlu0 %6165, %v5091
    %v6167 = vpop.permute.xlu0 %6166
    %6170 = vset.pattern.permute.xlu0 0
    %6171 = vperm.xlu0 %6170, %v5092
    %v6172 = vpop.permute.xlu0 %6171
    %6175 = vset.pattern.permute.xlu0 0
    %6176 = vperm.xlu0 %6175, %v5093
    %v6177 = vpop.permute.xlu0 %6176
    %6180 = vset.pattern.permute.xlu0 0
    %6181 = vperm.xlu0 %6180, %v5094
    %v6182 = vpop.permute.xlu0 %6181
    %6185 = vset.pattern.permute.xlu0 0
    %6186 = vperm.xlu0 %6185, %v5095
    %v6187 = vpop.permute.xlu0 %6186
    %6190 = vset.pattern.permute.xlu0 0
    %6191 = vperm.xlu0 %6190, %v5096
    %v6192 = vpop.permute.xlu0 %6191
    %6195 = vset.pattern.permute.xlu0 0
    %6196 = vperm.xlu0 %6195, %v5097
    %v6197 = vpop.permute.xlu0 %6196
    %6200 = vset.pattern.permute.xlu0 0
    %6201 = vperm.xlu0 %6200, %v5098
    %v6202 = vpop.permute.xlu0 %6201
    %6205 = vset.pattern.permute.xlu0 0
    %6206 = vperm.xlu0 %6205, %v5099
    %v6207 = vpop.permute.xlu0 %6206
    %6210 = vset.pattern.permute.xlu0 0
    %6211 = vperm.xlu0 %6210, %v5100
    %v6212 = vpop.permute.xlu0 %6211
    %6215 = vset.pattern.permute.xlu0 0
    %6216 = vperm.xlu0 %6215, %v5101
    %v6217 = vpop.permute.xlu0 %6216
    %6220 = vset.pattern.permute.xlu0 0
    %6221 = vperm.xlu0 %6220, %v5102
    %v6222 = vpop.permute.xlu0 %6221
    %6225 = vset.pattern.permute.xlu0 0
    %6226 = vperm.xlu0 %6225, %v5103
    %v6227 = vpop.permute.xlu0 %6226
    %6230 = vset.pattern.permute.xlu0 0
    %6231 = vperm.xlu0 %6230, %v5104
    %v6232 = vpop.permute.xlu0 %6231
    %6235 = vset.pattern.permute.xlu0 0
    %6236 = vperm.xlu0 %6235, %v5105
    %v6237 = vpop.permute.xlu0 %6236
    %6240 = vset.pattern.permute.xlu0 0
    %6241 = vperm.xlu0 %6240, %v5106
    %v6242 = vpop.permute.xlu0 %6241
    %6245 = vset.pattern.permute.xlu0 0
    %6246 = vperm.xlu0 %6245, %v5107
    %v6247 = vpop.permute.xlu0 %6246
    %6250 = vset.pattern.permute.xlu0 0
    %6251 = vperm.xlu0 %6250, %v5108
    %v6252 = vpop.permute.xlu0 %6251
    %6255 = vset.pattern.permute.xlu0 0
    %6256 = vperm.xlu0 %6255, %v5109
    %v6257 = vpop.permute.xlu0 %6256
    %6260 = vset.pattern.permute.xlu0 0
    %6261 = vperm.xlu0 %6260, %v5110
    %v6262 = vpop.permute.xlu0 %6261
    %6265 = vset.pattern.permute.xlu0 0
    %6266 = vperm.xlu0 %6265, %v5111
    %v6267 = vpop.permute.xlu0 %6266
    %6270 = vset.pattern.permute.xlu0 0
    %6271 = vperm.xlu0 %6270, %v5112
    %v6272 = vpop.permute.xlu0 %6271
    %6275 = vset.pattern.permute.xlu0 0
    %6276 = vperm.xlu0 %6275, %v5113
    %v6277 = vpop.permute.xlu0 %6276
    %6280 = vset.pattern.permute.xlu0 0
    %6281 = vperm.xlu0 %6280, %v5114
    %v6282 = vpop.permute.xlu0 %6281
    %v6284 = vadd.f32 %v5900, %v5967
    %v6285 = vadd.f32 %v5901, %v5972
    %v6286 = vadd.f32 %v5902, %v5977
    %v6287 = vadd.f32 %v5903, %v5982
    %v6288 = vadd.f32 %v5904, %v5987
    %v6289 = vadd.f32 %v5905, %v5992
    %v6290 = vadd.f32 %v5906, %v5997
    %v6291 = vadd.f32 %v5907, %v6002
    %v6292 = vadd.f32 %v5908, %v6007
    %v6293 = vadd.f32 %v5909, %v6012
    %v6294 = vadd.f32 %v5910, %v6017
    %v6295 = vadd.f32 %v5911, %v6022
    %v6296 = vadd.f32 %v5912, %v6027
    %v6297 = vadd.f32 %v5913, %v6032
    %v6298 = vadd.f32 %v5914, %v6037
    %v6299 = vadd.f32 %v5915, %v6042
    %v6300 = vadd.f32 %v5916, %v6047
    %v6301 = vadd.f32 %v5917, %v6052
    %v6302 = vadd.f32 %v5918, %v6057
    %v6303 = vadd.f32 %v5919, %v6062
    %v6304 = vadd.f32 %v5920, %v6067
    %v6305 = vadd.f32 %v5921, %v6072
    %v6306 = vadd.f32 %v5922, %v6077
    %v6307 = vadd.f32 %v5923, %v6082
    %v6308 = vadd.f32 %v5924, %v6087
    %v6309 = vadd.f32 %v5925, %v6092
    %v6310 = vadd.f32 %v5926, %v6097
    %v6311 = vadd.f32 %v5927, %v6102
    %v6312 = vadd.f32 %v5928, %v6107
    %v6313 = vadd.f32 %v5929, %v6112
    %v6314 = vadd.f32 %v5930, %v6117
    %v6315 = vadd.f32 %v5931, %v6122
    %v6316 = vadd.f32 %v5932, %v6127
    %v6317 = vadd.f32 %v5933, %v6132
    %v6318 = vadd.f32 %v5934, %v6137
    %v6319 = vadd.f32 %v5935, %v6142
    %v6320 = vadd.f32 %v5936, %v6147
    %v6321 = vadd.f32 %v5937, %v6152
    %v6322 = vadd.f32 %v5938, %v6157
    %v6323 = vadd.f32 %v5939, %v6162
    %v6324 = vadd.f32 %v5940, %v6167
    %v6325 = vadd.f32 %v5941, %v6172
    %v6326 = vadd.f32 %v5942, %v6177
    %v6327 = vadd.f32 %v5943, %v6182
    %v6328 = vadd.f32 %v5944, %v6187
    %v6329 = vadd.f32 %v5945, %v6192
    %v6330 = vadd.f32 %v5946, %v6197
    %v6331 = vadd.f32 %v5947, %v6202
    %v6332 = vadd.f32 %v5948, %v6207
    %v6333 = vadd.f32 %v5949, %v6212
    %v6334 = vadd.f32 %v5950, %v6217
    %v6335 = vadd.f32 %v5951, %v6222
    %v6336 = vadd.f32 %v5952, %v6227
    %v6337 = vadd.f32 %v5953, %v6232
    %v6338 = vadd.f32 %v5954, %v6237
    %v6339 = vadd.f32 %v5955, %v6242
    %v6340 = vadd.f32 %v5956, %v6247
    %v6341 = vadd.f32 %v5957, %v6252
    %v6342 = vadd.f32 %v5958, %v6257
    %v6343 = vadd.f32 %v5959, %v6262
    %v6344 = vadd.f32 %v5960, %v6267
    %v6345 = vadd.f32 %v5961, %v6272
    %v6346 = vadd.f32 %v5962, %v6277
    %v6347 = vadd.f32 %v5963, %v6282
    %6348 = vmatprep.subr.mxu0 0.0
    %6349 = vmatpush1.msra.mxu0 %v6284
    %6350 = vmatprep.subr.mxu0 0.0
    %6351 = vmatpush1.msra.mxu0 %v6285
    %6352 = vmatprep.subr.mxu0 0.0
    %6353 = vmatpush1.msra.mxu0 %v6286
    %6354 = vmatprep.subr.mxu0 0.0
    %6355 = vmatpush1.msra.mxu0 %v6287
    %6356 = vmatprep.subr.mxu0 0.0
    %6357 = vmatpush1.msra.mxu0 %v6288
    %6358 = vmatprep.subr.mxu0 0.0
    %6359 = vmatpush1.msra.mxu0 %v6289
    %6360 = vmatprep.subr.mxu0 0.0
    %6361 = vmatpush1.msra.mxu0 %v6290
    %6362 = vmatprep.subr.mxu0 0.0
    %6363 = vmatpush1.msra.mxu0 %v6291
    %6364 = vmatprep.subr.mxu0 0.0
    %6365 = vmatpush1.msra.mxu0 0.0
    %6366 = vmatprep.subr.mxu0 0.0
    %6367 = vmatpush1.msra.mxu0 0.0
    %6368 = vmatprep.subr.mxu0 0.0
    %6369 = vmatpush1.msra.mxu0 0.0
    %6370 = vmatprep.subr.mxu0 0.0
    %6371 = vmatpush1.msra.mxu0 0.0
    %6372 = vmatprep.subr.mxu0 0.0
    %6373 = vmatpush1.msra.mxu0 0.0
    %6374 = vmatprep.subr.mxu0 0.0
    %6375 = vmatpush1.msra.mxu0 0.0
    %6376 = vmatprep.subr.mxu0 0.0
    %6377 = vmatpush1.msra.mxu0 0.0
    %6378 = vmatprep.subr.mxu0 0.0
    %6379 = vmatpush1.msra.mxu0 0.0
    %6380 = vmatprep.subr.mxu0 0.0
    %6381 = vmatpush1.msra.mxu0 0.0
    %6382 = vmatprep.subr.mxu0 0.0
    %6383 = vmatpush1.msra.mxu0 0.0
    %6384 = vmatprep.subr.mxu0 0.0
    %6385 = vmatpush1.msra.mxu0 0.0
    %6386 = vmatprep.subr.mxu0 0.0
    %6387 = vmatpush1.msra.mxu0 0.0
    %6388 = vmatprep.subr.mxu0 0.0
    %6389 = vmatpush1.msra.mxu0 0.0
    %6390 = vmatprep.subr.mxu0 0.0
    %6391 = vmatpush1.msra.mxu0 0.0
    %6392 = vmatprep.subr.mxu0 0.0
    %6393 = vmatpush1.msra.mxu0 0.0
    %6394 = vmatprep.subr.mxu0 0.0
    %6395 = vmatpush1.msra.mxu0 0.0
    %6396 = vmatprep.subr.mxu0 0.0
    %6397 = vmatpush1.msra.mxu0 0.0
    %6398 = vmatprep.subr.mxu0 0.0
    %6399 = vmatpush1.msra.mxu0 0.0
    %6400 = vmatprep.subr.mxu0 0.0
    %6401 = vmatpush1.msra.mxu0 0.0
    %6402 = vmatprep.subr.mxu0 0.0
    %6403 = vmatpush1.msra.mxu0 0.0
    %6404 = vmatprep.subr.mxu0 0.0
    %6405 = vmatpush1.msra.mxu0 0.0
    %6406 = vmatprep.subr.mxu0 0.0
    %6407 = vmatpush1.msra.mxu0 0.0
    %6408 = vmatprep.subr.mxu0 0.0
    %6409 = vmatpush1.msra.mxu0 0.0
    %6410 = vmatprep.subr.mxu0 0.0
    %6411 = vmatpush1.msra.mxu0 0.0
    %6412 = vmatprep.mubr.f32.mxu0 0.0
    %6413 = vmatmul.mubr.f32.gmra.mrb[0].mxu0 %v940
    %v6414 = vpop.f32.mrb[0].mxu0
    %v6415 = vadd.f32 0.0, %v6414
    %v6416 = vpop.f32.mrb[0].mxu0
    %6417 = vmatprep.mubr.f32.mxu0 0.0
    %6418 = vmatmul.mubr.f32.gmra.mrb[0].mxu0 %v943
    %v6419 = vpop.f32.mrb[0].mxu0
    %v6420 = vadd.f32 0.0, %v6419
    %v6421 = vpop.f32.mrb[0].mxu0
    %6422 = vmatprep.mubr.f32.mxu0 0.0
    %6423 = vmatmul.mubr.f32.gmra.mrb[0].mxu0 %v946
    %v6424 = vpop.f32.mrb[0].mxu0
    %v6425 = vadd.f32 0.0, %v6424
    %v6426 = vpop.f32.mrb[0].mxu0
    %6427 = vmatprep.mubr.f32.mxu0 0.0
    %6428 = vmatmul.mubr.f32.gmra.mrb[0].mxu0 %v949
    %v6429 = vpop.f32.mrb[0].mxu0
    %v6430 = vadd.f32 0.0, %v6429
    %v6431 = vpop.f32.mrb[0].mxu0
    %6432 = vmatprep.mubr.f32.mxu0 0.0
    %6433 = vmatmul.mubr.f32.gmra.mrb[0].mxu0 %v952
    %v6434 = vpop.f32.mrb[0].mxu0
    %v6435 = vadd.f32 0.0, %v6434
    %v6436 = vpop.f32.mrb[0].mxu0
    %6437 = vmatprep.mubr.f32.mxu0 0.0
    %6438 = vmatmul.mubr.f32.gmra.mrb[0].mxu0 %v955
    %v6439 = vpop.f32.mrb[0].mxu0
    %v6440 = vadd.f32 0.0, %v6439
    %v6441 = vpop.f32.mrb[0].mxu0
    %6442 = vmatprep.mubr.f32.mxu0 0.0
    %6443 = vmatmul.mubr.f32.gmra.mrb[0].mxu0 %v958
    %v6444 = vpop.f32.mrb[0].mxu0
    %v6445 = vadd.f32 0.0, %v6444
    %v6446 = vpop.f32.mrb[0].mxu0
    %6447 = vmatprep.mubr.f32.mxu0 0.0
    %6448 = vmatmul.mubr.f32.gmra.mrb[0].mxu0 %v961
    %v6449 = vpop.f32.mrb[0].mxu0
    %v6450 = vadd.f32 0.0, %v6449
    %v6451 = vpop.f32.mrb[0].mxu0
    %6452 = vdwg.mxu0
    %6453 = vmatprep.subr.mxu0 0.0
    %6454 = vmatpush1.msra.mxu0 %v6292
    %6455 = vmatprep.subr.mxu0 0.0
    %6456 = vmatpush1.msra.mxu0 %v6293
    %6457 = vmatprep.subr.mxu0 0.0
    %6458 = vmatpush1.msra.mxu0 %v6294
    %6459 = vmatprep.subr.mxu0 0.0
    %6460 = vmatpush1.msra.mxu0 %v6295
    %6461 = vmatprep.subr.mxu0 0.0
    %6462 = vmatpush1.msra.mxu0 %v6296
    %6463 = vmatprep.subr.mxu0 0.0
    %6464 = vmatpush1.msra.mxu0 %v6297
    %6465 = vmatprep.subr.mxu0 0.0
    %6466 = vmatpush1.msra.mxu0 %v6298
    %6467 = vmatprep.subr.mxu0 0.0
    %6468 = vmatpush1.msra.mxu0 %v6299
    %6469 = vmatprep.subr.mxu0 0.0
    %6470 = vmatpush1.msra.mxu0 0.0
    %6471 = vmatprep.subr.mxu0 0.0
    %6472 = vmatpush1.msra.mxu0 0.0
    %6473 = vmatprep.subr.mxu0 0.0
    %6474 = vmatpush1.msra.mxu0 0.0
    %6475 = vmatprep.subr.mxu0 0.0
    %6476 = vmatpush1.msra.mxu0 0.0
    %6477 = vmatprep.subr.mxu0 0.0
    %6478 = vmatpush1.msra.mxu0 0.0
    %6479 = vmatprep.subr.mxu0 0.0
    %6480 = vmatpush1.msra.mxu0 0.0
    %6481 = vmatprep.subr.mxu0 0.0
    %6482 = vmatpush1.msra.mxu0 0.0
    %6483 = vmatprep.subr.mxu0 0.0
    %6484 = vmatpush1.msra.mxu0 0.0
    %6485 = vmatprep.subr.mxu0 0.0
    %6486 = vmatpush1.msra.mxu0 0.0
    %6487 = vmatprep.subr.mxu0 0.0
    %6488 = vmatpush1.msra.mxu0 0.0
    %6489 = vmatprep.subr.mxu0 0.0
    %6490 = vmatpush1.msra.mxu0 0.0
    %6491 = vmatprep.subr.mxu0 0.0
    %6492 = vmatpush1.msra.mxu0 0.0
    %6493 = vmatprep.subr.mxu0 0.0
    %6494 = vmatpush1.msra.mxu0 0.0
    %6495 = vmatprep.subr.mxu0 0.0
    %6496 = vmatpush1.msra.mxu0 0.0
    %6497 = vmatprep.subr.mxu0 0.0
    %6498 = vmatpush1.msra.mxu0 0.0
    %6499 = vmatprep.subr.mxu0 0.0
    %6500 = vmatpush1.msra.mxu0 0.0
    %6501 = vmatprep.subr.mxu0 0.0
    %6502 = vmatpush1.msra.mxu0 0.0
    %6503 = vmatprep.subr.mxu0 0.0
    %6504 = vmatpush1.msra.mxu0 0.0
    %6505 = vmatprep.subr.mxu0 0.0
    %6506 = vmatpush1.msra.mxu0 0.0
    %6507 = vmatprep.subr.mxu0 0.0
    %6508 = vmatpush1.msra.mxu0 0.0
    %6509 = vmatprep.subr.mxu0 0.0
    %6510 = vmatpush1.msra.mxu0 0.0
    %6511 = vmatprep.subr.mxu0 0.0
    %6512 = vmatpush1.msra.mxu0 0.0
    %6513 = vmatprep.subr.mxu0 0.0
    %6514 = vmatpush1.msra.mxu0 0.0
    %6515 = vmatprep.subr.mxu0 0.0
    %6516 = vmatpush1.msra.mxu0 0.0
    %6517 = vmatprep.mubr.f32.mxu0 0.0
    %6518 = vmatmul.mubr.f32.gmra.mrb[0].mxu0 %v940
    %v6519 = vpop.f32.mrb[0].mxu0
    %v6520 = vadd.f32 0.0, %v6519
    %v6521 = vpop.f32.mrb[0].mxu0
    %6522 = vmatprep.mubr.f32.mxu0 0.0
    %6523 = vmatmul.mubr.f32.gmra.mrb[0].mxu0 %v943
    %v6524 = vpop.f32.mrb[0].mxu0
    %v6525 = vadd.f32 0.0, %v6524
    %v6526 = vpop.f32.mrb[0].mxu0
    %6527 = vmatprep.mubr.f32.mxu0 0.0
    %6528 = vmatmul.mubr.f32.gmra.mrb[0].mxu0 %v946
    %v6529 = vpop.f32.mrb[0].mxu0
    %v6530 = vadd.f32 0.0, %v6529
    %v6531 = vpop.f32.mrb[0].mxu0
    %6532 = vmatprep.mubr.f32.mxu0 0.0
    %6533 = vmatmul.mubr.f32.gmra.mrb[0].mxu0 %v949
    %v6534 = vpop.f32.mrb[0].mxu0
    %v6535 = vadd.f32 0.0, %v6534
    %v6536 = vpop.f32.mrb[0].mxu0
    %6537 = vmatprep.mubr.f32.mxu0 0.0
    %6538 = vmatmul.mubr.f32.gmra.mrb[0].mxu0 %v952
    %v6539 = vpop.f32.mrb[0].mxu0
    %v6540 = vadd.f32 0.0, %v6539
    %v6541 = vpop.f32.mrb[0].mxu0
    %6542 = vmatprep.mubr.f32.mxu0 0.0
    %6543 = vmatmul.mubr.f32.gmra.mrb[0].mxu0 %v955
    %v6544 = vpop.f32.mrb[0].mxu0
    %v6545 = vadd.f32 0.0, %v6544
    %v6546 = vpop.f32.mrb[0].mxu0
    %6547 = vmatprep.mubr.f32.mxu0 0.0
    %6548 = vmatmul.mubr.f32.gmra.mrb[0].mxu0 %v958
    %v6549 = vpop.f32.mrb[0].mxu0
    %v6550 = vadd.f32 0.0, %v6549
    %v6551 = vpop.f32.mrb[0].mxu0
    %6552 = vmatprep.mubr.f32.mxu0 0.0
    %6553 = vmatmul.mubr.f32.gmra.mrb[0].mxu0 %v961
    %v6554 = vpop.f32.mrb[0].mxu0
    %v6555 = vadd.f32 0.0, %v6554
    %v6556 = vpop.f32.mrb[0].mxu0
    %6557 = vdwg.mxu0
    %6558 = vmatprep.subr.mxu0 0.0
    %6559 = vmatpush1.msra.mxu0 %v6300
    %6560 = vmatprep.subr.mxu0 0.0
    %6561 = vmatpush1.msra.mxu0 %v6301
    %6562 = vmatprep.subr.mxu0 0.0
    %6563 = vmatpush1.msra.mxu0 %v6302
    %6564 = vmatprep.subr.mxu0 0.0
    %6565 = vmatpush1.msra.mxu0 %v6303
    %6566 = vmatprep.subr.mxu0 0.0
    %6567 = vmatpush1.msra.mxu0 %v6304
    %6568 = vmatprep.subr.mxu0 0.0
    %6569 = vmatpush1.msra.mxu0 %v6305
    %6570 = vmatprep.subr.mxu0 0.0
    %6571 = vmatpush1.msra.mxu0 %v6306
    %6572 = vmatprep.subr.mxu0 0.0
    %6573 = vmatpush1.msra.mxu0 %v6307
    %6574 = vmatprep.subr.mxu0 0.0
    %6575 = vmatpush1.msra.mxu0 0.0
    %6576 = vmatprep.subr.mxu0 0.0
    %6577 = vmatpush1.msra.mxu0 0.0
    %6578 = vmatprep.subr.mxu0 0.0
    %6579 = vmatpush1.msra.mxu0 0.0
    %6580 = vmatprep.subr.mxu0 0.0
    %6581 = vmatpush1.msra.mxu0 0.0
    %6582 = vmatprep.subr.mxu0 0.0
    %6583 = vmatpush1.msra.mxu0 0.0
    %6584 = vmatprep.subr.mxu0 0.0
    %6585 = vmatpush1.msra.mxu0 0.0
    %6586 = vmatprep.subr.mxu0 0.0
    %6587 = vmatpush1.msra.mxu0 0.0
    %6588 = vmatprep.subr.mxu0 0.0
    %6589 = vmatpush1.msra.mxu0 0.0
    %6590 = vmatprep.subr.mxu0 0.0
    %6591 = vmatpush1.msra.mxu0 0.0
    %6592 = vmatprep.subr.mxu0 0.0
    %6593 = vmatpush1.msra.mxu0 0.0
    %6594 = vmatprep.subr.mxu0 0.0
    %6595 = vmatpush1.msra.mxu0 0.0
    %6596 = vmatprep.subr.mxu0 0.0
    %6597 = vmatpush1.msra.mxu0 0.0
    %6598 = vmatprep.subr.mxu0 0.0
    %6599 = vmatpush1.msra.mxu0 0.0
    %6600 = vmatprep.subr.mxu0 0.0
    %6601 = vmatpush1.msra.mxu0 0.0
    %6602 = vmatprep.subr.mxu0 0.0
    %6603 = vmatpush1.msra.mxu0 0.0
    %6604 = vmatprep.subr.mxu0 0.0
    %6605 = vmatpush1.msra.mxu0 0.0
    %6606 = vmatprep.subr.mxu0 0.0
    %6607 = vmatpush1.msra.mxu0 0.0
    %6608 = vmatprep.subr.mxu0 0.0
    %6609 = vmatpush1.msra.mxu0 0.0
    %6610 = vmatprep.subr.mxu0 0.0
    %6611 = vmatpush1.msra.mxu0 0.0
    %6612 = vmatprep.subr.mxu0 0.0
    %6613 = vmatpush1.msra.mxu0 0.0
    %6614 = vmatprep.subr.mxu0 0.0
    %6615 = vmatpush1.msra.mxu0 0.0
    %6616 = vmatprep.subr.mxu0 0.0
    %6617 = vmatpush1.msra.mxu0 0.0
    %6618 = vmatprep.subr.mxu0 0.0
    %6619 = vmatpush1.msra.mxu0 0.0
    %6620 = vmatprep.subr.mxu0 0.0
    %6621 = vmatpush1.msra.mxu0 0.0
    %6622 = vmatprep.mubr.f32.mxu0 0.0
    %6623 = vmatmul.mubr.f32.gmra.mrb[0].mxu0 %v940
    %v6624 = vpop.f32.mrb[0].mxu0
    %v6625 = vadd.f32 0.0, %v6624
    %v6626 = vpop.f32.mrb[0].mxu0
    %6627 = vmatprep.mubr.f32.mxu0 0.0
    %6628 = vmatmul.mubr.f32.gmra.mrb[0].mxu0 %v943
    %v6629 = vpop.f32.mrb[0].mxu0
    %v6630 = vadd.f32 0.0, %v6629
    %v6631 = vpop.f32.mrb[0].mxu0
    %6632 = vmatprep.mubr.f32.mxu0 0.0
    %6633 = vmatmul.mubr.f32.gmra.mrb[0].mxu0 %v946
    %v6634 = vpop.f32.mrb[0].mxu0
    %v6635 = vadd.f32 0.0, %v6634
    %v6636 = vpop.f32.mrb[0].mxu0
    %6637 = vmatprep.mubr.f32.mxu0 0.0
    %6638 = vmatmul.mubr.f32.gmra.mrb[0].mxu0 %v949
    %v6639 = vpop.f32.mrb[0].mxu0
    %v6640 = vadd.f32 0.0, %v6639
    %v6641 = vpop.f32.mrb[0].mxu0
    %6642 = vmatprep.mubr.f32.mxu0 0.0
    %6643 = vmatmul.mubr.f32.gmra.mrb[0].mxu0 %v952
    %v6644 = vpop.f32.mrb[0].mxu0
    %v6645 = vadd.f32 0.0, %v6644
    %v6646 = vpop.f32.mrb[0].mxu0
    %6647 = vmatprep.mubr.f32.mxu0 0.0
    %6648 = vmatmul.mubr.f32.gmra.mrb[0].mxu0 %v955
    %v6649 = vpop.f32.mrb[0].mxu0
    %v6650 = vadd.f32 0.0, %v6649
    %v6651 = vpop.f32.mrb[0].mxu0
    %6652 = vmatprep.mubr.f32.mxu0 0.0
    %6653 = vmatmul.mubr.f32.gmra.mrb[0].mxu0 %v958
    %v6654 = vpop.f32.mrb[0].mxu0
    %v6655 = vadd.f32 0.0, %v6654
    %v6656 = vpop.f32.mrb[0].mxu0
    %6657 = vmatprep.mubr.f32.mxu0 0.0
    %6658 = vmatmul.mubr.f32.gmra.mrb[0].mxu0 %v961
    %v6659 = vpop.f32.mrb[0].mxu0
    %v6660 = vadd.f32 0.0, %v6659
    %v6661 = vpop.f32.mrb[0].mxu0
    %6662 = vdwg.mxu0
    %6663 = vmatprep.subr.mxu0 0.0
    %6664 = vmatpush1.msra.mxu0 %v6308
    %6665 = vmatprep.subr.mxu0 0.0
    %6666 = vmatpush1.msra.mxu0 %v6309
    %6667 = vmatprep.subr.mxu0 0.0
    %6668 = vmatpush1.msra.mxu0 %v6310
    %6669 = vmatprep.subr.mxu0 0.0
    %6670 = vmatpush1.msra.mxu0 %v6311
    %6671 = vmatprep.subr.mxu0 0.0
    %6672 = vmatpush1.msra.mxu0 %v6312
    %6673 = vmatprep.subr.mxu0 0.0
    %6674 = vmatpush1.msra.mxu0 %v6313
    %6675 = vmatprep.subr.mxu0 0.0
    %6676 = vmatpush1.msra.mxu0 %v6314
    %6677 = vmatprep.subr.mxu0 0.0
    %6678 = vmatpush1.msra.mxu0 %v6315
    %6679 = vmatprep.subr.mxu0 0.0
    %6680 = vmatpush1.msra.mxu0 0.0
    %6681 = vmatprep.subr.mxu0 0.0
    %6682 = vmatpush1.msra.mxu0 0.0
    %6683 = vmatprep.subr.mxu0 0.0
    %6684 = vmatpush1.msra.mxu0 0.0
    %6685 = vmatprep.subr.mxu0 0.0
    %6686 = vmatpush1.msra.mxu0 0.0
    %6687 = vmatprep.subr.mxu0 0.0
    %6688 = vmatpush1.msra.mxu0 0.0
    %6689 = vmatprep.subr.mxu0 0.0
    %6690 = vmatpush1.msra.mxu0 0.0
    %6691 = vmatprep.subr.mxu0 0.0
    %6692 = vmatpush1.msra.mxu0 0.0
    %6693 = vmatprep.subr.mxu0 0.0
    %6694 = vmatpush1.msra.mxu0 0.0
    %6695 = vmatprep.subr.mxu0 0.0
    %6696 = vmatpush1.msra.mxu0 0.0
    %6697 = vmatprep.subr.mxu0 0.0
    %6698 = vmatpush1.msra.mxu0 0.0
    %6699 = vmatprep.subr.mxu0 0.0
    %6700 = vmatpush1.msra.mxu0 0.0
    %6701 = vmatprep.subr.mxu0 0.0
    %6702 = vmatpush1.msra.mxu0 0.0
    %6703 = vmatprep.subr.mxu0 0.0
    %6704 = vmatpush1.msra.mxu0 0.0
    %6705 = vmatprep.subr.mxu0 0.0
    %6706 = vmatpush1.msra.mxu0 0.0
    %6707 = vmatprep.subr.mxu0 0.0
    %6708 = vmatpush1.msra.mxu0 0.0
    %6709 = vmatprep.subr.mxu0 0.0
    %6710 = vmatpush1.msra.mxu0 0.0
    %6711 = vmatprep.subr.mxu0 0.0
    %6712 = vmatpush1.msra.mxu0 0.0
    %6713 = vmatprep.subr.mxu0 0.0
    %6714 = vmatpush1.msra.mxu0 0.0
    %6715 = vmatprep.subr.mxu0 0.0
    %6716 = vmatpush1.msra.mxu0 0.0
    %6717 = vmatprep.subr.mxu0 0.0
    %6718 = vmatpush1.msra.mxu0 0.0
    %6719 = vmatprep.subr.mxu0 0.0
    %6720 = vmatpush1.msra.mxu0 0.0
    %6721 = vmatprep.subr.mxu0 0.0
    %6722 = vmatpush1.msra.mxu0 0.0
    %6723 = vmatprep.subr.mxu0 0.0
    %6724 = vmatpush1.msra.mxu0 0.0
    %6725 = vmatprep.subr.mxu0 0.0
    %6726 = vmatpush1.msra.mxu0 0.0
    %6727 = vmatprep.mubr.f32.mxu0 0.0
    %6728 = vmatmul.mubr.f32.gmra.mrb[0].mxu0 %v940
    %v6729 = vpop.f32.mrb[0].mxu0
    %v6730 = vadd.f32 0.0, %v6729
    %v6731 = vpop.f32.mrb[0].mxu0
    %6732 = vmatprep.mubr.f32.mxu0 0.0
    %6733 = vmatmul.mubr.f32.gmra.mrb[0].mxu0 %v943
    %v6734 = vpop.f32.mrb[0].mxu0
    %v6735 = vadd.f32 0.0, %v6734
    %v6736 = vpop.f32.mrb[0].mxu0
    %6737 = vmatprep.mubr.f32.mxu0 0.0
    %6738 = vmatmul.mubr.f32.gmra.mrb[0].mxu0 %v946
    %v6739 = vpop.f32.mrb[0].mxu0
    %v6740 = vadd.f32 0.0, %v6739
    %v6741 = vpop.f32.mrb[0].mxu0
    %6742 = vmatprep.mubr.f32.mxu0 0.0
    %6743 = vmatmul.mubr.f32.gmra.mrb[0].mxu0 %v949
    %v6744 = vpop.f32.mrb[0].mxu0
    %v6745 = vadd.f32 0.0, %v6744
    %v6746 = vpop.f32.mrb[0].mxu0
    %6747 = vmatprep.mubr.f32.mxu0 0.0
    %6748 = vmatmul.mubr.f32.gmra.mrb[0].mxu0 %v952
    %v6749 = vpop.f32.mrb[0].mxu0
    %v6750 = vadd.f32 0.0, %v6749
    %v6751 = vpop.f32.mrb[0].mxu0
    %6752 = vmatprep.mubr.f32.mxu0 0.0
    %6753 = vmatmul.mubr.f32.gmra.mrb[0].mxu0 %v955
    %v6754 = vpop.f32.mrb[0].mxu0
    %v6755 = vadd.f32 0.0, %v6754
    %v6756 = vpop.f32.mrb[0].mxu0
    %6757 = vmatprep.mubr.f32.mxu0 0.0
    %6758 = vmatmul.mubr.f32.gmra.mrb[0].mxu0 %v958
    %v6759 = vpop.f32.mrb[0].mxu0
    %v6760 = vadd.f32 0.0, %v6759
    %v6761 = vpop.f32.mrb[0].mxu0
    %6762 = vmatprep.mubr.f32.mxu0 0.0
    %6763 = vmatmul.mubr.f32.gmra.mrb[0].mxu0 %v961
    %v6764 = vpop.f32.mrb[0].mxu0
    %v6765 = vadd.f32 0.0, %v6764
    %v6766 = vpop.f32.mrb[0].mxu0
    %6767 = vdwg.mxu0
    %6768 = vmatprep.subr.mxu0 0.0
    %6769 = vmatpush1.msra.mxu0 %v6316
    %6770 = vmatprep.subr.mxu0 0.0
    %6771 = vmatpush1.msra.mxu0 %v6317
    %6772 = vmatprep.subr.mxu0 0.0
    %6773 = vmatpush1.msra.mxu0 %v6318
    %6774 = vmatprep.subr.mxu0 0.0
    %6775 = vmatpush1.msra.mxu0 %v6319
    %6776 = vmatprep.subr.mxu0 0.0
    %6777 = vmatpush1.msra.mxu0 %v6320
    %6778 = vmatprep.subr.mxu0 0.0
    %6779 = vmatpush1.msra.mxu0 %v6321
    %6780 = vmatprep.subr.mxu0 0.0
    %6781 = vmatpush1.msra.mxu0 %v6322
    %6782 = vmatprep.subr.mxu0 0.0
    %6783 = vmatpush1.msra.mxu0 %v6323
    %6784 = vmatprep.subr.mxu0 0.0
    %6785 = vmatpush1.msra.mxu0 0.0
    %6786 = vmatprep.subr.mxu0 0.0
    %6787 = vmatpush1.msra.mxu0 0.0
    %6788 = vmatprep.subr.mxu0 0.0
    %6789 = vmatpush1.msra.mxu0 0.0
    %6790 = vmatprep.subr.mxu0 0.0
    %6791 = vmatpush1.msra.mxu0 0.0
    %6792 = vmatprep.subr.mxu0 0.0
    %6793 = vmatpush1.msra.mxu0 0.0
    %6794 = vmatprep.subr.mxu0 0.0
    %6795 = vmatpush1.msra.mxu0 0.0
    %6796 = vmatprep.subr.mxu0 0.0
    %6797 = vmatpush1.msra.mxu0 0.0
    %6798 = vmatprep.subr.mxu0 0.0
    %6799 = vmatpush1.msra.mxu0 0.0
    %6800 = vmatprep.subr.mxu0 0.0
    %6801 = vmatpush1.msra.mxu0 0.0
    %6802 = vmatprep.subr.mxu0 0.0
    %6803 = vmatpush1.msra.mxu0 0.0
    %6804 = vmatprep.subr.mxu0 0.0
    %6805 = vmatpush1.msra.mxu0 0.0
    %6806 = vmatprep.subr.mxu0 0.0
    %6807 = vmatpush1.msra.mxu0 0.0
    %6808 = vmatprep.subr.mxu0 0.0
    %6809 = vmatpush1.msra.mxu0 0.0
    %6810 = vmatprep.subr.mxu0 0.0
    %6811 = vmatpush1.msra.mxu0 0.0
    %6812 = vmatprep.subr.mxu0 0.0
    %6813 = vmatpush1.msra.mxu0 0.0
    %6814 = vmatprep.subr.mxu0 0.0
    %6815 = vmatpush1.msra.mxu0 0.0
    %6816 = vmatprep.subr.mxu0 0.0
    %6817 = vmatpush1.msra.mxu0 0.0
    %6818 = vmatprep.subr.mxu0 0.0
    %6819 = vmatpush1.msra.mxu0 0.0
    %6820 = vmatprep.subr.mxu0 0.0
    %6821 = vmatpush1.msra.mxu0 0.0
    %6822 = vmatprep.subr.mxu0 0.0
    %6823 = vmatpush1.msra.mxu0 0.0
    %6824 = vmatprep.subr.mxu0 0.0
    %6825 = vmatpush1.msra.mxu0 0.0
    %6826 = vmatprep.subr.mxu0 0.0
    %6827 = vmatpush1.msra.mxu0 0.0
    %6828 = vmatprep.subr.mxu0 0.0
    %6829 = vmatpush1.msra.mxu0 0.0
    %6830 = vmatprep.subr.mxu0 0.0
    %6831 = vmatpush1.msra.mxu0 0.0
    %6832 = vmatprep.mubr.f32.mxu0 0.0
    %6833 = vmatmul.mubr.f32.gmra.mrb[0].mxu0 %v940
    %v6834 = vpop.f32.mrb[0].mxu0
    %v6835 = vadd.f32 0.0, %v6834
    %v6836 = vpop.f32.mrb[0].mxu0
    %6837 = vmatprep.mubr.f32.mxu0 0.0
    %6838 = vmatmul.mubr.f32.gmra.mrb[0].mxu0 %v943
    %v6839 = vpop.f32.mrb[0].mxu0
    %v6840 = vadd.f32 0.0, %v6839
    %v6841 = vpop.f32.mrb[0].mxu0
    %6842 = vmatprep.mubr.f32.mxu0 0.0
    %6843 = vmatmul.mubr.f32.gmra.mrb[0].mxu0 %v946
    %v6844 = vpop.f32.mrb[0].mxu0
    %v6845 = vadd.f32 0.0, %v6844
    %v6846 = vpop.f32.mrb[0].mxu0
    %6847 = vmatprep.mubr.f32.mxu0 0.0
    %6848 = vmatmul.mubr.f32.gmra.mrb[0].mxu0 %v949
    %v6849 = vpop.f32.mrb[0].mxu0
    %v6850 = vadd.f32 0.0, %v6849
    %v6851 = vpop.f32.mrb[0].mxu0
    %6852 = vmatprep.mubr.f32.mxu0 0.0
    %6853 = vmatmul.mubr.f32.gmra.mrb[0].mxu0 %v952
    %v6854 = vpop.f32.mrb[0].mxu0
    %v6855 = vadd.f32 0.0, %v6854
    %v6856 = vpop.f32.mrb[0].mxu0
    %6857 = vmatprep.mubr.f32.mxu0 0.0
    %6858 = vmatmul.mubr.f32.gmra.mrb[0].mxu0 %v955
    %v6859 = vpop.f32.mrb[0].mxu0
    %v6860 = vadd.f32 0.0, %v6859
    %v6861 = vpop.f32.mrb[0].mxu0
    %6862 = vmatprep.mubr.f32.mxu0 0.0
    %6863 = vmatmul.mubr.f32.gmra.mrb[0].mxu0 %v958
    %v6864 = vpop.f32.mrb[0].mxu0
    %v6865 = vadd.f32 0.0, %v6864
    %v6866 = vpop.f32.mrb[0].mxu0
    %6867 = vmatprep.mubr.f32.mxu0 0.0
    %6868 = vmatmul.mubr.f32.gmra.mrb[0].mxu0 %v961
    %v6869 = vpop.f32.mrb[0].mxu0
    %v6870 = vadd.f32 0.0, %v6869
    %v6871 = vpop.f32.mrb[0].mxu0
    %6872 = vdwg.mxu0
    %6873 = vmatprep.subr.mxu0 0.0
    %6874 = vmatpush1.msra.mxu0 %v6324
    %6875 = vmatprep.subr.mxu0 0.0
    %6876 = vmatpush1.msra.mxu0 %v6325
    %6877 = vmatprep.subr.mxu0 0.0
    %6878 = vmatpush1.msra.mxu0 %v6326
    %6879 = vmatprep.subr.mxu0 0.0
    %6880 = vmatpush1.msra.mxu0 %v6327
    %6881 = vmatprep.subr.mxu0 0.0
    %6882 = vmatpush1.msra.mxu0 %v6328
    %6883 = vmatprep.subr.mxu0 0.0
    %6884 = vmatpush1.msra.mxu0 %v6329
    %6885 = vmatprep.subr.mxu0 0.0
    %6886 = vmatpush1.msra.mxu0 %v6330
    %6887 = vmatprep.subr.mxu0 0.0
    %6888 = vmatpush1.msra.mxu0 %v6331
    %6889 = vmatprep.subr.mxu0 0.0
    %6890 = vmatpush1.msra.mxu0 0.0
    %6891 = vmatprep.subr.mxu0 0.0
    %6892 = vmatpush1.msra.mxu0 0.0
    %6893 = vmatprep.subr.mxu0 0.0
    %6894 = vmatpush1.msra.mxu0 0.0
    %6895 = vmatprep.subr.mxu0 0.0
    %6896 = vmatpush1.msra.mxu0 0.0
    %6897 = vmatprep.subr.mxu0 0.0
    %6898 = vmatpush1.msra.mxu0 0.0
    %6899 = vmatprep.subr.mxu0 0.0
    %6900 = vmatpush1.msra.mxu0 0.0
    %6901 = vmatprep.subr.mxu0 0.0
    %6902 = vmatpush1.msra.mxu0 0.0
    %6903 = vmatprep.subr.mxu0 0.0
    %6904 = vmatpush1.msra.mxu0 0.0
    %6905 = vmatprep.subr.mxu0 0.0
    %6906 = vmatpush1.msra.mxu0 0.0
    %6907 = vmatprep.subr.mxu0 0.0
    %6908 = vmatpush1.msra.mxu0 0.0
    %6909 = vmatprep.subr.mxu0 0.0
    %6910 = vmatpush1.msra.mxu0 0.0
    %6911 = vmatprep.subr.mxu0 0.0
    %6912 = vmatpush1.msra.mxu0 0.0
    %6913 = vmatprep.subr.mxu0 0.0
    %6914 = vmatpush1.msra.mxu0 0.0
    %6915 = vmatprep.subr.mxu0 0.0
    %6916 = vmatpush1.msra.mxu0 0.0
    %6917 = vmatprep.subr.mxu0 0.0
    %6918 = vmatpush1.msra.mxu0 0.0
    %6919 = vmatprep.subr.mxu0 0.0
    %6920 = vmatpush1.msra.mxu0 0.0
    %6921 = vmatprep.subr.mxu0 0.0
    %6922 = vmatpush1.msra.mxu0 0.0
    %6923 = vmatprep.subr.mxu0 0.0
    %6924 = vmatpush1.msra.mxu0 0.0
    %6925 = vmatprep.subr.mxu0 0.0
    %6926 = vmatpush1.msra.mxu0 0.0
    %6927 = vmatprep.subr.mxu0 0.0
    %6928 = vmatpush1.msra.mxu0 0.0
    %6929 = vmatprep.subr.mxu0 0.0
    %6930 = vmatpush1.msra.mxu0 0.0
    %6931 = vmatprep.subr.mxu0 0.0
    %6932 = vmatpush1.msra.mxu0 0.0
    %6933 = vmatprep.subr.mxu0 0.0
    %6934 = vmatpush1.msra.mxu0 0.0
    %6935 = vmatprep.subr.mxu0 0.0
    %6936 = vmatpush1.msra.mxu0 0.0
    %6937 = vmatprep.mubr.f32.mxu0 0.0
    %6938 = vmatmul.mubr.f32.gmra.mrb[0].mxu0 %v940
    %v6939 = vpop.f32.mrb[0].mxu0
    %v6940 = vadd.f32 0.0, %v6939
    %v6941 = vpop.f32.mrb[0].mxu0
    %6942 = vmatprep.mubr.f32.mxu0 0.0
    %6943 = vmatmul.mubr.f32.gmra.mrb[0].mxu0 %v943
    %v6944 = vpop.f32.mrb[0].mxu0
    %v6945 = vadd.f32 0.0, %v6944
    %v6946 = vpop.f32.mrb[0].mxu0
    %6947 = vmatprep.mubr.f32.mxu0 0.0
    %6948 = vmatmul.mubr.f32.gmra.mrb[0].mxu0 %v946
    %v6949 = vpop.f32.mrb[0].mxu0
    %v6950 = vadd.f32 0.0, %v6949
    %v6951 = vpop.f32.mrb[0].mxu0
    %6952 = vmatprep.mubr.f32.mxu0 0.0
    %6953 = vmatmul.mubr.f32.gmra.mrb[0].mxu0 %v949
    %v6954 = vpop.f32.mrb[0].mxu0
    %v6955 = vadd.f32 0.0, %v6954
    %v6956 = vpop.f32.mrb[0].mxu0
    %6957 = vmatprep.mubr.f32.mxu0 0.0
    %6958 = vmatmul.mubr.f32.gmra.mrb[0].mxu0 %v952
    %v6959 = vpop.f32.mrb[0].mxu0
    %v6960 = vadd.f32 0.0, %v6959
    %v6961 = vpop.f32.mrb[0].mxu0
    %6962 = vmatprep.mubr.f32.mxu0 0.0
    %6963 = vmatmul.mubr.f32.gmra.mrb[0].mxu0 %v955
    %v6964 = vpop.f32.mrb[0].mxu0
    %v6965 = vadd.f32 0.0, %v6964
    %v6966 = vpop.f32.mrb[0].mxu0
    %6967 = vmatprep.mubr.f32.mxu0 0.0
    %6968 = vmatmul.mubr.f32.gmra.mrb[0].mxu0 %v958
    %v6969 = vpop.f32.mrb[0].mxu0
    %v6970 = vadd.f32 0.0, %v6969
    %v6971 = vpop.f32.mrb[0].mxu0
    %6972 = vmatprep.mubr.f32.mxu0 0.0
    %6973 = vmatmul.mubr.f32.gmra.mrb[0].mxu0 %v961
    %v6974 = vpop.f32.mrb[0].mxu0
    %v6975 = vadd.f32 0.0, %v6974
    %v6976 = vpop.f32.mrb[0].mxu0
    %6977 = vdwg.mxu0
    %6978 = vmatprep.subr.mxu0 0.0
    %6979 = vmatpush1.msra.mxu0 %v6332
    %6980 = vmatprep.subr.mxu0 0.0
    %6981 = vmatpush1.msra.mxu0 %v6333
    %6982 = vmatprep.subr.mxu0 0.0
    %6983 = vmatpush1.msra.mxu0 %v6334
    %6984 = vmatprep.subr.mxu0 0.0
    %6985 = vmatpush1.msra.mxu0 %v6335
    %6986 = vmatprep.subr.mxu0 0.0
    %6987 = vmatpush1.msra.mxu0 %v6336
    %6988 = vmatprep.subr.mxu0 0.0
    %6989 = vmatpush1.msra.mxu0 %v6337
    %6990 = vmatprep.subr.mxu0 0.0
    %6991 = vmatpush1.msra.mxu0 %v6338
    %6992 = vmatprep.subr.mxu0 0.0
    %6993 = vmatpush1.msra.mxu0 %v6339
    %6994 = vmatprep.subr.mxu0 0.0
    %6995 = vmatpush1.msra.mxu0 0.0
    %6996 = vmatprep.subr.mxu0 0.0
    %6997 = vmatpush1.msra.mxu0 0.0
    %6998 = vmatprep.subr.mxu0 0.0
    %6999 = vmatpush1.msra.mxu0 0.0
    %7000 = vmatprep.subr.mxu0 0.0
    %7001 = vmatpush1.msra.mxu0 0.0
    %7002 = vmatprep.subr.mxu0 0.0
    %7003 = vmatpush1.msra.mxu0 0.0
    %7004 = vmatprep.subr.mxu0 0.0
    %7005 = vmatpush1.msra.mxu0 0.0
    %7006 = vmatprep.subr.mxu0 0.0
    %7007 = vmatpush1.msra.mxu0 0.0
    %7008 = vmatprep.subr.mxu0 0.0
    %7009 = vmatpush1.msra.mxu0 0.0
    %7010 = vmatprep.subr.mxu0 0.0
    %7011 = vmatpush1.msra.mxu0 0.0
    %7012 = vmatprep.subr.mxu0 0.0
    %7013 = vmatpush1.msra.mxu0 0.0
    %7014 = vmatprep.subr.mxu0 0.0
    %7015 = vmatpush1.msra.mxu0 0.0
    %7016 = vmatprep.subr.mxu0 0.0
    %7017 = vmatpush1.msra.mxu0 0.0
    %7018 = vmatprep.subr.mxu0 0.0
    %7019 = vmatpush1.msra.mxu0 0.0
    %7020 = vmatprep.subr.mxu0 0.0
    %7021 = vmatpush1.msra.mxu0 0.0
    %7022 = vmatprep.subr.mxu0 0.0
    %7023 = vmatpush1.msra.mxu0 0.0
    %7024 = vmatprep.subr.mxu0 0.0
    %7025 = vmatpush1.msra.mxu0 0.0
    %7026 = vmatprep.subr.mxu0 0.0
    %7027 = vmatpush1.msra.mxu0 0.0
    %7028 = vmatprep.subr.mxu0 0.0
    %7029 = vmatpush1.msra.mxu0 0.0
    %7030 = vmatprep.subr.mxu0 0.0
    %7031 = vmatpush1.msra.mxu0 0.0
    %7032 = vmatprep.subr.mxu0 0.0
    %7033 = vmatpush1.msra.mxu0 0.0
    %7034 = vmatprep.subr.mxu0 0.0
    %7035 = vmatpush1.msra.mxu0 0.0
    %7036 = vmatprep.subr.mxu0 0.0
    %7037 = vmatpush1.msra.mxu0 0.0
    %7038 = vmatprep.subr.mxu0 0.0
    %7039 = vmatpush1.msra.mxu0 0.0
    %7040 = vmatprep.subr.mxu0 0.0
    %7041 = vmatpush1.msra.mxu0 0.0
    %7042 = vmatprep.mubr.f32.mxu0 0.0
    %7043 = vmatmul.mubr.f32.gmra.mrb[0].mxu0 %v940
    %v7044 = vpop.f32.mrb[0].mxu0
    %v7045 = vadd.f32 0.0, %v7044
    %v7046 = vpop.f32.mrb[0].mxu0
    %7047 = vmatprep.mubr.f32.mxu0 0.0
    %7048 = vmatmul.mubr.f32.gmra.mrb[0].mxu0 %v943
    %v7049 = vpop.f32.mrb[0].mxu0
    %v7050 = vadd.f32 0.0, %v7049
    %v7051 = vpop.f32.mrb[0].mxu0
    %7052 = vmatprep.mubr.f32.mxu0 0.0
    %7053 = vmatmul.mubr.f32.gmra.mrb[0].mxu0 %v946
    %v7054 = vpop.f32.mrb[0].mxu0
    %v7055 = vadd.f32 0.0, %v7054
    %v7056 = vpop.f32.mrb[0].mxu0
    %7057 = vmatprep.mubr.f32.mxu0 0.0
    %7058 = vmatmul.mubr.f32.gmra.mrb[0].mxu0 %v949
    %v7059 = vpop.f32.mrb[0].mxu0
    %v7060 = vadd.f32 0.0, %v7059
    %v7061 = vpop.f32.mrb[0].mxu0
    %7062 = vmatprep.mubr.f32.mxu0 0.0
    %7063 = vmatmul.mubr.f32.gmra.mrb[0].mxu0 %v952
    %v7064 = vpop.f32.mrb[0].mxu0
    %v7065 = vadd.f32 0.0, %v7064
    %v7066 = vpop.f32.mrb[0].mxu0
    %7067 = vmatprep.mubr.f32.mxu0 0.0
    %7068 = vmatmul.mubr.f32.gmra.mrb[0].mxu0 %v955
    %v7069 = vpop.f32.mrb[0].mxu0
    %v7070 = vadd.f32 0.0, %v7069
    %v7071 = vpop.f32.mrb[0].mxu0
    %7072 = vmatprep.mubr.f32.mxu0 0.0
    %7073 = vmatmul.mubr.f32.gmra.mrb[0].mxu0 %v958
    %v7074 = vpop.f32.mrb[0].mxu0
    %v7075 = vadd.f32 0.0, %v7074
    %v7076 = vpop.f32.mrb[0].mxu0
    %7077 = vmatprep.mubr.f32.mxu0 0.0
    %7078 = vmatmul.mubr.f32.gmra.mrb[0].mxu0 %v961
    %v7079 = vpop.f32.mrb[0].mxu0
    %v7080 = vadd.f32 0.0, %v7079
    %v7081 = vpop.f32.mrb[0].mxu0
    %7082 = vdwg.mxu0
    %7083 = vmatprep.subr.mxu0 0.0
    %7084 = vmatpush1.msra.mxu0 %v6340
    %7085 = vmatprep.subr.mxu0 0.0
    %7086 = vmatpush1.msra.mxu0 %v6341
    %7087 = vmatprep.subr.mxu0 0.0
    %7088 = vmatpush1.msra.mxu0 %v6342
    %7089 = vmatprep.subr.mxu0 0.0
    %7090 = vmatpush1.msra.mxu0 %v6343
    %7091 = vmatprep.subr.mxu0 0.0
    %7092 = vmatpush1.msra.mxu0 %v6344
    %7093 = vmatprep.subr.mxu0 0.0
    %7094 = vmatpush1.msra.mxu0 %v6345
    %7095 = vmatprep.subr.mxu0 0.0
    %7096 = vmatpush1.msra.mxu0 %v6346
    %7097 = vmatprep.subr.mxu0 0.0
    %7098 = vmatpush1.msra.mxu0 %v6347
    %7099 = vmatprep.subr.mxu0 0.0
    %7100 = vmatpush1.msra.mxu0 0.0
    %7101 = vmatprep.subr.mxu0 0.0
    %7102 = vmatpush1.msra.mxu0 0.0
    %7103 = vmatprep.subr.mxu0 0.0
    %7104 = vmatpush1.msra.mxu0 0.0
    %7105 = vmatprep.subr.mxu0 0.0
    %7106 = vmatpush1.msra.mxu0 0.0
    %7107 = vmatprep.subr.mxu0 0.0
    %7108 = vmatpush1.msra.mxu0 0.0
    %7109 = vmatprep.subr.mxu0 0.0
    %7110 = vmatpush1.msra.mxu0 0.0
    %7111 = vmatprep.subr.mxu0 0.0
    %7112 = vmatpush1.msra.mxu0 0.0
    %7113 = vmatprep.subr.mxu0 0.0
    %7114 = vmatpush1.msra.mxu0 0.0
    %7115 = vmatprep.subr.mxu0 0.0
    %7116 = vmatpush1.msra.mxu0 0.0
    %7117 = vmatprep.subr.mxu0 0.0
    %7118 = vmatpush1.msra.mxu0 0.0
    %7119 = vmatprep.subr.mxu0 0.0
    %7120 = vmatpush1.msra.mxu0 0.0
    %7121 = vmatprep.subr.mxu0 0.0
    %7122 = vmatpush1.msra.mxu0 0.0
    %7123 = vmatprep.subr.mxu0 0.0
    %7124 = vmatpush1.msra.mxu0 0.0
    %7125 = vmatprep.subr.mxu0 0.0
    %7126 = vmatpush1.msra.mxu0 0.0
    %7127 = vmatprep.subr.mxu0 0.0
    %7128 = vmatpush1.msra.mxu0 0.0
    %7129 = vmatprep.subr.mxu0 0.0
    %7130 = vmatpush1.msra.mxu0 0.0
    %7131 = vmatprep.subr.mxu0 0.0
    %7132 = vmatpush1.msra.mxu0 0.0
    %7133 = vmatprep.subr.mxu0 0.0
    %7134 = vmatpush1.msra.mxu0 0.0
    %7135 = vmatprep.subr.mxu0 0.0
    %7136 = vmatpush1.msra.mxu0 0.0
    %7137 = vmatprep.subr.mxu0 0.0
    %7138 = vmatpush1.msra.mxu0 0.0
    %7139 = vmatprep.subr.mxu0 0.0
    %7140 = vmatpush1.msra.mxu0 0.0
    %7141 = vmatprep.subr.mxu0 0.0
    %7142 = vmatpush1.msra.mxu0 0.0
    %7143 = vmatprep.subr.mxu0 0.0
    %7144 = vmatpush1.msra.mxu0 0.0
    %7145 = vmatprep.subr.mxu0 0.0
    %7146 = vmatpush1.msra.mxu0 0.0
    %7147 = vmatprep.mubr.f32.mxu0 0.0
    %7148 = vmatmul.mubr.f32.gmra.mrb[0].mxu0 %v940
    %v7149 = vpop.f32.mrb[0].mxu0
    %v7150 = vadd.f32 0.0, %v7149
    %v7151 = vpop.f32.mrb[0].mxu0
    %7152 = vmatprep.mubr.f32.mxu0 0.0
    %7153 = vmatmul.mubr.f32.gmra.mrb[0].mxu0 %v943
    %v7154 = vpop.f32.mrb[0].mxu0
    %v7155 = vadd.f32 0.0, %v7154
    %v7156 = vpop.f32.mrb[0].mxu0
    %7157 = vmatprep.mubr.f32.mxu0 0.0
    %7158 = vmatmul.mubr.f32.gmra.mrb[0].mxu0 %v946
    %v7159 = vpop.f32.mrb[0].mxu0
    %v7160 = vadd.f32 0.0, %v7159
    %v7161 = vpop.f32.mrb[0].mxu0
    %7162 = vmatprep.mubr.f32.mxu0 0.0
    %7163 = vmatmul.mubr.f32.gmra.mrb[0].mxu0 %v949
    %v7164 = vpop.f32.mrb[0].mxu0
    %v7165 = vadd.f32 0.0, %v7164
    %v7166 = vpop.f32.mrb[0].mxu0
    %7167 = vmatprep.mubr.f32.mxu0 0.0
    %7168 = vmatmul.mubr.f32.gmra.mrb[0].mxu0 %v952
    %v7169 = vpop.f32.mrb[0].mxu0
    %v7170 = vadd.f32 0.0, %v7169
    %v7171 = vpop.f32.mrb[0].mxu0
    %7172 = vmatprep.mubr.f32.mxu0 0.0
    %7173 = vmatmul.mubr.f32.gmra.mrb[0].mxu0 %v955
    %v7174 = vpop.f32.mrb[0].mxu0
    %v7175 = vadd.f32 0.0, %v7174
    %v7176 = vpop.f32.mrb[0].mxu0
    %7177 = vmatprep.mubr.f32.mxu0 0.0
    %7178 = vmatmul.mubr.f32.gmra.mrb[0].mxu0 %v958
    %v7179 = vpop.f32.mrb[0].mxu0
    %v7180 = vadd.f32 0.0, %v7179
    %v7181 = vpop.f32.mrb[0].mxu0
    %7182 = vmatprep.mubr.f32.mxu0 0.0
    %7183 = vmatmul.mubr.f32.gmra.mrb[0].mxu0 %v961
    %v7184 = vpop.f32.mrb[0].mxu0
    %v7185 = vadd.f32 0.0, %v7184
    %v7186 = vpop.f32.mrb[0].mxu0
    %7187 = vdwg.mxu0
    %7192 = vrot.lane.b32.xlu0 %v69, 79
    %v7193 = vpop.permute.xlu0 %7192
    %7194 = vrot.lane.b32.xlu0 %v70, 79
    %v7195 = vpop.permute.xlu0 %7194
    %7196 = vrot.lane.b32.xlu0 %v71, 79
    %v7197 = vpop.permute.xlu0 %7196
    %7198 = vrot.lane.b32.xlu0 %v72, 79
    %v7199 = vpop.permute.xlu0 %7198
    %vm7204 = vcmask 261120
    %v7206 = vsel %vm7204, %v6284, 0
    %v7209 = vsel %vm7204, %v6285, 0
    %v7212 = vsel %vm7204, %v6286, 0
    %v7215 = vsel %vm7204, %v6287, 0
    %v7218 = vsel %vm7204, %v6288, 0
    %v7221 = vsel %vm7204, %v6289, 0
    %v7224 = vsel %vm7204, %v6290, 0
    %v7227 = vsel %vm7204, %v6291, 0
    %v7230 = vsel %vm7204, %v6292, 0
    %v7233 = vsel %vm7204, %v6293, 0
    %v7236 = vsel %vm7204, %v6294, 0
    %v7239 = vsel %vm7204, %v6295, 0
    %v7242 = vsel %vm7204, %v6296, 0
    %v7245 = vsel %vm7204, %v6297, 0
    %v7248 = vsel %vm7204, %v6298, 0
    %v7251 = vsel %vm7204, %v6299, 0
    %v7254 = vsel %vm7204, %v6300, 0
    %v7257 = vsel %vm7204, %v6301, 0
    %v7260 = vsel %vm7204, %v6302, 0
    %v7263 = vsel %vm7204, %v6303, 0
    %v7266 = vsel %vm7204, %v6304, 0
    %v7269 = vsel %vm7204, %v6305, 0
    %v7272 = vsel %vm7204, %v6306, 0
    %v7275 = vsel %vm7204, %v6307, 0
    %v7278 = vsel %vm7204, %v6308, 0
    %v7281 = vsel %vm7204, %v6309, 0
    %v7284 = vsel %vm7204, %v6310, 0
    %v7287 = vsel %vm7204, %v6311, 0
    %v7290 = vsel %vm7204, %v6312, 0
    %v7293 = vsel %vm7204, %v6313, 0
    %v7296 = vsel %vm7204, %v6314, 0
    %v7299 = vsel %vm7204, %v6315, 0
    %v7302 = vsel %vm7204, %v6316, 0
    %v7305 = vsel %vm7204, %v6317, 0
    %v7308 = vsel %vm7204, %v6318, 0
    %v7311 = vsel %vm7204, %v6319, 0
    %v7314 = vsel %vm7204, %v6320, 0
    %v7317 = vsel %vm7204, %v6321, 0
    %v7320 = vsel %vm7204, %v6322, 0
    %v7323 = vsel %vm7204, %v6323, 0
    %v7326 = vsel %vm7204, %v6324, 0
    %v7329 = vsel %vm7204, %v6325, 0
    %v7332 = vsel %vm7204, %v6326, 0
    %v7335 = vsel %vm7204, %v6327, 0
    %v7338 = vsel %vm7204, %v6328, 0
    %v7341 = vsel %vm7204, %v6329, 0
    %v7344 = vsel %vm7204, %v6330, 0
    %v7347 = vsel %vm7204, %v6331, 0
    %v7350 = vsel %vm7204, %v6332, 0
    %v7353 = vsel %vm7204, %v6333, 0
    %v7356 = vsel %vm7204, %v6334, 0
    %v7359 = vsel %vm7204, %v6335, 0
    %v7362 = vsel %vm7204, %v6336, 0
    %v7365 = vsel %vm7204, %v6337, 0
    %v7368 = vsel %vm7204, %v6338, 0
    %v7371 = vsel %vm7204, %v6339, 0
    %v7374 = vsel %vm7204, %v6340, 0
    %v7377 = vsel %vm7204, %v6341, 0
    %v7380 = vsel %vm7204, %v6342, 0
    %v7383 = vsel %vm7204, %v6343, 0
    %v7386 = vsel %vm7204, %v6344, 0
    %v7389 = vsel %vm7204, %v6345, 0
    %v7392 = vsel %vm7204, %v6346, 0
    %v7395 = vsel %vm7204, %v6347, 0
    %7397 = vmatprep.subr.mxu0 0.0
    %7398 = vmatpush1.msra.mxu0 %v7193
    %7399 = vmatprep.subr.mxu0 0.0
    %7400 = vmatpush1.msra.mxu0 %v7195
    %7401 = vmatprep.subr.mxu0 0.0
    %7402 = vmatpush1.msra.mxu0 %v7197
    %7403 = vmatprep.subr.mxu0 0.0
    %7404 = vmatpush1.msra.mxu0 %v7199
    %7405 = vmatprep.subr.mxu0 0.0
    %7406 = vmatpush1.msra.mxu0 0.0
    %7407 = vmatprep.subr.mxu0 0.0
    %7408 = vmatpush1.msra.mxu0 0.0
    %7409 = vmatprep.subr.mxu0 0.0
    %7410 = vmatpush1.msra.mxu0 0.0
    %7411 = vmatprep.subr.mxu0 0.0
    %7412 = vmatpush1.msra.mxu0 0.0
    %7413 = vmatprep.subr.mxu0 0.0
    %7414 = vmatpush1.msra.mxu0 0.0
    %7415 = vmatprep.subr.mxu0 0.0
    %7416 = vmatpush1.msra.mxu0 0.0
    %7417 = vmatprep.subr.mxu0 0.0
    %7418 = vmatpush1.msra.mxu0 0.0
    %7419 = vmatprep.subr.mxu0 0.0
    %7420 = vmatpush1.msra.mxu0 0.0
    %7421 = vmatprep.subr.mxu0 0.0
    %7422 = vmatpush1.msra.mxu0 0.0
    %7423 = vmatprep.subr.mxu0 0.0
    %7424 = vmatpush1.msra.mxu0 0.0
    %7425 = vmatprep.subr.mxu0 0.0
    %7426 = vmatpush1.msra.mxu0 0.0
    %7427 = vmatprep.subr.mxu0 0.0
    %7428 = vmatpush1.msra.mxu0 0.0
    %7429 = vmatprep.subr.mxu0 0.0
    %7430 = vmatpush1.msra.mxu0 0.0
    %7431 = vmatprep.subr.mxu0 0.0
    %7432 = vmatpush1.msra.mxu0 0.0
    %7433 = vmatprep.subr.mxu0 0.0
    %7434 = vmatpush1.msra.mxu0 0.0
    %7435 = vmatprep.subr.mxu0 0.0
    %7436 = vmatpush1.msra.mxu0 0.0
    %7437 = vmatprep.subr.mxu0 0.0
    %7438 = vmatpush1.msra.mxu0 0.0
    %7439 = vmatprep.subr.mxu0 0.0
    %7440 = vmatpush1.msra.mxu0 0.0
    %7441 = vmatprep.subr.mxu0 0.0
    %7442 = vmatpush1.msra.mxu0 0.0
    %7443 = vmatprep.subr.mxu0 0.0
    %7444 = vmatpush1.msra.mxu0 0.0
    %7445 = vmatprep.subr.mxu0 0.0
    %7446 = vmatpush1.msra.mxu0 0.0
    %7447 = vmatprep.subr.mxu0 0.0
    %7448 = vmatpush1.msra.mxu0 0.0
    %7449 = vmatprep.subr.mxu0 0.0
    %7450 = vmatpush1.msra.mxu0 0.0
    %7451 = vmatprep.subr.mxu0 0.0
    %7452 = vmatpush1.msra.mxu0 0.0
    %7453 = vmatprep.subr.mxu0 0.0
    %7454 = vmatpush1.msra.mxu0 0.0
    %7455 = vmatprep.subr.mxu0 0.0
    %7456 = vmatpush1.msra.mxu0 0.0
    %7457 = vmatprep.subr.mxu0 0.0
    %7458 = vmatpush1.msra.mxu0 0.0
    %7459 = vmatprep.subr.mxu0 0.0
    %7460 = vmatpush1.msra.mxu0 0.0
    %7461 = vmatprep.mubr.f32.mxu0 0.0
    %7462 = vmatmul.mubr.f32.gmra.mrb[0].mxu0 %v7206
    %v7463 = vpop.f32.mrb[0].mxu0
    %v7464 = vadd.f32 0.0, %v7463
    %v7465 = vpop.f32.mrb[0].mxu0
    %7466 = vmatprep.mubr.f32.mxu0 0.0
    %7467 = vmatmul.mubr.f32.gmra.mrb[0].mxu0 %v7209
    %v7468 = vpop.f32.mrb[0].mxu0
    %v7469 = vadd.f32 0.0, %v7468
    %v7470 = vpop.f32.mrb[0].mxu0
    %7471 = vmatprep.mubr.f32.mxu0 0.0
    %7472 = vmatmul.mubr.f32.gmra.mrb[0].mxu0 %v7212
    %v7473 = vpop.f32.mrb[0].mxu0
    %v7474 = vadd.f32 0.0, %v7473
    %v7475 = vpop.f32.mrb[0].mxu0
    %7476 = vmatprep.mubr.f32.mxu0 0.0
    %7477 = vmatmul.mubr.f32.gmra.mrb[0].mxu0 %v7215
    %v7478 = vpop.f32.mrb[0].mxu0
    %v7479 = vadd.f32 0.0, %v7478
    %v7480 = vpop.f32.mrb[0].mxu0
    %7481 = vmatprep.mubr.f32.mxu0 0.0
    %7482 = vmatmul.mubr.f32.gmra.mrb[0].mxu0 %v7218
    %v7483 = vpop.f32.mrb[0].mxu0
    %v7484 = vadd.f32 0.0, %v7483
    %v7485 = vpop.f32.mrb[0].mxu0
    %7486 = vmatprep.mubr.f32.mxu0 0.0
    %7487 = vmatmul.mubr.f32.gmra.mrb[0].mxu0 %v7221
    %v7488 = vpop.f32.mrb[0].mxu0
    %v7489 = vadd.f32 0.0, %v7488
    %v7490 = vpop.f32.mrb[0].mxu0
    %7491 = vmatprep.mubr.f32.mxu0 0.0
    %7492 = vmatmul.mubr.f32.gmra.mrb[0].mxu0 %v7224
    %v7493 = vpop.f32.mrb[0].mxu0
    %v7494 = vadd.f32 0.0, %v7493
    %v7495 = vpop.f32.mrb[0].mxu0
    %7496 = vmatprep.mubr.f32.mxu0 0.0
    %7497 = vmatmul.mubr.f32.gmra.mrb[0].mxu0 %v7227
    %v7498 = vpop.f32.mrb[0].mxu0
    %v7499 = vadd.f32 0.0, %v7498
    %v7500 = vpop.f32.mrb[0].mxu0
    %7501 = vmatprep.mubr.f32.mxu0 0.0
    %7502 = vmatmul.mubr.f32.gmra.mrb[0].mxu0 %v7230
    %v7503 = vpop.f32.mrb[0].mxu0
    %v7504 = vadd.f32 0.0, %v7503
    %v7505 = vpop.f32.mrb[0].mxu0
    %7506 = vmatprep.mubr.f32.mxu0 0.0
    %7507 = vmatmul.mubr.f32.gmra.mrb[0].mxu0 %v7233
    %v7508 = vpop.f32.mrb[0].mxu0
    %v7509 = vadd.f32 0.0, %v7508
    %v7510 = vpop.f32.mrb[0].mxu0
    %7511 = vmatprep.mubr.f32.mxu0 0.0
    %7512 = vmatmul.mubr.f32.gmra.mrb[0].mxu0 %v7236
    %v7513 = vpop.f32.mrb[0].mxu0
    %v7514 = vadd.f32 0.0, %v7513
    %v7515 = vpop.f32.mrb[0].mxu0
    %7516 = vmatprep.mubr.f32.mxu0 0.0
    %7517 = vmatmul.mubr.f32.gmra.mrb[0].mxu0 %v7239
    %v7518 = vpop.f32.mrb[0].mxu0
    %v7519 = vadd.f32 0.0, %v7518
    %v7520 = vpop.f32.mrb[0].mxu0
    %7521 = vmatprep.mubr.f32.mxu0 0.0
    %7522 = vmatmul.mubr.f32.gmra.mrb[0].mxu0 %v7242
    %v7523 = vpop.f32.mrb[0].mxu0
    %v7524 = vadd.f32 0.0, %v7523
    %v7525 = vpop.f32.mrb[0].mxu0
    %7526 = vmatprep.mubr.f32.mxu0 0.0
    %7527 = vmatmul.mubr.f32.gmra.mrb[0].mxu0 %v7245
    %v7528 = vpop.f32.mrb[0].mxu0
    %v7529 = vadd.f32 0.0, %v7528
    %v7530 = vpop.f32.mrb[0].mxu0
    %7531 = vmatprep.mubr.f32.mxu0 0.0
    %7532 = vmatmul.mubr.f32.gmra.mrb[0].mxu0 %v7248
    %v7533 = vpop.f32.mrb[0].mxu0
    %v7534 = vadd.f32 0.0, %v7533
    %v7535 = vpop.f32.mrb[0].mxu0
    %7536 = vmatprep.mubr.f32.mxu0 0.0
    %7537 = vmatmul.mubr.f32.gmra.mrb[0].mxu0 %v7251
    %v7538 = vpop.f32.mrb[0].mxu0
    %v7539 = vadd.f32 0.0, %v7538
    %v7540 = vpop.f32.mrb[0].mxu0
    %7541 = vmatprep.mubr.f32.mxu0 0.0
    %7542 = vmatmul.mubr.f32.gmra.mrb[0].mxu0 %v7254
    %v7543 = vpop.f32.mrb[0].mxu0
    %v7544 = vadd.f32 0.0, %v7543
    %v7545 = vpop.f32.mrb[0].mxu0
    %7546 = vmatprep.mubr.f32.mxu0 0.0
    %7547 = vmatmul.mubr.f32.gmra.mrb[0].mxu0 %v7257
    %v7548 = vpop.f32.mrb[0].mxu0
    %v7549 = vadd.f32 0.0, %v7548
    %v7550 = vpop.f32.mrb[0].mxu0
    %7551 = vmatprep.mubr.f32.mxu0 0.0
    %7552 = vmatmul.mubr.f32.gmra.mrb[0].mxu0 %v7260
    %v7553 = vpop.f32.mrb[0].mxu0
    %v7554 = vadd.f32 0.0, %v7553
    %v7555 = vpop.f32.mrb[0].mxu0
    %7556 = vmatprep.mubr.f32.mxu0 0.0
    %7557 = vmatmul.mubr.f32.gmra.mrb[0].mxu0 %v7263
    %v7558 = vpop.f32.mrb[0].mxu0
    %v7559 = vadd.f32 0.0, %v7558
    %v7560 = vpop.f32.mrb[0].mxu0
    %7561 = vmatprep.mubr.f32.mxu0 0.0
    %7562 = vmatmul.mubr.f32.gmra.mrb[0].mxu0 %v7266
    %v7563 = vpop.f32.mrb[0].mxu0
    %v7564 = vadd.f32 0.0, %v7563
    %v7565 = vpop.f32.mrb[0].mxu0
    %7566 = vmatprep.mubr.f32.mxu0 0.0
    %7567 = vmatmul.mubr.f32.gmra.mrb[0].mxu0 %v7269
    %v7568 = vpop.f32.mrb[0].mxu0
    %v7569 = vadd.f32 0.0, %v7568
    %v7570 = vpop.f32.mrb[0].mxu0
    %7571 = vmatprep.mubr.f32.mxu0 0.0
    %7572 = vmatmul.mubr.f32.gmra.mrb[0].mxu0 %v7272
    %v7573 = vpop.f32.mrb[0].mxu0
    %v7574 = vadd.f32 0.0, %v7573
    %v7575 = vpop.f32.mrb[0].mxu0
    %7576 = vmatprep.mubr.f32.mxu0 0.0
    %7577 = vmatmul.mubr.f32.gmra.mrb[0].mxu0 %v7275
    %v7578 = vpop.f32.mrb[0].mxu0
    %v7579 = vadd.f32 0.0, %v7578
    %v7580 = vpop.f32.mrb[0].mxu0
    %7581 = vmatprep.mubr.f32.mxu0 0.0
    %7582 = vmatmul.mubr.f32.gmra.mrb[0].mxu0 %v7278
    %v7583 = vpop.f32.mrb[0].mxu0
    %v7584 = vadd.f32 0.0, %v7583
    %v7585 = vpop.f32.mrb[0].mxu0
    %7586 = vmatprep.mubr.f32.mxu0 0.0
    %7587 = vmatmul.mubr.f32.gmra.mrb[0].mxu0 %v7281
    %v7588 = vpop.f32.mrb[0].mxu0
    %v7589 = vadd.f32 0.0, %v7588
    %v7590 = vpop.f32.mrb[0].mxu0
    %7591 = vmatprep.mubr.f32.mxu0 0.0
    %7592 = vmatmul.mubr.f32.gmra.mrb[0].mxu0 %v7284
    %v7593 = vpop.f32.mrb[0].mxu0
    %v7594 = vadd.f32 0.0, %v7593
    %v7595 = vpop.f32.mrb[0].mxu0
    %7596 = vmatprep.mubr.f32.mxu0 0.0
    %7597 = vmatmul.mubr.f32.gmra.mrb[0].mxu0 %v7287
    %v7598 = vpop.f32.mrb[0].mxu0
    %v7599 = vadd.f32 0.0, %v7598
    %v7600 = vpop.f32.mrb[0].mxu0
    %7601 = vmatprep.mubr.f32.mxu0 0.0
    %7602 = vmatmul.mubr.f32.gmra.mrb[0].mxu0 %v7290
    %v7603 = vpop.f32.mrb[0].mxu0
    %v7604 = vadd.f32 0.0, %v7603
    %v7605 = vpop.f32.mrb[0].mxu0
    %7606 = vmatprep.mubr.f32.mxu0 0.0
    %7607 = vmatmul.mubr.f32.gmra.mrb[0].mxu0 %v7293
    %v7608 = vpop.f32.mrb[0].mxu0
    %v7609 = vadd.f32 0.0, %v7608
    %v7610 = vpop.f32.mrb[0].mxu0
    %7611 = vmatprep.mubr.f32.mxu0 0.0
    %7612 = vmatmul.mubr.f32.gmra.mrb[0].mxu0 %v7296
    %v7613 = vpop.f32.mrb[0].mxu0
    %v7614 = vadd.f32 0.0, %v7613
    %v7615 = vpop.f32.mrb[0].mxu0
    %7616 = vmatprep.mubr.f32.mxu0 0.0
    %7617 = vmatmul.mubr.f32.gmra.mrb[0].mxu0 %v7299
    %v7618 = vpop.f32.mrb[0].mxu0
    %v7619 = vadd.f32 0.0, %v7618
    %v7620 = vpop.f32.mrb[0].mxu0
    %7621 = vmatprep.mubr.f32.mxu0 0.0
    %7622 = vmatmul.mubr.f32.gmra.mrb[0].mxu0 %v7302
    %v7623 = vpop.f32.mrb[0].mxu0
    %v7624 = vadd.f32 0.0, %v7623
    %v7625 = vpop.f32.mrb[0].mxu0
    %7626 = vmatprep.mubr.f32.mxu0 0.0
    %7627 = vmatmul.mubr.f32.gmra.mrb[0].mxu0 %v7305
    %v7628 = vpop.f32.mrb[0].mxu0
    %v7629 = vadd.f32 0.0, %v7628
    %v7630 = vpop.f32.mrb[0].mxu0
    %7631 = vmatprep.mubr.f32.mxu0 0.0
    %7632 = vmatmul.mubr.f32.gmra.mrb[0].mxu0 %v7308
    %v7633 = vpop.f32.mrb[0].mxu0
    %v7634 = vadd.f32 0.0, %v7633
    %v7635 = vpop.f32.mrb[0].mxu0
    %7636 = vmatprep.mubr.f32.mxu0 0.0
    %7637 = vmatmul.mubr.f32.gmra.mrb[0].mxu0 %v7311
    %v7638 = vpop.f32.mrb[0].mxu0
    %v7639 = vadd.f32 0.0, %v7638
    %v7640 = vpop.f32.mrb[0].mxu0
    %7641 = vmatprep.mubr.f32.mxu0 0.0
    %7642 = vmatmul.mubr.f32.gmra.mrb[0].mxu0 %v7314
    %v7643 = vpop.f32.mrb[0].mxu0
    %v7644 = vadd.f32 0.0, %v7643
    %v7645 = vpop.f32.mrb[0].mxu0
    %7646 = vmatprep.mubr.f32.mxu0 0.0
    %7647 = vmatmul.mubr.f32.gmra.mrb[0].mxu0 %v7317
    %v7648 = vpop.f32.mrb[0].mxu0
    %v7649 = vadd.f32 0.0, %v7648
    %v7650 = vpop.f32.mrb[0].mxu0
    %7651 = vmatprep.mubr.f32.mxu0 0.0
    %7652 = vmatmul.mubr.f32.gmra.mrb[0].mxu0 %v7320
    %v7653 = vpop.f32.mrb[0].mxu0
    %v7654 = vadd.f32 0.0, %v7653
    %v7655 = vpop.f32.mrb[0].mxu0
    %7656 = vmatprep.mubr.f32.mxu0 0.0
    %7657 = vmatmul.mubr.f32.gmra.mrb[0].mxu0 %v7323
    %v7658 = vpop.f32.mrb[0].mxu0
    %v7659 = vadd.f32 0.0, %v7658
    %v7660 = vpop.f32.mrb[0].mxu0
    %7661 = vmatprep.mubr.f32.mxu0 0.0
    %7662 = vmatmul.mubr.f32.gmra.mrb[0].mxu0 %v7326
    %v7663 = vpop.f32.mrb[0].mxu0
    %v7664 = vadd.f32 0.0, %v7663
    %v7665 = vpop.f32.mrb[0].mxu0
    %7666 = vmatprep.mubr.f32.mxu0 0.0
    %7667 = vmatmul.mubr.f32.gmra.mrb[0].mxu0 %v7329
    %v7668 = vpop.f32.mrb[0].mxu0
    %v7669 = vadd.f32 0.0, %v7668
    %v7670 = vpop.f32.mrb[0].mxu0
    %7671 = vmatprep.mubr.f32.mxu0 0.0
    %7672 = vmatmul.mubr.f32.gmra.mrb[0].mxu0 %v7332
    %v7673 = vpop.f32.mrb[0].mxu0
    %v7674 = vadd.f32 0.0, %v7673
    %v7675 = vpop.f32.mrb[0].mxu0
    %7676 = vmatprep.mubr.f32.mxu0 0.0
    %7677 = vmatmul.mubr.f32.gmra.mrb[0].mxu0 %v7335
    %v7678 = vpop.f32.mrb[0].mxu0
    %v7679 = vadd.f32 0.0, %v7678
    %v7680 = vpop.f32.mrb[0].mxu0
    %7681 = vmatprep.mubr.f32.mxu0 0.0
    %7682 = vmatmul.mubr.f32.gmra.mrb[0].mxu0 %v7338
    %v7683 = vpop.f32.mrb[0].mxu0
    %v7684 = vadd.f32 0.0, %v7683
    %v7685 = vpop.f32.mrb[0].mxu0
    %7686 = vmatprep.mubr.f32.mxu0 0.0
    %7687 = vmatmul.mubr.f32.gmra.mrb[0].mxu0 %v7341
    %v7688 = vpop.f32.mrb[0].mxu0
    %v7689 = vadd.f32 0.0, %v7688
    %v7690 = vpop.f32.mrb[0].mxu0
    %7691 = vmatprep.mubr.f32.mxu0 0.0
    %7692 = vmatmul.mubr.f32.gmra.mrb[0].mxu0 %v7344
    %v7693 = vpop.f32.mrb[0].mxu0
    %v7694 = vadd.f32 0.0, %v7693
    %v7695 = vpop.f32.mrb[0].mxu0
    %7696 = vmatprep.mubr.f32.mxu0 0.0
    %7697 = vmatmul.mubr.f32.gmra.mrb[0].mxu0 %v7347
    %v7698 = vpop.f32.mrb[0].mxu0
    %v7699 = vadd.f32 0.0, %v7698
    %v7700 = vpop.f32.mrb[0].mxu0
    %7701 = vmatprep.mubr.f32.mxu0 0.0
    %7702 = vmatmul.mubr.f32.gmra.mrb[0].mxu0 %v7350
    %v7703 = vpop.f32.mrb[0].mxu0
    %v7704 = vadd.f32 0.0, %v7703
    %v7705 = vpop.f32.mrb[0].mxu0
    %7706 = vmatprep.mubr.f32.mxu0 0.0
    %7707 = vmatmul.mubr.f32.gmra.mrb[0].mxu0 %v7353
    %v7708 = vpop.f32.mrb[0].mxu0
    %v7709 = vadd.f32 0.0, %v7708
    %v7710 = vpop.f32.mrb[0].mxu0
    %7711 = vmatprep.mubr.f32.mxu0 0.0
    %7712 = vmatmul.mubr.f32.gmra.mrb[0].mxu0 %v7356
    %v7713 = vpop.f32.mrb[0].mxu0
    %v7714 = vadd.f32 0.0, %v7713
    %v7715 = vpop.f32.mrb[0].mxu0
    %7716 = vmatprep.mubr.f32.mxu0 0.0
    %7717 = vmatmul.mubr.f32.gmra.mrb[0].mxu0 %v7359
    %v7718 = vpop.f32.mrb[0].mxu0
    %v7719 = vadd.f32 0.0, %v7718
    %v7720 = vpop.f32.mrb[0].mxu0
    %7721 = vmatprep.mubr.f32.mxu0 0.0
    %7722 = vmatmul.mubr.f32.gmra.mrb[0].mxu0 %v7362
    %v7723 = vpop.f32.mrb[0].mxu0
    %v7724 = vadd.f32 0.0, %v7723
    %v7725 = vpop.f32.mrb[0].mxu0
    %7726 = vmatprep.mubr.f32.mxu0 0.0
    %7727 = vmatmul.mubr.f32.gmra.mrb[0].mxu0 %v7365
    %v7728 = vpop.f32.mrb[0].mxu0
    %v7729 = vadd.f32 0.0, %v7728
    %v7730 = vpop.f32.mrb[0].mxu0
    %7731 = vmatprep.mubr.f32.mxu0 0.0
    %7732 = vmatmul.mubr.f32.gmra.mrb[0].mxu0 %v7368
    %v7733 = vpop.f32.mrb[0].mxu0
    %v7734 = vadd.f32 0.0, %v7733
    %v7735 = vpop.f32.mrb[0].mxu0
    %7736 = vmatprep.mubr.f32.mxu0 0.0
    %7737 = vmatmul.mubr.f32.gmra.mrb[0].mxu0 %v7371
    %v7738 = vpop.f32.mrb[0].mxu0
    %v7739 = vadd.f32 0.0, %v7738
    %v7740 = vpop.f32.mrb[0].mxu0
    %7741 = vmatprep.mubr.f32.mxu0 0.0
    %7742 = vmatmul.mubr.f32.gmra.mrb[0].mxu0 %v7374
    %v7743 = vpop.f32.mrb[0].mxu0
    %v7744 = vadd.f32 0.0, %v7743
    %v7745 = vpop.f32.mrb[0].mxu0
    %7746 = vmatprep.mubr.f32.mxu0 0.0
    %7747 = vmatmul.mubr.f32.gmra.mrb[0].mxu0 %v7377
    %v7748 = vpop.f32.mrb[0].mxu0
    %v7749 = vadd.f32 0.0, %v7748
    %v7750 = vpop.f32.mrb[0].mxu0
    %7751 = vmatprep.mubr.f32.mxu0 0.0
    %7752 = vmatmul.mubr.f32.gmra.mrb[0].mxu0 %v7380
    %v7753 = vpop.f32.mrb[0].mxu0
    %v7754 = vadd.f32 0.0, %v7753
    %v7755 = vpop.f32.mrb[0].mxu0
    %7756 = vmatprep.mubr.f32.mxu0 0.0
    %7757 = vmatmul.mubr.f32.gmra.mrb[0].mxu0 %v7383
    %v7758 = vpop.f32.mrb[0].mxu0
    %v7759 = vadd.f32 0.0, %v7758
    %v7760 = vpop.f32.mrb[0].mxu0
    %7761 = vmatprep.mubr.f32.mxu0 0.0
    %7762 = vmatmul.mubr.f32.gmra.mrb[0].mxu0 %v7386
    %v7763 = vpop.f32.mrb[0].mxu0
    %v7764 = vadd.f32 0.0, %v7763
    %v7765 = vpop.f32.mrb[0].mxu0
    %7766 = vmatprep.mubr.f32.mxu0 0.0
    %7767 = vmatmul.mubr.f32.gmra.mrb[0].mxu0 %v7389
    %v7768 = vpop.f32.mrb[0].mxu0
    %v7769 = vadd.f32 0.0, %v7768
    %v7770 = vpop.f32.mrb[0].mxu0
    %7771 = vmatprep.mubr.f32.mxu0 0.0
    %7772 = vmatmul.mubr.f32.gmra.mrb[0].mxu0 %v7392
    %v7773 = vpop.f32.mrb[0].mxu0
    %v7774 = vadd.f32 0.0, %v7773
    %v7775 = vpop.f32.mrb[0].mxu0
    %7776 = vmatprep.mubr.f32.mxu0 0.0
    %7777 = vmatmul.mubr.f32.gmra.mrb[0].mxu0 %v7395
    %v7778 = vpop.f32.mrb[0].mxu0
    %v7779 = vadd.f32 0.0, %v7778
    %v7780 = vpop.f32.mrb[0].mxu0
    %7781 = vdwg.mxu0
    %7782 = vrot.lane.b32.xlu0 %v65, 79
    %v7783 = vpop.permute.xlu0 %7782
    %7784 = vrot.lane.b32.xlu0 %v66, 79
    %v7785 = vpop.permute.xlu0 %7784
    %7786 = vrot.lane.b32.xlu0 %v67, 79
    %v7787 = vpop.permute.xlu0 %7786
    %7788 = vrot.lane.b32.xlu0 %v68, 79
    %v7789 = vpop.permute.xlu0 %7788
    %v7795 = vsel %vm7204, %v6415, 0
    %v7798 = vsel %vm7204, %v6420, 0
    %v7801 = vsel %vm7204, %v6425, 0
    %v7804 = vsel %vm7204, %v6430, 0
    %v7807 = vsel %vm7204, %v6435, 0
    %v7810 = vsel %vm7204, %v6440, 0
    %v7813 = vsel %vm7204, %v6445, 0
    %v7816 = vsel %vm7204, %v6450, 0
    %v7819 = vsel %vm7204, %v6520, 0
    %v7822 = vsel %vm7204, %v6525, 0
    %v7825 = vsel %vm7204, %v6530, 0
    %v7828 = vsel %vm7204, %v6535, 0
    %v7831 = vsel %vm7204, %v6540, 0
    %v7834 = vsel %vm7204, %v6545, 0
    %v7837 = vsel %vm7204, %v6550, 0
    %v7840 = vsel %vm7204, %v6555, 0
    %v7843 = vsel %vm7204, %v6625, 0
    %v7846 = vsel %vm7204, %v6630, 0
    %v7849 = vsel %vm7204, %v6635, 0
    %v7852 = vsel %vm7204, %v6640, 0
    %v7855 = vsel %vm7204, %v6645, 0
    %v7858 = vsel %vm7204, %v6650, 0
    %v7861 = vsel %vm7204, %v6655, 0
    %v7864 = vsel %vm7204, %v6660, 0
    %v7867 = vsel %vm7204, %v6730, 0
    %v7870 = vsel %vm7204, %v6735, 0
    %v7873 = vsel %vm7204, %v6740, 0
    %v7876 = vsel %vm7204, %v6745, 0
    %v7879 = vsel %vm7204, %v6750, 0
    %v7882 = vsel %vm7204, %v6755, 0
    %v7885 = vsel %vm7204, %v6760, 0
    %v7888 = vsel %vm7204, %v6765, 0
    %v7891 = vsel %vm7204, %v6835, 0
    %v7894 = vsel %vm7204, %v6840, 0
    %v7897 = vsel %vm7204, %v6845, 0
    %v7900 = vsel %vm7204, %v6850, 0
    %v7903 = vsel %vm7204, %v6855, 0
    %v7906 = vsel %vm7204, %v6860, 0
    %v7909 = vsel %vm7204, %v6865, 0
    %v7912 = vsel %vm7204, %v6870, 0
    %v7915 = vsel %vm7204, %v6940, 0
    %v7918 = vsel %vm7204, %v6945, 0
    %v7921 = vsel %vm7204, %v6950, 0
    %v7924 = vsel %vm7204, %v6955, 0
    %v7927 = vsel %vm7204, %v6960, 0
    %v7930 = vsel %vm7204, %v6965, 0
    %v7933 = vsel %vm7204, %v6970, 0
    %v7936 = vsel %vm7204, %v6975, 0
    %v7939 = vsel %vm7204, %v7045, 0
    %v7942 = vsel %vm7204, %v7050, 0
    %v7945 = vsel %vm7204, %v7055, 0
    %v7948 = vsel %vm7204, %v7060, 0
    %v7951 = vsel %vm7204, %v7065, 0
    %v7954 = vsel %vm7204, %v7070, 0
    %v7957 = vsel %vm7204, %v7075, 0
    %v7960 = vsel %vm7204, %v7080, 0
    %v7963 = vsel %vm7204, %v7150, 0
    %v7966 = vsel %vm7204, %v7155, 0
    %v7969 = vsel %vm7204, %v7160, 0
    %v7972 = vsel %vm7204, %v7165, 0
    %v7975 = vsel %vm7204, %v7170, 0
    %v7978 = vsel %vm7204, %v7175, 0
    %v7981 = vsel %vm7204, %v7180, 0
    %v7984 = vsel %vm7204, %v7185, 0
    %7986 = vmatprep.subr.mxu0 0.0
    %7987 = vmatpush1.msra.mxu0 %v7783
    %7988 = vmatprep.subr.mxu0 0.0
    %7989 = vmatpush1.msra.mxu0 %v7785
    %7990 = vmatprep.subr.mxu0 0.0
    %7991 = vmatpush1.msra.mxu0 %v7787
    %7992 = vmatprep.subr.mxu0 0.0
    %7993 = vmatpush1.msra.mxu0 %v7789
    %7994 = vmatprep.subr.mxu0 0.0
    %7995 = vmatpush1.msra.mxu0 0.0
    %7996 = vmatprep.subr.mxu0 0.0
    %7997 = vmatpush1.msra.mxu0 0.0
    %7998 = vmatprep.subr.mxu0 0.0
    %7999 = vmatpush1.msra.mxu0 0.0
    %8000 = vmatprep.subr.mxu0 0.0
    %8001 = vmatpush1.msra.mxu0 0.0
    %8002 = vmatprep.subr.mxu0 0.0
    %8003 = vmatpush1.msra.mxu0 0.0
    %8004 = vmatprep.subr.mxu0 0.0
    %8005 = vmatpush1.msra.mxu0 0.0
    %8006 = vmatprep.subr.mxu0 0.0
    %8007 = vmatpush1.msra.mxu0 0.0
    %8008 = vmatprep.subr.mxu0 0.0
    %8009 = vmatpush1.msra.mxu0 0.0
    %8010 = vmatprep.subr.mxu0 0.0
    %8011 = vmatpush1.msra.mxu0 0.0
    %8012 = vmatprep.subr.mxu0 0.0
    %8013 = vmatpush1.msra.mxu0 0.0
    %8014 = vmatprep.subr.mxu0 0.0
    %8015 = vmatpush1.msra.mxu0 0.0
    %8016 = vmatprep.subr.mxu0 0.0
    %8017 = vmatpush1.msra.mxu0 0.0
    %8018 = vmatprep.subr.mxu0 0.0
    %8019 = vmatpush1.msra.mxu0 0.0
    %8020 = vmatprep.subr.mxu0 0.0
    %8021 = vmatpush1.msra.mxu0 0.0
    %8022 = vmatprep.subr.mxu0 0.0
    %8023 = vmatpush1.msra.mxu0 0.0
    %8024 = vmatprep.subr.mxu0 0.0
    %8025 = vmatpush1.msra.mxu0 0.0
    %8026 = vmatprep.subr.mxu0 0.0
    %8027 = vmatpush1.msra.mxu0 0.0
    %8028 = vmatprep.subr.mxu0 0.0
    %8029 = vmatpush1.msra.mxu0 0.0
    %8030 = vmatprep.subr.mxu0 0.0
    %8031 = vmatpush1.msra.mxu0 0.0
    %8032 = vmatprep.subr.mxu0 0.0
    %8033 = vmatpush1.msra.mxu0 0.0
    %8034 = vmatprep.subr.mxu0 0.0
    %8035 = vmatpush1.msra.mxu0 0.0
    %8036 = vmatprep.subr.mxu0 0.0
    %8037 = vmatpush1.msra.mxu0 0.0
    %8038 = vmatprep.subr.mxu0 0.0
    %8039 = vmatpush1.msra.mxu0 0.0
    %8040 = vmatprep.subr.mxu0 0.0
    %8041 = vmatpush1.msra.mxu0 0.0
    %8042 = vmatprep.subr.mxu0 0.0
    %8043 = vmatpush1.msra.mxu0 0.0
    %8044 = vmatprep.subr.mxu0 0.0
    %8045 = vmatpush1.msra.mxu0 0.0
    %8046 = vmatprep.subr.mxu0 0.0
    %8047 = vmatpush1.msra.mxu0 0.0
    %8048 = vmatprep.subr.mxu0 0.0
    %8049 = vmatpush1.msra.mxu0 0.0
    %8050 = vmatprep.mubr.f32.mxu0 0.0
    %8051 = vmatmul.mubr.f32.gmra.mrb[0].mxu0 %v7795
    %v8052 = vpop.f32.mrb[0].mxu0
    %v8053 = vadd.f32 %v7464, %v8052
    %v8054 = vpop.f32.mrb[0].mxu0
    %8055 = vmatprep.mubr.f32.mxu0 0.0
    %8056 = vmatmul.mubr.f32.gmra.mrb[0].mxu0 %v7798
    %v8057 = vpop.f32.mrb[0].mxu0
    %v8058 = vadd.f32 %v7469, %v8057
    %v8059 = vpop.f32.mrb[0].mxu0
    %8060 = vmatprep.mubr.f32.mxu0 0.0
    %8061 = vmatmul.mubr.f32.gmra.mrb[0].mxu0 %v7801
    %v8062 = vpop.f32.mrb[0].mxu0
    %v8063 = vadd.f32 %v7474, %v8062
    %v8064 = vpop.f32.mrb[0].mxu0
    %8065 = vmatprep.mubr.f32.mxu0 0.0
    %8066 = vmatmul.mubr.f32.gmra.mrb[0].mxu0 %v7804
    %v8067 = vpop.f32.mrb[0].mxu0
    %v8068 = vadd.f32 %v7479, %v8067
    %v8069 = vpop.f32.mrb[0].mxu0
    %8070 = vmatprep.mubr.f32.mxu0 0.0
    %8071 = vmatmul.mubr.f32.gmra.mrb[0].mxu0 %v7807
    %v8072 = vpop.f32.mrb[0].mxu0
    %v8073 = vadd.f32 %v7484, %v8072
    %v8074 = vpop.f32.mrb[0].mxu0
    %8075 = vmatprep.mubr.f32.mxu0 0.0
    %8076 = vmatmul.mubr.f32.gmra.mrb[0].mxu0 %v7810
    %v8077 = vpop.f32.mrb[0].mxu0
    %v8078 = vadd.f32 %v7489, %v8077
    %v8079 = vpop.f32.mrb[0].mxu0
    %8080 = vmatprep.mubr.f32.mxu0 0.0
    %8081 = vmatmul.mubr.f32.gmra.mrb[0].mxu0 %v7813
    %v8082 = vpop.f32.mrb[0].mxu0
    %v8083 = vadd.f32 %v7494, %v8082
    %v8084 = vpop.f32.mrb[0].mxu0
    %8085 = vmatprep.mubr.f32.mxu0 0.0
    %8086 = vmatmul.mubr.f32.gmra.mrb[0].mxu0 %v7816
    %v8087 = vpop.f32.mrb[0].mxu0
    %v8088 = vadd.f32 %v7499, %v8087
    %v8089 = vpop.f32.mrb[0].mxu0
    %8090 = vmatprep.mubr.f32.mxu0 0.0
    %8091 = vmatmul.mubr.f32.gmra.mrb[0].mxu0 %v7819
    %v8092 = vpop.f32.mrb[0].mxu0
    %v8093 = vadd.f32 %v7504, %v8092
    %v8094 = vpop.f32.mrb[0].mxu0
    %8095 = vmatprep.mubr.f32.mxu0 0.0
    %8096 = vmatmul.mubr.f32.gmra.mrb[0].mxu0 %v7822
    %v8097 = vpop.f32.mrb[0].mxu0
    %v8098 = vadd.f32 %v7509, %v8097
    %v8099 = vpop.f32.mrb[0].mxu0
    %8100 = vmatprep.mubr.f32.mxu0 0.0
    %8101 = vmatmul.mubr.f32.gmra.mrb[0].mxu0 %v7825
    %v8102 = vpop.f32.mrb[0].mxu0
    %v8103 = vadd.f32 %v7514, %v8102
    %v8104 = vpop.f32.mrb[0].mxu0
    %8105 = vmatprep.mubr.f32.mxu0 0.0
    %8106 = vmatmul.mubr.f32.gmra.mrb[0].mxu0 %v7828
    %v8107 = vpop.f32.mrb[0].mxu0
    %v8108 = vadd.f32 %v7519, %v8107
    %v8109 = vpop.f32.mrb[0].mxu0
    %8110 = vmatprep.mubr.f32.mxu0 0.0
    %8111 = vmatmul.mubr.f32.gmra.mrb[0].mxu0 %v7831
    %v8112 = vpop.f32.mrb[0].mxu0
    %v8113 = vadd.f32 %v7524, %v8112
    %v8114 = vpop.f32.mrb[0].mxu0
    %8115 = vmatprep.mubr.f32.mxu0 0.0
    %8116 = vmatmul.mubr.f32.gmra.mrb[0].mxu0 %v7834
    %v8117 = vpop.f32.mrb[0].mxu0
    %v8118 = vadd.f32 %v7529, %v8117
    %v8119 = vpop.f32.mrb[0].mxu0
    %8120 = vmatprep.mubr.f32.mxu0 0.0
    %8121 = vmatmul.mubr.f32.gmra.mrb[0].mxu0 %v7837
    %v8122 = vpop.f32.mrb[0].mxu0
    %v8123 = vadd.f32 %v7534, %v8122
    %v8124 = vpop.f32.mrb[0].mxu0
    %8125 = vmatprep.mubr.f32.mxu0 0.0
    %8126 = vmatmul.mubr.f32.gmra.mrb[0].mxu0 %v7840
    %v8127 = vpop.f32.mrb[0].mxu0
    %v8128 = vadd.f32 %v7539, %v8127
    %v8129 = vpop.f32.mrb[0].mxu0
    %8130 = vmatprep.mubr.f32.mxu0 0.0
    %8131 = vmatmul.mubr.f32.gmra.mrb[0].mxu0 %v7843
    %v8132 = vpop.f32.mrb[0].mxu0
    %v8133 = vadd.f32 %v7544, %v8132
    %v8134 = vpop.f32.mrb[0].mxu0
    %8135 = vmatprep.mubr.f32.mxu0 0.0
    %8136 = vmatmul.mubr.f32.gmra.mrb[0].mxu0 %v7846
    %v8137 = vpop.f32.mrb[0].mxu0
    %v8138 = vadd.f32 %v7549, %v8137
    %v8139 = vpop.f32.mrb[0].mxu0
    %8140 = vmatprep.mubr.f32.mxu0 0.0
    %8141 = vmatmul.mubr.f32.gmra.mrb[0].mxu0 %v7849
    %v8142 = vpop.f32.mrb[0].mxu0
    %v8143 = vadd.f32 %v7554, %v8142
    %v8144 = vpop.f32.mrb[0].mxu0
    %8145 = vmatprep.mubr.f32.mxu0 0.0
    %8146 = vmatmul.mubr.f32.gmra.mrb[0].mxu0 %v7852
    %v8147 = vpop.f32.mrb[0].mxu0
    %v8148 = vadd.f32 %v7559, %v8147
    %v8149 = vpop.f32.mrb[0].mxu0
    %8150 = vmatprep.mubr.f32.mxu0 0.0
    %8151 = vmatmul.mubr.f32.gmra.mrb[0].mxu0 %v7855
    %v8152 = vpop.f32.mrb[0].mxu0
    %v8153 = vadd.f32 %v7564, %v8152
    %v8154 = vpop.f32.mrb[0].mxu0
    %8155 = vmatprep.mubr.f32.mxu0 0.0
    %8156 = vmatmul.mubr.f32.gmra.mrb[0].mxu0 %v7858
    %v8157 = vpop.f32.mrb[0].mxu0
    %v8158 = vadd.f32 %v7569, %v8157
    %v8159 = vpop.f32.mrb[0].mxu0
    %8160 = vmatprep.mubr.f32.mxu0 0.0
    %8161 = vmatmul.mubr.f32.gmra.mrb[0].mxu0 %v7861
    %v8162 = vpop.f32.mrb[0].mxu0
    %v8163 = vadd.f32 %v7574, %v8162
    %v8164 = vpop.f32.mrb[0].mxu0
    %8165 = vmatprep.mubr.f32.mxu0 0.0
    %8166 = vmatmul.mubr.f32.gmra.mrb[0].mxu0 %v7864
    %v8167 = vpop.f32.mrb[0].mxu0
    %v8168 = vadd.f32 %v7579, %v8167
    %v8169 = vpop.f32.mrb[0].mxu0
    %8170 = vmatprep.mubr.f32.mxu0 0.0
    %8171 = vmatmul.mubr.f32.gmra.mrb[0].mxu0 %v7867
    %v8172 = vpop.f32.mrb[0].mxu0
    %v8173 = vadd.f32 %v7584, %v8172
    %v8174 = vpop.f32.mrb[0].mxu0
    %8175 = vmatprep.mubr.f32.mxu0 0.0
    %8176 = vmatmul.mubr.f32.gmra.mrb[0].mxu0 %v7870
    %v8177 = vpop.f32.mrb[0].mxu0
    %v8178 = vadd.f32 %v7589, %v8177
    %v8179 = vpop.f32.mrb[0].mxu0
    %8180 = vmatprep.mubr.f32.mxu0 0.0
    %8181 = vmatmul.mubr.f32.gmra.mrb[0].mxu0 %v7873
    %v8182 = vpop.f32.mrb[0].mxu0
    %v8183 = vadd.f32 %v7594, %v8182
    %v8184 = vpop.f32.mrb[0].mxu0
    %8185 = vmatprep.mubr.f32.mxu0 0.0
    %8186 = vmatmul.mubr.f32.gmra.mrb[0].mxu0 %v7876
    %v8187 = vpop.f32.mrb[0].mxu0
    %v8188 = vadd.f32 %v7599, %v8187
    %v8189 = vpop.f32.mrb[0].mxu0
    %8190 = vmatprep.mubr.f32.mxu0 0.0
    %8191 = vmatmul.mubr.f32.gmra.mrb[0].mxu0 %v7879
    %v8192 = vpop.f32.mrb[0].mxu0
    %v8193 = vadd.f32 %v7604, %v8192
    %v8194 = vpop.f32.mrb[0].mxu0
    %8195 = vmatprep.mubr.f32.mxu0 0.0
    %8196 = vmatmul.mubr.f32.gmra.mrb[0].mxu0 %v7882
    %v8197 = vpop.f32.mrb[0].mxu0
    %v8198 = vadd.f32 %v7609, %v8197
    %v8199 = vpop.f32.mrb[0].mxu0
    %8200 = vmatprep.mubr.f32.mxu0 0.0
    %8201 = vmatmul.mubr.f32.gmra.mrb[0].mxu0 %v7885
    %v8202 = vpop.f32.mrb[0].mxu0
    %v8203 = vadd.f32 %v7614, %v8202
    %v8204 = vpop.f32.mrb[0].mxu0
    %8205 = vmatprep.mubr.f32.mxu0 0.0
    %8206 = vmatmul.mubr.f32.gmra.mrb[0].mxu0 %v7888
    %v8207 = vpop.f32.mrb[0].mxu0
    %v8208 = vadd.f32 %v7619, %v8207
    %v8209 = vpop.f32.mrb[0].mxu0
    %8210 = vmatprep.mubr.f32.mxu0 0.0
    %8211 = vmatmul.mubr.f32.gmra.mrb[0].mxu0 %v7891
    %v8212 = vpop.f32.mrb[0].mxu0
    %v8213 = vadd.f32 %v7624, %v8212
    %v8214 = vpop.f32.mrb[0].mxu0
    %8215 = vmatprep.mubr.f32.mxu0 0.0
    %8216 = vmatmul.mubr.f32.gmra.mrb[0].mxu0 %v7894
    %v8217 = vpop.f32.mrb[0].mxu0
    %v8218 = vadd.f32 %v7629, %v8217
    %v8219 = vpop.f32.mrb[0].mxu0
    %8220 = vmatprep.mubr.f32.mxu0 0.0
    %8221 = vmatmul.mubr.f32.gmra.mrb[0].mxu0 %v7897
    %v8222 = vpop.f32.mrb[0].mxu0
    %v8223 = vadd.f32 %v7634, %v8222
    %v8224 = vpop.f32.mrb[0].mxu0
    %8225 = vmatprep.mubr.f32.mxu0 0.0
    %8226 = vmatmul.mubr.f32.gmra.mrb[0].mxu0 %v7900
    %v8227 = vpop.f32.mrb[0].mxu0
    %v8228 = vadd.f32 %v7639, %v8227
    %v8229 = vpop.f32.mrb[0].mxu0
    %8230 = vmatprep.mubr.f32.mxu0 0.0
    %8231 = vmatmul.mubr.f32.gmra.mrb[0].mxu0 %v7903
    %v8232 = vpop.f32.mrb[0].mxu0
    %v8233 = vadd.f32 %v7644, %v8232
    %v8234 = vpop.f32.mrb[0].mxu0
    %8235 = vmatprep.mubr.f32.mxu0 0.0
    %8236 = vmatmul.mubr.f32.gmra.mrb[0].mxu0 %v7906
    %v8237 = vpop.f32.mrb[0].mxu0
    %v8238 = vadd.f32 %v7649, %v8237
    %v8239 = vpop.f32.mrb[0].mxu0
    %8240 = vmatprep.mubr.f32.mxu0 0.0
    %8241 = vmatmul.mubr.f32.gmra.mrb[0].mxu0 %v7909
    %v8242 = vpop.f32.mrb[0].mxu0
    %v8243 = vadd.f32 %v7654, %v8242
    %v8244 = vpop.f32.mrb[0].mxu0
    %8245 = vmatprep.mubr.f32.mxu0 0.0
    %8246 = vmatmul.mubr.f32.gmra.mrb[0].mxu0 %v7912
    %v8247 = vpop.f32.mrb[0].mxu0
    %v8248 = vadd.f32 %v7659, %v8247
    %v8249 = vpop.f32.mrb[0].mxu0
    %8250 = vmatprep.mubr.f32.mxu0 0.0
    %8251 = vmatmul.mubr.f32.gmra.mrb[0].mxu0 %v7915
    %v8252 = vpop.f32.mrb[0].mxu0
    %v8253 = vadd.f32 %v7664, %v8252
    %v8254 = vpop.f32.mrb[0].mxu0
    %8255 = vmatprep.mubr.f32.mxu0 0.0
    %8256 = vmatmul.mubr.f32.gmra.mrb[0].mxu0 %v7918
    %v8257 = vpop.f32.mrb[0].mxu0
    %v8258 = vadd.f32 %v7669, %v8257
    %v8259 = vpop.f32.mrb[0].mxu0
    %8260 = vmatprep.mubr.f32.mxu0 0.0
    %8261 = vmatmul.mubr.f32.gmra.mrb[0].mxu0 %v7921
    %v8262 = vpop.f32.mrb[0].mxu0
    %v8263 = vadd.f32 %v7674, %v8262
    %v8264 = vpop.f32.mrb[0].mxu0
    %8265 = vmatprep.mubr.f32.mxu0 0.0
    %8266 = vmatmul.mubr.f32.gmra.mrb[0].mxu0 %v7924
    %v8267 = vpop.f32.mrb[0].mxu0
    %v8268 = vadd.f32 %v7679, %v8267
    %v8269 = vpop.f32.mrb[0].mxu0
    %8270 = vmatprep.mubr.f32.mxu0 0.0
    %8271 = vmatmul.mubr.f32.gmra.mrb[0].mxu0 %v7927
    %v8272 = vpop.f32.mrb[0].mxu0
    %v8273 = vadd.f32 %v7684, %v8272
    %v8274 = vpop.f32.mrb[0].mxu0
    %8275 = vmatprep.mubr.f32.mxu0 0.0
    %8276 = vmatmul.mubr.f32.gmra.mrb[0].mxu0 %v7930
    %v8277 = vpop.f32.mrb[0].mxu0
    %v8278 = vadd.f32 %v7689, %v8277
    %v8279 = vpop.f32.mrb[0].mxu0
    %8280 = vmatprep.mubr.f32.mxu0 0.0
    %8281 = vmatmul.mubr.f32.gmra.mrb[0].mxu0 %v7933
    %v8282 = vpop.f32.mrb[0].mxu0
    %v8283 = vadd.f32 %v7694, %v8282
    %v8284 = vpop.f32.mrb[0].mxu0
    %8285 = vmatprep.mubr.f32.mxu0 0.0
    %8286 = vmatmul.mubr.f32.gmra.mrb[0].mxu0 %v7936
    %v8287 = vpop.f32.mrb[0].mxu0
    %v8288 = vadd.f32 %v7699, %v8287
    %v8289 = vpop.f32.mrb[0].mxu0
    %8290 = vmatprep.mubr.f32.mxu0 0.0
    %8291 = vmatmul.mubr.f32.gmra.mrb[0].mxu0 %v7939
    %v8292 = vpop.f32.mrb[0].mxu0
    %v8293 = vadd.f32 %v7704, %v8292
    %v8294 = vpop.f32.mrb[0].mxu0
    %8295 = vmatprep.mubr.f32.mxu0 0.0
    %8296 = vmatmul.mubr.f32.gmra.mrb[0].mxu0 %v7942
    %v8297 = vpop.f32.mrb[0].mxu0
    %v8298 = vadd.f32 %v7709, %v8297
    %v8299 = vpop.f32.mrb[0].mxu0
    %8300 = vmatprep.mubr.f32.mxu0 0.0
    %8301 = vmatmul.mubr.f32.gmra.mrb[0].mxu0 %v7945
    %v8302 = vpop.f32.mrb[0].mxu0
    %v8303 = vadd.f32 %v7714, %v8302
    %v8304 = vpop.f32.mrb[0].mxu0
    %8305 = vmatprep.mubr.f32.mxu0 0.0
    %8306 = vmatmul.mubr.f32.gmra.mrb[0].mxu0 %v7948
    %v8307 = vpop.f32.mrb[0].mxu0
    %v8308 = vadd.f32 %v7719, %v8307
    %v8309 = vpop.f32.mrb[0].mxu0
    %8310 = vmatprep.mubr.f32.mxu0 0.0
    %8311 = vmatmul.mubr.f32.gmra.mrb[0].mxu0 %v7951
    %v8312 = vpop.f32.mrb[0].mxu0
    %v8313 = vadd.f32 %v7724, %v8312
    %v8314 = vpop.f32.mrb[0].mxu0
    %8315 = vmatprep.mubr.f32.mxu0 0.0
    %8316 = vmatmul.mubr.f32.gmra.mrb[0].mxu0 %v7954
    %v8317 = vpop.f32.mrb[0].mxu0
    %v8318 = vadd.f32 %v7729, %v8317
    %v8319 = vpop.f32.mrb[0].mxu0
    %8320 = vmatprep.mubr.f32.mxu0 0.0
    %8321 = vmatmul.mubr.f32.gmra.mrb[0].mxu0 %v7957
    %v8322 = vpop.f32.mrb[0].mxu0
    %v8323 = vadd.f32 %v7734, %v8322
    %v8324 = vpop.f32.mrb[0].mxu0
    %8325 = vmatprep.mubr.f32.mxu0 0.0
    %8326 = vmatmul.mubr.f32.gmra.mrb[0].mxu0 %v7960
    %v8327 = vpop.f32.mrb[0].mxu0
    %v8328 = vadd.f32 %v7739, %v8327
    %v8329 = vpop.f32.mrb[0].mxu0
    %8330 = vmatprep.mubr.f32.mxu0 0.0
    %8331 = vmatmul.mubr.f32.gmra.mrb[0].mxu0 %v7963
    %v8332 = vpop.f32.mrb[0].mxu0
    %v8333 = vadd.f32 %v7744, %v8332
    %v8334 = vpop.f32.mrb[0].mxu0
    %8335 = vmatprep.mubr.f32.mxu0 0.0
    %8336 = vmatmul.mubr.f32.gmra.mrb[0].mxu0 %v7966
    %v8337 = vpop.f32.mrb[0].mxu0
    %v8338 = vadd.f32 %v7749, %v8337
    %v8339 = vpop.f32.mrb[0].mxu0
    %8340 = vmatprep.mubr.f32.mxu0 0.0
    %8341 = vmatmul.mubr.f32.gmra.mrb[0].mxu0 %v7969
    %v8342 = vpop.f32.mrb[0].mxu0
    %v8343 = vadd.f32 %v7754, %v8342
    %v8344 = vpop.f32.mrb[0].mxu0
    %8345 = vmatprep.mubr.f32.mxu0 0.0
    %8346 = vmatmul.mubr.f32.gmra.mrb[0].mxu0 %v7972
    %v8347 = vpop.f32.mrb[0].mxu0
    %v8348 = vadd.f32 %v7759, %v8347
    %v8349 = vpop.f32.mrb[0].mxu0
    %8350 = vmatprep.mubr.f32.mxu0 0.0
    %8351 = vmatmul.mubr.f32.gmra.mrb[0].mxu0 %v7975
    %v8352 = vpop.f32.mrb[0].mxu0
    %v8353 = vadd.f32 %v7764, %v8352
    %v8354 = vpop.f32.mrb[0].mxu0
    %8355 = vmatprep.mubr.f32.mxu0 0.0
    %8356 = vmatmul.mubr.f32.gmra.mrb[0].mxu0 %v7978
    %v8357 = vpop.f32.mrb[0].mxu0
    %v8358 = vadd.f32 %v7769, %v8357
    %v8359 = vpop.f32.mrb[0].mxu0
    %8360 = vmatprep.mubr.f32.mxu0 0.0
    %8361 = vmatmul.mubr.f32.gmra.mrb[0].mxu0 %v7981
    %v8362 = vpop.f32.mrb[0].mxu0
    %v8363 = vadd.f32 %v7774, %v8362
    %v8364 = vpop.f32.mrb[0].mxu0
    %8365 = vmatprep.mubr.f32.mxu0 0.0
    %8366 = vmatmul.mubr.f32.gmra.mrb[0].mxu0 %v7984
    %v8367 = vpop.f32.mrb[0].mxu0
    %v8368 = vadd.f32 %v7779, %v8367
    %v8369 = vpop.f32.mrb[0].mxu0
    %8370 = vdwg.mxu0
    %v8371 = vlaneseq
    %v8372 = vshrl.u32 %v8371, 7
    %v8373 = vsub.s32 0, %v8372
    %v8374 = vrot.slane %v73, %v8373
    %8376 = vrot.lane.b32.xlu0 %v8374, 79
    %v8377 = vpop.permute.xlu0 %8376
    %v8379 = vadd.f32 %v8053, %v8377
    %v8380 = vadd.f32 %v8058, %v8377
    %v8381 = vadd.f32 %v8063, %v8377
    %v8382 = vadd.f32 %v8068, %v8377
    %v8383 = vadd.f32 %v8073, %v8377
    %v8384 = vadd.f32 %v8078, %v8377
    %v8385 = vadd.f32 %v8083, %v8377
    %v8386 = vadd.f32 %v8088, %v8377
    %v8387 = vadd.f32 %v8093, %v8377
    %v8388 = vadd.f32 %v8098, %v8377
    %v8389 = vadd.f32 %v8103, %v8377
    %v8390 = vadd.f32 %v8108, %v8377
    %v8391 = vadd.f32 %v8113, %v8377
    %v8392 = vadd.f32 %v8118, %v8377
    %v8393 = vadd.f32 %v8123, %v8377
    %v8394 = vadd.f32 %v8128, %v8377
    %v8395 = vadd.f32 %v8133, %v8377
    %v8396 = vadd.f32 %v8138, %v8377
    %v8397 = vadd.f32 %v8143, %v8377
    %v8398 = vadd.f32 %v8148, %v8377
    %v8399 = vadd.f32 %v8153, %v8377
    %v8400 = vadd.f32 %v8158, %v8377
    %v8401 = vadd.f32 %v8163, %v8377
    %v8402 = vadd.f32 %v8168, %v8377
    %v8403 = vadd.f32 %v8173, %v8377
    %v8404 = vadd.f32 %v8178, %v8377
    %v8405 = vadd.f32 %v8183, %v8377
    %v8406 = vadd.f32 %v8188, %v8377
    %v8407 = vadd.f32 %v8193, %v8377
    %v8408 = vadd.f32 %v8198, %v8377
    %v8409 = vadd.f32 %v8203, %v8377
    %v8410 = vadd.f32 %v8208, %v8377
    %v8411 = vadd.f32 %v8213, %v8377
    %v8412 = vadd.f32 %v8218, %v8377
    %v8413 = vadd.f32 %v8223, %v8377
    %v8414 = vadd.f32 %v8228, %v8377
    %v8415 = vadd.f32 %v8233, %v8377
    %v8416 = vadd.f32 %v8238, %v8377
    %v8417 = vadd.f32 %v8243, %v8377
    %v8418 = vadd.f32 %v8248, %v8377
    %v8419 = vadd.f32 %v8253, %v8377
    %v8420 = vadd.f32 %v8258, %v8377
    %v8421 = vadd.f32 %v8263, %v8377
    %v8422 = vadd.f32 %v8268, %v8377
    %v8423 = vadd.f32 %v8273, %v8377
    %v8424 = vadd.f32 %v8278, %v8377
    %v8425 = vadd.f32 %v8283, %v8377
    %v8426 = vadd.f32 %v8288, %v8377
    %v8427 = vadd.f32 %v8293, %v8377
    %v8428 = vadd.f32 %v8298, %v8377
    %v8429 = vadd.f32 %v8303, %v8377
    %v8430 = vadd.f32 %v8308, %v8377
    %v8431 = vadd.f32 %v8313, %v8377
    %v8432 = vadd.f32 %v8318, %v8377
    %v8433 = vadd.f32 %v8323, %v8377
    %v8434 = vadd.f32 %v8328, %v8377
    %v8435 = vadd.f32 %v8333, %v8377
    %v8436 = vadd.f32 %v8338, %v8377
    %v8437 = vadd.f32 %v8343, %v8377
    %v8438 = vadd.f32 %v8348, %v8377
    %v8439 = vadd.f32 %v8353, %v8377
    %v8440 = vadd.f32 %v8358, %v8377
    %v8441 = vadd.f32 %v8363, %v8377
    %v8442 = vadd.f32 %v8368, %v8377
    %8443 = vrot.lane.b32.xlu0 %v69, 78
    %v8444 = vpop.permute.xlu0 %8443
    %8445 = vrot.lane.b32.xlu0 %v70, 78
    %v8446 = vpop.permute.xlu0 %8445
    %8447 = vrot.lane.b32.xlu0 %v71, 78
    %v8448 = vpop.permute.xlu0 %8447
    %8449 = vrot.lane.b32.xlu0 %v72, 78
    %v8450 = vpop.permute.xlu0 %8449
    %8455 = vmatprep.subr.mxu0 0.0
    %8456 = vmatpush1.msra.mxu0 %v8444
    %8457 = vmatprep.subr.mxu0 0.0
    %8458 = vmatpush1.msra.mxu0 %v8446
    %8459 = vmatprep.subr.mxu0 0.0
    %8460 = vmatpush1.msra.mxu0 %v8448
    %8461 = vmatprep.subr.mxu0 0.0
    %8462 = vmatpush1.msra.mxu0 %v8450
    %8463 = vmatprep.subr.mxu0 0.0
    %8464 = vmatpush1.msra.mxu0 0.0
    %8465 = vmatprep.subr.mxu0 0.0
    %8466 = vmatpush1.msra.mxu0 0.0
    %8467 = vmatprep.subr.mxu0 0.0
    %8468 = vmatpush1.msra.mxu0 0.0
    %8469 = vmatprep.subr.mxu0 0.0
    %8470 = vmatpush1.msra.mxu0 0.0
    %8471 = vmatprep.subr.mxu0 0.0
    %8472 = vmatpush1.msra.mxu0 0.0
    %8473 = vmatprep.subr.mxu0 0.0
    %8474 = vmatpush1.msra.mxu0 0.0
    %8475 = vmatprep.subr.mxu0 0.0
    %8476 = vmatpush1.msra.mxu0 0.0
    %8477 = vmatprep.subr.mxu0 0.0
    %8478 = vmatpush1.msra.mxu0 0.0
    %8479 = vmatprep.subr.mxu0 0.0
    %8480 = vmatpush1.msra.mxu0 0.0
    %8481 = vmatprep.subr.mxu0 0.0
    %8482 = vmatpush1.msra.mxu0 0.0
    %8483 = vmatprep.subr.mxu0 0.0
    %8484 = vmatpush1.msra.mxu0 0.0
    %8485 = vmatprep.subr.mxu0 0.0
    %8486 = vmatpush1.msra.mxu0 0.0
    %8487 = vmatprep.subr.mxu0 0.0
    %8488 = vmatpush1.msra.mxu0 0.0
    %8489 = vmatprep.subr.mxu0 0.0
    %8490 = vmatpush1.msra.mxu0 0.0
    %8491 = vmatprep.subr.mxu0 0.0
    %8492 = vmatpush1.msra.mxu0 0.0
    %8493 = vmatprep.subr.mxu0 0.0
    %8494 = vmatpush1.msra.mxu0 0.0
    %8495 = vmatprep.subr.mxu0 0.0
    %8496 = vmatpush1.msra.mxu0 0.0
    %8497 = vmatprep.subr.mxu0 0.0
    %8498 = vmatpush1.msra.mxu0 0.0
    %8499 = vmatprep.subr.mxu0 0.0
    %8500 = vmatpush1.msra.mxu0 0.0
    %8501 = vmatprep.subr.mxu0 0.0
    %8502 = vmatpush1.msra.mxu0 0.0
    %8503 = vmatprep.subr.mxu0 0.0
    %8504 = vmatpush1.msra.mxu0 0.0
    %8505 = vmatprep.subr.mxu0 0.0
    %8506 = vmatpush1.msra.mxu0 0.0
    %8507 = vmatprep.subr.mxu0 0.0
    %8508 = vmatpush1.msra.mxu0 0.0
    %8509 = vmatprep.subr.mxu0 0.0
    %8510 = vmatpush1.msra.mxu0 0.0
    %8511 = vmatprep.subr.mxu0 0.0
    %8512 = vmatpush1.msra.mxu0 0.0
    %8513 = vmatprep.subr.mxu0 0.0
    %8514 = vmatpush1.msra.mxu0 0.0
    %8515 = vmatprep.subr.mxu0 0.0
    %8516 = vmatpush1.msra.mxu0 0.0
    %8517 = vmatprep.subr.mxu0 0.0
    %8518 = vmatpush1.msra.mxu0 0.0
    %8519 = vmatprep.mubr.f32.mxu0 0.0
    %8520 = vmatmul.mubr.f32.gmra.mrb[0].mxu0 %v7206
    %v8521 = vpop.f32.mrb[0].mxu0
    %v8522 = vadd.f32 0.0, %v8521
    %v8523 = vpop.f32.mrb[0].mxu0
    %8524 = vmatprep.mubr.f32.mxu0 0.0
    %8525 = vmatmul.mubr.f32.gmra.mrb[0].mxu0 %v7209
    %v8526 = vpop.f32.mrb[0].mxu0
    %v8527 = vadd.f32 0.0, %v8526
    %v8528 = vpop.f32.mrb[0].mxu0
    %8529 = vmatprep.mubr.f32.mxu0 0.0
    %8530 = vmatmul.mubr.f32.gmra.mrb[0].mxu0 %v7212
    %v8531 = vpop.f32.mrb[0].mxu0
    %v8532 = vadd.f32 0.0, %v8531
    %v8533 = vpop.f32.mrb[0].mxu0
    %8534 = vmatprep.mubr.f32.mxu0 0.0
    %8535 = vmatmul.mubr.f32.gmra.mrb[0].mxu0 %v7215
    %v8536 = vpop.f32.mrb[0].mxu0
    %v8537 = vadd.f32 0.0, %v8536
    %v8538 = vpop.f32.mrb[0].mxu0
    %8539 = vmatprep.mubr.f32.mxu0 0.0
    %8540 = vmatmul.mubr.f32.gmra.mrb[0].mxu0 %v7218
    %v8541 = vpop.f32.mrb[0].mxu0
    %v8542 = vadd.f32 0.0, %v8541
    %v8543 = vpop.f32.mrb[0].mxu0
    %8544 = vmatprep.mubr.f32.mxu0 0.0
    %8545 = vmatmul.mubr.f32.gmra.mrb[0].mxu0 %v7221
    %v8546 = vpop.f32.mrb[0].mxu0
    %v8547 = vadd.f32 0.0, %v8546
    %v8548 = vpop.f32.mrb[0].mxu0
    %8549 = vmatprep.mubr.f32.mxu0 0.0
    %8550 = vmatmul.mubr.f32.gmra.mrb[0].mxu0 %v7224
    %v8551 = vpop.f32.mrb[0].mxu0
    %v8552 = vadd.f32 0.0, %v8551
    %v8553 = vpop.f32.mrb[0].mxu0
    %8554 = vmatprep.mubr.f32.mxu0 0.0
    %8555 = vmatmul.mubr.f32.gmra.mrb[0].mxu0 %v7227
    %v8556 = vpop.f32.mrb[0].mxu0
    %v8557 = vadd.f32 0.0, %v8556
    %v8558 = vpop.f32.mrb[0].mxu0
    %8559 = vmatprep.mubr.f32.mxu0 0.0
    %8560 = vmatmul.mubr.f32.gmra.mrb[0].mxu0 %v7230
    %v8561 = vpop.f32.mrb[0].mxu0
    %v8562 = vadd.f32 0.0, %v8561
    %v8563 = vpop.f32.mrb[0].mxu0
    %8564 = vmatprep.mubr.f32.mxu0 0.0
    %8565 = vmatmul.mubr.f32.gmra.mrb[0].mxu0 %v7233
    %v8566 = vpop.f32.mrb[0].mxu0
    %v8567 = vadd.f32 0.0, %v8566
    %v8568 = vpop.f32.mrb[0].mxu0
    %8569 = vmatprep.mubr.f32.mxu0 0.0
    %8570 = vmatmul.mubr.f32.gmra.mrb[0].mxu0 %v7236
    %v8571 = vpop.f32.mrb[0].mxu0
    %v8572 = vadd.f32 0.0, %v8571
    %v8573 = vpop.f32.mrb[0].mxu0
    %8574 = vmatprep.mubr.f32.mxu0 0.0
    %8575 = vmatmul.mubr.f32.gmra.mrb[0].mxu0 %v7239
    %v8576 = vpop.f32.mrb[0].mxu0
    %v8577 = vadd.f32 0.0, %v8576
    %v8578 = vpop.f32.mrb[0].mxu0
    %8579 = vmatprep.mubr.f32.mxu0 0.0
    %8580 = vmatmul.mubr.f32.gmra.mrb[0].mxu0 %v7242
    %v8581 = vpop.f32.mrb[0].mxu0
    %v8582 = vadd.f32 0.0, %v8581
    %v8583 = vpop.f32.mrb[0].mxu0
    %8584 = vmatprep.mubr.f32.mxu0 0.0
    %8585 = vmatmul.mubr.f32.gmra.mrb[0].mxu0 %v7245
    %v8586 = vpop.f32.mrb[0].mxu0
    %v8587 = vadd.f32 0.0, %v8586
    %v8588 = vpop.f32.mrb[0].mxu0
    %8589 = vmatprep.mubr.f32.mxu0 0.0
    %8590 = vmatmul.mubr.f32.gmra.mrb[0].mxu0 %v7248
    %v8591 = vpop.f32.mrb[0].mxu0
    %v8592 = vadd.f32 0.0, %v8591
    %v8593 = vpop.f32.mrb[0].mxu0
    %8594 = vmatprep.mubr.f32.mxu0 0.0
    %8595 = vmatmul.mubr.f32.gmra.mrb[0].mxu0 %v7251
    %v8596 = vpop.f32.mrb[0].mxu0
    %v8597 = vadd.f32 0.0, %v8596
    %v8598 = vpop.f32.mrb[0].mxu0
    %8599 = vmatprep.mubr.f32.mxu0 0.0
    %8600 = vmatmul.mubr.f32.gmra.mrb[0].mxu0 %v7254
    %v8601 = vpop.f32.mrb[0].mxu0
    %v8602 = vadd.f32 0.0, %v8601
    %v8603 = vpop.f32.mrb[0].mxu0
    %8604 = vmatprep.mubr.f32.mxu0 0.0
    %8605 = vmatmul.mubr.f32.gmra.mrb[0].mxu0 %v7257
    %v8606 = vpop.f32.mrb[0].mxu0
    %v8607 = vadd.f32 0.0, %v8606
    %v8608 = vpop.f32.mrb[0].mxu0
    %8609 = vmatprep.mubr.f32.mxu0 0.0
    %8610 = vmatmul.mubr.f32.gmra.mrb[0].mxu0 %v7260
    %v8611 = vpop.f32.mrb[0].mxu0
    %v8612 = vadd.f32 0.0, %v8611
    %v8613 = vpop.f32.mrb[0].mxu0
    %8614 = vmatprep.mubr.f32.mxu0 0.0
    %8615 = vmatmul.mubr.f32.gmra.mrb[0].mxu0 %v7263
    %v8616 = vpop.f32.mrb[0].mxu0
    %v8617 = vadd.f32 0.0, %v8616
    %v8618 = vpop.f32.mrb[0].mxu0
    %8619 = vmatprep.mubr.f32.mxu0 0.0
    %8620 = vmatmul.mubr.f32.gmra.mrb[0].mxu0 %v7266
    %v8621 = vpop.f32.mrb[0].mxu0
    %v8622 = vadd.f32 0.0, %v8621
    %v8623 = vpop.f32.mrb[0].mxu0
    %8624 = vmatprep.mubr.f32.mxu0 0.0
    %8625 = vmatmul.mubr.f32.gmra.mrb[0].mxu0 %v7269
    %v8626 = vpop.f32.mrb[0].mxu0
    %v8627 = vadd.f32 0.0, %v8626
    %v8628 = vpop.f32.mrb[0].mxu0
    %8629 = vmatprep.mubr.f32.mxu0 0.0
    %8630 = vmatmul.mubr.f32.gmra.mrb[0].mxu0 %v7272
    %v8631 = vpop.f32.mrb[0].mxu0
    %v8632 = vadd.f32 0.0, %v8631
    %v8633 = vpop.f32.mrb[0].mxu0
    %8634 = vmatprep.mubr.f32.mxu0 0.0
    %8635 = vmatmul.mubr.f32.gmra.mrb[0].mxu0 %v7275
    %v8636 = vpop.f32.mrb[0].mxu0
    %v8637 = vadd.f32 0.0, %v8636
    %v8638 = vpop.f32.mrb[0].mxu0
    %8639 = vmatprep.mubr.f32.mxu0 0.0
    %8640 = vmatmul.mubr.f32.gmra.mrb[0].mxu0 %v7278
    %v8641 = vpop.f32.mrb[0].mxu0
    %v8642 = vadd.f32 0.0, %v8641
    %v8643 = vpop.f32.mrb[0].mxu0
    %8644 = vmatprep.mubr.f32.mxu0 0.0
    %8645 = vmatmul.mubr.f32.gmra.mrb[0].mxu0 %v7281
    %v8646 = vpop.f32.mrb[0].mxu0
    %v8647 = vadd.f32 0.0, %v8646
    %v8648 = vpop.f32.mrb[0].mxu0
    %8649 = vmatprep.mubr.f32.mxu0 0.0
    %8650 = vmatmul.mubr.f32.gmra.mrb[0].mxu0 %v7284
    %v8651 = vpop.f32.mrb[0].mxu0
    %v8652 = vadd.f32 0.0, %v8651
    %v8653 = vpop.f32.mrb[0].mxu0
    %8654 = vmatprep.mubr.f32.mxu0 0.0
    %8655 = vmatmul.mubr.f32.gmra.mrb[0].mxu0 %v7287
    %v8656 = vpop.f32.mrb[0].mxu0
    %v8657 = vadd.f32 0.0, %v8656
    %v8658 = vpop.f32.mrb[0].mxu0
    %8659 = vmatprep.mubr.f32.mxu0 0.0
    %8660 = vmatmul.mubr.f32.gmra.mrb[0].mxu0 %v7290
    %v8661 = vpop.f32.mrb[0].mxu0
    %v8662 = vadd.f32 0.0, %v8661
    %v8663 = vpop.f32.mrb[0].mxu0
    %8664 = vmatprep.mubr.f32.mxu0 0.0
    %8665 = vmatmul.mubr.f32.gmra.mrb[0].mxu0 %v7293
    %v8666 = vpop.f32.mrb[0].mxu0
    %v8667 = vadd.f32 0.0, %v8666
    %v8668 = vpop.f32.mrb[0].mxu0
    %8669 = vmatprep.mubr.f32.mxu0 0.0
    %8670 = vmatmul.mubr.f32.gmra.mrb[0].mxu0 %v7296
    %v8671 = vpop.f32.mrb[0].mxu0
    %v8672 = vadd.f32 0.0, %v8671
    %v8673 = vpop.f32.mrb[0].mxu0
    %8674 = vmatprep.mubr.f32.mxu0 0.0
    %8675 = vmatmul.mubr.f32.gmra.mrb[0].mxu0 %v7299
    %v8676 = vpop.f32.mrb[0].mxu0
    %v8677 = vadd.f32 0.0, %v8676
    %v8678 = vpop.f32.mrb[0].mxu0
    %8679 = vmatprep.mubr.f32.mxu0 0.0
    %8680 = vmatmul.mubr.f32.gmra.mrb[0].mxu0 %v7302
    %v8681 = vpop.f32.mrb[0].mxu0
    %v8682 = vadd.f32 0.0, %v8681
    %v8683 = vpop.f32.mrb[0].mxu0
    %8684 = vmatprep.mubr.f32.mxu0 0.0
    %8685 = vmatmul.mubr.f32.gmra.mrb[0].mxu0 %v7305
    %v8686 = vpop.f32.mrb[0].mxu0
    %v8687 = vadd.f32 0.0, %v8686
    %v8688 = vpop.f32.mrb[0].mxu0
    %8689 = vmatprep.mubr.f32.mxu0 0.0
    %8690 = vmatmul.mubr.f32.gmra.mrb[0].mxu0 %v7308
    %v8691 = vpop.f32.mrb[0].mxu0
    %v8692 = vadd.f32 0.0, %v8691
    %v8693 = vpop.f32.mrb[0].mxu0
    %8694 = vmatprep.mubr.f32.mxu0 0.0
    %8695 = vmatmul.mubr.f32.gmra.mrb[0].mxu0 %v7311
    %v8696 = vpop.f32.mrb[0].mxu0
    %v8697 = vadd.f32 0.0, %v8696
    %v8698 = vpop.f32.mrb[0].mxu0
    %8699 = vmatprep.mubr.f32.mxu0 0.0
    %8700 = vmatmul.mubr.f32.gmra.mrb[0].mxu0 %v7314
    %v8701 = vpop.f32.mrb[0].mxu0
    %v8702 = vadd.f32 0.0, %v8701
    %v8703 = vpop.f32.mrb[0].mxu0
    %8704 = vmatprep.mubr.f32.mxu0 0.0
    %8705 = vmatmul.mubr.f32.gmra.mrb[0].mxu0 %v7317
    %v8706 = vpop.f32.mrb[0].mxu0
    %v8707 = vadd.f32 0.0, %v8706
    %v8708 = vpop.f32.mrb[0].mxu0
    %8709 = vmatprep.mubr.f32.mxu0 0.0
    %8710 = vmatmul.mubr.f32.gmra.mrb[0].mxu0 %v7320
    %v8711 = vpop.f32.mrb[0].mxu0
    %v8712 = vadd.f32 0.0, %v8711
    %v8713 = vpop.f32.mrb[0].mxu0
    %8714 = vmatprep.mubr.f32.mxu0 0.0
    %8715 = vmatmul.mubr.f32.gmra.mrb[0].mxu0 %v7323
    %v8716 = vpop.f32.mrb[0].mxu0
    %v8717 = vadd.f32 0.0, %v8716
    %v8718 = vpop.f32.mrb[0].mxu0
    %8719 = vmatprep.mubr.f32.mxu0 0.0
    %8720 = vmatmul.mubr.f32.gmra.mrb[0].mxu0 %v7326
    %v8721 = vpop.f32.mrb[0].mxu0
    %v8722 = vadd.f32 0.0, %v8721
    %v8723 = vpop.f32.mrb[0].mxu0
    %8724 = vmatprep.mubr.f32.mxu0 0.0
    %8725 = vmatmul.mubr.f32.gmra.mrb[0].mxu0 %v7329
    %v8726 = vpop.f32.mrb[0].mxu0
    %v8727 = vadd.f32 0.0, %v8726
    %v8728 = vpop.f32.mrb[0].mxu0
    %8729 = vmatprep.mubr.f32.mxu0 0.0
    %8730 = vmatmul.mubr.f32.gmra.mrb[0].mxu0 %v7332
    %v8731 = vpop.f32.mrb[0].mxu0
    %v8732 = vadd.f32 0.0, %v8731
    %v8733 = vpop.f32.mrb[0].mxu0
    %8734 = vmatprep.mubr.f32.mxu0 0.0
    %8735 = vmatmul.mubr.f32.gmra.mrb[0].mxu0 %v7335
    %v8736 = vpop.f32.mrb[0].mxu0
    %v8737 = vadd.f32 0.0, %v8736
    %v8738 = vpop.f32.mrb[0].mxu0
    %8739 = vmatprep.mubr.f32.mxu0 0.0
    %8740 = vmatmul.mubr.f32.gmra.mrb[0].mxu0 %v7338
    %v8741 = vpop.f32.mrb[0].mxu0
    %v8742 = vadd.f32 0.0, %v8741
    %v8743 = vpop.f32.mrb[0].mxu0
    %8744 = vmatprep.mubr.f32.mxu0 0.0
    %8745 = vmatmul.mubr.f32.gmra.mrb[0].mxu0 %v7341
    %v8746 = vpop.f32.mrb[0].mxu0
    %v8747 = vadd.f32 0.0, %v8746
    %v8748 = vpop.f32.mrb[0].mxu0
    %8749 = vmatprep.mubr.f32.mxu0 0.0
    %8750 = vmatmul.mubr.f32.gmra.mrb[0].mxu0 %v7344
    %v8751 = vpop.f32.mrb[0].mxu0
    %v8752 = vadd.f32 0.0, %v8751
    %v8753 = vpop.f32.mrb[0].mxu0
    %8754 = vmatprep.mubr.f32.mxu0 0.0
    %8755 = vmatmul.mubr.f32.gmra.mrb[0].mxu0 %v7347
    %v8756 = vpop.f32.mrb[0].mxu0
    %v8757 = vadd.f32 0.0, %v8756
    %v8758 = vpop.f32.mrb[0].mxu0
    %8759 = vmatprep.mubr.f32.mxu0 0.0
    %8760 = vmatmul.mubr.f32.gmra.mrb[0].mxu0 %v7350
    %v8761 = vpop.f32.mrb[0].mxu0
    %v8762 = vadd.f32 0.0, %v8761
    %v8763 = vpop.f32.mrb[0].mxu0
    %8764 = vmatprep.mubr.f32.mxu0 0.0
    %8765 = vmatmul.mubr.f32.gmra.mrb[0].mxu0 %v7353
    %v8766 = vpop.f32.mrb[0].mxu0
    %v8767 = vadd.f32 0.0, %v8766
    %v8768 = vpop.f32.mrb[0].mxu0
    %8769 = vmatprep.mubr.f32.mxu0 0.0
    %8770 = vmatmul.mubr.f32.gmra.mrb[0].mxu0 %v7356
    %v8771 = vpop.f32.mrb[0].mxu0
    %v8772 = vadd.f32 0.0, %v8771
    %v8773 = vpop.f32.mrb[0].mxu0
    %8774 = vmatprep.mubr.f32.mxu0 0.0
    %8775 = vmatmul.mubr.f32.gmra.mrb[0].mxu0 %v7359
    %v8776 = vpop.f32.mrb[0].mxu0
    %v8777 = vadd.f32 0.0, %v8776
    %v8778 = vpop.f32.mrb[0].mxu0
    %8779 = vmatprep.mubr.f32.mxu0 0.0
    %8780 = vmatmul.mubr.f32.gmra.mrb[0].mxu0 %v7362
    %v8781 = vpop.f32.mrb[0].mxu0
    %v8782 = vadd.f32 0.0, %v8781
    %v8783 = vpop.f32.mrb[0].mxu0
    %8784 = vmatprep.mubr.f32.mxu0 0.0
    %8785 = vmatmul.mubr.f32.gmra.mrb[0].mxu0 %v7365
    %v8786 = vpop.f32.mrb[0].mxu0
    %v8787 = vadd.f32 0.0, %v8786
    %v8788 = vpop.f32.mrb[0].mxu0
    %8789 = vmatprep.mubr.f32.mxu0 0.0
    %8790 = vmatmul.mubr.f32.gmra.mrb[0].mxu0 %v7368
    %v8791 = vpop.f32.mrb[0].mxu0
    %v8792 = vadd.f32 0.0, %v8791
    %v8793 = vpop.f32.mrb[0].mxu0
    %8794 = vmatprep.mubr.f32.mxu0 0.0
    %8795 = vmatmul.mubr.f32.gmra.mrb[0].mxu0 %v7371
    %v8796 = vpop.f32.mrb[0].mxu0
    %v8797 = vadd.f32 0.0, %v8796
    %v8798 = vpop.f32.mrb[0].mxu0
    %8799 = vmatprep.mubr.f32.mxu0 0.0
    %8800 = vmatmul.mubr.f32.gmra.mrb[0].mxu0 %v7374
    %v8801 = vpop.f32.mrb[0].mxu0
    %v8802 = vadd.f32 0.0, %v8801
    %v8803 = vpop.f32.mrb[0].mxu0
    %8804 = vmatprep.mubr.f32.mxu0 0.0
    %8805 = vmatmul.mubr.f32.gmra.mrb[0].mxu0 %v7377
    %v8806 = vpop.f32.mrb[0].mxu0
    %v8807 = vadd.f32 0.0, %v8806
    %v8808 = vpop.f32.mrb[0].mxu0
    %8809 = vmatprep.mubr.f32.mxu0 0.0
    %8810 = vmatmul.mubr.f32.gmra.mrb[0].mxu0 %v7380
    %v8811 = vpop.f32.mrb[0].mxu0
    %v8812 = vadd.f32 0.0, %v8811
    %v8813 = vpop.f32.mrb[0].mxu0
    %8814 = vmatprep.mubr.f32.mxu0 0.0
    %8815 = vmatmul.mubr.f32.gmra.mrb[0].mxu0 %v7383
    %v8816 = vpop.f32.mrb[0].mxu0
    %v8817 = vadd.f32 0.0, %v8816
    %v8818 = vpop.f32.mrb[0].mxu0
    %8819 = vmatprep.mubr.f32.mxu0 0.0
    %8820 = vmatmul.mubr.f32.gmra.mrb[0].mxu0 %v7386
    %v8821 = vpop.f32.mrb[0].mxu0
    %v8822 = vadd.f32 0.0, %v8821
    %v8823 = vpop.f32.mrb[0].mxu0
    %8824 = vmatprep.mubr.f32.mxu0 0.0
    %8825 = vmatmul.mubr.f32.gmra.mrb[0].mxu0 %v7389
    %v8826 = vpop.f32.mrb[0].mxu0
    %v8827 = vadd.f32 0.0, %v8826
    %v8828 = vpop.f32.mrb[0].mxu0
    %8829 = vmatprep.mubr.f32.mxu0 0.0
    %8830 = vmatmul.mubr.f32.gmra.mrb[0].mxu0 %v7392
    %v8831 = vpop.f32.mrb[0].mxu0
    %v8832 = vadd.f32 0.0, %v8831
    %v8833 = vpop.f32.mrb[0].mxu0
    %8834 = vmatprep.mubr.f32.mxu0 0.0
    %8835 = vmatmul.mubr.f32.gmra.mrb[0].mxu0 %v7395
    %v8836 = vpop.f32.mrb[0].mxu0
    %v8837 = vadd.f32 0.0, %v8836
    %v8838 = vpop.f32.mrb[0].mxu0
    %8839 = vdwg.mxu0
    %8840 = vrot.lane.b32.xlu0 %v65, 78
    %v8841 = vpop.permute.xlu0 %8840
    %8842 = vrot.lane.b32.xlu0 %v66, 78
    %v8843 = vpop.permute.xlu0 %8842
    %8844 = vrot.lane.b32.xlu0 %v67, 78
    %v8845 = vpop.permute.xlu0 %8844
    %8846 = vrot.lane.b32.xlu0 %v68, 78
    %v8847 = vpop.permute.xlu0 %8846
    %8852 = vmatprep.subr.mxu0 0.0
    %8853 = vmatpush1.msra.mxu0 %v8841
    %8854 = vmatprep.subr.mxu0 0.0
    %8855 = vmatpush1.msra.mxu0 %v8843
    %8856 = vmatprep.subr.mxu0 0.0
    %8857 = vmatpush1.msra.mxu0 %v8845
    %8858 = vmatprep.subr.mxu0 0.0
    %8859 = vmatpush1.msra.mxu0 %v8847
    %8860 = vmatprep.subr.mxu0 0.0
    %8861 = vmatpush1.msra.mxu0 0.0
    %8862 = vmatprep.subr.mxu0 0.0
    %8863 = vmatpush1.msra.mxu0 0.0
    %8864 = vmatprep.subr.mxu0 0.0
    %8865 = vmatpush1.msra.mxu0 0.0
    %8866 = vmatprep.subr.mxu0 0.0
    %8867 = vmatpush1.msra.mxu0 0.0
    %8868 = vmatprep.subr.mxu0 0.0
    %8869 = vmatpush1.msra.mxu0 0.0
    %8870 = vmatprep.subr.mxu0 0.0
    %8871 = vmatpush1.msra.mxu0 0.0
    %8872 = vmatprep.subr.mxu0 0.0
    %8873 = vmatpush1.msra.mxu0 0.0
    %8874 = vmatprep.subr.mxu0 0.0
    %8875 = vmatpush1.msra.mxu0 0.0
    %8876 = vmatprep.subr.mxu0 0.0
    %8877 = vmatpush1.msra.mxu0 0.0
    %8878 = vmatprep.subr.mxu0 0.0
    %8879 = vmatpush1.msra.mxu0 0.0
    %8880 = vmatprep.subr.mxu0 0.0
    %8881 = vmatpush1.msra.mxu0 0.0
    %8882 = vmatprep.subr.mxu0 0.0
    %8883 = vmatpush1.msra.mxu0 0.0
    %8884 = vmatprep.subr.mxu0 0.0
    %8885 = vmatpush1.msra.mxu0 0.0
    %8886 = vmatprep.subr.mxu0 0.0
    %8887 = vmatpush1.msra.mxu0 0.0
    %8888 = vmatprep.subr.mxu0 0.0
    %8889 = vmatpush1.msra.mxu0 0.0
    %8890 = vmatprep.subr.mxu0 0.0
    %8891 = vmatpush1.msra.mxu0 0.0
    %8892 = vmatprep.subr.mxu0 0.0
    %8893 = vmatpush1.msra.mxu0 0.0
    %8894 = vmatprep.subr.mxu0 0.0
    %8895 = vmatpush1.msra.mxu0 0.0
    %8896 = vmatprep.subr.mxu0 0.0
    %8897 = vmatpush1.msra.mxu0 0.0
    %8898 = vmatprep.subr.mxu0 0.0
    %8899 = vmatpush1.msra.mxu0 0.0
    %8900 = vmatprep.subr.mxu0 0.0
    %8901 = vmatpush1.msra.mxu0 0.0
    %8902 = vmatprep.subr.mxu0 0.0
    %8903 = vmatpush1.msra.mxu0 0.0
    %8904 = vmatprep.subr.mxu0 0.0
    %8905 = vmatpush1.msra.mxu0 0.0
    %8906 = vmatprep.subr.mxu0 0.0
    %8907 = vmatpush1.msra.mxu0 0.0
    %8908 = vmatprep.subr.mxu0 0.0
    %8909 = vmatpush1.msra.mxu0 0.0
    %8910 = vmatprep.subr.mxu0 0.0
    %8911 = vmatpush1.msra.mxu0 0.0
    %8912 = vmatprep.subr.mxu0 0.0
    %8913 = vmatpush1.msra.mxu0 0.0
    %8914 = vmatprep.subr.mxu0 0.0
    %8915 = vmatpush1.msra.mxu0 0.0
    %8916 = vmatprep.mubr.f32.mxu0 0.0
    %8917 = vmatmul.mubr.f32.gmra.mrb[0].mxu0 %v7795
    %v8918 = vpop.f32.mrb[0].mxu0
    %v8919 = vadd.f32 %v8522, %v8918
    %v8920 = vpop.f32.mrb[0].mxu0
    %8921 = vmatprep.mubr.f32.mxu0 0.0
    %8922 = vmatmul.mubr.f32.gmra.mrb[0].mxu0 %v7798
    %v8923 = vpop.f32.mrb[0].mxu0
    %v8924 = vadd.f32 %v8527, %v8923
    %v8925 = vpop.f32.mrb[0].mxu0
    %8926 = vmatprep.mubr.f32.mxu0 0.0
    %8927 = vmatmul.mubr.f32.gmra.mrb[0].mxu0 %v7801
    %v8928 = vpop.f32.mrb[0].mxu0
    %v8929 = vadd.f32 %v8532, %v8928
    %v8930 = vpop.f32.mrb[0].mxu0
    %8931 = vmatprep.mubr.f32.mxu0 0.0
    %8932 = vmatmul.mubr.f32.gmra.mrb[0].mxu0 %v7804
    %v8933 = vpop.f32.mrb[0].mxu0
    %v8934 = vadd.f32 %v8537, %v8933
    %v8935 = vpop.f32.mrb[0].mxu0
    %8936 = vmatprep.mubr.f32.mxu0 0.0
    %8937 = vmatmul.mubr.f32.gmra.mrb[0].mxu0 %v7807
    %v8938 = vpop.f32.mrb[0].mxu0
    %v8939 = vadd.f32 %v8542, %v8938
    %v8940 = vpop.f32.mrb[0].mxu0
    %8941 = vmatprep.mubr.f32.mxu0 0.0
    %8942 = vmatmul.mubr.f32.gmra.mrb[0].mxu0 %v7810
    %v8943 = vpop.f32.mrb[0].mxu0
    %v8944 = vadd.f32 %v8547, %v8943
    %v8945 = vpop.f32.mrb[0].mxu0
    %8946 = vmatprep.mubr.f32.mxu0 0.0
    %8947 = vmatmul.mubr.f32.gmra.mrb[0].mxu0 %v7813
    %v8948 = vpop.f32.mrb[0].mxu0
    %v8949 = vadd.f32 %v8552, %v8948
    %v8950 = vpop.f32.mrb[0].mxu0
    %8951 = vmatprep.mubr.f32.mxu0 0.0
    %8952 = vmatmul.mubr.f32.gmra.mrb[0].mxu0 %v7816
    %v8953 = vpop.f32.mrb[0].mxu0
    %v8954 = vadd.f32 %v8557, %v8953
    %v8955 = vpop.f32.mrb[0].mxu0
    %8956 = vmatprep.mubr.f32.mxu0 0.0
    %8957 = vmatmul.mubr.f32.gmra.mrb[0].mxu0 %v7819
    %v8958 = vpop.f32.mrb[0].mxu0
    %v8959 = vadd.f32 %v8562, %v8958
    %v8960 = vpop.f32.mrb[0].mxu0
    %8961 = vmatprep.mubr.f32.mxu0 0.0
    %8962 = vmatmul.mubr.f32.gmra.mrb[0].mxu0 %v7822
    %v8963 = vpop.f32.mrb[0].mxu0
    %v8964 = vadd.f32 %v8567, %v8963
    %v8965 = vpop.f32.mrb[0].mxu0
    %8966 = vmatprep.mubr.f32.mxu0 0.0
    %8967 = vmatmul.mubr.f32.gmra.mrb[0].mxu0 %v7825
    %v8968 = vpop.f32.mrb[0].mxu0
    %v8969 = vadd.f32 %v8572, %v8968
    %v8970 = vpop.f32.mrb[0].mxu0
    %8971 = vmatprep.mubr.f32.mxu0 0.0
    %8972 = vmatmul.mubr.f32.gmra.mrb[0].mxu0 %v7828
    %v8973 = vpop.f32.mrb[0].mxu0
    %v8974 = vadd.f32 %v8577, %v8973
    %v8975 = vpop.f32.mrb[0].mxu0
    %8976 = vmatprep.mubr.f32.mxu0 0.0
    %8977 = vmatmul.mubr.f32.gmra.mrb[0].mxu0 %v7831
    %v8978 = vpop.f32.mrb[0].mxu0
    %v8979 = vadd.f32 %v8582, %v8978
    %v8980 = vpop.f32.mrb[0].mxu0
    %8981 = vmatprep.mubr.f32.mxu0 0.0
    %8982 = vmatmul.mubr.f32.gmra.mrb[0].mxu0 %v7834
    %v8983 = vpop.f32.mrb[0].mxu0
    %v8984 = vadd.f32 %v8587, %v8983
    %v8985 = vpop.f32.mrb[0].mxu0
    %8986 = vmatprep.mubr.f32.mxu0 0.0
    %8987 = vmatmul.mubr.f32.gmra.mrb[0].mxu0 %v7837
    %v8988 = vpop.f32.mrb[0].mxu0
    %v8989 = vadd.f32 %v8592, %v8988
    %v8990 = vpop.f32.mrb[0].mxu0
    %8991 = vmatprep.mubr.f32.mxu0 0.0
    %8992 = vmatmul.mubr.f32.gmra.mrb[0].mxu0 %v7840
    %v8993 = vpop.f32.mrb[0].mxu0
    %v8994 = vadd.f32 %v8597, %v8993
    %v8995 = vpop.f32.mrb[0].mxu0
    %8996 = vmatprep.mubr.f32.mxu0 0.0
    %8997 = vmatmul.mubr.f32.gmra.mrb[0].mxu0 %v7843
    %v8998 = vpop.f32.mrb[0].mxu0
    %v8999 = vadd.f32 %v8602, %v8998
    %v9000 = vpop.f32.mrb[0].mxu0
    %9001 = vmatprep.mubr.f32.mxu0 0.0
    %9002 = vmatmul.mubr.f32.gmra.mrb[0].mxu0 %v7846
    %v9003 = vpop.f32.mrb[0].mxu0
    %v9004 = vadd.f32 %v8607, %v9003
    %v9005 = vpop.f32.mrb[0].mxu0
    %9006 = vmatprep.mubr.f32.mxu0 0.0
    %9007 = vmatmul.mubr.f32.gmra.mrb[0].mxu0 %v7849
    %v9008 = vpop.f32.mrb[0].mxu0
    %v9009 = vadd.f32 %v8612, %v9008
    %v9010 = vpop.f32.mrb[0].mxu0
    %9011 = vmatprep.mubr.f32.mxu0 0.0
    %9012 = vmatmul.mubr.f32.gmra.mrb[0].mxu0 %v7852
    %v9013 = vpop.f32.mrb[0].mxu0
    %v9014 = vadd.f32 %v8617, %v9013
    %v9015 = vpop.f32.mrb[0].mxu0
    %9016 = vmatprep.mubr.f32.mxu0 0.0
    %9017 = vmatmul.mubr.f32.gmra.mrb[0].mxu0 %v7855
    %v9018 = vpop.f32.mrb[0].mxu0
    %v9019 = vadd.f32 %v8622, %v9018
    %v9020 = vpop.f32.mrb[0].mxu0
    %9021 = vmatprep.mubr.f32.mxu0 0.0
    %9022 = vmatmul.mubr.f32.gmra.mrb[0].mxu0 %v7858
    %v9023 = vpop.f32.mrb[0].mxu0
    %v9024 = vadd.f32 %v8627, %v9023
    %v9025 = vpop.f32.mrb[0].mxu0
    %9026 = vmatprep.mubr.f32.mxu0 0.0
    %9027 = vmatmul.mubr.f32.gmra.mrb[0].mxu0 %v7861
    %v9028 = vpop.f32.mrb[0].mxu0
    %v9029 = vadd.f32 %v8632, %v9028
    %v9030 = vpop.f32.mrb[0].mxu0
    %9031 = vmatprep.mubr.f32.mxu0 0.0
    %9032 = vmatmul.mubr.f32.gmra.mrb[0].mxu0 %v7864
    %v9033 = vpop.f32.mrb[0].mxu0
    %v9034 = vadd.f32 %v8637, %v9033
    %v9035 = vpop.f32.mrb[0].mxu0
    %9036 = vmatprep.mubr.f32.mxu0 0.0
    %9037 = vmatmul.mubr.f32.gmra.mrb[0].mxu0 %v7867
    %v9038 = vpop.f32.mrb[0].mxu0
    %v9039 = vadd.f32 %v8642, %v9038
    %v9040 = vpop.f32.mrb[0].mxu0
    %9041 = vmatprep.mubr.f32.mxu0 0.0
    %9042 = vmatmul.mubr.f32.gmra.mrb[0].mxu0 %v7870
    %v9043 = vpop.f32.mrb[0].mxu0
    %v9044 = vadd.f32 %v8647, %v9043
    %v9045 = vpop.f32.mrb[0].mxu0
    %9046 = vmatprep.mubr.f32.mxu0 0.0
    %9047 = vmatmul.mubr.f32.gmra.mrb[0].mxu0 %v7873
    %v9048 = vpop.f32.mrb[0].mxu0
    %v9049 = vadd.f32 %v8652, %v9048
    %v9050 = vpop.f32.mrb[0].mxu0
    %9051 = vmatprep.mubr.f32.mxu0 0.0
    %9052 = vmatmul.mubr.f32.gmra.mrb[0].mxu0 %v7876
    %v9053 = vpop.f32.mrb[0].mxu0
    %v9054 = vadd.f32 %v8657, %v9053
    %v9055 = vpop.f32.mrb[0].mxu0
    %9056 = vmatprep.mubr.f32.mxu0 0.0
    %9057 = vmatmul.mubr.f32.gmra.mrb[0].mxu0 %v7879
    %v9058 = vpop.f32.mrb[0].mxu0
    %v9059 = vadd.f32 %v8662, %v9058
    %v9060 = vpop.f32.mrb[0].mxu0
    %9061 = vmatprep.mubr.f32.mxu0 0.0
    %9062 = vmatmul.mubr.f32.gmra.mrb[0].mxu0 %v7882
    %v9063 = vpop.f32.mrb[0].mxu0
    %v9064 = vadd.f32 %v8667, %v9063
    %v9065 = vpop.f32.mrb[0].mxu0
    %9066 = vmatprep.mubr.f32.mxu0 0.0
    %9067 = vmatmul.mubr.f32.gmra.mrb[0].mxu0 %v7885
    %v9068 = vpop.f32.mrb[0].mxu0
    %v9069 = vadd.f32 %v8672, %v9068
    %v9070 = vpop.f32.mrb[0].mxu0
    %9071 = vmatprep.mubr.f32.mxu0 0.0
    %9072 = vmatmul.mubr.f32.gmra.mrb[0].mxu0 %v7888
    %v9073 = vpop.f32.mrb[0].mxu0
    %v9074 = vadd.f32 %v8677, %v9073
    %v9075 = vpop.f32.mrb[0].mxu0
    %9076 = vmatprep.mubr.f32.mxu0 0.0
    %9077 = vmatmul.mubr.f32.gmra.mrb[0].mxu0 %v7891
    %v9078 = vpop.f32.mrb[0].mxu0
    %v9079 = vadd.f32 %v8682, %v9078
    %v9080 = vpop.f32.mrb[0].mxu0
    %9081 = vmatprep.mubr.f32.mxu0 0.0
    %9082 = vmatmul.mubr.f32.gmra.mrb[0].mxu0 %v7894
    %v9083 = vpop.f32.mrb[0].mxu0
    %v9084 = vadd.f32 %v8687, %v9083
    %v9085 = vpop.f32.mrb[0].mxu0
    %9086 = vmatprep.mubr.f32.mxu0 0.0
    %9087 = vmatmul.mubr.f32.gmra.mrb[0].mxu0 %v7897
    %v9088 = vpop.f32.mrb[0].mxu0
    %v9089 = vadd.f32 %v8692, %v9088
    %v9090 = vpop.f32.mrb[0].mxu0
    %9091 = vmatprep.mubr.f32.mxu0 0.0
    %9092 = vmatmul.mubr.f32.gmra.mrb[0].mxu0 %v7900
    %v9093 = vpop.f32.mrb[0].mxu0
    %v9094 = vadd.f32 %v8697, %v9093
    %v9095 = vpop.f32.mrb[0].mxu0
    %9096 = vmatprep.mubr.f32.mxu0 0.0
    %9097 = vmatmul.mubr.f32.gmra.mrb[0].mxu0 %v7903
    %v9098 = vpop.f32.mrb[0].mxu0
    %v9099 = vadd.f32 %v8702, %v9098
    %v9100 = vpop.f32.mrb[0].mxu0
    %9101 = vmatprep.mubr.f32.mxu0 0.0
    %9102 = vmatmul.mubr.f32.gmra.mrb[0].mxu0 %v7906
    %v9103 = vpop.f32.mrb[0].mxu0
    %v9104 = vadd.f32 %v8707, %v9103
    %v9105 = vpop.f32.mrb[0].mxu0
    %9106 = vmatprep.mubr.f32.mxu0 0.0
    %9107 = vmatmul.mubr.f32.gmra.mrb[0].mxu0 %v7909
    %v9108 = vpop.f32.mrb[0].mxu0
    %v9109 = vadd.f32 %v8712, %v9108
    %v9110 = vpop.f32.mrb[0].mxu0
    %9111 = vmatprep.mubr.f32.mxu0 0.0
    %9112 = vmatmul.mubr.f32.gmra.mrb[0].mxu0 %v7912
    %v9113 = vpop.f32.mrb[0].mxu0
    %v9114 = vadd.f32 %v8717, %v9113
    %v9115 = vpop.f32.mrb[0].mxu0
    %9116 = vmatprep.mubr.f32.mxu0 0.0
    %9117 = vmatmul.mubr.f32.gmra.mrb[0].mxu0 %v7915
    %v9118 = vpop.f32.mrb[0].mxu0
    %v9119 = vadd.f32 %v8722, %v9118
    %v9120 = vpop.f32.mrb[0].mxu0
    %9121 = vmatprep.mubr.f32.mxu0 0.0
    %9122 = vmatmul.mubr.f32.gmra.mrb[0].mxu0 %v7918
    %v9123 = vpop.f32.mrb[0].mxu0
    %v9124 = vadd.f32 %v8727, %v9123
    %v9125 = vpop.f32.mrb[0].mxu0
    %9126 = vmatprep.mubr.f32.mxu0 0.0
    %9127 = vmatmul.mubr.f32.gmra.mrb[0].mxu0 %v7921
    %v9128 = vpop.f32.mrb[0].mxu0
    %v9129 = vadd.f32 %v8732, %v9128
    %v9130 = vpop.f32.mrb[0].mxu0
    %9131 = vmatprep.mubr.f32.mxu0 0.0
    %9132 = vmatmul.mubr.f32.gmra.mrb[0].mxu0 %v7924
    %v9133 = vpop.f32.mrb[0].mxu0
    %v9134 = vadd.f32 %v8737, %v9133
    %v9135 = vpop.f32.mrb[0].mxu0
    %9136 = vmatprep.mubr.f32.mxu0 0.0
    %9137 = vmatmul.mubr.f32.gmra.mrb[0].mxu0 %v7927
    %v9138 = vpop.f32.mrb[0].mxu0
    %v9139 = vadd.f32 %v8742, %v9138
    %v9140 = vpop.f32.mrb[0].mxu0
    %9141 = vmatprep.mubr.f32.mxu0 0.0
    %9142 = vmatmul.mubr.f32.gmra.mrb[0].mxu0 %v7930
    %v9143 = vpop.f32.mrb[0].mxu0
    %v9144 = vadd.f32 %v8747, %v9143
    %v9145 = vpop.f32.mrb[0].mxu0
    %9146 = vmatprep.mubr.f32.mxu0 0.0
    %9147 = vmatmul.mubr.f32.gmra.mrb[0].mxu0 %v7933
    %v9148 = vpop.f32.mrb[0].mxu0
    %v9149 = vadd.f32 %v8752, %v9148
    %v9150 = vpop.f32.mrb[0].mxu0
    %9151 = vmatprep.mubr.f32.mxu0 0.0
    %9152 = vmatmul.mubr.f32.gmra.mrb[0].mxu0 %v7936
    %v9153 = vpop.f32.mrb[0].mxu0
    %v9154 = vadd.f32 %v8757, %v9153
    %v9155 = vpop.f32.mrb[0].mxu0
    %9156 = vmatprep.mubr.f32.mxu0 0.0
    %9157 = vmatmul.mubr.f32.gmra.mrb[0].mxu0 %v7939
    %v9158 = vpop.f32.mrb[0].mxu0
    %v9159 = vadd.f32 %v8762, %v9158
    %v9160 = vpop.f32.mrb[0].mxu0
    %9161 = vmatprep.mubr.f32.mxu0 0.0
    %9162 = vmatmul.mubr.f32.gmra.mrb[0].mxu0 %v7942
    %v9163 = vpop.f32.mrb[0].mxu0
    %v9164 = vadd.f32 %v8767, %v9163
    %v9165 = vpop.f32.mrb[0].mxu0
    %9166 = vmatprep.mubr.f32.mxu0 0.0
    %9167 = vmatmul.mubr.f32.gmra.mrb[0].mxu0 %v7945
    %v9168 = vpop.f32.mrb[0].mxu0
    %v9169 = vadd.f32 %v8772, %v9168
    %v9170 = vpop.f32.mrb[0].mxu0
    %9171 = vmatprep.mubr.f32.mxu0 0.0
    %9172 = vmatmul.mubr.f32.gmra.mrb[0].mxu0 %v7948
    %v9173 = vpop.f32.mrb[0].mxu0
    %v9174 = vadd.f32 %v8777, %v9173
    %v9175 = vpop.f32.mrb[0].mxu0
    %9176 = vmatprep.mubr.f32.mxu0 0.0
    %9177 = vmatmul.mubr.f32.gmra.mrb[0].mxu0 %v7951
    %v9178 = vpop.f32.mrb[0].mxu0
    %v9179 = vadd.f32 %v8782, %v9178
    %v9180 = vpop.f32.mrb[0].mxu0
    %9181 = vmatprep.mubr.f32.mxu0 0.0
    %9182 = vmatmul.mubr.f32.gmra.mrb[0].mxu0 %v7954
    %v9183 = vpop.f32.mrb[0].mxu0
    %v9184 = vadd.f32 %v8787, %v9183
    %v9185 = vpop.f32.mrb[0].mxu0
    %9186 = vmatprep.mubr.f32.mxu0 0.0
    %9187 = vmatmul.mubr.f32.gmra.mrb[0].mxu0 %v7957
    %v9188 = vpop.f32.mrb[0].mxu0
    %v9189 = vadd.f32 %v8792, %v9188
    %v9190 = vpop.f32.mrb[0].mxu0
    %9191 = vmatprep.mubr.f32.mxu0 0.0
    %9192 = vmatmul.mubr.f32.gmra.mrb[0].mxu0 %v7960
    %v9193 = vpop.f32.mrb[0].mxu0
    %v9194 = vadd.f32 %v8797, %v9193
    %v9195 = vpop.f32.mrb[0].mxu0
    %9196 = vmatprep.mubr.f32.mxu0 0.0
    %9197 = vmatmul.mubr.f32.gmra.mrb[0].mxu0 %v7963
    %v9198 = vpop.f32.mrb[0].mxu0
    %v9199 = vadd.f32 %v8802, %v9198
    %v9200 = vpop.f32.mrb[0].mxu0
    %9201 = vmatprep.mubr.f32.mxu0 0.0
    %9202 = vmatmul.mubr.f32.gmra.mrb[0].mxu0 %v7966
    %v9203 = vpop.f32.mrb[0].mxu0
    %v9204 = vadd.f32 %v8807, %v9203
    %v9205 = vpop.f32.mrb[0].mxu0
    %9206 = vmatprep.mubr.f32.mxu0 0.0
    %9207 = vmatmul.mubr.f32.gmra.mrb[0].mxu0 %v7969
    %v9208 = vpop.f32.mrb[0].mxu0
    %v9209 = vadd.f32 %v8812, %v9208
    %v9210 = vpop.f32.mrb[0].mxu0
    %9211 = vmatprep.mubr.f32.mxu0 0.0
    %9212 = vmatmul.mubr.f32.gmra.mrb[0].mxu0 %v7972
    %v9213 = vpop.f32.mrb[0].mxu0
    %v9214 = vadd.f32 %v8817, %v9213
    %v9215 = vpop.f32.mrb[0].mxu0
    %9216 = vmatprep.mubr.f32.mxu0 0.0
    %9217 = vmatmul.mubr.f32.gmra.mrb[0].mxu0 %v7975
    %v9218 = vpop.f32.mrb[0].mxu0
    %v9219 = vadd.f32 %v8822, %v9218
    %v9220 = vpop.f32.mrb[0].mxu0
    %9221 = vmatprep.mubr.f32.mxu0 0.0
    %9222 = vmatmul.mubr.f32.gmra.mrb[0].mxu0 %v7978
    %v9223 = vpop.f32.mrb[0].mxu0
    %v9224 = vadd.f32 %v8827, %v9223
    %v9225 = vpop.f32.mrb[0].mxu0
    %9226 = vmatprep.mubr.f32.mxu0 0.0
    %9227 = vmatmul.mubr.f32.gmra.mrb[0].mxu0 %v7981
    %v9228 = vpop.f32.mrb[0].mxu0
    %v9229 = vadd.f32 %v8832, %v9228
    %v9230 = vpop.f32.mrb[0].mxu0
    %9231 = vmatprep.mubr.f32.mxu0 0.0
    %9232 = vmatmul.mubr.f32.gmra.mrb[0].mxu0 %v7984
    %v9233 = vpop.f32.mrb[0].mxu0
    %v9234 = vadd.f32 %v8837, %v9233
    %v9235 = vpop.f32.mrb[0].mxu0
    %9236 = vdwg.mxu0
    %9237 = vrot.lane.b32.xlu0 %v8374, 78
    %v9238 = vpop.permute.xlu0 %9237
    %v9240 = vadd.f32 %v8919, %v9238
    %v9241 = vadd.f32 %v8924, %v9238
    %v9242 = vadd.f32 %v8929, %v9238
    %v9243 = vadd.f32 %v8934, %v9238
    %v9244 = vadd.f32 %v8939, %v9238
    %v9245 = vadd.f32 %v8944, %v9238
    %v9246 = vadd.f32 %v8949, %v9238
    %v9247 = vadd.f32 %v8954, %v9238
    %v9248 = vadd.f32 %v8959, %v9238
    %v9249 = vadd.f32 %v8964, %v9238
    %v9250 = vadd.f32 %v8969, %v9238
    %v9251 = vadd.f32 %v8974, %v9238
    %v9252 = vadd.f32 %v8979, %v9238
    %v9253 = vadd.f32 %v8984, %v9238
    %v9254 = vadd.f32 %v8989, %v9238
    %v9255 = vadd.f32 %v8994, %v9238
    %v9256 = vadd.f32 %v8999, %v9238
    %v9257 = vadd.f32 %v9004, %v9238
    %v9258 = vadd.f32 %v9009, %v9238
    %v9259 = vadd.f32 %v9014, %v9238
    %v9260 = vadd.f32 %v9019, %v9238
    %v9261 = vadd.f32 %v9024, %v9238
    %v9262 = vadd.f32 %v9029, %v9238
    %v9263 = vadd.f32 %v9034, %v9238
    %v9264 = vadd.f32 %v9039, %v9238
    %v9265 = vadd.f32 %v9044, %v9238
    %v9266 = vadd.f32 %v9049, %v9238
    %v9267 = vadd.f32 %v9054, %v9238
    %v9268 = vadd.f32 %v9059, %v9238
    %v9269 = vadd.f32 %v9064, %v9238
    %v9270 = vadd.f32 %v9069, %v9238
    %v9271 = vadd.f32 %v9074, %v9238
    %v9272 = vadd.f32 %v9079, %v9238
    %v9273 = vadd.f32 %v9084, %v9238
    %v9274 = vadd.f32 %v9089, %v9238
    %v9275 = vadd.f32 %v9094, %v9238
    %v9276 = vadd.f32 %v9099, %v9238
    %v9277 = vadd.f32 %v9104, %v9238
    %v9278 = vadd.f32 %v9109, %v9238
    %v9279 = vadd.f32 %v9114, %v9238
    %v9280 = vadd.f32 %v9119, %v9238
    %v9281 = vadd.f32 %v9124, %v9238
    %v9282 = vadd.f32 %v9129, %v9238
    %v9283 = vadd.f32 %v9134, %v9238
    %v9284 = vadd.f32 %v9139, %v9238
    %v9285 = vadd.f32 %v9144, %v9238
    %v9286 = vadd.f32 %v9149, %v9238
    %v9287 = vadd.f32 %v9154, %v9238
    %v9288 = vadd.f32 %v9159, %v9238
    %v9289 = vadd.f32 %v9164, %v9238
    %v9290 = vadd.f32 %v9169, %v9238
    %v9291 = vadd.f32 %v9174, %v9238
    %v9292 = vadd.f32 %v9179, %v9238
    %v9293 = vadd.f32 %v9184, %v9238
    %v9294 = vadd.f32 %v9189, %v9238
    %v9295 = vadd.f32 %v9194, %v9238
    %v9296 = vadd.f32 %v9199, %v9238
    %v9297 = vadd.f32 %v9204, %v9238
    %v9298 = vadd.f32 %v9209, %v9238
    %v9299 = vadd.f32 %v9214, %v9238
    %v9300 = vadd.f32 %v9219, %v9238
    %v9301 = vadd.f32 %v9224, %v9238
    %v9302 = vadd.f32 %v9229, %v9238
    %v9303 = vadd.f32 %v9234, %v9238
    %v9304 = vadd.f32 %v9240, %v8379
    %v9305 = vadd.f32 %v9241, %v8380
    %v9306 = vadd.f32 %v9242, %v8381
    %v9307 = vadd.f32 %v9243, %v8382
    %v9308 = vadd.f32 %v9244, %v8383
    %v9309 = vadd.f32 %v9245, %v8384
    %v9310 = vadd.f32 %v9246, %v8385
    %v9311 = vadd.f32 %v9247, %v8386
    %v9312 = vadd.f32 %v9248, %v8387
    %v9313 = vadd.f32 %v9249, %v8388
    %v9314 = vadd.f32 %v9250, %v8389
    %v9315 = vadd.f32 %v9251, %v8390
    %v9316 = vadd.f32 %v9252, %v8391
    %v9317 = vadd.f32 %v9253, %v8392
    %v9318 = vadd.f32 %v9254, %v8393
    %v9319 = vadd.f32 %v9255, %v8394
    %v9320 = vadd.f32 %v9256, %v8395
    %v9321 = vadd.f32 %v9257, %v8396
    %v9322 = vadd.f32 %v9258, %v8397
    %v9323 = vadd.f32 %v9259, %v8398
    %v9324 = vadd.f32 %v9260, %v8399
    %v9325 = vadd.f32 %v9261, %v8400
    %v9326 = vadd.f32 %v9262, %v8401
    %v9327 = vadd.f32 %v9263, %v8402
    %v9328 = vadd.f32 %v9264, %v8403
    %v9329 = vadd.f32 %v9265, %v8404
    %v9330 = vadd.f32 %v9266, %v8405
    %v9331 = vadd.f32 %v9267, %v8406
    %v9332 = vadd.f32 %v9268, %v8407
    %v9333 = vadd.f32 %v9269, %v8408
    %v9334 = vadd.f32 %v9270, %v8409
    %v9335 = vadd.f32 %v9271, %v8410
    %v9336 = vadd.f32 %v9272, %v8411
    %v9337 = vadd.f32 %v9273, %v8412
    %v9338 = vadd.f32 %v9274, %v8413
    %v9339 = vadd.f32 %v9275, %v8414
    %v9340 = vadd.f32 %v9276, %v8415
    %v9341 = vadd.f32 %v9277, %v8416
    %v9342 = vadd.f32 %v9278, %v8417
    %v9343 = vadd.f32 %v9279, %v8418
    %v9344 = vadd.f32 %v9280, %v8419
    %v9345 = vadd.f32 %v9281, %v8420
    %v9346 = vadd.f32 %v9282, %v8421
    %v9347 = vadd.f32 %v9283, %v8422
    %v9348 = vadd.f32 %v9284, %v8423
    %v9349 = vadd.f32 %v9285, %v8424
    %v9350 = vadd.f32 %v9286, %v8425
    %v9351 = vadd.f32 %v9287, %v8426
    %v9352 = vadd.f32 %v9288, %v8427
    %v9353 = vadd.f32 %v9289, %v8428
    %v9354 = vadd.f32 %v9290, %v8429
    %v9355 = vadd.f32 %v9291, %v8430
    %v9356 = vadd.f32 %v9292, %v8431
    %v9357 = vadd.f32 %v9293, %v8432
    %v9358 = vadd.f32 %v9294, %v8433
    %v9359 = vadd.f32 %v9295, %v8434
    %v9360 = vadd.f32 %v9296, %v8435
    %v9361 = vadd.f32 %v9297, %v8436
    %v9362 = vadd.f32 %v9298, %v8437
    %v9363 = vadd.f32 %v9299, %v8438
    %v9364 = vadd.f32 %v9300, %v8439
    %v9365 = vadd.f32 %v9301, %v8440
    %v9366 = vadd.f32 %v9302, %v8441
    %v9367 = vadd.f32 %v9303, %v8442
    %vm9368 = vcmask 7168
    %v9369 = vsel %vm9368, %v9304, inf
    %v9370 = vsel %vm9368, %v9305, inf
    %v9371 = vmin.f32 %v9369, %v9370
    %v9372 = vsel %vm9368, %v9306, inf
    %v9373 = vmin.f32 %v9371, %v9372
    %v9374 = vsel %vm9368, %v9307, inf
    %v9375 = vmin.f32 %v9373, %v9374
    %v9376 = vsel %vm9368, %v9308, inf
    %v9377 = vmin.f32 %v9375, %v9376
    %v9378 = vsel %vm9368, %v9309, inf
    %v9379 = vmin.f32 %v9377, %v9378
    %v9380 = vsel %vm9368, %v9310, inf
    %v9381 = vmin.f32 %v9379, %v9380
    %v9382 = vsel %vm9368, %v9311, inf
    %v9383 = vmin.f32 %v9381, %v9382
    %v9384 = vrot.slane %v9383, 4
    %v9385 = vmin.f32 %v9383, %v9384
    %v9386 = vrot.slane %v9385, 2
    %v9387 = vmin.f32 %v9385, %v9386
    %v9388 = vrot.slane %v9387, 1
    %v9389 = vmin.f32 %v9387, %v9388
    %v9390 = vsel %vm9368, %v9312, inf
    %v9391 = vsel %vm9368, %v9313, inf
    %v9392 = vmin.f32 %v9390, %v9391
    %v9393 = vsel %vm9368, %v9314, inf
    %v9394 = vmin.f32 %v9392, %v9393
    %v9395 = vsel %vm9368, %v9315, inf
    %v9396 = vmin.f32 %v9394, %v9395
    %v9397 = vsel %vm9368, %v9316, inf
    %v9398 = vmin.f32 %v9396, %v9397
    %v9399 = vsel %vm9368, %v9317, inf
    %v9400 = vmin.f32 %v9398, %v9399
    %v9401 = vsel %vm9368, %v9318, inf
    %v9402 = vmin.f32 %v9400, %v9401
    %v9403 = vsel %vm9368, %v9319, inf
    %v9404 = vmin.f32 %v9402, %v9403
    %v9405 = vrot.slane %v9404, 4
    %v9406 = vmin.f32 %v9404, %v9405
    %v9407 = vrot.slane %v9406, 2
    %v9408 = vmin.f32 %v9406, %v9407
    %v9409 = vrot.slane %v9408, 1
    %v9410 = vmin.f32 %v9408, %v9409
    %v9411 = vsel %vm9368, %v9320, inf
    %v9412 = vsel %vm9368, %v9321, inf
    %v9413 = vmin.f32 %v9411, %v9412
    %v9414 = vsel %vm9368, %v9322, inf
    %v9415 = vmin.f32 %v9413, %v9414
    %v9416 = vsel %vm9368, %v9323, inf
    %v9417 = vmin.f32 %v9415, %v9416
    %v9418 = vsel %vm9368, %v9324, inf
    %v9419 = vmin.f32 %v9417, %v9418
    %v9420 = vsel %vm9368, %v9325, inf
    %v9421 = vmin.f32 %v9419, %v9420
    %v9422 = vsel %vm9368, %v9326, inf
    %v9423 = vmin.f32 %v9421, %v9422
    %v9424 = vsel %vm9368, %v9327, inf
    %v9425 = vmin.f32 %v9423, %v9424
    %v9426 = vrot.slane %v9425, 4
    %v9427 = vmin.f32 %v9425, %v9426
    %v9428 = vrot.slane %v9427, 2
    %v9429 = vmin.f32 %v9427, %v9428
    %v9430 = vrot.slane %v9429, 1
    %v9431 = vmin.f32 %v9429, %v9430
    %v9432 = vsel %vm9368, %v9328, inf
    %v9433 = vsel %vm9368, %v9329, inf
    %v9434 = vmin.f32 %v9432, %v9433
    %v9435 = vsel %vm9368, %v9330, inf
    %v9436 = vmin.f32 %v9434, %v9435
    %v9437 = vsel %vm9368, %v9331, inf
    %v9438 = vmin.f32 %v9436, %v9437
    %v9439 = vsel %vm9368, %v9332, inf
    %v9440 = vmin.f32 %v9438, %v9439
    %v9441 = vsel %vm9368, %v9333, inf
    %v9442 = vmin.f32 %v9440, %v9441
    %v9443 = vsel %vm9368, %v9334, inf
    %v9444 = vmin.f32 %v9442, %v9443
    %v9445 = vsel %vm9368, %v9335, inf
    %v9446 = vmin.f32 %v9444, %v9445
    %v9447 = vrot.slane %v9446, 4
    %v9448 = vmin.f32 %v9446, %v9447
    %v9449 = vrot.slane %v9448, 2
    %v9450 = vmin.f32 %v9448, %v9449
    %v9451 = vrot.slane %v9450, 1
    %v9452 = vmin.f32 %v9450, %v9451
    %v9453 = vsel %vm9368, %v9336, inf
    %v9454 = vsel %vm9368, %v9337, inf
    %v9455 = vmin.f32 %v9453, %v9454
    %v9456 = vsel %vm9368, %v9338, inf
    %v9457 = vmin.f32 %v9455, %v9456
    %v9458 = vsel %vm9368, %v9339, inf
    %v9459 = vmin.f32 %v9457, %v9458
    %v9460 = vsel %vm9368, %v9340, inf
    %v9461 = vmin.f32 %v9459, %v9460
    %v9462 = vsel %vm9368, %v9341, inf
    %v9463 = vmin.f32 %v9461, %v9462
    %v9464 = vsel %vm9368, %v9342, inf
    %v9465 = vmin.f32 %v9463, %v9464
    %v9466 = vsel %vm9368, %v9343, inf
    %v9467 = vmin.f32 %v9465, %v9466
    %v9468 = vrot.slane %v9467, 4
    %v9469 = vmin.f32 %v9467, %v9468
    %v9470 = vrot.slane %v9469, 2
    %v9471 = vmin.f32 %v9469, %v9470
    %v9472 = vrot.slane %v9471, 1
    %v9473 = vmin.f32 %v9471, %v9472
    %v9474 = vsel %vm9368, %v9344, inf
    %v9475 = vsel %vm9368, %v9345, inf
    %v9476 = vmin.f32 %v9474, %v9475
    %v9477 = vsel %vm9368, %v9346, inf
    %v9478 = vmin.f32 %v9476, %v9477
    %v9479 = vsel %vm9368, %v9347, inf
    %v9480 = vmin.f32 %v9478, %v9479
    %v9481 = vsel %vm9368, %v9348, inf
    %v9482 = vmin.f32 %v9480, %v9481
    %v9483 = vsel %vm9368, %v9349, inf
    %v9484 = vmin.f32 %v9482, %v9483
    %v9485 = vsel %vm9368, %v9350, inf
    %v9486 = vmin.f32 %v9484, %v9485
    %v9487 = vsel %vm9368, %v9351, inf
    %v9488 = vmin.f32 %v9486, %v9487
    %v9489 = vrot.slane %v9488, 4
    %v9490 = vmin.f32 %v9488, %v9489
    %v9491 = vrot.slane %v9490, 2
    %v9492 = vmin.f32 %v9490, %v9491
    %v9493 = vrot.slane %v9492, 1
    %v9494 = vmin.f32 %v9492, %v9493
    %v9495 = vsel %vm9368, %v9352, inf
    %v9496 = vsel %vm9368, %v9353, inf
    %v9497 = vmin.f32 %v9495, %v9496
    %v9498 = vsel %vm9368, %v9354, inf
    %v9499 = vmin.f32 %v9497, %v9498
    %v9500 = vsel %vm9368, %v9355, inf
    %v9501 = vmin.f32 %v9499, %v9500
    %v9502 = vsel %vm9368, %v9356, inf
    %v9503 = vmin.f32 %v9501, %v9502
    %v9504 = vsel %vm9368, %v9357, inf
    %v9505 = vmin.f32 %v9503, %v9504
    %v9506 = vsel %vm9368, %v9358, inf
    %v9507 = vmin.f32 %v9505, %v9506
    %v9508 = vsel %vm9368, %v9359, inf
    %v9509 = vmin.f32 %v9507, %v9508
    %v9510 = vrot.slane %v9509, 4
    %v9511 = vmin.f32 %v9509, %v9510
    %v9512 = vrot.slane %v9511, 2
    %v9513 = vmin.f32 %v9511, %v9512
    %v9514 = vrot.slane %v9513, 1
    %v9515 = vmin.f32 %v9513, %v9514
    %v9516 = vsel %vm9368, %v9360, inf
    %v9517 = vsel %vm9368, %v9361, inf
    %v9518 = vmin.f32 %v9516, %v9517
    %v9519 = vsel %vm9368, %v9362, inf
    %v9520 = vmin.f32 %v9518, %v9519
    %v9521 = vsel %vm9368, %v9363, inf
    %v9522 = vmin.f32 %v9520, %v9521
    %v9523 = vsel %vm9368, %v9364, inf
    %v9524 = vmin.f32 %v9522, %v9523
    %v9525 = vsel %vm9368, %v9365, inf
    %v9526 = vmin.f32 %v9524, %v9525
    %v9527 = vsel %vm9368, %v9366, inf
    %v9528 = vmin.f32 %v9526, %v9527
    %v9529 = vsel %vm9368, %v9367, inf
    %v9530 = vmin.f32 %v9528, %v9529
    %v9531 = vrot.slane %v9530, 4
    %v9532 = vmin.f32 %v9530, %v9531
    %v9533 = vrot.slane %v9532, 2
    %v9534 = vmin.f32 %v9532, %v9533
    %v9535 = vrot.slane %v9534, 1
    %v9536 = vmin.f32 %v9534, %v9535
    %9539 = vrot.lane.b32.xlu0 %v63, 64
    %v9540 = vpop.permute.xlu0 %9539
    %9541 = vrot.lane.b32.xlu0 %v64, 64
    %v9542 = vpop.permute.xlu0 %9541
    %v9545 = vmul.f32 %v9389, %v9540
    %v9546 = vmul.f32 %v9389, %v9542
    %v9547 = vmul.f32 %v9410, %v9540
    %v9548 = vmul.f32 %v9410, %v9542
    %v9549 = vmul.f32 %v9431, %v9540
    %v9550 = vmul.f32 %v9431, %v9542
    %v9551 = vmul.f32 %v9452, %v9540
    %v9552 = vmul.f32 %v9452, %v9542
    %v9553 = vmul.f32 %v9473, %v9540
    %v9554 = vmul.f32 %v9473, %v9542
    %v9555 = vmul.f32 %v9494, %v9540
    %v9556 = vmul.f32 %v9494, %v9542
    %v9557 = vmul.f32 %v9515, %v9540
    %v9558 = vmul.f32 %v9515, %v9542
    %v9559 = vmul.f32 %v9536, %v9540
    %v9560 = vmul.f32 %v9536, %v9542
    %v9561 = vsel %vm938, %v63, 0
    %v9563 = vsel %vm938, %v64, 0
    %9565 = vmatprep.subr.mxu0 0.0
    %9566 = vmatpush1.msra.mxu0 %v9304
    %9567 = vmatprep.subr.mxu0 0.0
    %9568 = vmatpush1.msra.mxu0 %v9305
    %9569 = vmatprep.subr.mxu0 0.0
    %9570 = vmatpush1.msra.mxu0 %v9306
    %9571 = vmatprep.subr.mxu0 0.0
    %9572 = vmatpush1.msra.mxu0 %v9307
    %9573 = vmatprep.subr.mxu0 0.0
    %9574 = vmatpush1.msra.mxu0 %v9308
    %9575 = vmatprep.subr.mxu0 0.0
    %9576 = vmatpush1.msra.mxu0 %v9309
    %9577 = vmatprep.subr.mxu0 0.0
    %9578 = vmatpush1.msra.mxu0 %v9310
    %9579 = vmatprep.subr.mxu0 0.0
    %9580 = vmatpush1.msra.mxu0 %v9311
    %9581 = vmatprep.subr.mxu0 0.0
    %9582 = vmatpush1.msra.mxu0 0.0
    %9583 = vmatprep.subr.mxu0 0.0
    %9584 = vmatpush1.msra.mxu0 0.0
    %9585 = vmatprep.subr.mxu0 0.0
    %9586 = vmatpush1.msra.mxu0 0.0
    %9587 = vmatprep.subr.mxu0 0.0
    %9588 = vmatpush1.msra.mxu0 0.0
    %9589 = vmatprep.subr.mxu0 0.0
    %9590 = vmatpush1.msra.mxu0 0.0
    %9591 = vmatprep.subr.mxu0 0.0
    %9592 = vmatpush1.msra.mxu0 0.0
    %9593 = vmatprep.subr.mxu0 0.0
    %9594 = vmatpush1.msra.mxu0 0.0
    %9595 = vmatprep.subr.mxu0 0.0
    %9596 = vmatpush1.msra.mxu0 0.0
    %9597 = vmatprep.subr.mxu0 0.0
    %9598 = vmatpush1.msra.mxu0 0.0
    %9599 = vmatprep.subr.mxu0 0.0
    %9600 = vmatpush1.msra.mxu0 0.0
    %9601 = vmatprep.subr.mxu0 0.0
    %9602 = vmatpush1.msra.mxu0 0.0
    %9603 = vmatprep.subr.mxu0 0.0
    %9604 = vmatpush1.msra.mxu0 0.0
    %9605 = vmatprep.subr.mxu0 0.0
    %9606 = vmatpush1.msra.mxu0 0.0
    %9607 = vmatprep.subr.mxu0 0.0
    %9608 = vmatpush1.msra.mxu0 0.0
    %9609 = vmatprep.subr.mxu0 0.0
    %9610 = vmatpush1.msra.mxu0 0.0
    %9611 = vmatprep.subr.mxu0 0.0
    %9612 = vmatpush1.msra.mxu0 0.0
    %9613 = vmatprep.subr.mxu0 0.0
    %9614 = vmatpush1.msra.mxu0 0.0
    %9615 = vmatprep.subr.mxu0 0.0
    %9616 = vmatpush1.msra.mxu0 0.0
    %9617 = vmatprep.subr.mxu0 0.0
    %9618 = vmatpush1.msra.mxu0 0.0
    %9619 = vmatprep.subr.mxu0 0.0
    %9620 = vmatpush1.msra.mxu0 0.0
    %9621 = vmatprep.subr.mxu0 0.0
    %9622 = vmatpush1.msra.mxu0 0.0
    %9623 = vmatprep.subr.mxu0 0.0
    %9624 = vmatpush1.msra.mxu0 0.0
    %9625 = vmatprep.subr.mxu0 0.0
    %9626 = vmatpush1.msra.mxu0 0.0
    %9627 = vmatprep.subr.mxu0 0.0
    %9628 = vmatpush1.msra.mxu0 0.0
    %9629 = vmatprep.mubr.f32.mxu0 0.0
    %9630 = vmatmul.mubr.f32.gmra.mrb[0].mxu0 %v9561
    %v9631 = vpop.f32.mrb[0].mxu0
    %v9632 = vadd.f32 %v9545, %v9631
    %v9633 = vpop.f32.mrb[0].mxu0
    %9634 = vmatprep.mubr.f32.mxu0 0.0
    %9635 = vmatmul.mubr.f32.gmra.mrb[0].mxu0 %v9563
    %v9636 = vpop.f32.mrb[0].mxu0
    %v9637 = vadd.f32 %v9546, %v9636
    %v9638 = vpop.f32.mrb[0].mxu0
    %9639 = vdwg.mxu0
    %9640 = vmatprep.subr.mxu0 0.0
    %9641 = vmatpush1.msra.mxu0 %v9312
    %9642 = vmatprep.subr.mxu0 0.0
    %9643 = vmatpush1.msra.mxu0 %v9313
    %9644 = vmatprep.subr.mxu0 0.0
    %9645 = vmatpush1.msra.mxu0 %v9314
    %9646 = vmatprep.subr.mxu0 0.0
    %9647 = vmatpush1.msra.mxu0 %v9315
    %9648 = vmatprep.subr.mxu0 0.0
    %9649 = vmatpush1.msra.mxu0 %v9316
    %9650 = vmatprep.subr.mxu0 0.0
    %9651 = vmatpush1.msra.mxu0 %v9317
    %9652 = vmatprep.subr.mxu0 0.0
    %9653 = vmatpush1.msra.mxu0 %v9318
    %9654 = vmatprep.subr.mxu0 0.0
    %9655 = vmatpush1.msra.mxu0 %v9319
    %9656 = vmatprep.subr.mxu0 0.0
    %9657 = vmatpush1.msra.mxu0 0.0
    %9658 = vmatprep.subr.mxu0 0.0
    %9659 = vmatpush1.msra.mxu0 0.0
    %9660 = vmatprep.subr.mxu0 0.0
    %9661 = vmatpush1.msra.mxu0 0.0
    %9662 = vmatprep.subr.mxu0 0.0
    %9663 = vmatpush1.msra.mxu0 0.0
    %9664 = vmatprep.subr.mxu0 0.0
    %9665 = vmatpush1.msra.mxu0 0.0
    %9666 = vmatprep.subr.mxu0 0.0
    %9667 = vmatpush1.msra.mxu0 0.0
    %9668 = vmatprep.subr.mxu0 0.0
    %9669 = vmatpush1.msra.mxu0 0.0
    %9670 = vmatprep.subr.mxu0 0.0
    %9671 = vmatpush1.msra.mxu0 0.0
    %9672 = vmatprep.subr.mxu0 0.0
    %9673 = vmatpush1.msra.mxu0 0.0
    %9674 = vmatprep.subr.mxu0 0.0
    %9675 = vmatpush1.msra.mxu0 0.0
    %9676 = vmatprep.subr.mxu0 0.0
    %9677 = vmatpush1.msra.mxu0 0.0
    %9678 = vmatprep.subr.mxu0 0.0
    %9679 = vmatpush1.msra.mxu0 0.0
    %9680 = vmatprep.subr.mxu0 0.0
    %9681 = vmatpush1.msra.mxu0 0.0
    %9682 = vmatprep.subr.mxu0 0.0
    %9683 = vmatpush1.msra.mxu0 0.0
    %9684 = vmatprep.subr.mxu0 0.0
    %9685 = vmatpush1.msra.mxu0 0.0
    %9686 = vmatprep.subr.mxu0 0.0
    %9687 = vmatpush1.msra.mxu0 0.0
    %9688 = vmatprep.subr.mxu0 0.0
    %9689 = vmatpush1.msra.mxu0 0.0
    %9690 = vmatprep.subr.mxu0 0.0
    %9691 = vmatpush1.msra.mxu0 0.0
    %9692 = vmatprep.subr.mxu0 0.0
    %9693 = vmatpush1.msra.mxu0 0.0
    %9694 = vmatprep.subr.mxu0 0.0
    %9695 = vmatpush1.msra.mxu0 0.0
    %9696 = vmatprep.subr.mxu0 0.0
    %9697 = vmatpush1.msra.mxu0 0.0
    %9698 = vmatprep.subr.mxu0 0.0
    %9699 = vmatpush1.msra.mxu0 0.0
    %9700 = vmatprep.subr.mxu0 0.0
    %9701 = vmatpush1.msra.mxu0 0.0
    %9702 = vmatprep.subr.mxu0 0.0
    %9703 = vmatpush1.msra.mxu0 0.0
    %9704 = vmatprep.mubr.f32.mxu0 0.0
    %9705 = vmatmul.mubr.f32.gmra.mrb[0].mxu0 %v9561
    %v9706 = vpop.f32.mrb[0].mxu0
    %v9707 = vadd.f32 %v9547, %v9706
    %v9708 = vpop.f32.mrb[0].mxu0
    %9709 = vmatprep.mubr.f32.mxu0 0.0
    %9710 = vmatmul.mubr.f32.gmra.mrb[0].mxu0 %v9563
    %v9711 = vpop.f32.mrb[0].mxu0
    %v9712 = vadd.f32 %v9548, %v9711
    %v9713 = vpop.f32.mrb[0].mxu0
    %9714 = vdwg.mxu0
    %9715 = vmatprep.subr.mxu0 0.0
    %9716 = vmatpush1.msra.mxu0 %v9320
    %9717 = vmatprep.subr.mxu0 0.0
    %9718 = vmatpush1.msra.mxu0 %v9321
    %9719 = vmatprep.subr.mxu0 0.0
    %9720 = vmatpush1.msra.mxu0 %v9322
    %9721 = vmatprep.subr.mxu0 0.0
    %9722 = vmatpush1.msra.mxu0 %v9323
    %9723 = vmatprep.subr.mxu0 0.0
    %9724 = vmatpush1.msra.mxu0 %v9324
    %9725 = vmatprep.subr.mxu0 0.0
    %9726 = vmatpush1.msra.mxu0 %v9325
    %9727 = vmatprep.subr.mxu0 0.0
    %9728 = vmatpush1.msra.mxu0 %v9326
    %9729 = vmatprep.subr.mxu0 0.0
    %9730 = vmatpush1.msra.mxu0 %v9327
    %9731 = vmatprep.subr.mxu0 0.0
    %9732 = vmatpush1.msra.mxu0 0.0
    %9733 = vmatprep.subr.mxu0 0.0
    %9734 = vmatpush1.msra.mxu0 0.0
    %9735 = vmatprep.subr.mxu0 0.0
    %9736 = vmatpush1.msra.mxu0 0.0
    %9737 = vmatprep.subr.mxu0 0.0
    %9738 = vmatpush1.msra.mxu0 0.0
    %9739 = vmatprep.subr.mxu0 0.0
    %9740 = vmatpush1.msra.mxu0 0.0
    %9741 = vmatprep.subr.mxu0 0.0
    %9742 = vmatpush1.msra.mxu0 0.0
    %9743 = vmatprep.subr.mxu0 0.0
    %9744 = vmatpush1.msra.mxu0 0.0
    %9745 = vmatprep.subr.mxu0 0.0
    %9746 = vmatpush1.msra.mxu0 0.0
    %9747 = vmatprep.subr.mxu0 0.0
    %9748 = vmatpush1.msra.mxu0 0.0
    %9749 = vmatprep.subr.mxu0 0.0
    %9750 = vmatpush1.msra.mxu0 0.0
    %9751 = vmatprep.subr.mxu0 0.0
    %9752 = vmatpush1.msra.mxu0 0.0
    %9753 = vmatprep.subr.mxu0 0.0
    %9754 = vmatpush1.msra.mxu0 0.0
    %9755 = vmatprep.subr.mxu0 0.0
    %9756 = vmatpush1.msra.mxu0 0.0
    %9757 = vmatprep.subr.mxu0 0.0
    %9758 = vmatpush1.msra.mxu0 0.0
    %9759 = vmatprep.subr.mxu0 0.0
    %9760 = vmatpush1.msra.mxu0 0.0
    %9761 = vmatprep.subr.mxu0 0.0
    %9762 = vmatpush1.msra.mxu0 0.0
    %9763 = vmatprep.subr.mxu0 0.0
    %9764 = vmatpush1.msra.mxu0 0.0
    %9765 = vmatprep.subr.mxu0 0.0
    %9766 = vmatpush1.msra.mxu0 0.0
    %9767 = vmatprep.subr.mxu0 0.0
    %9768 = vmatpush1.msra.mxu0 0.0
    %9769 = vmatprep.subr.mxu0 0.0
    %9770 = vmatpush1.msra.mxu0 0.0
    %9771 = vmatprep.subr.mxu0 0.0
    %9772 = vmatpush1.msra.mxu0 0.0
    %9773 = vmatprep.subr.mxu0 0.0
    %9774 = vmatpush1.msra.mxu0 0.0
    %9775 = vmatprep.subr.mxu0 0.0
    %9776 = vmatpush1.msra.mxu0 0.0
    %9777 = vmatprep.subr.mxu0 0.0
    %9778 = vmatpush1.msra.mxu0 0.0
    %9779 = vmatprep.mubr.f32.mxu0 0.0
    %9780 = vmatmul.mubr.f32.gmra.mrb[0].mxu0 %v9561
    %v9781 = vpop.f32.mrb[0].mxu0
    %v9782 = vadd.f32 %v9549, %v9781
    %v9783 = vpop.f32.mrb[0].mxu0
    %9784 = vmatprep.mubr.f32.mxu0 0.0
    %9785 = vmatmul.mubr.f32.gmra.mrb[0].mxu0 %v9563
    %v9786 = vpop.f32.mrb[0].mxu0
    %v9787 = vadd.f32 %v9550, %v9786
    %v9788 = vpop.f32.mrb[0].mxu0
    %9789 = vdwg.mxu0
    %9790 = vmatprep.subr.mxu0 0.0
    %9791 = vmatpush1.msra.mxu0 %v9328
    %9792 = vmatprep.subr.mxu0 0.0
    %9793 = vmatpush1.msra.mxu0 %v9329
    %9794 = vmatprep.subr.mxu0 0.0
    %9795 = vmatpush1.msra.mxu0 %v9330
    %9796 = vmatprep.subr.mxu0 0.0
    %9797 = vmatpush1.msra.mxu0 %v9331
    %9798 = vmatprep.subr.mxu0 0.0
    %9799 = vmatpush1.msra.mxu0 %v9332
    %9800 = vmatprep.subr.mxu0 0.0
    %9801 = vmatpush1.msra.mxu0 %v9333
    %9802 = vmatprep.subr.mxu0 0.0
    %9803 = vmatpush1.msra.mxu0 %v9334
    %9804 = vmatprep.subr.mxu0 0.0
    %9805 = vmatpush1.msra.mxu0 %v9335
    %9806 = vmatprep.subr.mxu0 0.0
    %9807 = vmatpush1.msra.mxu0 0.0
    %9808 = vmatprep.subr.mxu0 0.0
    %9809 = vmatpush1.msra.mxu0 0.0
    %9810 = vmatprep.subr.mxu0 0.0
    %9811 = vmatpush1.msra.mxu0 0.0
    %9812 = vmatprep.subr.mxu0 0.0
    %9813 = vmatpush1.msra.mxu0 0.0
    %9814 = vmatprep.subr.mxu0 0.0
    %9815 = vmatpush1.msra.mxu0 0.0
    %9816 = vmatprep.subr.mxu0 0.0
    %9817 = vmatpush1.msra.mxu0 0.0
    %9818 = vmatprep.subr.mxu0 0.0
    %9819 = vmatpush1.msra.mxu0 0.0
    %9820 = vmatprep.subr.mxu0 0.0
    %9821 = vmatpush1.msra.mxu0 0.0
    %9822 = vmatprep.subr.mxu0 0.0
    %9823 = vmatpush1.msra.mxu0 0.0
    %9824 = vmatprep.subr.mxu0 0.0
    %9825 = vmatpush1.msra.mxu0 0.0
    %9826 = vmatprep.subr.mxu0 0.0
    %9827 = vmatpush1.msra.mxu0 0.0
    %9828 = vmatprep.subr.mxu0 0.0
    %9829 = vmatpush1.msra.mxu0 0.0
    %9830 = vmatprep.subr.mxu0 0.0
    %9831 = vmatpush1.msra.mxu0 0.0
    %9832 = vmatprep.subr.mxu0 0.0
    %9833 = vmatpush1.msra.mxu0 0.0
    %9834 = vmatprep.subr.mxu0 0.0
    %9835 = vmatpush1.msra.mxu0 0.0
    %9836 = vmatprep.subr.mxu0 0.0
    %9837 = vmatpush1.msra.mxu0 0.0
    %9838 = vmatprep.subr.mxu0 0.0
    %9839 = vmatpush1.msra.mxu0 0.0
    %9840 = vmatprep.subr.mxu0 0.0
    %9841 = vmatpush1.msra.mxu0 0.0
    %9842 = vmatprep.subr.mxu0 0.0
    %9843 = vmatpush1.msra.mxu0 0.0
    %9844 = vmatprep.subr.mxu0 0.0
    %9845 = vmatpush1.msra.mxu0 0.0
    %9846 = vmatprep.subr.mxu0 0.0
    %9847 = vmatpush1.msra.mxu0 0.0
    %9848 = vmatprep.subr.mxu0 0.0
    %9849 = vmatpush1.msra.mxu0 0.0
    %9850 = vmatprep.subr.mxu0 0.0
    %9851 = vmatpush1.msra.mxu0 0.0
    %9852 = vmatprep.subr.mxu0 0.0
    %9853 = vmatpush1.msra.mxu0 0.0
    %9854 = vmatprep.mubr.f32.mxu0 0.0
    %9855 = vmatmul.mubr.f32.gmra.mrb[0].mxu0 %v9561
    %v9856 = vpop.f32.mrb[0].mxu0
    %v9857 = vadd.f32 %v9551, %v9856
    %v9858 = vpop.f32.mrb[0].mxu0
    %9859 = vmatprep.mubr.f32.mxu0 0.0
    %9860 = vmatmul.mubr.f32.gmra.mrb[0].mxu0 %v9563
    %v9861 = vpop.f32.mrb[0].mxu0
    %v9862 = vadd.f32 %v9552, %v9861
    %v9863 = vpop.f32.mrb[0].mxu0
    %9864 = vdwg.mxu0
    %9865 = vmatprep.subr.mxu0 0.0
    %9866 = vmatpush1.msra.mxu0 %v9336
    %9867 = vmatprep.subr.mxu0 0.0
    %9868 = vmatpush1.msra.mxu0 %v9337
    %9869 = vmatprep.subr.mxu0 0.0
    %9870 = vmatpush1.msra.mxu0 %v9338
    %9871 = vmatprep.subr.mxu0 0.0
    %9872 = vmatpush1.msra.mxu0 %v9339
    %9873 = vmatprep.subr.mxu0 0.0
    %9874 = vmatpush1.msra.mxu0 %v9340
    %9875 = vmatprep.subr.mxu0 0.0
    %9876 = vmatpush1.msra.mxu0 %v9341
    %9877 = vmatprep.subr.mxu0 0.0
    %9878 = vmatpush1.msra.mxu0 %v9342
    %9879 = vmatprep.subr.mxu0 0.0
    %9880 = vmatpush1.msra.mxu0 %v9343
    %9881 = vmatprep.subr.mxu0 0.0
    %9882 = vmatpush1.msra.mxu0 0.0
    %9883 = vmatprep.subr.mxu0 0.0
    %9884 = vmatpush1.msra.mxu0 0.0
    %9885 = vmatprep.subr.mxu0 0.0
    %9886 = vmatpush1.msra.mxu0 0.0
    %9887 = vmatprep.subr.mxu0 0.0
    %9888 = vmatpush1.msra.mxu0 0.0
    %9889 = vmatprep.subr.mxu0 0.0
    %9890 = vmatpush1.msra.mxu0 0.0
    %9891 = vmatprep.subr.mxu0 0.0
    %9892 = vmatpush1.msra.mxu0 0.0
    %9893 = vmatprep.subr.mxu0 0.0
    %9894 = vmatpush1.msra.mxu0 0.0
    %9895 = vmatprep.subr.mxu0 0.0
    %9896 = vmatpush1.msra.mxu0 0.0
    %9897 = vmatprep.subr.mxu0 0.0
    %9898 = vmatpush1.msra.mxu0 0.0
    %9899 = vmatprep.subr.mxu0 0.0
    %9900 = vmatpush1.msra.mxu0 0.0
    %9901 = vmatprep.subr.mxu0 0.0
    %9902 = vmatpush1.msra.mxu0 0.0
    %9903 = vmatprep.subr.mxu0 0.0
    %9904 = vmatpush1.msra.mxu0 0.0
    %9905 = vmatprep.subr.mxu0 0.0
    %9906 = vmatpush1.msra.mxu0 0.0
    %9907 = vmatprep.subr.mxu0 0.0
    %9908 = vmatpush1.msra.mxu0 0.0
    %9909 = vmatprep.subr.mxu0 0.0
    %9910 = vmatpush1.msra.mxu0 0.0
    %9911 = vmatprep.subr.mxu0 0.0
    %9912 = vmatpush1.msra.mxu0 0.0
    %9913 = vmatprep.subr.mxu0 0.0
    %9914 = vmatpush1.msra.mxu0 0.0
    %9915 = vmatprep.subr.mxu0 0.0
    %9916 = vmatpush1.msra.mxu0 0.0
    %9917 = vmatprep.subr.mxu0 0.0
    %9918 = vmatpush1.msra.mxu0 0.0
    %9919 = vmatprep.subr.mxu0 0.0
    %9920 = vmatpush1.msra.mxu0 0.0
    %9921 = vmatprep.subr.mxu0 0.0
    %9922 = vmatpush1.msra.mxu0 0.0
    %9923 = vmatprep.subr.mxu0 0.0
    %9924 = vmatpush1.msra.mxu0 0.0
    %9925 = vmatprep.subr.mxu0 0.0
    %9926 = vmatpush1.msra.mxu0 0.0
    %9927 = vmatprep.subr.mxu0 0.0
    %9928 = vmatpush1.msra.mxu0 0.0
    %9929 = vmatprep.mubr.f32.mxu0 0.0
    %9930 = vmatmul.mubr.f32.gmra.mrb[0].mxu0 %v9561
    %v9931 = vpop.f32.mrb[0].mxu0
    %v9932 = vadd.f32 %v9553, %v9931
    %v9933 = vpop.f32.mrb[0].mxu0
    %9934 = vmatprep.mubr.f32.mxu0 0.0
    %9935 = vmatmul.mubr.f32.gmra.mrb[0].mxu0 %v9563
    %v9936 = vpop.f32.mrb[0].mxu0
    %v9937 = vadd.f32 %v9554, %v9936
    %v9938 = vpop.f32.mrb[0].mxu0
    %9939 = vdwg.mxu0
    %9940 = vmatprep.subr.mxu0 0.0
    %9941 = vmatpush1.msra.mxu0 %v9344
    %9942 = vmatprep.subr.mxu0 0.0
    %9943 = vmatpush1.msra.mxu0 %v9345
    %9944 = vmatprep.subr.mxu0 0.0
    %9945 = vmatpush1.msra.mxu0 %v9346
    %9946 = vmatprep.subr.mxu0 0.0
    %9947 = vmatpush1.msra.mxu0 %v9347
    %9948 = vmatprep.subr.mxu0 0.0
    %9949 = vmatpush1.msra.mxu0 %v9348
    %9950 = vmatprep.subr.mxu0 0.0
    %9951 = vmatpush1.msra.mxu0 %v9349
    %9952 = vmatprep.subr.mxu0 0.0
    %9953 = vmatpush1.msra.mxu0 %v9350
    %9954 = vmatprep.subr.mxu0 0.0
    %9955 = vmatpush1.msra.mxu0 %v9351
    %9956 = vmatprep.subr.mxu0 0.0
    %9957 = vmatpush1.msra.mxu0 0.0
    %9958 = vmatprep.subr.mxu0 0.0
    %9959 = vmatpush1.msra.mxu0 0.0
    %9960 = vmatprep.subr.mxu0 0.0
    %9961 = vmatpush1.msra.mxu0 0.0
    %9962 = vmatprep.subr.mxu0 0.0
    %9963 = vmatpush1.msra.mxu0 0.0
    %9964 = vmatprep.subr.mxu0 0.0
    %9965 = vmatpush1.msra.mxu0 0.0
    %9966 = vmatprep.subr.mxu0 0.0
    %9967 = vmatpush1.msra.mxu0 0.0
    %9968 = vmatprep.subr.mxu0 0.0
    %9969 = vmatpush1.msra.mxu0 0.0
    %9970 = vmatprep.subr.mxu0 0.0
    %9971 = vmatpush1.msra.mxu0 0.0
    %9972 = vmatprep.subr.mxu0 0.0
    %9973 = vmatpush1.msra.mxu0 0.0
    %9974 = vmatprep.subr.mxu0 0.0
    %9975 = vmatpush1.msra.mxu0 0.0
    %9976 = vmatprep.subr.mxu0 0.0
    %9977 = vmatpush1.msra.mxu0 0.0
    %9978 = vmatprep.subr.mxu0 0.0
    %9979 = vmatpush1.msra.mxu0 0.0
    %9980 = vmatprep.subr.mxu0 0.0
    %9981 = vmatpush1.msra.mxu0 0.0
    %9982 = vmatprep.subr.mxu0 0.0
    %9983 = vmatpush1.msra.mxu0 0.0
    %9984 = vmatprep.subr.mxu0 0.0
    %9985 = vmatpush1.msra.mxu0 0.0
    %9986 = vmatprep.subr.mxu0 0.0
    %9987 = vmatpush1.msra.mxu0 0.0
    %9988 = vmatprep.subr.mxu0 0.0
    %9989 = vmatpush1.msra.mxu0 0.0
    %9990 = vmatprep.subr.mxu0 0.0
    %9991 = vmatpush1.msra.mxu0 0.0
    %9992 = vmatprep.subr.mxu0 0.0
    %9993 = vmatpush1.msra.mxu0 0.0
    %9994 = vmatprep.subr.mxu0 0.0
    %9995 = vmatpush1.msra.mxu0 0.0
    %9996 = vmatprep.subr.mxu0 0.0
    %9997 = vmatpush1.msra.mxu0 0.0
    %9998 = vmatprep.subr.mxu0 0.0
    %9999 = vmatpush1.msra.mxu0 0.0
    %10000 = vmatprep.subr.mxu0 0.0
    %10001 = vmatpush1.msra.mxu0 0.0
    %10002 = vmatprep.subr.mxu0 0.0
    %10003 = vmatpush1.msra.mxu0 0.0
    %10004 = vmatprep.mubr.f32.mxu0 0.0
    %10005 = vmatmul.mubr.f32.gmra.mrb[0].mxu0 %v9561
    %v10006 = vpop.f32.mrb[0].mxu0
    %v10007 = vadd.f32 %v9555, %v10006
    %v10008 = vpop.f32.mrb[0].mxu0
    %10009 = vmatprep.mubr.f32.mxu0 0.0
    %10010 = vmatmul.mubr.f32.gmra.mrb[0].mxu0 %v9563
    %v10011 = vpop.f32.mrb[0].mxu0
    %v10012 = vadd.f32 %v9556, %v10011
    %v10013 = vpop.f32.mrb[0].mxu0
    %10014 = vdwg.mxu0
    %10015 = vmatprep.subr.mxu0 0.0
    %10016 = vmatpush1.msra.mxu0 %v9352
    %10017 = vmatprep.subr.mxu0 0.0
    %10018 = vmatpush1.msra.mxu0 %v9353
    %10019 = vmatprep.subr.mxu0 0.0
    %10020 = vmatpush1.msra.mxu0 %v9354
    %10021 = vmatprep.subr.mxu0 0.0
    %10022 = vmatpush1.msra.mxu0 %v9355
    %10023 = vmatprep.subr.mxu0 0.0
    %10024 = vmatpush1.msra.mxu0 %v9356
    %10025 = vmatprep.subr.mxu0 0.0
    %10026 = vmatpush1.msra.mxu0 %v9357
    %10027 = vmatprep.subr.mxu0 0.0
    %10028 = vmatpush1.msra.mxu0 %v9358
    %10029 = vmatprep.subr.mxu0 0.0
    %10030 = vmatpush1.msra.mxu0 %v9359
    %10031 = vmatprep.subr.mxu0 0.0
    %10032 = vmatpush1.msra.mxu0 0.0
    %10033 = vmatprep.subr.mxu0 0.0
    %10034 = vmatpush1.msra.mxu0 0.0
    %10035 = vmatprep.subr.mxu0 0.0
    %10036 = vmatpush1.msra.mxu0 0.0
    %10037 = vmatprep.subr.mxu0 0.0
    %10038 = vmatpush1.msra.mxu0 0.0
    %10039 = vmatprep.subr.mxu0 0.0
    %10040 = vmatpush1.msra.mxu0 0.0
    %10041 = vmatprep.subr.mxu0 0.0
    %10042 = vmatpush1.msra.mxu0 0.0
    %10043 = vmatprep.subr.mxu0 0.0
    %10044 = vmatpush1.msra.mxu0 0.0
    %10045 = vmatprep.subr.mxu0 0.0
    %10046 = vmatpush1.msra.mxu0 0.0
    %10047 = vmatprep.subr.mxu0 0.0
    %10048 = vmatpush1.msra.mxu0 0.0
    %10049 = vmatprep.subr.mxu0 0.0
    %10050 = vmatpush1.msra.mxu0 0.0
    %10051 = vmatprep.subr.mxu0 0.0
    %10052 = vmatpush1.msra.mxu0 0.0
    %10053 = vmatprep.subr.mxu0 0.0
    %10054 = vmatpush1.msra.mxu0 0.0
    %10055 = vmatprep.subr.mxu0 0.0
    %10056 = vmatpush1.msra.mxu0 0.0
    %10057 = vmatprep.subr.mxu0 0.0
    %10058 = vmatpush1.msra.mxu0 0.0
    %10059 = vmatprep.subr.mxu0 0.0
    %10060 = vmatpush1.msra.mxu0 0.0
    %10061 = vmatprep.subr.mxu0 0.0
    %10062 = vmatpush1.msra.mxu0 0.0
    %10063 = vmatprep.subr.mxu0 0.0
    %10064 = vmatpush1.msra.mxu0 0.0
    %10065 = vmatprep.subr.mxu0 0.0
    %10066 = vmatpush1.msra.mxu0 0.0
    %10067 = vmatprep.subr.mxu0 0.0
    %10068 = vmatpush1.msra.mxu0 0.0
    %10069 = vmatprep.subr.mxu0 0.0
    %10070 = vmatpush1.msra.mxu0 0.0
    %10071 = vmatprep.subr.mxu0 0.0
    %10072 = vmatpush1.msra.mxu0 0.0
    %10073 = vmatprep.subr.mxu0 0.0
    %10074 = vmatpush1.msra.mxu0 0.0
    %10075 = vmatprep.subr.mxu0 0.0
    %10076 = vmatpush1.msra.mxu0 0.0
    %10077 = vmatprep.subr.mxu0 0.0
    %10078 = vmatpush1.msra.mxu0 0.0
    %10079 = vmatprep.mubr.f32.mxu0 0.0
    %10080 = vmatmul.mubr.f32.gmra.mrb[0].mxu0 %v9561
    %v10081 = vpop.f32.mrb[0].mxu0
    %v10082 = vadd.f32 %v9557, %v10081
    %v10083 = vpop.f32.mrb[0].mxu0
    %10084 = vmatprep.mubr.f32.mxu0 0.0
    %10085 = vmatmul.mubr.f32.gmra.mrb[0].mxu0 %v9563
    %v10086 = vpop.f32.mrb[0].mxu0
    %v10087 = vadd.f32 %v9558, %v10086
    %v10088 = vpop.f32.mrb[0].mxu0
    %10089 = vdwg.mxu0
    %10090 = vmatprep.subr.mxu0 0.0
    %10091 = vmatpush1.msra.mxu0 %v9360
    %10092 = vmatprep.subr.mxu0 0.0
    %10093 = vmatpush1.msra.mxu0 %v9361
    %10094 = vmatprep.subr.mxu0 0.0
    %10095 = vmatpush1.msra.mxu0 %v9362
    %10096 = vmatprep.subr.mxu0 0.0
    %10097 = vmatpush1.msra.mxu0 %v9363
    %10098 = vmatprep.subr.mxu0 0.0
    %10099 = vmatpush1.msra.mxu0 %v9364
    %10100 = vmatprep.subr.mxu0 0.0
    %10101 = vmatpush1.msra.mxu0 %v9365
    %10102 = vmatprep.subr.mxu0 0.0
    %10103 = vmatpush1.msra.mxu0 %v9366
    %10104 = vmatprep.subr.mxu0 0.0
    %10105 = vmatpush1.msra.mxu0 %v9367
    %10106 = vmatprep.subr.mxu0 0.0
    %10107 = vmatpush1.msra.mxu0 0.0
    %10108 = vmatprep.subr.mxu0 0.0
    %10109 = vmatpush1.msra.mxu0 0.0
    %10110 = vmatprep.subr.mxu0 0.0
    %10111 = vmatpush1.msra.mxu0 0.0
    %10112 = vmatprep.subr.mxu0 0.0
    %10113 = vmatpush1.msra.mxu0 0.0
    %10114 = vmatprep.subr.mxu0 0.0
    %10115 = vmatpush1.msra.mxu0 0.0
    %10116 = vmatprep.subr.mxu0 0.0
    %10117 = vmatpush1.msra.mxu0 0.0
    %10118 = vmatprep.subr.mxu0 0.0
    %10119 = vmatpush1.msra.mxu0 0.0
    %10120 = vmatprep.subr.mxu0 0.0
    %10121 = vmatpush1.msra.mxu0 0.0
    %10122 = vmatprep.subr.mxu0 0.0
    %10123 = vmatpush1.msra.mxu0 0.0
    %10124 = vmatprep.subr.mxu0 0.0
    %10125 = vmatpush1.msra.mxu0 0.0
    %10126 = vmatprep.subr.mxu0 0.0
    %10127 = vmatpush1.msra.mxu0 0.0
    %10128 = vmatprep.subr.mxu0 0.0
    %10129 = vmatpush1.msra.mxu0 0.0
    %10130 = vmatprep.subr.mxu0 0.0
    %10131 = vmatpush1.msra.mxu0 0.0
    %10132 = vmatprep.subr.mxu0 0.0
    %10133 = vmatpush1.msra.mxu0 0.0
    %10134 = vmatprep.subr.mxu0 0.0
    %10135 = vmatpush1.msra.mxu0 0.0
    %10136 = vmatprep.subr.mxu0 0.0
    %10137 = vmatpush1.msra.mxu0 0.0
    %10138 = vmatprep.subr.mxu0 0.0
    %10139 = vmatpush1.msra.mxu0 0.0
    %10140 = vmatprep.subr.mxu0 0.0
    %10141 = vmatpush1.msra.mxu0 0.0
    %10142 = vmatprep.subr.mxu0 0.0
    %10143 = vmatpush1.msra.mxu0 0.0
    %10144 = vmatprep.subr.mxu0 0.0
    %10145 = vmatpush1.msra.mxu0 0.0
    %10146 = vmatprep.subr.mxu0 0.0
    %10147 = vmatpush1.msra.mxu0 0.0
    %10148 = vmatprep.subr.mxu0 0.0
    %10149 = vmatpush1.msra.mxu0 0.0
    %10150 = vmatprep.subr.mxu0 0.0
    %10151 = vmatpush1.msra.mxu0 0.0
    %10152 = vmatprep.subr.mxu0 0.0
    %10153 = vmatpush1.msra.mxu0 0.0
    %10154 = vmatprep.mubr.f32.mxu0 0.0
    %10155 = vmatmul.mubr.f32.gmra.mrb[0].mxu0 %v9561
    %v10156 = vpop.f32.mrb[0].mxu0
    %v10157 = vadd.f32 %v9559, %v10156
    %v10158 = vpop.f32.mrb[0].mxu0
    %10159 = vmatprep.mubr.f32.mxu0 0.0
    %10160 = vmatmul.mubr.f32.gmra.mrb[0].mxu0 %v9563
    %v10161 = vpop.f32.mrb[0].mxu0
    %v10162 = vadd.f32 %v9560, %v10161
    %v10163 = vpop.f32.mrb[0].mxu0
    %10164 = vdwg.mxu0
    %v10165 = vsel %vm9368, %v9632, inf
    %v10166 = vsel %vm9368, %v9637, inf
    %v10167 = vmin.f32 %v10165, %v10166
    %v10168 = vrot.slane %v10167, 4
    %v10169 = vmin.f32 %v10167, %v10168
    %v10170 = vrot.slane %v10169, 2
    %v10171 = vmin.f32 %v10169, %v10170
    %v10172 = vrot.slane %v10171, 1
    %v10173 = vmin.f32 %v10171, %v10172
    %v10174 = vsel %vm9368, %v9707, inf
    %v10175 = vsel %vm9368, %v9712, inf
    %v10176 = vmin.f32 %v10174, %v10175
    %v10177 = vrot.slane %v10176, 4
    %v10178 = vmin.f32 %v10176, %v10177
    %v10179 = vrot.slane %v10178, 2
    %v10180 = vmin.f32 %v10178, %v10179
    %v10181 = vrot.slane %v10180, 1
    %v10182 = vmin.f32 %v10180, %v10181
    %v10183 = vsel %vm9368, %v9782, inf
    %v10184 = vsel %vm9368, %v9787, inf
    %v10185 = vmin.f32 %v10183, %v10184
    %v10186 = vrot.slane %v10185, 4
    %v10187 = vmin.f32 %v10185, %v10186
    %v10188 = vrot.slane %v10187, 2
    %v10189 = vmin.f32 %v10187, %v10188
    %v10190 = vrot.slane %v10189, 1
    %v10191 = vmin.f32 %v10189, %v10190
    %v10192 = vsel %vm9368, %v9857, inf
    %v10193 = vsel %vm9368, %v9862, inf
    %v10194 = vmin.f32 %v10192, %v10193
    %v10195 = vrot.slane %v10194, 4
    %v10196 = vmin.f32 %v10194, %v10195
    %v10197 = vrot.slane %v10196, 2
    %v10198 = vmin.f32 %v10196, %v10197
    %v10199 = vrot.slane %v10198, 1
    %v10200 = vmin.f32 %v10198, %v10199
    %v10201 = vsel %vm9368, %v9932, inf
    %v10202 = vsel %vm9368, %v9937, inf
    %v10203 = vmin.f32 %v10201, %v10202
    %v10204 = vrot.slane %v10203, 4
    %v10205 = vmin.f32 %v10203, %v10204
    %v10206 = vrot.slane %v10205, 2
    %v10207 = vmin.f32 %v10205, %v10206
    %v10208 = vrot.slane %v10207, 1
    %v10209 = vmin.f32 %v10207, %v10208
    %v10210 = vsel %vm9368, %v10007, inf
    %v10211 = vsel %vm9368, %v10012, inf
    %v10212 = vmin.f32 %v10210, %v10211
    %v10213 = vrot.slane %v10212, 4
    %v10214 = vmin.f32 %v10212, %v10213
    %v10215 = vrot.slane %v10214, 2
    %v10216 = vmin.f32 %v10214, %v10215
    %v10217 = vrot.slane %v10216, 1
    %v10218 = vmin.f32 %v10216, %v10217
    %v10219 = vsel %vm9368, %v10082, inf
    %v10220 = vsel %vm9368, %v10087, inf
    %v10221 = vmin.f32 %v10219, %v10220
    %v10222 = vrot.slane %v10221, 4
    %v10223 = vmin.f32 %v10221, %v10222
    %v10224 = vrot.slane %v10223, 2
    %v10225 = vmin.f32 %v10223, %v10224
    %v10226 = vrot.slane %v10225, 1
    %v10227 = vmin.f32 %v10225, %v10226
    %v10228 = vsel %vm9368, %v10157, inf
    %v10229 = vsel %vm9368, %v10162, inf
    %v10230 = vmin.f32 %v10228, %v10229
    %v10231 = vrot.slane %v10230, 4
    %v10232 = vmin.f32 %v10230, %v10231
    %v10233 = vrot.slane %v10232, 2
    %v10234 = vmin.f32 %v10232, %v10233
    %v10235 = vrot.slane %v10234, 1
    %v10236 = vmin.f32 %v10234, %v10235
    %v10237 = vsel %vm9368, %v9632, -inf
    %v10238 = vsel %vm9368, %v9637, -inf
    %v10239 = vmax.f32 %v10237, %v10238
    %v10240 = vrot.slane %v10239, 4
    %v10241 = vmax.f32 %v10239, %v10240
    %v10242 = vrot.slane %v10241, 2
    %v10243 = vmax.f32 %v10241, %v10242
    %v10244 = vrot.slane %v10243, 1
    %v10245 = vmax.f32 %v10243, %v10244
    %v10246 = vsel %vm9368, %v9707, -inf
    %v10247 = vsel %vm9368, %v9712, -inf
    %v10248 = vmax.f32 %v10246, %v10247
    %v10249 = vrot.slane %v10248, 4
    %v10250 = vmax.f32 %v10248, %v10249
    %v10251 = vrot.slane %v10250, 2
    %v10252 = vmax.f32 %v10250, %v10251
    %v10253 = vrot.slane %v10252, 1
    %v10254 = vmax.f32 %v10252, %v10253
    %v10255 = vsel %vm9368, %v9782, -inf
    %v10256 = vsel %vm9368, %v9787, -inf
    %v10257 = vmax.f32 %v10255, %v10256
    %v10258 = vrot.slane %v10257, 4
    %v10259 = vmax.f32 %v10257, %v10258
    %v10260 = vrot.slane %v10259, 2
    %v10261 = vmax.f32 %v10259, %v10260
    %v10262 = vrot.slane %v10261, 1
    %v10263 = vmax.f32 %v10261, %v10262
    %v10264 = vsel %vm9368, %v9857, -inf
    %v10265 = vsel %vm9368, %v9862, -inf
    %v10266 = vmax.f32 %v10264, %v10265
    %v10267 = vrot.slane %v10266, 4
    %v10268 = vmax.f32 %v10266, %v10267
    %v10269 = vrot.slane %v10268, 2
    %v10270 = vmax.f32 %v10268, %v10269
    %v10271 = vrot.slane %v10270, 1
    %v10272 = vmax.f32 %v10270, %v10271
    %v10273 = vsel %vm9368, %v9932, -inf
    %v10274 = vsel %vm9368, %v9937, -inf
    %v10275 = vmax.f32 %v10273, %v10274
    %v10276 = vrot.slane %v10275, 4
    %v10277 = vmax.f32 %v10275, %v10276
    %v10278 = vrot.slane %v10277, 2
    %v10279 = vmax.f32 %v10277, %v10278
    %v10280 = vrot.slane %v10279, 1
    %v10281 = vmax.f32 %v10279, %v10280
    %v10282 = vsel %vm9368, %v10007, -inf
    %v10283 = vsel %vm9368, %v10012, -inf
    %v10284 = vmax.f32 %v10282, %v10283
    %v10285 = vrot.slane %v10284, 4
    %v10286 = vmax.f32 %v10284, %v10285
    %v10287 = vrot.slane %v10286, 2
    %v10288 = vmax.f32 %v10286, %v10287
    %v10289 = vrot.slane %v10288, 1
    %v10290 = vmax.f32 %v10288, %v10289
    %v10291 = vsel %vm9368, %v10082, -inf
    %v10292 = vsel %vm9368, %v10087, -inf
    %v10293 = vmax.f32 %v10291, %v10292
    %v10294 = vrot.slane %v10293, 4
    %v10295 = vmax.f32 %v10293, %v10294
    %v10296 = vrot.slane %v10295, 2
    %v10297 = vmax.f32 %v10295, %v10296
    %v10298 = vrot.slane %v10297, 1
    %v10299 = vmax.f32 %v10297, %v10298
    %v10300 = vsel %vm9368, %v10157, -inf
    %v10301 = vsel %vm9368, %v10162, -inf
    %v10302 = vmax.f32 %v10300, %v10301
    %v10303 = vrot.slane %v10302, 4
    %v10304 = vmax.f32 %v10302, %v10303
    %v10305 = vrot.slane %v10304, 2
    %v10306 = vmax.f32 %v10304, %v10305
    %v10307 = vrot.slane %v10306, 1
    %v10308 = vmax.f32 %v10306, %v10307
    %v10309 = vsub.f32 %v9632, %v10173
    %v10310 = vsub.f32 %v9637, %v10173
    %v10311 = vsub.f32 %v9707, %v10182
    %v10312 = vsub.f32 %v9712, %v10182
    %v10313 = vsub.f32 %v9782, %v10191
    %v10314 = vsub.f32 %v9787, %v10191
    %v10315 = vsub.f32 %v9857, %v10200
    %v10316 = vsub.f32 %v9862, %v10200
    %v10317 = vsub.f32 %v9932, %v10209
    %v10318 = vsub.f32 %v9937, %v10209
    %v10319 = vsub.f32 %v10007, %v10218
    %v10320 = vsub.f32 %v10012, %v10218
    %v10321 = vsub.f32 %v10082, %v10227
    %v10322 = vsub.f32 %v10087, %v10227
    %v10323 = vsub.f32 %v10157, %v10236
    %v10324 = vsub.f32 %v10162, %v10236
    %v10325 = vsub.f32 %v10245, %v10173
    %v10326 = vsub.f32 %v10254, %v10182
    %v10327 = vsub.f32 %v10263, %v10191
    %v10328 = vsub.f32 %v10272, %v10200
    %v10329 = vsub.f32 %v10281, %v10209
    %v10330 = vsub.f32 %v10290, %v10218
    %v10331 = vsub.f32 %v10299, %v10227
    %v10332 = vsub.f32 %v10308, %v10236
    %v10333 = vrcp.pop %v10325
    %v10334 = vmul.f32 %v10309, %v10333
    %v10335 = vmul.f32 %v10310, %v10333
    %v10336 = vrcp.pop %v10326
    %v10337 = vmul.f32 %v10311, %v10336
    %v10338 = vmul.f32 %v10312, %v10336
    %v10339 = vrcp.pop %v10327
    %v10340 = vmul.f32 %v10313, %v10339
    %v10341 = vmul.f32 %v10314, %v10339
    %v10342 = vrcp.pop %v10328
    %v10343 = vmul.f32 %v10315, %v10342
    %v10344 = vmul.f32 %v10316, %v10342
    %v10345 = vrcp.pop %v10329
    %v10346 = vmul.f32 %v10317, %v10345
    %v10347 = vmul.f32 %v10318, %v10345
    %v10348 = vrcp.pop %v10330
    %v10349 = vmul.f32 %v10319, %v10348
    %v10350 = vmul.f32 %v10320, %v10348
    %v10351 = vrcp.pop %v10331
    %v10352 = vmul.f32 %v10321, %v10351
    %v10353 = vmul.f32 %v10322, %v10351
    %v10354 = vrcp.pop %v10332
    %v10355 = vmul.f32 %v10323, %v10354
    %v10356 = vmul.f32 %v10324, %v10354
    %10357 = vst.msk [vmem:[%s4] sm:$0xff] %vm9368, %v10334
    %10358 = vst.msk [vmem:[%s4 + $0x8] sm:$0xff] %vm9368, %v10335
    %10359 = vst.msk [vmem:[%s4 + $0x10] sm:$0xff] %vm9368, %v10337
    %10360 = vst.msk [vmem:[%s4 + $0x18] sm:$0xff] %vm9368, %v10338
    %10361 = vst.msk [vmem:[%s4 + $0x20] sm:$0xff] %vm9368, %v10340
    %10362 = vst.msk [vmem:[%s4 + $0x28] sm:$0xff] %vm9368, %v10341
    %10363 = vst.msk [vmem:[%s4 + $0x30] sm:$0xff] %vm9368, %v10343
    %10364 = vst.msk [vmem:[%s4 + $0x38] sm:$0xff] %vm9368, %v10344
    %10365 = vst.msk [vmem:[%s4 + $0x40] sm:$0xff] %vm9368, %v10346
    %10366 = vst.msk [vmem:[%s4 + $0x48] sm:$0xff] %vm9368, %v10347
    %10367 = vst.msk [vmem:[%s4 + $0x50] sm:$0xff] %vm9368, %v10349
    %10368 = vst.msk [vmem:[%s4 + $0x58] sm:$0xff] %vm9368, %v10350
    %10369 = vst.msk [vmem:[%s4 + $0x60] sm:$0xff] %vm9368, %v10352
    %10370 = vst.msk [vmem:[%s4 + $0x68] sm:$0xff] %vm9368, %v10353
    %10371 = vst.msk [vmem:[%s4 + $0x70] sm:$0xff] %vm9368, %v10355
    %10372 = vst.msk [vmem:[%s4 + $0x78] sm:$0xff] %vm9368, %v10356
    // Predicated region
    $region22: #{tpu_custom_call.1} parent=1 // pred_check
      _
    $region23: #{tpu_custom_call.1} parent=1 // pred_check_branch
      %10374 = sbr.rel (0) target = $region25
    $region24: #{tpu_custom_call.1} parent=1 // pred_region
      _
    $region25: #{tpu_custom_call.1} parent=1 // pred_fallthru
      _
    // Predicated region
    $region26: #{tpu_custom_call.1} parent=1 // pred_check
      _
    $region27: #{tpu_custom_call.1} parent=1 // pred_check_branch
      %10376 = sbr.rel (0) target = $region29
    $region28: #{tpu_custom_call.1} parent=1 // pred_region
      _
    $region29: #{tpu_custom_call.1} parent=1 // pred_fallthru
      _
    %10377 = vsyncpa [#allocation3], 1

</llo_original>
